<compile_context>
chip_gen: v6e
topology: v6e:2x2x1
jax: 0.10.0
libtpu: 0.0.40
codegen_flags: <defaults>
</compile_context>

<pallas_src>
import functools
import math

import numpy as np

import jax
import jax.numpy as jnp
from jax.experimental import pallas as pl
from jax.experimental.pallas import tpu as pltpu


# ----------------------------- small helpers --------------------------------

_VMEM_LIMIT = 32 * 1024 * 1024   # safe on v5e/v6e (128 MiB) and v7x (64 MiB)
_KSZ = 5                          # conv kernel size
_NSHIFT = 2 + _KSZ - 1            # 6 distinct row shifts  vr = pool_di + tap_i


def _round_up(x, m):
    return ((x + m - 1) // m) * m


def _choose_m_tile(m, max_tile):
    """Row tile (multiple of 16) and padded M.  Guarantees >= 2 grid steps
    whenever M allows it so the "parallel" M axis spans both v7x TensorCores."""
    g = 16
    tm = min(max_tile, _round_up(m, g))
    if m > g:
        tm = min(tm, _round_up((m + 1) // 2, g))
    mp = _round_up(m, tm)
    return tm, mp


def _pad_rows(a, rows):
    if a.shape[0] == rows:
        return a
    return jnp.pad(a, ((0, rows - a.shape[0]), (0, 0)))


# ----------------------------- Pallas kernels -------------------------------

def _conv_banded_kernel(lhs_ref, w_ref, b_ref, o_ref, *, n_group):
    """Fused Conv(5x5) + bias + ReLU + MaxPool2d(2) as one banded matmul.

    lhs: (TM, K) bf16 row-shifted feature map; w: (K, 4*n_group) bf16 banded
    weight whose 4 column groups are the 4 pool corners; b: (1, n_group) f32.
    out = relu(max_corner(lhs @ w) + b)  -> (TM, n_group).
    """
    acc = jnp.dot(lhs_ref[...], w_ref[...], preferred_element_type=jnp.float32)
    # Max over the 4 pool-corner column groups first (bias is corner-invariant
    # and ReLU is monotone), then one bias add + one ReLU.
    m = jnp.maximum(
        jnp.maximum(acc[:, 0 * n_group:1 * n_group], acc[:, 1 * n_group:2 * n_group]),
        jnp.maximum(acc[:, 2 * n_group:3 * n_group], acc[:, 3 * n_group:4 * n_group]))
    o_ref[...] = jnp.maximum(m + b_ref[...], 0.0).astype(o_ref.dtype)


def _fc_head_kernel(x_ref, w1_ref, b1_ref, w2_ref, b2_ref, o_ref, *, n_valid):
    """Fused Linear(->500) + ReLU + Linear(->10) + log_softmax (f32 epilogue)."""
    h = jnp.dot(x_ref[...], w1_ref[...], preferred_element_type=jnp.float32)
    h = jnp.maximum(h + b1_ref[...], 0.0)
    logits = jnp.dot(h.astype(w2_ref.dtype), w2_ref[...],
                     preferred_element_type=jnp.float32)
    logits = logits + b2_ref[...]
    # Mask padded output columns so they don't contribute to the normalizer.
    col = jax.lax.broadcasted_iota(jnp.int32, logits.shape, 1)
    logits = jnp.where(col < n_valid, logits, jnp.float32(-1e30))
    m = jnp.max(logits, axis=-1, keepdims=True)
    e = jnp.exp(logits - m)
    lse = m + jnp.log(jnp.sum(e, axis=-1, keepdims=True))
    o_ref[...] = (logits - lse).astype(o_ref.dtype)


# ------------------------------ wrappers -------------------------------------

def conv_banded(lhs, w, b_row, *, max_tile):
    """lhs: (M, K) bf16; w: (K, 4*n_group) bf16; b_row: (1, n_group) f32."""
    m, k = lhs.shape
    n4 = w.shape[1]
    n_group = n4 // 4
    tm, mp = _choose_m_tile(m, max_tile)
    lhs_p = _pad_rows(lhs, mp)

    out = pl.pallas_call(
        functools.partial(_conv_banded_kernel, n_group=n_group),
        out_shape=jax.ShapeDtypeStruct((mp, n_group), jnp.bfloat16),
        grid=(mp // tm,),
        in_specs=[
            pl.BlockSpec((tm, k), lambda i: (i, 0)),
            pl.BlockSpec((k, n4), lambda i: (0, 0)),       # VMEM-resident weight
            pl.BlockSpec((1, n_group), lambda i: (0, 0)),
        ],
        out_specs=pl.BlockSpec((tm, n_group), lambda i: (i, 0)),
        compiler_params=pltpu.CompilerParams(
            dimension_semantics=("parallel",), vmem_limit_bytes=_VMEM_LIMIT),
        cost_estimate=pl.CostEstimate(
            flops=2 * mp * k * n4, transcendentals=0,
            bytes_accessed=mp * k * 2 + k * n4 * 2 + mp * n_group * 2),
    )(lhs_p, w, b_row)
    return out[:m]


def fc_head(x, w1, b1, w2, b2, *, n_valid, max_tile):
    """x: (M, K) bf16 -> log_softmax(relu(x@w1+b1)@w2+b2) as (M, N2) f32."""
    m, k = x.shape
    n1 = w1.shape[1]
    n2 = w2.shape[1]
    tm, mp = _choose_m_tile(m, max_tile)
    xp = _pad_rows(x, mp)

    out = pl.pallas_call(
        functools.partial(_fc_head_kernel, n_valid=n_valid),
        out_shape=jax.ShapeDtypeStruct((mp, n2), jnp.float32),
        grid=(mp // tm,),
        in_specs=[
            pl.BlockSpec((tm, k), lambda i: (i, 0)),
            pl.BlockSpec((k, n1), lambda i: (0, 0)),
            pl.BlockSpec((1, n1), lambda i: (0, 0)),
            pl.BlockSpec((n1, n2), lambda i: (0, 0)),
            pl.BlockSpec((1, n2), lambda i: (0, 0)),
        ],
        out_specs=pl.BlockSpec((tm, n2), lambda i: (i, 0)),
        compiler_params=pltpu.CompilerParams(
            dimension_semantics=("parallel",), vmem_limit_bytes=_VMEM_LIMIT),
        cost_estimate=pl.CostEstimate(
            flops=2 * mp * (k * n1 + n1 * n2), transcendentals=mp * n2,
            bytes_accessed=mp * k * 2 + (k * n1 + n1 * n2) * 2 + mp * n2 * 4),
    )(xp, w1, b1, w2, b2)
    return out[:m]


def _build_shift_lhs(fmap, ph):
    """fmap: (B, Hin, Win*Cin) bf16 (channels minor) -> banded-conv LHS
    (B*ph, _NSHIFT*Win*Cin): row (b, p), column (vr, wsrc, ci) holds
    fmap[b, 2*p + vr, wsrc, ci]."""
    b, _, wc = fmap.shape
    pieces = [fmap[:, vr: vr + 2 * ph - 1: 2, :] for vr in range(_NSHIFT)]
    lhs = jnp.concatenate(pieces, axis=-1)          # (B, ph, _NSHIFT*Win*Cin)
    return lhs.reshape(b * ph, _NSHIFT * wc)


# ------------------------- offline weight re-layout --------------------------

def _band_weight_and_bias(w, b, pw_count, c_out_pad):
    """Fold the 5x5 taps, the C_in contraction, the output-width positions and
    the 4 pool corners of one conv+pool layer into a banded matmul weight.

      rows    k = (vr*Win + wsrc)*C_in + ci          (vr = pool_di + tap_i)
      columns n = (corner*PW + pw)*c_out_pad + co    (corner = di*2 + dj)
      band[k, n] = w[co, ci, vr-di, wsrc-2*pw-dj]    (when tap indices valid)

    so (LHS @ band)[(b,ph), (corner,pw,co)] = conv(x)[b, 2ph+di, 2pw+dj, co]
    without bias; the kernel epilogue takes the max over the 4 corner column
    groups, adds bias and applies ReLU.
    """
    w_np = np.asarray(w, dtype=np.float32)            # (c_out, c_in, 5, 5)
    b_np = np.asarray(b, dtype=np.float32)
    c_out, c_in = w_np.shape[0], w_np.shape[1]
    win = 2 * pw_count + _KSZ - 1
    band = np.zeros((_NSHIFT * win * c_in, 4 * pw_count * c_out_pad), np.float32)
    for di in range(2):
        for dj in range(2):
            corner = di * 2 + dj
            for i in range(_KSZ):
                for j in range(_KSZ):
                    tap = w_np[:, :, i, j].T           # (c_in, c_out)
                    for pw in range(pw_count):
                        k0 = ((di + i) * win + (2 * pw + dj + j)) * c_in
                        n0 = (corner * pw_count + pw) * c_out_pad
                        band[k0:k0 + c_in, n0:n0 + c_out] += tap
    bias = np.zeros((1, pw_count * c_out_pad), np.float32)
    for pw in range(pw_count):
        bias[0, pw * c_out_pad: pw * c_out_pad + c_out] = b_np
    return jnp.asarray(band, dtype=jnp.bfloat16), jnp.asarray(bias)


def _fc_weights(params, c_out_pad=64, ph_count=4, pw_count=4, n1_pad=512, n2_pad=128):
    """fc1/fc2 in the layout the fused head consumes.  fc1 rows are permuted so
    they consume conv2's (ph, pw, co_pad) output directly (zero rows for the
    padded channels), folding the PyTorch NCHW flatten into the weight."""
    fc1 = np.asarray(params["fc1_w"], np.float32)      # (500, 800), in = co*16+ph*4+pw
    fc2 = np.asarray(params["fc2_w"], np.float32)      # (10, 500)
    n1, n2 = fc1.shape[0], fc2.shape[0]
    c_out = 50
    w1 = np.zeros((ph_count * pw_count * c_out_pad, n1_pad), np.float32)
    for ph in range(ph_count):
        for pw in range(pw_count):
            for co in range(c_out):
                k = (ph * pw_count + pw) * c_out_pad + co
                w1[k, :n1] = fc1[:, co * (ph_count * pw_count) + ph * pw_count + pw]
    b1 = np.zeros((1, n1_pad), np.float32)
    b1[0, :n1] = np.asarray(params["fc1_b"], np.float32)
    w2 = np.zeros((n1_pad, n2_pad), np.float32)
    w2[:n1, :n2] = fc2.T
    b2 = np.zeros((1, n2_pad), np.float32)
    b2[0, :n2] = np.asarray(params["fc2_b"], np.float32)
    return (jnp.asarray(w1, jnp.bfloat16), jnp.asarray(b1),
            jnp.asarray(w2, jnp.bfloat16), jnp.asarray(b2))


def init_params(key):
    """PyTorch-layout parameters (Conv2d / Linear default uniform init)."""
    ks = jax.random.split(key, 8)

    def u(k, shape, fan_in):
        bound = 1.0 / math.sqrt(fan_in)
        return jax.random.uniform(k, shape, jnp.float32, -bound, bound)

    return {
        "conv1_w": u(ks[0], (20, 1, 5, 5), 1 * 5 * 5),
        "conv1_b": u(ks[1], (20,), 1 * 5 * 5),
        "conv2_w": u(ks[2], (50, 20, 5, 5), 20 * 5 * 5),
        "conv2_b": u(ks[3], (50,), 20 * 5 * 5),
        "fc1_w": u(ks[4], (500, 800), 800),
        "fc1_b": u(ks[5], (500,), 800),
        "fc2_w": u(ks[6], (10, 500), 500),
        "fc2_b": u(ks[7], (10,), 500),
    }


def prepare_params(params):
    """One-time (outside jit) re-layout into banded conv weights + permuted fc."""
    c1_w, c1_b = _band_weight_and_bias(params["conv1_w"], params["conv1_b"],
                                       pw_count=12, c_out_pad=20)   # (168, 960)
    c2_w, c2_b = _band_weight_and_bias(params["conv2_w"], params["conv2_b"],
                                       pw_count=4, c_out_pad=64)    # (1440, 1024)
    fc1_w, fc1_b, fc2_w, fc2_b = _fc_weights(params)
    return {"c1_w": c1_w, "c1_b": c1_b, "c2_w": c2_w, "c2_b": c2_b,
            "fc1_w": fc1_w, "fc1_b": fc1_b, "fc2_w": fc2_w, "fc2_b": fc2_b}


# ------------------------------ the network ----------------------------------

def net_forward(x_nchw, p):
    b = x_nchw.shape[0]
    # NCHW (B,1,28,28); C_in == 1, so (B, H, W*C) is a pure reshape.
    x = x_nchw.reshape(b, 28, 28).astype(jnp.bfloat16)

    # Conv1 + ReLU + MaxPool2d(2): rows (b, ph), lanes (pw, 20 channels)
    h1 = conv_banded(_build_shift_lhs(x, ph=12), p["c1_w"], p["c1_b"], max_tile=1024)
    h1 = h1.reshape(b, 12, 12 * 20)          # next layer's (B, Hin, Win*Cin)

    # Conv2 + ReLU + MaxPool2d(2): rows (b, ph), lanes (pw, 64 channels; 50 valid)
    h2 = conv_banded(_build_shift_lhs(h1, ph=4), p["c2_w"], p["c2_b"], max_tile=2048)
    h2 = h2.reshape(b, 4 * 4 * 64)           # (B, 1024); padded channels hit zero fc1 rows

    out = fc_head(h2, p["fc1_w"], p["fc1_b"], p["fc2_w"], p["fc2_b"],
                  n_valid=10, max_tile=1024)
    return out[:, :10]                       # (B, 10) f32 log-probs


def net_reference(x_nchw, params):
    """Pure-JAX reference with matching bf16 weight/activation rounding."""
    f32 = jnp.float32

    def bf(a):
        return a.astype(jnp.bfloat16).astype(f32)

    def conv_relu_pool(x, w, b):
        y = jax.lax.conv_general_dilated(
            x, jnp.transpose(bf(w), (2, 3, 1, 0)), (1, 1), "VALID",
            dimension_numbers=("NHWC", "HWIO", "NHWC"))
        y = jnp.maximum(y + b.reshape(1, 1, 1, -1).astype(f32), 0.0)
        bsz, hh, ww, cc = y.shape
        y = jnp.max(y.reshape(bsz, hh // 2, 2, ww // 2, 2, cc), axis=(2, 4))
        return bf(y)                         # intermediates stored in bf16

    x = jnp.transpose(bf(x_nchw), (0, 2, 3, 1))          # NHWC
    h = conv_relu_pool(x, params["conv1_w"], params["conv1_b"])
    h = conv_relu_pool(h, params["conv2_w"], params["conv2_b"])
    h = jnp.transpose(h, (0, 3, 1, 2)).reshape(h.shape[0], -1)   # NCHW flatten (B, 800)
    h = jnp.maximum(h @ bf(params["fc1_w"]).T + params["fc1_b"].astype(f32), 0.0)
    logits = h @ bf(params["fc2_w"]).T + params["fc2_b"].astype(f32)
    return jax.nn.log_softmax(logits, axis=-1)


if __name__ == "__main__":
    key = jax.random.PRNGKey(0)
    k_x, k_p = jax.random.split(key)
    # MNIST-shaped input (28x28 is required by the 4*4*50 flatten), small batch.
    x = jax.random.normal(k_x, (2, 1, 28, 28), dtype=jnp.float32)
    params = init_params(k_p)
    prepared = prepare_params(params)        # one-time weight re-layout, outside jit

    fwd = jax.jit(net_forward)
    out = fwd(x, prepared)
    jax.block_until_ready(out)

    assert out.shape == (2, 10)
    assert bool(jnp.all(jnp.isfinite(out)))
    # log_softmax rows exponentiate-and-sum to 1.
    row_sums = jnp.sum(jnp.exp(out), axis=1)
    assert bool(jnp.all(jnp.abs(row_sums - 1.0) < 1e-3))
    # Match the pure-JAX reference (same bf16 rounding points).
    ref = net_reference(x, params)
    max_err = float(jnp.max(jnp.abs(out - ref)))
    assert max_err < 3e-2, f"kernel/reference mismatch: {max_err}"
    print("KERNEL_OK")
</pallas_src>

<mosaic_0001>
module attributes {stable_mosaic.version = 11 : i64} {
  func.func @_conv_banded_kernel(%arg0: i32, %arg1: memref<16x168xbf16, #tpu.memory_space<vmem>>, %arg2: memref<168x960xbf16, #tpu.memory_space<vmem>>, %arg3: memref<1x240xf32, #tpu.memory_space<vmem>>, %arg4: memref<16x240xbf16, #tpu.memory_space<vmem>>) attributes {dimension_semantics = [#tpu.dimension_semantics<parallel>], iteration_bounds = array<i64: 2>, scalar_prefetch = 0 : i64, scratch_operands = 0 : i64, tpu.core_type = #tpu.core_type<tc>, window_params = [{transform_indices = @transform_0, window_bounds = array<i64: 16, 168>}, {pipeline_mode = #tpu.pipeline_mode<synchronous>, transform_indices = @transform_1, window_bounds = array<i64: 168, 960>}, {pipeline_mode = #tpu.pipeline_mode<synchronous>, transform_indices = @transform_2, window_bounds = array<i64: 1, 240>}, {transform_indices = @transform_3, window_bounds = array<i64: 16, 240>}]} {
    %c0 = arith.constant 0 : index
    %c0_0 = arith.constant 0 : index
    %0 = vector.load %arg1[%c0, %c0_0] : memref<16x168xbf16, #tpu.memory_space<vmem>>, vector<16x168xbf16>
    %c0_1 = arith.constant 0 : index
    %c0_2 = arith.constant 0 : index
    %1 = vector.load %arg2[%c0_1, %c0_2] : memref<168x960xbf16, #tpu.memory_space<vmem>>, vector<168x960xbf16>
    %cst = arith.constant dense<0.000000e+00> : vector<16x960xf32>
    %2 = tpu.matmul %0, %1, %cst {dimension_numbers = #tpu.dot_dimension_numbers<[1], [0], [0], [1], [0, 0, 1, 1], [], []>} : vector<16x168xbf16>, vector<168x960xbf16>, vector<16x960xf32> -> vector<16x960xf32>
    %3 = vector.extract_strided_slice %2 {offsets = [0, 0], sizes = [16, 240], strides = [1, 1]} : vector<16x960xf32> to vector<16x240xf32>
    %4 = vector.extract_strided_slice %2 {offsets = [0, 240], sizes = [16, 240], strides = [1, 1]} : vector<16x960xf32> to vector<16x240xf32>
    %5 = arith.maximumf %3, %4 : vector<16x240xf32>
    %6 = vector.extract_strided_slice %2 {offsets = [0, 480], sizes = [16, 240], strides = [1, 1]} : vector<16x960xf32> to vector<16x240xf32>
    %7 = vector.extract_strided_slice %2 {offsets = [0, 720], sizes = [16, 240], strides = [1, 1]} : vector<16x960xf32> to vector<16x240xf32>
    %8 = arith.maximumf %6, %7 : vector<16x240xf32>
    %9 = arith.maximumf %5, %8 : vector<16x240xf32>
    %c0_3 = arith.constant 0 : index
    %c0_4 = arith.constant 0 : index
    %10 = vector.load %arg3[%c0_3, %c0_4] : memref<1x240xf32, #tpu.memory_space<vmem>>, vector<1x240xf32>
    %11 = vector.broadcast %10 : vector<1x240xf32> to vector<16x240xf32>
    %12 = arith.addf %9, %11 : vector<16x240xf32>
    %cst_5 = arith.constant 0.000000e+00 : f32
    %13 = vector.broadcast %cst_5 : f32 to vector<16x240xf32>
    %14 = arith.maximumf %12, %13 : vector<16x240xf32>
    %15 = arith.truncf %14 : vector<16x240xf32> to vector<16x240xbf16>
    %c0_6 = arith.constant 0 : index
    %c0_7 = arith.constant 0 : index
    %16 = vector.load %arg4[%c0_6, %c0_7] : memref<16x240xbf16, #tpu.memory_space<vmem>>, vector<16x240xbf16>
    tpu.vector_store %arg4[%c0_6, %c0_7], %15 {strides = array<i32>} : memref<16x240xbf16, #tpu.memory_space<vmem>>, vector<16x240xbf16>,
    return
  }
  func.func @transform_0(%arg0: i32) -> (i32, i32) {
    %c0_i32 = arith.constant 0 : i32
    %c0_i32_0 = arith.constant 0 : i32
    return %arg0, %c0_i32 : i32, i32
  }
  func.func @transform_1(%arg0: i32) -> (i32, i32) {
    %c0_i32 = arith.constant 0 : i32
    %c0_i32_0 = arith.constant 0 : i32
    %c0_i32_1 = arith.constant 0 : i32
    return %c0_i32, %c0_i32_0 : i32, i32
  }
  func.func @transform_2(%arg0: i32) -> (i32, i32) {
    %c0_i32 = arith.constant 0 : i32
    %c0_i32_0 = arith.constant 0 : i32
    %c0_i32_1 = arith.constant 0 : i32
    return %c0_i32, %c0_i32_0 : i32, i32
  }
  func.func @transform_3(%arg0: i32) -> (i32, i32) {
    %c0_i32 = arith.constant 0 : i32
    %c0_i32_0 = arith.constant 0 : i32
    return %arg0, %c0_i32 : i32, i32
  }
}

module attributes {stable_mosaic.version = 11 : i64} {
  func.func @_conv_banded_kernel(%arg0: i32, %arg1: memref<16x1440xbf16, #tpu.memory_space<vmem>>, %arg2: memref<1440x1024xbf16, #tpu.memory_space<vmem>>, %arg3: memref<1x256xf32, #tpu.memory_space<vmem>>, %arg4: memref<16x256xbf16, #tpu.memory_space<vmem>>) attributes {dimension_semantics = [#tpu.dimension_semantics<parallel>], iteration_bounds = array<i64: 1>, scalar_prefetch = 0 : i64, scratch_operands = 0 : i64, tpu.core_type = #tpu.core_type<tc>, window_params = [{transform_indices = @transform_0, window_bounds = array<i64: 16, 1440>}, {pipeline_mode = #tpu.pipeline_mode<synchronous>, transform_indices = @transform_1, window_bounds = array<i64: 1440, 1024>}, {pipeline_mode = #tpu.pipeline_mode<synchronous>, transform_indices = @transform_2, window_bounds = array<i64: 1, 256>}, {transform_indices = @transform_3, window_bounds = array<i64: 16, 256>}]} {
    %c0 = arith.constant 0 : index
    %c0_0 = arith.constant 0 : index
    %0 = vector.load %arg1[%c0, %c0_0] : memref<16x1440xbf16, #tpu.memory_space<vmem>>, vector<16x1440xbf16>
    %c0_1 = arith.constant 0 : index
    %c0_2 = arith.constant 0 : index
    %1 = vector.load %arg2[%c0_1, %c0_2] : memref<1440x1024xbf16, #tpu.memory_space<vmem>>, vector<1440x1024xbf16>
    %cst = arith.constant dense<0.000000e+00> : vector<16x1024xf32>
    %2 = tpu.matmul %0, %1, %cst {dimension_numbers = #tpu.dot_dimension_numbers<[1], [0], [0], [1], [0, 0, 1, 1], [], []>} : vector<16x1440xbf16>, vector<1440x1024xbf16>, vector<16x1024xf32> -> vector<16x1024xf32>
    %3 = vector.extract_strided_slice %2 {offsets = [0, 0], sizes = [16, 256], strides = [1, 1]} : vector<16x1024xf32> to vector<16x256xf32>
    %4 = vector.extract_strided_slice %2 {offsets = [0, 256], sizes = [16, 256], strides = [1, 1]} : vector<16x1024xf32> to vector<16x256xf32>
    %5 = arith.maximumf %3, %4 : vector<16x256xf32>
    %6 = vector.extract_strided_slice %2 {offsets = [0, 512], sizes = [16, 256], strides = [1, 1]} : vector<16x1024xf32> to vector<16x256xf32>
    %7 = vector.extract_strided_slice %2 {offsets = [0, 768], sizes = [16, 256], strides = [1, 1]} : vector<16x1024xf32> to vector<16x256xf32>
    %8 = arith.maximumf %6, %7 : vector<16x256xf32>
    %9 = arith.maximumf %5, %8 : vector<16x256xf32>
    %c0_3 = arith.constant 0 : index
    %c0_4 = arith.constant 0 : index
    %10 = vector.load %arg3[%c0_3, %c0_4] : memref<1x256xf32, #tpu.memory_space<vmem>>, vector<1x256xf32>
    %11 = vector.broadcast %10 : vector<1x256xf32> to vector<16x256xf32>
    %12 = arith.addf %9, %11 : vector<16x256xf32>
    %cst_5 = arith.constant 0.000000e+00 : f32
    %13 = vector.broadcast %cst_5 : f32 to vector<16x256xf32>
    %14 = arith.maximumf %12, %13 : vector<16x256xf32>
    %15 = arith.truncf %14 : vector<16x256xf32> to vector<16x256xbf16>
    %c0_6 = arith.constant 0 : index
    %c0_7 = arith.constant 0 : index
    %16 = vector.load %arg4[%c0_6, %c0_7] : memref<16x256xbf16, #tpu.memory_space<vmem>>, vector<16x256xbf16>
    tpu.vector_store %arg4[%c0_6, %c0_7], %15 {strides = array<i32>} : memref<16x256xbf16, #tpu.memory_space<vmem>>, vector<16x256xbf16>,
    return
  }
  func.func @transform_0(%arg0: i32) -> (i32, i32) {
    %c0_i32 = arith.constant 0 : i32
    %c0_i32_0 = arith.constant 0 : i32
    return %arg0, %c0_i32 : i32, i32
  }
  func.func @transform_1(%arg0: i32) -> (i32, i32) {
    %c0_i32 = arith.constant 0 : i32
    %c0_i32_0 = arith.constant 0 : i32
    %c0_i32_1 = arith.constant 0 : i32
    return %c0_i32, %c0_i32_0 : i32, i32
  }
  func.func @transform_2(%arg0: i32) -> (i32, i32) {
    %c0_i32 = arith.constant 0 : i32
    %c0_i32_0 = arith.constant 0 : i32
    %c0_i32_1 = arith.constant 0 : i32
    return %c0_i32, %c0_i32_0 : i32, i32
  }
  func.func @transform_3(%arg0: i32) -> (i32, i32) {
    %c0_i32 = arith.constant 0 : i32
    %c0_i32_0 = arith.constant 0 : i32
    return %arg0, %c0_i32 : i32, i32
  }
}

module attributes {stable_mosaic.version = 11 : i64} {
  func.func @_fc_head_kernel(%arg0: i32, %arg1: memref<16x1024xbf16, #tpu.memory_space<vmem>>, %arg2: memref<1024x512xbf16, #tpu.memory_space<vmem>>, %arg3: memref<1x512xf32, #tpu.memory_space<vmem>>, %arg4: memref<512x128xbf16, #tpu.memory_space<vmem>>, %arg5: memref<1x128xf32, #tpu.memory_space<vmem>>, %arg6: memref<16x128xf32, #tpu.memory_space<vmem>>) attributes {dimension_semantics = [#tpu.dimension_semantics<parallel>], iteration_bounds = array<i64: 1>, scalar_prefetch = 0 : i64, scratch_operands = 0 : i64, tpu.core_type = #tpu.core_type<tc>, window_params = [{transform_indices = @transform_0, window_bounds = array<i64: 16, 1024>}, {pipeline_mode = #tpu.pipeline_mode<synchronous>, transform_indices = @transform_1, window_bounds = array<i64: 1024, 512>}, {pipeline_mode = #tpu.pipeline_mode<synchronous>, transform_indices = @transform_2, window_bounds = array<i64: 1, 512>}, {pipeline_mode = #tpu.pipeline_mode<synchronous>, transform_indices = @transform_3, window_bounds = array<i64: 512, 128>}, {pipeline_mode = #tpu.pipeline_mode<synchronous>, transform_indices = @transform_4, window_bounds = array<i64: 1, 128>}, {transform_indices = @transform_5, window_bounds = array<i64: 16, 128>}]} {
    %c0 = arith.constant 0 : index
    %c0_0 = arith.constant 0 : index
    %0 = vector.load %arg1[%c0, %c0_0] : memref<16x1024xbf16, #tpu.memory_space<vmem>>, vector<16x1024xbf16>
    %c0_1 = arith.constant 0 : index
    %c0_2 = arith.constant 0 : index
    %1 = vector.load %arg2[%c0_1, %c0_2] : memref<1024x512xbf16, #tpu.memory_space<vmem>>, vector<1024x512xbf16>
    %cst = arith.constant dense<0.000000e+00> : vector<16x512xf32>
    %2 = tpu.matmul %0, %1, %cst {dimension_numbers = #tpu.dot_dimension_numbers<[1], [0], [0], [1], [0, 0, 1, 1], [], []>} : vector<16x1024xbf16>, vector<1024x512xbf16>, vector<16x512xf32> -> vector<16x512xf32>
    %c0_3 = arith.constant 0 : index
    %c0_4 = arith.constant 0 : index
    %3 = vector.load %arg3[%c0_3, %c0_4] : memref<1x512xf32, #tpu.memory_space<vmem>>, vector<1x512xf32>
    %4 = vector.broadcast %3 : vector<1x512xf32> to vector<16x512xf32>
    %5 = arith.addf %2, %4 : vector<16x512xf32>
    %cst_5 = arith.constant 0.000000e+00 : f32
    %6 = vector.broadcast %cst_5 : f32 to vector<16x512xf32>
    %7 = arith.maximumf %5, %6 : vector<16x512xf32>
    %8 = arith.truncf %7 : vector<16x512xf32> to vector<16x512xbf16>
    %c0_6 = arith.constant 0 : index
    %c0_7 = arith.constant 0 : index
    %9 = vector.load %arg4[%c0_6, %c0_7] : memref<512x128xbf16, #tpu.memory_space<vmem>>, vector<512x128xbf16>
    %cst_8 = arith.constant dense<0.000000e+00> : vector<16x128xf32>
    %10 = tpu.matmul %8, %9, %cst_8 {dimension_numbers = #tpu.dot_dimension_numbers<[1], [0], [0], [1], [0, 0, 1, 1], [], []>} : vector<16x512xbf16>, vector<512x128xbf16>, vector<16x128xf32> -> vector<16x128xf32>
    %c0_9 = arith.constant 0 : index
    %c0_10 = arith.constant 0 : index
    %11 = vector.load %arg5[%c0_9, %c0_10] : memref<1x128xf32, #tpu.memory_space<vmem>>, vector<1x128xf32>
    %12 = vector.broadcast %11 : vector<1x128xf32> to vector<16x128xf32>
    %13 = arith.addf %10, %12 : vector<16x128xf32>
    %14 = tpu.iota {dimensions = array<i32: 1>} : vector<16x128xi32>
    %c10_i32 = arith.constant 10 : i32
    %15 = vector.broadcast %c10_i32 : i32 to vector<16x128xi32>
    %16 = arith.cmpi slt, %14, %15 : vector<16x128xi32>
    %cst_11 = arith.constant -1.000000e+30 : f32
    %17 = vector.broadcast %cst_11 : f32 to vector<16x128xf32>
    %18 = arith.select %16, %13, %17 : vector<16x128xi1>, vector<16x128xf32>
    %cst_12 = arith.constant dense<0xFF800000> : vector<16xf32>
    %19 = vector.multi_reduction <maximumf>, %18, %cst_12 [1] : vector<16x128xf32> to vector<16xf32>
    %20 = vector.shape_cast %19 : vector<16xf32> to vector<16x1xf32>
    %21 = vector.broadcast %20 : vector<16x1xf32> to vector<16x128xf32>
    %22 = arith.subf %18, %21 : vector<16x128xf32>
    %23 = math.exp %22 : vector<16x128xf32>
    %cst_13 = arith.constant dense<0.000000e+00> : vector<16xf32>
    %24 = vector.multi_reduction <add>, %23, %cst_13 [1] : vector<16x128xf32> to vector<16xf32>
    %25 = vector.shape_cast %24 : vector<16xf32> to vector<16x1xf32>
    %26 = math.log %25 : vector<16x1xf32>
    %27 = arith.addf %20, %26 : vector<16x1xf32>
    %28 = vector.broadcast %27 : vector<16x1xf32> to vector<16x128xf32>
    %29 = arith.subf %18, %28 : vector<16x128xf32>
    %c0_14 = arith.constant 0 : index
    %c0_15 = arith.constant 0 : index
    %30 = vector.load %arg6[%c0_14, %c0_15] : memref<16x128xf32, #tpu.memory_space<vmem>>, vector<16x128xf32>
    tpu.vector_store %arg6[%c0_14, %c0_15], %29 {strides = array<i32>} : memref<16x128xf32, #tpu.memory_space<vmem>>, vector<16x128xf32>,
    return
  }
  func.func @transform_0(%arg0: i32) -> (i32, i32) {
    %c0_i32 = arith.constant 0 : i32
    %c0_i32_0 = arith.constant 0 : i32
    return %arg0, %c0_i32 : i32, i32
  }
  func.func @transform_1(%arg0: i32) -> (i32, i32) {
    %c0_i32 = arith.constant 0 : i32
    %c0_i32_0 = arith.constant 0 : i32
    %c0_i32_1 = arith.constant 0 : i32
    return %c0_i32, %c0_i32_0 : i32, i32
  }
  func.func @transform_2(%arg0: i32) -> (i32, i32) {
    %c0_i32 = arith.constant 0 : i32
    %c0_i32_0 = arith.constant 0 : i32
    %c0_i32_1 = arith.constant 0 : i32
    return %c0_i32, %c0_i32_0 : i32, i32
  }
  func.func @transform_3(%arg0: i32) -> (i32, i32) {
    %c0_i32 = arith.constant 0 : i32
    %c0_i32_0 = arith.constant 0 : i32
    %c0_i32_1 = arith.constant 0 : i32
    return %c0_i32, %c0_i32_0 : i32, i32
  }
  func.func @transform_4(%arg0: i32) -> (i32, i32) {
    %c0_i32 = arith.constant 0 : i32
    %c0_i32_0 = arith.constant 0 : i32
    %c0_i32_1 = arith.constant 0 : i32
    return %c0_i32, %c0_i32_0 : i32, i32
  }
  func.func @transform_5(%arg0: i32) -> (i32, i32) {
    %c0_i32 = arith.constant 0 : i32
    %c0_i32_0 = arith.constant 0 : i32
    return %arg0, %c0_i32 : i32, i32
  }
}

</mosaic_0001>

<llo_original>
// kernel: net_forward.3
$region0: #{net_forward.3}
  #allocation0 [shape = 'u32[]', space=smem, size = 0x4, offset = 0x4, fixed_abs, tag = 'smem constant byte address 0x4 - core index']
  #allocation1 [shape = 'u32[144,128]{1,0:T(1,128)}', space=vmem, size = 0x12000, scoped, tag = 'internal scratch']
  %s0 = inlined_call_operand.vmem [shape: bf16[32,168], index: 0, kind: input, shape index: {}]
  %s1 = inlined_call_operand.hbm [shape: bf16[168,960], index: 1, kind: input, shape index: {}]
  %s2 = inlined_call_operand.hbm [shape: f32[1,240], index: 2, kind: input, shape index: {}]
  %s3 = inlined_call_operand.vmem [shape: bf16[32,240], index: 3, kind: output, shape index: {}]
  %s4 = sld [smem:[#allocation0]]
  $region53: #{net_forward.3} parent=0
    _
  %s6 = ssub.s32 1, %s4
  %s7 = scalar_select 0, %s6, %s4
  $region1: #{net_forward.3} parent=0
    #allocation2 [shape = 'u8[344064]{0}', space=vmem, size = 0x54000, scoped, tag = 'input window, operand 1, single buffered']
    #allocation3 [shape = 's32[2]{0}', space=sflag, size = 0x8, scoped, tag = 'scoped memory for net_forward.3']
    #allocation4 [shape = 'u8[1024]{0}', space=vmem, size = 0x400, scoped, tag = 'input window, operand 2, single buffered']
    #allocation5 [shape = 's32[1]{0}', space=sflag, size = 0x4, scoped, tag = 'scoped memory for net_forward.3']
    %8 = vsyncpa [#allocation3], 0
    %9 = vsyncpa [#allocation5], 0
    loop: start=0, step=1, limit=4
    $region2: #{net_forward.3} parent=1 // loop_pre_header
      _
    $region3: #{net_forward.3} parent=1 // loop_header
      %s11 = sphi 0, %s15
      %p12 = scmp.ge.s32.totalorder %s11, 4
      %s21 = sphi 0, %s23
      %s24 = sphi 0, %s21
      %s25 = sphi 0, %s24
      %s41 = sphi 0, %s25
      %s45 = sphi 0, %s45
      %s47 = sphi 0, %s45
      %s48 = sphi 0, %s47
      %s62 = sphi 0, %s48
      %s66 = sphi 0, %s66
      %s68 = sphi 0, %s66
      %s69 = sphi 0, %s68
      %s83 = sphi 0, %s69
      %s89 = sphi 0, %s91
      %s92 = sphi 0, %s89
      %s93 = sphi 0, %s92
      %s109 = sphi 0, %s93
    $region4: #{net_forward.3} parent=1 // loop_header_branch
      %14 = sbr.rel (%p12) target = $region8
    $region5: #{net_forward.3} parent=1 // loop_body
      %s16 = ssub.s32 %s11, 1
      %s17 = ssub.s32 %s11, 2
      %s18 = sadd.s32 %s11, 1
      %s19 = ssub.s32 %s11, %s18
      %p20 = scmp.eq.s32.totalorder %s19, 0
      %s22 = sadd.s32 %s21, 1
      %s23 = scalar_select %p20, %s21, %s22
      %p26 = pneg %p20
      %p27 = scmp.eq.s32.totalorder %s11, 1
      %p28 = por %p26, %p27
      %p29 = scmp.ne.s32.totalorder %s21, %s24
      %p30 = scmp.eq.s32.totalorder %s11, 0
      %p31 = por %p29, %p30
      %p32 = scmp.ne.s32.totalorder %s21, %s24
      %p33 = scmp.eq.s32.totalorder %s16, 1
      %p34 = por %p32, %p33
      %p35 = scmp.ne.s32.totalorder %s24, %s25
      %p36 = scmp.eq.s32.totalorder %s16, 0
      %p37 = por %p35, %p36
      %p38 = scmp.ne.s32.totalorder %s24, %s25
      %p39 = scmp.eq.s32.totalorder %s17, 1
      %p40 = por %p38, %p39
      %p42 = scmp.ne.s32.totalorder %s25, %s41
      %p43 = scmp.eq.s32.totalorder %s17, 0
      %p44 = por %p42, %p43
      %s46 = sadd.s32 %s45, 1
      %p49 = scmp.eq.s32.totalorder %s11, 1
      %p50 = scmp.ne.s32.totalorder %s45, %s47
      %p51 = scmp.eq.s32.totalorder %s11, 0
      %p52 = por %p50, %p51
      %p53 = scmp.ne.s32.totalorder %s45, %s47
      %p54 = scmp.eq.s32.totalorder %s16, 1
      %p55 = por %p53, %p54
      %p56 = scmp.ne.s32.totalorder %s47, %s48
      %p57 = scmp.eq.s32.totalorder %s16, 0
      %p58 = por %p56, %p57
      %p59 = scmp.ne.s32.totalorder %s47, %s48
      %p60 = scmp.eq.s32.totalorder %s17, 1
      %p61 = por %p59, %p60
      %p63 = scmp.ne.s32.totalorder %s48, %s62
      %p64 = scmp.eq.s32.totalorder %s17, 0
      %p65 = por %p63, %p64
      %s67 = sadd.s32 %s66, 1
      %p70 = scmp.eq.s32.totalorder %s11, 1
      %p71 = scmp.ne.s32.totalorder %s66, %s68
      %p72 = scmp.eq.s32.totalorder %s11, 0
      %p73 = por %p71, %p72
      %p74 = scmp.ne.s32.totalorder %s66, %s68
      %p75 = scmp.eq.s32.totalorder %s16, 1
      %p76 = por %p74, %p75
      %p77 = scmp.ne.s32.totalorder %s68, %s69
      %p78 = scmp.eq.s32.totalorder %s16, 0
      %p79 = por %p77, %p78
      %p80 = scmp.ne.s32.totalorder %s68, %s69
      %p81 = scmp.eq.s32.totalorder %s17, 1
      %p82 = por %p80, %p81
      %p84 = scmp.ne.s32.totalorder %s69, %s83
      %p85 = scmp.eq.s32.totalorder %s17, 0
      %p86 = por %p84, %p85
      %s87 = ssub.s32 %s11, %s18
      %p88 = scmp.eq.s32.totalorder %s87, 0
      %s90 = sadd.s32 %s89, 1
      %s91 = scalar_select %p88, %s89, %s90
      %p94 = pneg %p88
      %p95 = scmp.eq.s32.totalorder %s11, 1
      %p96 = por %p94, %p95
      %p97 = scmp.ne.s32.totalorder %s89, %s92
      %p98 = scmp.eq.s32.totalorder %s11, 0
      %p99 = por %p97, %p98
      %p100 = scmp.ne.s32.totalorder %s89, %s92
      %p101 = scmp.eq.s32.totalorder %s16, 1
      %p102 = por %p100, %p101
      %p103 = scmp.ne.s32.totalorder %s92, %s93
      %p104 = scmp.eq.s32.totalorder %s16, 0
      %p105 = por %p103, %p104
      %p106 = scmp.ne.s32.totalorder %s92, %s93
      %p107 = scmp.eq.s32.totalorder %s17, 1
      %p108 = por %p106, %p107
      %p110 = scmp.ne.s32.totalorder %s93, %s109
      %p111 = scmp.eq.s32.totalorder %s17, 0
      %p112 = por %p110, %p111
      %p113 = scmp.le.s32.totalorder 1, %s11
      %p114 = scmp.lt.s32.totalorder %s11, 3
      %p115 = pnand %p113, %p114
      %p116 = pneg %p115
      // Predicated region
      $region9: #{net_forward.3} parent=5 // pred_check
        _
      $region10: #{net_forward.3} parent=5 // pred_check_branch
        %118 = sbr.rel (%p115) target = $region12
      $region11: #{net_forward.3} parent=5 // pred_region
        %s119 = ssub.s32 %s11, 1
        // Predicated region
        $region13: #{net_forward.3} parent=11 // pred_check
          %p120 = pneg %p58
        $region14: #{net_forward.3} parent=11 // pred_check_branch
          %122 = sbr.rel (%p120) target = $region16
        $region15: #{net_forward.3} parent=11 // pred_region
          %s124 = ssub.s32 10752, 10752
          %125 = vsyncadd [#allocation3], %s124
          %s126 = sshll.u32 [#allocation2], 4
          %s127 = int_to_ptr.vmem [resolvable:$true] %s126
          %132 = dma.hbm_to_vmem [thread:$0]  %s1, 10752, %s127, [#allocation3], 512, 512, 32
        $region16: #{net_forward.3} parent=11 // pred_fallthru
          _
        // Predicated region
        $region17: #{net_forward.3} parent=11 // pred_check
          %p133 = pneg %p79
        $region18: #{net_forward.3} parent=11 // pred_check_branch
          %135 = sbr.rel (%p133) target = $region20
        $region19: #{net_forward.3} parent=11 // pred_region
          %s137 = ssub.s32 32, 32
          %138 = vsyncadd [#allocation5], %s137
          %s140 = sshll.u32 [#allocation4], 4
          %s141 = int_to_ptr.vmem [resolvable:$true] %s140
          %143 = dma.hbm_to_vmem [thread:$0]  %s2, 32, %s141, [#allocation5]
        $region20: #{net_forward.3} parent=11 // pred_fallthru
          _
      $region12: #{net_forward.3} parent=5 // pred_fallthru
        _
      %p144 = scmp.lt.s32.totalorder %s11, 2
      // Predicated region
      $region21: #{net_forward.3} parent=5 // pred_check
        %p145 = pneg %p144
      $region22: #{net_forward.3} parent=5 // pred_check_branch
        %147 = sbr.rel (%p145) target = $region24
      $region23: #{net_forward.3} parent=5 // pred_region
        // Predicated region
        $region25: #{net_forward.3} parent=23 // pred_check
          %p148 = pneg %p31
        $region26: #{net_forward.3} parent=23 // pred_check_branch
          %150 = sbr.rel (%p148) target = $region28
        $region27: #{net_forward.3} parent=23 // pred_region
          %s151 = smul.u32 2, %s11
          %p152 = scmp.lt.s32.totalorder %s151, 3
          %s153 = scalar_select %p152, %s151, 3
          %s154 = smul.addr %s153, 2
          %s155 = smul.addr %s154, 4
          %s156 = scalar_lea.vmem %s0, %s155
          %s157 = smul.u32 2, %s11
        $region28: #{net_forward.3} parent=23 // pred_fallthru
          _
      $region24: #{net_forward.3} parent=5 // pred_fallthru
        _
      %p158 = scmp.le.s32.totalorder 1, %s11
      %p159 = scmp.lt.s32.totalorder %s11, 3
      %p160 = pnand %p158, %p159
      %p161 = pneg %p160
      // Predicated region
      $region29: #{net_forward.3} parent=5 // pred_check
        _
      $region30: #{net_forward.3} parent=5 // pred_check_branch
        %163 = sbr.rel (%p160) target = $region32
      $region31: #{net_forward.3} parent=5 // pred_region
        %s164 = ssub.s32 %s11, 1
        // Predicated region
        $region33: #{net_forward.3} parent=31 // pred_check
          %p165 = pneg %p58
        $region34: #{net_forward.3} parent=31 // pred_check_branch
          %167 = sbr.rel (%p165) target = $region36
        $region35: #{net_forward.3} parent=31 // pred_region
          %168 = dma.done [#allocation3], 10752
        $region36: #{net_forward.3} parent=31 // pred_fallthru
          _
        // Predicated region
        $region37: #{net_forward.3} parent=31 // pred_check
          %p169 = pneg %p79
        $region38: #{net_forward.3} parent=31 // pred_check_branch
          %171 = sbr.rel (%p169) target = $region40
        $region39: #{net_forward.3} parent=31 // pred_region
          %172 = dma.done [#allocation5], 32
        $region40: #{net_forward.3} parent=31 // pred_fallthru
          _
        %s173 = smul.u32 2, %s16
        %p174 = scmp.lt.s32.totalorder %s173, 3
        %s175 = scalar_select %p174, %s173, 3
        %s176 = smul.addr %s175, 2
        %s177 = smul.addr %s176, 4
        %s178 = scalar_lea.vmem %s0, %s177
        %p179 = pneg %p37
        %p180 = pneg %p34
        %p181 = pneg %p58
        %p182 = pneg %p55
        %p183 = pneg %p79
        %p184 = pneg %p76
        %p185 = pneg %p105
        %p186 = pneg %p102
        %s187 = smul.u32 2, %s16
        %p188 = scmp.lt.s32.totalorder %s187, 3
        %s189 = scalar_select %p188, %s187, 3
        %s190 = smul.addr %s189, 2
        %s191 = smul.addr %s190, 4
        %s192 = scalar_lea.vmem %s3, %s191
        %s193 = smul.u32 2, %s16
        %p194 = scmp.lt.s32.totalorder %s193, 3
        %s195 = scalar_select %p194, %s193, 3
        %s196 = smul.addr %s195, 2
        %s197 = smul.addr %s196, 4
        %s198 = scalar_lea.vmem %s0, %s197
        %s199 = smul.u32 2, %s16
        %s200 = smul.u32 2, %s16
        %p201 = scmp.lt.s32.totalorder %s200, 3
        %s202 = scalar_select %p201, %s200, 3
        %s203 = smul.addr %s202, 2
        %s204 = smul.addr %s203, 4
        %s205 = scalar_lea.vmem %s3, %s204
        %s206 = smul.u32 2, %s16
        %v208 = vld [vmem:[%s198] sm:$0xff]
        %v209 = vld [vmem:[%s198 + $0x8] sm:$0xff]
        %v210 = vld [vmem:[#allocation2] sm:$0xff]
        %v211 = vld [vmem:[#allocation2 + $0x8] sm:$0xff]
        %v212 = vld [vmem:[#allocation2 + $0x10] sm:$0xff]
        %v213 = vld [vmem:[#allocation2 + $0x18] sm:$0xff]
        %v214 = vld [vmem:[#allocation2 + $0x20] sm:$0xff]
        %v215 = vld [vmem:[#allocation2 + $0x28] sm:$0xff]
        %v216 = vld [vmem:[#allocation2 + $0x30] sm:$0xff]
        %v217 = vld [vmem:[#allocation2 + $0x38] sm:$0xff]
        %v218 = vld [vmem:[#allocation2 + $0x40] sm:$0xff]
        %v219 = vld [vmem:[#allocation2 + $0x48] sm:$0xff]
        %v220 = vld [vmem:[#allocation2 + $0x50] sm:$0xff]
        %v221 = vld [vmem:[#allocation2 + $0x58] sm:$0xff]
        %v222 = vld [vmem:[#allocation2 + $0x60] sm:$0xff]
        %v223 = vld [vmem:[#allocation2 + $0x68] sm:$0xff]
        %v224 = vld [vmem:[#allocation2 + $0x70] sm:$0xff]
        %v225 = vld [vmem:[#allocation2 + $0x78] sm:$0xff]
        %v226 = vld [vmem:[#allocation2 + $0x80] sm:$0xff]
        %v227 = vld [vmem:[#allocation2 + $0x88] sm:$0xff]
        %v228 = vld [vmem:[#allocation2 + $0x90] sm:$0xff]
        %v229 = vld [vmem:[#allocation2 + $0x98] sm:$0xff]
        %v230 = vld [vmem:[#allocation2 + $0xa0] sm:$0xff]
        %v231 = vld [vmem:[#allocation2 + $0xa8] sm:$0xff]
        %v232 = vld [vmem:[#allocation2 + $0xb0] sm:$0xff]
        %v233 = vld [vmem:[#allocation2 + $0xb8] sm:$0xff]
        %v234 = vld [vmem:[#allocation2 + $0xc0] sm:$0xff]
        %v235 = vld [vmem:[#allocation2 + $0xc8] sm:$0xff]
        %v236 = vld [vmem:[#allocation2 + $0xd0] sm:$0xff]
        %v237 = vld [vmem:[#allocation2 + $0xd8] sm:$0xff]
        %v238 = vld [vmem:[#allocation2 + $0xe0] sm:$0xff]
        %v239 = vld [vmem:[#allocation2 + $0xe8] sm:$0xff]
        %v240 = vld [vmem:[#allocation2 + $0xf0] sm:$0xff]
        %v241 = vld [vmem:[#allocation2 + $0xf8] sm:$0xff]
        %v242 = vld [vmem:[#allocation2 + $0x100] sm:$0xff]
        %v243 = vld [vmem:[#allocation2 + $0x108] sm:$0xff]
        %v244 = vld [vmem:[#allocation2 + $0x110] sm:$0xff]
        %v245 = vld [vmem:[#allocation2 + $0x118] sm:$0xff]
        %v246 = vld [vmem:[#allocation2 + $0x120] sm:$0xff]
        %v247 = vld [vmem:[#allocation2 + $0x128] sm:$0xff]
        %v248 = vld [vmem:[#allocation2 + $0x130] sm:$0xff]
        %v249 = vld [vmem:[#allocation2 + $0x138] sm:$0xff]
        %v250 = vld [vmem:[#allocation2 + $0x140] sm:$0xff]
        %v251 = vld [vmem:[#allocation2 + $0x148] sm:$0xff]
        %v252 = vld [vmem:[#allocation2 + $0x150] sm:$0xff]
        %v253 = vld [vmem:[#allocation2 + $0x158] sm:$0xff]
        %v254 = vld [vmem:[#allocation2 + $0x160] sm:$0xff]
        %v255 = vld [vmem:[#allocation2 + $0x168] sm:$0xff]
        %v256 = vld [vmem:[#allocation2 + $0x170] sm:$0xff]
        %v257 = vld [vmem:[#allocation2 + $0x178] sm:$0xff]
        %v258 = vld [vmem:[#allocation2 + $0x180] sm:$0xff]
        %v259 = vld [vmem:[#allocation2 + $0x188] sm:$0xff]
        %v260 = vld [vmem:[#allocation2 + $0x190] sm:$0xff]
        %v261 = vld [vmem:[#allocation2 + $0x198] sm:$0xff]
        %v262 = vld [vmem:[#allocation2 + $0x1a0] sm:$0xff]
        %v263 = vld [vmem:[#allocation2 + $0x1a8] sm:$0xff]
        %v264 = vld [vmem:[#allocation2 + $0x1b0] sm:$0xff]
        %v265 = vld [vmem:[#allocation2 + $0x1b8] sm:$0xff]
        %v266 = vld [vmem:[#allocation2 + $0x1c0] sm:$0xff]
        %v267 = vld [vmem:[#allocation2 + $0x1c8] sm:$0xff]
        %v268 = vld [vmem:[#allocation2 + $0x1d0] sm:$0xff]
        %v269 = vld [vmem:[#allocation2 + $0x1d8] sm:$0xff]
        %v270 = vld [vmem:[#allocation2 + $0x1e0] sm:$0xff]
        %v271 = vld [vmem:[#allocation2 + $0x1e8] sm:$0xff]
        %v272 = vld [vmem:[#allocation2 + $0x1f0] sm:$0xff]
        %v273 = vld [vmem:[#allocation2 + $0x1f8] sm:$0xff]
        %v274 = vld [vmem:[#allocation2 + $0x200] sm:$0xff]
        %v275 = vld [vmem:[#allocation2 + $0x208] sm:$0xff]
        %v276 = vld [vmem:[#allocation2 + $0x210] sm:$0xff]
        %v277 = vld [vmem:[#allocation2 + $0x218] sm:$0xff]
        %v278 = vld [vmem:[#allocation2 + $0x220] sm:$0xff]
        %v279 = vld [vmem:[#allocation2 + $0x228] sm:$0xff]
        %v280 = vld [vmem:[#allocation2 + $0x230] sm:$0xff]
        %v281 = vld [vmem:[#allocation2 + $0x238] sm:$0xff]
        %v282 = vld [vmem:[#allocation2 + $0x240] sm:$0xff]
        %v283 = vld [vmem:[#allocation2 + $0x248] sm:$0xff]
        %v284 = vld [vmem:[#allocation2 + $0x250] sm:$0xff]
        %v285 = vld [vmem:[#allocation2 + $0x258] sm:$0xff]
        %v286 = vld [vmem:[#allocation2 + $0x260] sm:$0xff]
        %v287 = vld [vmem:[#allocation2 + $0x268] sm:$0xff]
        %v288 = vld [vmem:[#allocation2 + $0x270] sm:$0xff]
        %v289 = vld [vmem:[#allocation2 + $0x278] sm:$0xff]
        %v290 = vld [vmem:[#allocation2 + $0x280] sm:$0xff]
        %v291 = vld [vmem:[#allocation2 + $0x288] sm:$0xff]
        %v292 = vld [vmem:[#allocation2 + $0x290] sm:$0xff]
        %v293 = vld [vmem:[#allocation2 + $0x298] sm:$0xff]
        %v296 = vunpack.c.l.b16 %v208
        %v297 = vunpack.c.h.b16 %v208
        %v298 = vunpack.c.l.b16 %v209
        %v299 = vunpack.c.h.b16 %v209
        %v300 = vpack.c.b16 %v298, %v296
        %v301 = vpack.c.b16 %v299, %v297
        %v387 = vunpack.c.l.b16 %v210
        %v388 = vunpack.c.h.b16 %v210
        %v389 = vunpack.c.l.b16 %v211
        %v390 = vunpack.c.h.b16 %v211
        %v391 = vunpack.c.l.b16 %v212
        %v392 = vunpack.c.h.b16 %v212
        %v393 = vunpack.c.l.b16 %v213
        %v394 = vunpack.c.h.b16 %v213
        %v395 = vunpack.c.l.b16 %v214
        %v396 = vunpack.c.h.b16 %v214
        %v397 = vunpack.c.l.b16 %v215
        %v398 = vunpack.c.h.b16 %v215
        %v399 = vunpack.c.l.b16 %v216
        %v400 = vunpack.c.h.b16 %v216
        %v401 = vunpack.c.l.b16 %v217
        %v402 = vunpack.c.h.b16 %v217
        %v403 = vunpack.c.l.b16 %v218
        %v404 = vunpack.c.h.b16 %v218
        %v405 = vunpack.c.l.b16 %v219
        %v406 = vunpack.c.h.b16 %v219
        %v407 = vunpack.c.l.b16 %v220
        %v408 = vunpack.c.h.b16 %v220
        %v409 = vunpack.c.l.b16 %v221
        %v410 = vunpack.c.h.b16 %v221
        %v411 = vunpack.c.l.b16 %v222
        %v412 = vunpack.c.h.b16 %v222
        %v413 = vunpack.c.l.b16 %v223
        %v414 = vunpack.c.h.b16 %v223
        %v415 = vunpack.c.l.b16 %v224
        %v416 = vunpack.c.h.b16 %v224
        %v417 = vunpack.c.l.b16 %v225
        %v418 = vunpack.c.h.b16 %v225
        %v419 = vunpack.c.l.b16 %v226
        %v420 = vunpack.c.h.b16 %v226
        %v421 = vunpack.c.l.b16 %v227
        %v422 = vunpack.c.h.b16 %v227
        %v423 = vunpack.c.l.b16 %v228
        %v424 = vunpack.c.h.b16 %v228
        %v425 = vunpack.c.l.b16 %v229
        %v426 = vunpack.c.h.b16 %v229
        %v427 = vunpack.c.l.b16 %v230
        %v428 = vunpack.c.h.b16 %v230
        %v429 = vunpack.c.l.b16 %v231
        %v430 = vunpack.c.h.b16 %v231
        %v431 = vunpack.c.l.b16 %v232
        %v432 = vunpack.c.h.b16 %v232
        %v433 = vunpack.c.l.b16 %v233
        %v434 = vunpack.c.h.b16 %v233
        %v435 = vunpack.c.l.b16 %v234
        %v436 = vunpack.c.h.b16 %v234
        %v437 = vunpack.c.l.b16 %v235
        %v438 = vunpack.c.h.b16 %v235
        %v439 = vunpack.c.l.b16 %v236
        %v440 = vunpack.c.h.b16 %v236
        %v441 = vunpack.c.l.b16 %v237
        %v442 = vunpack.c.h.b16 %v237
        %v443 = vunpack.c.l.b16 %v238
        %v444 = vunpack.c.h.b16 %v238
        %v445 = vunpack.c.l.b16 %v239
        %v446 = vunpack.c.h.b16 %v239
        %v447 = vunpack.c.l.b16 %v240
        %v448 = vunpack.c.h.b16 %v240
        %v449 = vunpack.c.l.b16 %v241
        %v450 = vunpack.c.h.b16 %v241
        %v451 = vunpack.c.l.b16 %v242
        %v452 = vunpack.c.h.b16 %v242
        %v453 = vunpack.c.l.b16 %v243
        %v454 = vunpack.c.h.b16 %v243
        %v455 = vunpack.c.l.b16 %v244
        %v456 = vunpack.c.h.b16 %v244
        %v457 = vunpack.c.l.b16 %v245
        %v458 = vunpack.c.h.b16 %v245
        %v459 = vunpack.c.l.b16 %v246
        %v460 = vunpack.c.h.b16 %v246
        %v461 = vunpack.c.l.b16 %v247
        %v462 = vunpack.c.h.b16 %v247
        %v463 = vunpack.c.l.b16 %v248
        %v464 = vunpack.c.h.b16 %v248
        %v465 = vunpack.c.l.b16 %v249
        %v466 = vunpack.c.h.b16 %v249
        %v467 = vunpack.c.l.b16 %v250
        %v468 = vunpack.c.h.b16 %v250
        %v469 = vunpack.c.l.b16 %v251
        %v470 = vunpack.c.h.b16 %v251
        %v471 = vunpack.c.l.b16 %v252
        %v472 = vunpack.c.h.b16 %v252
        %v473 = vunpack.c.l.b16 %v253
        %v474 = vunpack.c.h.b16 %v253
        %v475 = vunpack.c.l.b16 %v254
        %v476 = vunpack.c.h.b16 %v254
        %v477 = vunpack.c.l.b16 %v255
        %v478 = vunpack.c.h.b16 %v255
        %v479 = vunpack.c.l.b16 %v256
        %v480 = vunpack.c.h.b16 %v256
        %v481 = vunpack.c.l.b16 %v257
        %v482 = vunpack.c.h.b16 %v257
        %v483 = vunpack.c.l.b16 %v258
        %v484 = vunpack.c.h.b16 %v258
        %v485 = vunpack.c.l.b16 %v259
        %v486 = vunpack.c.h.b16 %v259
        %v487 = vunpack.c.l.b16 %v260
        %v488 = vunpack.c.h.b16 %v260
        %v489 = vunpack.c.l.b16 %v261
        %v490 = vunpack.c.h.b16 %v261
        %v491 = vunpack.c.l.b16 %v262
        %v492 = vunpack.c.h.b16 %v262
        %v493 = vunpack.c.l.b16 %v263
        %v494 = vunpack.c.h.b16 %v263
        %v495 = vunpack.c.l.b16 %v264
        %v496 = vunpack.c.h.b16 %v264
        %v497 = vunpack.c.l.b16 %v265
        %v498 = vunpack.c.h.b16 %v265
        %v499 = vunpack.c.l.b16 %v266
        %v500 = vunpack.c.h.b16 %v266
        %v501 = vunpack.c.l.b16 %v267
        %v502 = vunpack.c.h.b16 %v267
        %v503 = vunpack.c.l.b16 %v268
        %v504 = vunpack.c.h.b16 %v268
        %v505 = vunpack.c.l.b16 %v269
        %v506 = vunpack.c.h.b16 %v269
        %v507 = vunpack.c.l.b16 %v270
        %v508 = vunpack.c.h.b16 %v270
        %v509 = vunpack.c.l.b16 %v271
        %v510 = vunpack.c.h.b16 %v271
        %v511 = vunpack.c.l.b16 %v272
        %v512 = vunpack.c.h.b16 %v272
        %v513 = vunpack.c.l.b16 %v273
        %v514 = vunpack.c.h.b16 %v273
        %v515 = vunpack.c.l.b16 %v274
        %v516 = vunpack.c.h.b16 %v274
        %v517 = vunpack.c.l.b16 %v275
        %v518 = vunpack.c.h.b16 %v275
        %v519 = vunpack.c.l.b16 %v276
        %v520 = vunpack.c.h.b16 %v276
        %v521 = vunpack.c.l.b16 %v277
        %v522 = vunpack.c.h.b16 %v277
        %v523 = vunpack.c.l.b16 %v278
        %v524 = vunpack.c.h.b16 %v278
        %v525 = vunpack.c.l.b16 %v279
        %v526 = vunpack.c.h.b16 %v279
        %v527 = vunpack.c.l.b16 %v280
        %v528 = vunpack.c.h.b16 %v280
        %v529 = vunpack.c.l.b16 %v281
        %v530 = vunpack.c.h.b16 %v281
        %v531 = vunpack.c.l.b16 %v282
        %v532 = vunpack.c.h.b16 %v282
        %v533 = vunpack.c.l.b16 %v283
        %v534 = vunpack.c.h.b16 %v283
        %v535 = vunpack.c.l.b16 %v284
        %v536 = vunpack.c.h.b16 %v284
        %v537 = vunpack.c.l.b16 %v285
        %v538 = vunpack.c.h.b16 %v285
        %v539 = vunpack.c.l.b16 %v286
        %v540 = vunpack.c.h.b16 %v286
        %v541 = vunpack.c.l.b16 %v287
        %v542 = vunpack.c.h.b16 %v287
        %v543 = vunpack.c.l.b16 %v288
        %v544 = vunpack.c.h.b16 %v288
        %v545 = vunpack.c.l.b16 %v289
        %v546 = vunpack.c.h.b16 %v289
        %v547 = vunpack.c.l.b16 %v290
        %v548 = vunpack.c.h.b16 %v290
        %v549 = vunpack.c.l.b16 %v291
        %v550 = vunpack.c.h.b16 %v291
        %v551 = vunpack.c.l.b16 %v292
        %v552 = vunpack.c.h.b16 %v292
        %v553 = vunpack.c.l.b16 %v293
        %v554 = vunpack.c.h.b16 %v293
        %v555 = vpack.c.b16 %v395, %v387
        %v556 = vpack.c.b16 %v396, %v388
        %v557 = vpack.c.b16 %v397, %v389
        %v558 = vpack.c.b16 %v398, %v390
        %v559 = vpack.c.b16 %v399, %v391
        %v560 = vpack.c.b16 %v400, %v392
        %v561 = vpack.c.b16 %v401, %v393
        %v562 = vpack.c.b16 %v402, %v394
        %v563 = vpack.c.b16 %v411, %v403
        %v564 = vpack.c.b16 %v412, %v404
        %v565 = vpack.c.b16 %v413, %v405
        %v566 = vpack.c.b16 %v414, %v406
        %v567 = vpack.c.b16 %v415, %v407
        %v568 = vpack.c.b16 %v416, %v408
        %v569 = vpack.c.b16 %v417, %v409
        %v570 = vpack.c.b16 %v418, %v410
        %v571 = vpack.c.b16 %v427, %v419
        %v572 = vpack.c.b16 %v428, %v420
        %v573 = vpack.c.b16 %v429, %v421
        %v574 = vpack.c.b16 %v430, %v422
        %v575 = vpack.c.b16 %v431, %v423
        %v576 = vpack.c.b16 %v432, %v424
        %v577 = vpack.c.b16 %v433, %v425
        %v578 = vpack.c.b16 %v434, %v426
        %v579 = vpack.c.b16 %v443, %v435
        %v580 = vpack.c.b16 %v444, %v436
        %v581 = vpack.c.b16 %v445, %v437
        %v582 = vpack.c.b16 %v446, %v438
        %v583 = vpack.c.b16 %v447, %v439
        %v584 = vpack.c.b16 %v448, %v440
        %v585 = vpack.c.b16 %v449, %v441
        %v586 = vpack.c.b16 %v450, %v442
        %v587 = vpack.c.b16 %v459, %v451
        %v588 = vpack.c.b16 %v460, %v452
        %v589 = vpack.c.b16 %v461, %v453
        %v590 = vpack.c.b16 %v462, %v454
        %v591 = vpack.c.b16 %v463, %v455
        %v592 = vpack.c.b16 %v464, %v456
        %v593 = vpack.c.b16 %v465, %v457
        %v594 = vpack.c.b16 %v466, %v458
        %v595 = vpack.c.b16 %v475, %v467
        %v596 = vpack.c.b16 %v476, %v468
        %v597 = vpack.c.b16 %v477, %v469
        %v598 = vpack.c.b16 %v478, %v470
        %v599 = vpack.c.b16 %v479, %v471
        %v600 = vpack.c.b16 %v480, %v472
        %v601 = vpack.c.b16 %v481, %v473
        %v602 = vpack.c.b16 %v482, %v474
        %v603 = vpack.c.b16 %v491, %v483
        %v604 = vpack.c.b16 %v492, %v484
        %v605 = vpack.c.b16 %v493, %v485
        %v606 = vpack.c.b16 %v494, %v486
        %v607 = vpack.c.b16 %v495, %v487
        %v608 = vpack.c.b16 %v496, %v488
        %v609 = vpack.c.b16 %v497, %v489
        %v610 = vpack.c.b16 %v498, %v490
        %v611 = vpack.c.b16 %v507, %v499
        %v612 = vpack.c.b16 %v508, %v500
        %v613 = vpack.c.b16 %v509, %v501
        %v614 = vpack.c.b16 %v510, %v502
        %v615 = vpack.c.b16 %v511, %v503
        %v616 = vpack.c.b16 %v512, %v504
        %v617 = vpack.c.b16 %v513, %v505
        %v618 = vpack.c.b16 %v514, %v506
        %v619 = vpack.c.b16 %v523, %v515
        %v620 = vpack.c.b16 %v524, %v516
        %v621 = vpack.c.b16 %v525, %v517
        %v622 = vpack.c.b16 %v526, %v518
        %v623 = vpack.c.b16 %v527, %v519
        %v624 = vpack.c.b16 %v528, %v520
        %v625 = vpack.c.b16 %v529, %v521
        %v626 = vpack.c.b16 %v530, %v522
        %v627 = vpack.c.b16 %v539, %v531
        %v628 = vpack.c.b16 %v540, %v532
        %v629 = vpack.c.b16 %v541, %v533
        %v630 = vpack.c.b16 %v542, %v534
        %v631 = vpack.c.b16 %v543, %v535
        %v632 = vpack.c.b16 %v544, %v536
        %v633 = vpack.c.b16 %v545, %v537
        %v634 = vpack.c.b16 %v546, %v538
        %v635 = vpack.c.b16 %v547, %v547
        %v636 = vpack.c.b16 %v548, %v548
        %v637 = vpack.c.b16 %v549, %v549
        %v638 = vpack.c.b16 %v550, %v550
        %v639 = vpack.c.b16 %v551, %v551
        %v640 = vpack.c.b16 %v552, %v552
        %v641 = vpack.c.b16 %v553, %v553
        %v642 = vpack.c.b16 %v554, %v554
        %vm723 = vcmask 326656
        %v725 = vsel %vm723, %v301, 0
        %vm727 = vcmask 1043456
        %v729 = vsel %vm727, %v635, 0
        %v732 = vsel %vm727, %v636, 0
        %v735 = vsel %vm727, %v637, 0
        %v738 = vsel %vm727, %v638, 0
        %v741 = vsel %vm727, %v639, 0
        %v744 = vsel %vm727, %v640, 0
        %v747 = vsel %vm727, %v641, 0
        %v750 = vsel %vm727, %v642, 0
        %752 = vmatprep.subr.bf16.mxu0 %v612
        %753 = vmatpush1.bf16.msra.mxu0 %v611
        %754 = vmatprep.subr.bf16.mxu0 %v604
        %755 = vmatpush1.bf16.msra.mxu0 %v603
        %756 = vmatprep.subr.bf16.mxu0 %v596
        %757 = vmatpush1.bf16.msra.mxu0 %v595
        %758 = vmatprep.subr.bf16.mxu0 %v588
        %759 = vmatpush1.bf16.msra.mxu0 %v587
        %760 = vmatprep.subr.bf16.mxu0 %v580
        %761 = vmatpush1.bf16.msra.mxu0 %v579
        %762 = vmatprep.subr.bf16.mxu0 %v572
        %763 = vmatpush1.bf16.msra.mxu0 %v571
        %764 = vmatprep.subr.bf16.mxu0 %v564
        %765 = vmatpush1.bf16.msra.mxu0 %v563
        %766 = vmatprep.subr.bf16.mxu0 %v556
        %767 = vmatpush1.bf16.msra.mxu0 %v555
        %768 = vmatprep.subr.bf16.mxu0 0
        %769 = vmatpush2.bf16.msra.mxu0 0
        %770 = vmatprep.subr.bf16.mxu0 0
        %771 = vmatpush2.bf16.msra.mxu0 0
        %772 = vmatprep.subr.bf16.mxu0 0
        %773 = vmatpush2.bf16.msra.mxu0 0
        %774 = vmatprep.subr.bf16.mxu0 0
        %775 = vmatpush2.bf16.msra.mxu0 0
        %776 = vmatprep.subr.bf16.mxu0 0
        %777 = vmatpush2.bf16.msra.mxu0 0
        %778 = vmatprep.subr.bf16.mxu0 %v732
        %779 = vmatpush2.bf16.msra.mxu0 %v729
        %780 = vmatprep.subr.bf16.mxu0 %v628
        %781 = vmatpush2.bf16.msra.mxu0 %v627
        %782 = vmatprep.subr.bf16.mxu0 %v620
        %783 = vmatpush2.bf16.msra.mxu0 %v619
        %784 = vmatprep.mubr.bf16.mxu0 %v725
        %785 = vmatmul.mubr.bf16.gmra.mxu0 %v300
        %v786 = vpop.f32.mrf.mxu0
        %v787 = vadd.f32 0.0, %v786
        %v788 = vpop.f32.mrf.mxu0
        %v789 = vadd.f32 0.0, %v788
        %v790 = vpop.f32.mrf.mxu0
        %v791 = vadd.f32 0.0, %v790
        %v792 = vpop.f32.mrf.mxu0
        %v793 = vadd.f32 0.0, %v792
        %794 = vdwg.mxu0
        %795 = vmatprep.subr.bf16.mxu0 %v614
        %796 = vmatpush1.bf16.msra.mxu0 %v613
        %797 = vmatprep.subr.bf16.mxu0 %v606
        %798 = vmatpush1.bf16.msra.mxu0 %v605
        %799 = vmatprep.subr.bf16.mxu0 %v598
        %800 = vmatpush1.bf16.msra.mxu0 %v597
        %801 = vmatprep.subr.bf16.mxu0 %v590
        %802 = vmatpush1.bf16.msra.mxu0 %v589
        %803 = vmatprep.subr.bf16.mxu0 %v582
        %804 = vmatpush1.bf16.msra.mxu0 %v581
        %805 = vmatprep.subr.bf16.mxu0 %v574
        %806 = vmatpush1.bf16.msra.mxu0 %v573
        %807 = vmatprep.subr.bf16.mxu0 %v566
        %808 = vmatpush1.bf16.msra.mxu0 %v565
        %809 = vmatprep.subr.bf16.mxu0 %v558
        %810 = vmatpush1.bf16.msra.mxu0 %v557
        %811 = vmatprep.subr.bf16.mxu0 0
        %812 = vmatpush2.bf16.msra.mxu0 0
        %813 = vmatprep.subr.bf16.mxu0 0
        %814 = vmatpush2.bf16.msra.mxu0 0
        %815 = vmatprep.subr.bf16.mxu0 0
        %816 = vmatpush2.bf16.msra.mxu0 0
        %817 = vmatprep.subr.bf16.mxu0 0
        %818 = vmatpush2.bf16.msra.mxu0 0
        %819 = vmatprep.subr.bf16.mxu0 0
        %820 = vmatpush2.bf16.msra.mxu0 0
        %821 = vmatprep.subr.bf16.mxu0 %v738
        %822 = vmatpush2.bf16.msra.mxu0 %v735
        %823 = vmatprep.subr.bf16.mxu0 %v630
        %824 = vmatpush2.bf16.msra.mxu0 %v629
        %825 = vmatprep.subr.bf16.mxu0 %v622
        %826 = vmatpush2.bf16.msra.mxu0 %v621
        %827 = vmatprep.mubr.bf16.mxu0 %v725
        %828 = vmatmul.mubr.bf16.gmra.mxu0 %v300
        %v829 = vpop.f32.mrf.mxu0
        %v830 = vadd.f32 0.0, %v829
        %v831 = vpop.f32.mrf.mxu0
        %v832 = vadd.f32 0.0, %v831
        %v833 = vpop.f32.mrf.mxu0
        %v834 = vadd.f32 0.0, %v833
        %v835 = vpop.f32.mrf.mxu0
        %v836 = vadd.f32 0.0, %v835
        %837 = vdwg.mxu0
        %838 = vmatprep.subr.bf16.mxu0 %v616
        %839 = vmatpush1.bf16.msra.mxu0 %v615
        %840 = vmatprep.subr.bf16.mxu0 %v608
        %841 = vmatpush1.bf16.msra.mxu0 %v607
        %842 = vmatprep.subr.bf16.mxu0 %v600
        %843 = vmatpush1.bf16.msra.mxu0 %v599
        %844 = vmatprep.subr.bf16.mxu0 %v592
        %845 = vmatpush1.bf16.msra.mxu0 %v591
        %846 = vmatprep.subr.bf16.mxu0 %v584
        %847 = vmatpush1.bf16.msra.mxu0 %v583
        %848 = vmatprep.subr.bf16.mxu0 %v576
        %849 = vmatpush1.bf16.msra.mxu0 %v575
        %850 = vmatprep.subr.bf16.mxu0 %v568
        %851 = vmatpush1.bf16.msra.mxu0 %v567
        %852 = vmatprep.subr.bf16.mxu0 %v560
        %853 = vmatpush1.bf16.msra.mxu0 %v559
        %854 = vmatprep.subr.bf16.mxu0 0
        %855 = vmatpush2.bf16.msra.mxu0 0
        %856 = vmatprep.subr.bf16.mxu0 0
        %857 = vmatpush2.bf16.msra.mxu0 0
        %858 = vmatprep.subr.bf16.mxu0 0
        %859 = vmatpush2.bf16.msra.mxu0 0
        %860 = vmatprep.subr.bf16.mxu0 0
        %861 = vmatpush2.bf16.msra.mxu0 0
        %862 = vmatprep.subr.bf16.mxu0 0
        %863 = vmatpush2.bf16.msra.mxu0 0
        %864 = vmatprep.subr.bf16.mxu0 %v744
        %865 = vmatpush2.bf16.msra.mxu0 %v741
        %866 = vmatprep.subr.bf16.mxu0 %v632
        %867 = vmatpush2.bf16.msra.mxu0 %v631
        %868 = vmatprep.subr.bf16.mxu0 %v624
        %869 = vmatpush2.bf16.msra.mxu0 %v623
        %870 = vmatprep.mubr.bf16.mxu0 %v725
        %871 = vmatmul.mubr.bf16.gmra.mxu0 %v300
        %v872 = vpop.f32.mrf.mxu0
        %v873 = vadd.f32 0.0, %v872
        %v874 = vpop.f32.mrf.mxu0
        %v875 = vadd.f32 0.0, %v874
        %v876 = vpop.f32.mrf.mxu0
        %v877 = vadd.f32 0.0, %v876
        %v878 = vpop.f32.mrf.mxu0
        %v879 = vadd.f32 0.0, %v878
        %880 = vdwg.mxu0
        %881 = vmatprep.subr.bf16.mxu0 %v618
        %882 = vmatpush1.bf16.msra.mxu0 %v617
        %883 = vmatprep.subr.bf16.mxu0 %v610
        %884 = vmatpush1.bf16.msra.mxu0 %v609
        %885 = vmatprep.subr.bf16.mxu0 %v602
        %886 = vmatpush1.bf16.msra.mxu0 %v601
        %887 = vmatprep.subr.bf16.mxu0 %v594
        %888 = vmatpush1.bf16.msra.mxu0 %v593
        %889 = vmatprep.subr.bf16.mxu0 %v586
        %890 = vmatpush1.bf16.msra.mxu0 %v585
        %891 = vmatprep.subr.bf16.mxu0 %v578
        %892 = vmatpush1.bf16.msra.mxu0 %v577
        %893 = vmatprep.subr.bf16.mxu0 %v570
        %894 = vmatpush1.bf16.msra.mxu0 %v569
        %895 = vmatprep.subr.bf16.mxu0 %v562
        %896 = vmatpush1.bf16.msra.mxu0 %v561
        %897 = vmatprep.subr.bf16.mxu0 0
        %898 = vmatpush2.bf16.msra.mxu0 0
        %899 = vmatprep.subr.bf16.mxu0 0
        %900 = vmatpush2.bf16.msra.mxu0 0
        %901 = vmatprep.subr.bf16.mxu0 0
        %902 = vmatpush2.bf16.msra.mxu0 0
        %903 = vmatprep.subr.bf16.mxu0 0
        %904 = vmatpush2.bf16.msra.mxu0 0
        %905 = vmatprep.subr.bf16.mxu0 0
        %906 = vmatpush2.bf16.msra.mxu0 0
        %907 = vmatprep.subr.bf16.mxu0 %v750
        %908 = vmatpush2.bf16.msra.mxu0 %v747
        %909 = vmatprep.subr.bf16.mxu0 %v634
        %910 = vmatpush2.bf16.msra.mxu0 %v633
        %911 = vmatprep.subr.bf16.mxu0 %v626
        %912 = vmatpush2.bf16.msra.mxu0 %v625
        %913 = vmatprep.mubr.bf16.mxu0 %v725
        %914 = vmatmul.mubr.bf16.gmra.mxu0 %v300
        %v915 = vpop.f32.mrf.mxu0
        %v916 = vadd.f32 0.0, %v915
        %v917 = vpop.f32.mrf.mxu0
        %v918 = vadd.f32 0.0, %v917
        %v919 = vpop.f32.mrf.mxu0
        %v920 = vadd.f32 0.0, %v919
        %v921 = vpop.f32.mrf.mxu0
        %v922 = vadd.f32 0.0, %v921
        %923 = vdwg.mxu0
        %930 = vrot.lane.b32.xlu0 %v789, 16
        %v931 = vpop.permute.xlu0 %930
        %932 = vrot.lane.b32.xlu0 %v830, 16
        %v933 = vpop.permute.xlu0 %932
        %934 = vrot.lane.b32.xlu0 %v832, 16
        %v935 = vpop.permute.xlu0 %934
        %936 = vrot.lane.b32.xlu0 %v793, 16
        %v937 = vpop.permute.xlu0 %936
        %938 = vrot.lane.b32.xlu0 %v834, 16
        %v939 = vpop.permute.xlu0 %938
        %940 = vrot.lane.b32.xlu0 %v836, 16
        %v941 = vpop.permute.xlu0 %940
        %vm942 = vcmask 130048
        %v943 = vsel %vm942, %v931, %v933
        %v944 = vsel %vm942, %v933, %v935
        %v945 = vsel %vm942, %v937, %v939
        %v946 = vsel %vm942, %v939, %v941
        %v951 = vmax.f32 %v787, %v943
        %v952 = vmax.f32 %v789, %v944
        %v953 = vmax.f32 %v791, %v945
        %v954 = vmax.f32 %v793, %v946
        %961 = vrot.lane.b32.xlu0 %v875, 16
        %v962 = vpop.permute.xlu0 %961
        %963 = vrot.lane.b32.xlu0 %v916, 16
        %v964 = vpop.permute.xlu0 %963
        %965 = vrot.lane.b32.xlu0 %v918, 16
        %v966 = vpop.permute.xlu0 %965
        %967 = vrot.lane.b32.xlu0 %v879, 16
        %v968 = vpop.permute.xlu0 %967
        %969 = vrot.lane.b32.xlu0 %v920, 16
        %v970 = vpop.permute.xlu0 %969
        %971 = vrot.lane.b32.xlu0 %v922, 16
        %v972 = vpop.permute.xlu0 %971
        %v973 = vsel %vm942, %v962, %v964
        %v974 = vsel %vm942, %v964, %v966
        %v975 = vsel %vm942, %v968, %v970
        %v976 = vsel %vm942, %v970, %v972
        %v983 = vmax.f32 %v832, %v962
        %v984 = vmax.f32 %v873, %v973
        %v985 = vmax.f32 %v875, %v974
        %v986 = vmax.f32 %v836, %v968
        %v987 = vmax.f32 %v877, %v975
        %v988 = vmax.f32 %v879, %v976
        %995 = vrot.lane.b32.xlu0 %v983, 32
        %v996 = vpop.permute.xlu0 %995
        %997 = vrot.lane.b32.xlu0 %v984, 32
        %v998 = vpop.permute.xlu0 %997
        %999 = vrot.lane.b32.xlu0 %v985, 32
        %v1000 = vpop.permute.xlu0 %999
        %1001 = vrot.lane.b32.xlu0 %v986, 32
        %v1002 = vpop.permute.xlu0 %1001
        %1003 = vrot.lane.b32.xlu0 %v987, 32
        %v1004 = vpop.permute.xlu0 %1003
        %1005 = vrot.lane.b32.xlu0 %v988, 32
        %v1006 = vpop.permute.xlu0 %1005
        %vm1007 = vcmask 261120
        %v1008 = vsel %vm1007, %v996, %v998
        %v1009 = vsel %vm1007, %v998, %v1000
        %v1010 = vsel %vm1007, %v1002, %v1004
        %v1011 = vsel %vm1007, %v1004, %v1006
        %v1016 = vmax.f32 %v951, %v1008
        %v1017 = vmax.f32 %v952, %v1009
        %v1018 = vmax.f32 %v953, %v1010
        %v1019 = vmax.f32 %v954, %v1011
        %v1020 = vld [vmem:[#allocation4] sm:$0x3]
        %v1022 = vlaneseq
        %v1023 = vshrl.u32 %v1022, 7
        %v1024 = vsub.s32 0, %v1023
        %v1025 = vrot.slane %v1020, %v1024
        %v1026 = vlaneseq
        %v1027 = vshrl.u32 %v1026, 7
        %v1028 = vsub.s32 1, %v1027
        %v1029 = vrot.slane %v1020, %v1028
        %v1032 = vadd.f32 %v1016, %v1025
        %v1033 = vadd.f32 %v1017, %v1029
        %v1034 = vadd.f32 %v1018, %v1025
        %v1035 = vadd.f32 %v1019, %v1029
        %v1036 = vmax.f32 %v1032, 0.0
        %v1037 = vmax.f32 %v1033, 0.0
        %v1038 = vmax.f32 %v1034, 0.0
        %v1039 = vmax.f32 %v1035, 0.0
        %v1040 = vpack.c.bf16 %v1038, %v1036
        %v1041 = vpack.c.bf16 %v1039, %v1037
        %v1044 = vunpack.c.l.b16 %v1040
        %v1045 = vunpack.c.l.b16 %v1041
        %v1046 = vunpack.c.h.b16 %v1040
        %v1047 = vunpack.c.h.b16 %v1041
        %v1048 = vpack.c.b16 %v1045, %v1044
        %v1049 = vpack.c.b16 %v1047, %v1046
        %vm1052 = vcmask 916484
        %vm1053 = vmor %vm1052, %vm727
        %1054 = vst.msk [vmem:[%s205] sm:$0xff] %vm1053, %v1048
        %1055 = vst.msk [vmem:[%s205 + $0x8] sm:$0xff] %vm1053, %v1049
        %s1056 = smul.u32 2, %s16
        %p1057 = scmp.lt.s32.totalorder %s1056, 3
        %s1058 = scalar_select %p1057, %s1056, 3
        %s1059 = smul.addr %s1058, 2
        %s1060 = smul.addr %s1059, 4
        %s1061 = scalar_lea.vmem %s3, %s1060
        // Predicated region
        $region41: #{net_forward.3} parent=31 // pred_check
          %p1062 = pneg %p102
        $region42: #{net_forward.3} parent=31 // pred_check_branch
          %1064 = sbr.rel (%p1062) target = $region44
        $region43: #{net_forward.3} parent=31 // pred_region
          %s1065 = smul.u32 2, %s16
        $region44: #{net_forward.3} parent=31 // pred_fallthru
          _
      $region32: #{net_forward.3} parent=5 // pred_fallthru
        _
      %p1066 = scmp.le.s32.totalorder 2, %s11
      // Predicated region
      $region45: #{net_forward.3} parent=5 // pred_check
        %p1067 = pneg %p1066
      $region46: #{net_forward.3} parent=5 // pred_check_branch
        %1069 = sbr.rel (%p1067) target = $region48
      $region47: #{net_forward.3} parent=5 // pred_region
        %s1070 = ssub.s32 %s11, 2
        // Predicated region
        $region49: #{net_forward.3} parent=47 // pred_check
          %p1071 = pneg %p108
        $region50: #{net_forward.3} parent=47 // pred_check_branch
          %1073 = sbr.rel (%p1071) target = $region52
        $region51: #{net_forward.3} parent=47 // pred_region
          %s1074 = smul.u32 2, %s17
          %p1075 = scmp.lt.s32.totalorder %s1074, 3
          %s1076 = scalar_select %p1075, %s1074, 3
          %s1077 = smul.addr %s1076, 2
          %s1078 = smul.addr %s1077, 4
          %s1079 = scalar_lea.vmem %s3, %s1078
        $region52: #{net_forward.3} parent=47 // pred_fallthru
          _
      $region48: #{net_forward.3} parent=5 // pred_fallthru
        _
    $region6: #{net_forward.3} parent=1 // loop_footer
      %s15 = sadd.s32 1, %s11
    $region7: #{net_forward.3} parent=1 // loop_footer_branch
      %10 = sbr.rel target = $region3
    $region8: #{net_forward.3} parent=1 // loop_exit
      _
    %1080 = vsyncpa [#allocation3], 1
    %s1081 = scalar_lea.sflag [#allocation3], 1
    %1082 = vsyncpa %s1081, 1
    %1083 = vsyncpa [#allocation5], 1

// kernel: net_forward.5
$region0: #{net_forward.5}
  #allocation0 [shape = 'u32[]', space=smem, size = 0x4, offset = 0x4, fixed_abs, tag = 'smem constant byte address 0x4 - core index']
  #allocation1 [shape = 'u32[144,128]{1,0:T(1,128)}', space=vmem, size = 0x12000, scoped, tag = 'internal scratch']
  %s0 = inlined_call_operand.vmem [shape: bf16[16,1024], index: 0, kind: input, shape index: {}]
  %s1 = inlined_call_operand.vmem [shape: bf16[1024,512], index: 1, kind: input, shape index: {}]
  %s2 = inlined_call_operand.vmem [shape: f32[1,512], index: 2, kind: input, shape index: {}]
  %s3 = inlined_call_operand.vmem [shape: bf16[512,128], index: 3, kind: input, shape index: {}]
  %s4 = inlined_call_operand.vmem [shape: f32[1,128], index: 4, kind: input, shape index: {}]
  %s5 = inlined_call_operand.vmem [shape: f32[16,128], index: 5, kind: output, shape index: {}]
  %s6 = sld [smem:[#allocation0]]
  $region30: #{net_forward.5} parent=0
    _
  %s8 = ssub.s32 1, %s6
  %s9 = scalar_select 0, %s8, %s6
  // Predicated region
  $region2: #{net_forward.5} parent=0 // pred_check
    _
  $region3: #{net_forward.5} parent=0 // pred_check_branch
    %11 = sbr.rel (0) target = $region5
  $region4: #{net_forward.5} parent=0 // pred_region
    _
  $region5: #{net_forward.5} parent=0 // pred_fallthru
    _
  // Predicated region
  $region6: #{net_forward.5} parent=0 // pred_check
    _
  $region7: #{net_forward.5} parent=0 // pred_check_branch
    %13 = sbr.rel (0) target = $region9
  $region8: #{net_forward.5} parent=0 // pred_region
    _
  $region9: #{net_forward.5} parent=0 // pred_fallthru
    _
  // Predicated region
  $region10: #{net_forward.5} parent=0 // pred_check
    _
  $region11: #{net_forward.5} parent=0 // pred_check_branch
    %15 = sbr.rel (0) target = $region13
  $region12: #{net_forward.5} parent=0 // pred_region
    _
  $region13: #{net_forward.5} parent=0 // pred_fallthru
    _
  // Predicated region
  $region14: #{net_forward.5} parent=0 // pred_check
    _
  $region15: #{net_forward.5} parent=0 // pred_check_branch
    %17 = sbr.rel (0) target = $region17
  $region16: #{net_forward.5} parent=0 // pred_region
    _
  $region17: #{net_forward.5} parent=0 // pred_fallthru
    _
  // Predicated region
  $region18: #{net_forward.5} parent=0 // pred_check
    _
  $region19: #{net_forward.5} parent=0 // pred_check_branch
    %19 = sbr.rel (0) target = $region21
  $region20: #{net_forward.5} parent=0 // pred_region
    _
  $region21: #{net_forward.5} parent=0 // pred_fallthru
    _
  %v21 = vld [vmem:[%s0] sm:$0xff]
  %v22 = vld [vmem:[%s0 + $0x8] sm:$0xff]
  %v23 = vld [vmem:[%s0 + $0x10] sm:$0xff]
  %v24 = vld [vmem:[%s0 + $0x18] sm:$0xff]
  %v25 = vld [vmem:[%s0 + $0x20] sm:$0xff]
  %v26 = vld [vmem:[%s0 + $0x28] sm:$0xff]
  %v27 = vld [vmem:[%s0 + $0x30] sm:$0xff]
  %v28 = vld [vmem:[%s0 + $0x38] sm:$0xff]
  %v29 = vld [vmem:[%s1] sm:$0xff]
  %v30 = vld [vmem:[%s1 + $0x8] sm:$0xff]
  %v31 = vld [vmem:[%s1 + $0x10] sm:$0xff]
  %v32 = vld [vmem:[%s1 + $0x18] sm:$0xff]
  %v33 = vld [vmem:[%s1 + $0x20] sm:$0xff]
  %v34 = vld [vmem:[%s1 + $0x28] sm:$0xff]
  %v35 = vld [vmem:[%s1 + $0x30] sm:$0xff]
  %v36 = vld [vmem:[%s1 + $0x38] sm:$0xff]
  %v37 = vld [vmem:[%s1 + $0x40] sm:$0xff]
  %v38 = vld [vmem:[%s1 + $0x48] sm:$0xff]
  %v39 = vld [vmem:[%s1 + $0x50] sm:$0xff]
  %v40 = vld [vmem:[%s1 + $0x58] sm:$0xff]
  %v41 = vld [vmem:[%s1 + $0x60] sm:$0xff]
  %v42 = vld [vmem:[%s1 + $0x68] sm:$0xff]
  %v43 = vld [vmem:[%s1 + $0x70] sm:$0xff]
  %v44 = vld [vmem:[%s1 + $0x78] sm:$0xff]
  %v45 = vld [vmem:[%s1 + $0x80] sm:$0xff]
  %v46 = vld [vmem:[%s1 + $0x88] sm:$0xff]
  %v47 = vld [vmem:[%s1 + $0x90] sm:$0xff]
  %v48 = vld [vmem:[%s1 + $0x98] sm:$0xff]
  %v49 = vld [vmem:[%s1 + $0xa0] sm:$0xff]
  %v50 = vld [vmem:[%s1 + $0xa8] sm:$0xff]
  %v51 = vld [vmem:[%s1 + $0xb0] sm:$0xff]
  %v52 = vld [vmem:[%s1 + $0xb8] sm:$0xff]
  %v53 = vld [vmem:[%s1 + $0xc0] sm:$0xff]
  %v54 = vld [vmem:[%s1 + $0xc8] sm:$0xff]
  %v55 = vld [vmem:[%s1 + $0xd0] sm:$0xff]
  %v56 = vld [vmem:[%s1 + $0xd8] sm:$0xff]
  %v57 = vld [vmem:[%s1 + $0xe0] sm:$0xff]
  %v58 = vld [vmem:[%s1 + $0xe8] sm:$0xff]
  %v59 = vld [vmem:[%s1 + $0xf0] sm:$0xff]
  %v60 = vld [vmem:[%s1 + $0xf8] sm:$0xff]
  %v61 = vld [vmem:[%s1 + $0x100] sm:$0xff]
  %v62 = vld [vmem:[%s1 + $0x108] sm:$0xff]
  %v63 = vld [vmem:[%s1 + $0x110] sm:$0xff]
  %v64 = vld [vmem:[%s1 + $0x118] sm:$0xff]
  %v65 = vld [vmem:[%s1 + $0x120] sm:$0xff]
  %v66 = vld [vmem:[%s1 + $0x128] sm:$0xff]
  %v67 = vld [vmem:[%s1 + $0x130] sm:$0xff]
  %v68 = vld [vmem:[%s1 + $0x138] sm:$0xff]
  %v69 = vld [vmem:[%s1 + $0x140] sm:$0xff]
  %v70 = vld [vmem:[%s1 + $0x148] sm:$0xff]
  %v71 = vld [vmem:[%s1 + $0x150] sm:$0xff]
  %v72 = vld [vmem:[%s1 + $0x158] sm:$0xff]
  %v73 = vld [vmem:[%s1 + $0x160] sm:$0xff]
  %v74 = vld [vmem:[%s1 + $0x168] sm:$0xff]
  %v75 = vld [vmem:[%s1 + $0x170] sm:$0xff]
  %v76 = vld [vmem:[%s1 + $0x178] sm:$0xff]
  %v77 = vld [vmem:[%s1 + $0x180] sm:$0xff]
  %v78 = vld [vmem:[%s1 + $0x188] sm:$0xff]
  %v79 = vld [vmem:[%s1 + $0x190] sm:$0xff]
  %v80 = vld [vmem:[%s1 + $0x198] sm:$0xff]
  %v81 = vld [vmem:[%s1 + $0x1a0] sm:$0xff]
  %v82 = vld [vmem:[%s1 + $0x1a8] sm:$0xff]
  %v83 = vld [vmem:[%s1 + $0x1b0] sm:$0xff]
  %v84 = vld [vmem:[%s1 + $0x1b8] sm:$0xff]
  %v85 = vld [vmem:[%s1 + $0x1c0] sm:$0xff]
  %v86 = vld [vmem:[%s1 + $0x1c8] sm:$0xff]
  %v87 = vld [vmem:[%s1 + $0x1d0] sm:$0xff]
  %v88 = vld [vmem:[%s1 + $0x1d8] sm:$0xff]
  %v89 = vld [vmem:[%s1 + $0x1e0] sm:$0xff]
  %v90 = vld [vmem:[%s1 + $0x1e8] sm:$0xff]
  %v91 = vld [vmem:[%s1 + $0x1f0] sm:$0xff]
  %v92 = vld [vmem:[%s1 + $0x1f8] sm:$0xff]
  %v93 = vld [vmem:[%s1 + $0x200] sm:$0xff]
  %v94 = vld [vmem:[%s1 + $0x208] sm:$0xff]
  %v95 = vld [vmem:[%s1 + $0x210] sm:$0xff]
  %v96 = vld [vmem:[%s1 + $0x218] sm:$0xff]
  %v97 = vld [vmem:[%s1 + $0x220] sm:$0xff]
  %v98 = vld [vmem:[%s1 + $0x228] sm:$0xff]
  %v99 = vld [vmem:[%s1 + $0x230] sm:$0xff]
  %v100 = vld [vmem:[%s1 + $0x238] sm:$0xff]
  %v101 = vld [vmem:[%s1 + $0x240] sm:$0xff]
  %v102 = vld [vmem:[%s1 + $0x248] sm:$0xff]
  %v103 = vld [vmem:[%s1 + $0x250] sm:$0xff]
  %v104 = vld [vmem:[%s1 + $0x258] sm:$0xff]
  %v105 = vld [vmem:[%s1 + $0x260] sm:$0xff]
  %v106 = vld [vmem:[%s1 + $0x268] sm:$0xff]
  %v107 = vld [vmem:[%s1 + $0x270] sm:$0xff]
  %v108 = vld [vmem:[%s1 + $0x278] sm:$0xff]
  %v109 = vld [vmem:[%s1 + $0x280] sm:$0xff]
  %v110 = vld [vmem:[%s1 + $0x288] sm:$0xff]
  %v111 = vld [vmem:[%s1 + $0x290] sm:$0xff]
  %v112 = vld [vmem:[%s1 + $0x298] sm:$0xff]
  %v113 = vld [vmem:[%s1 + $0x2a0] sm:$0xff]
  %v114 = vld [vmem:[%s1 + $0x2a8] sm:$0xff]
  %v115 = vld [vmem:[%s1 + $0x2b0] sm:$0xff]
  %v116 = vld [vmem:[%s1 + $0x2b8] sm:$0xff]
  %v117 = vld [vmem:[%s1 + $0x2c0] sm:$0xff]
  %v118 = vld [vmem:[%s1 + $0x2c8] sm:$0xff]
  %v119 = vld [vmem:[%s1 + $0x2d0] sm:$0xff]
  %v120 = vld [vmem:[%s1 + $0x2d8] sm:$0xff]
  %v121 = vld [vmem:[%s1 + $0x2e0] sm:$0xff]
  %v122 = vld [vmem:[%s1 + $0x2e8] sm:$0xff]
  %v123 = vld [vmem:[%s1 + $0x2f0] sm:$0xff]
  %v124 = vld [vmem:[%s1 + $0x2f8] sm:$0xff]
  %v125 = vld [vmem:[%s1 + $0x300] sm:$0xff]
  %v126 = vld [vmem:[%s1 + $0x308] sm:$0xff]
  %v127 = vld [vmem:[%s1 + $0x310] sm:$0xff]
  %v128 = vld [vmem:[%s1 + $0x318] sm:$0xff]
  %v129 = vld [vmem:[%s1 + $0x320] sm:$0xff]
  %v130 = vld [vmem:[%s1 + $0x328] sm:$0xff]
  %v131 = vld [vmem:[%s1 + $0x330] sm:$0xff]
  %v132 = vld [vmem:[%s1 + $0x338] sm:$0xff]
  %v133 = vld [vmem:[%s1 + $0x340] sm:$0xff]
  %v134 = vld [vmem:[%s1 + $0x348] sm:$0xff]
  %v135 = vld [vmem:[%s1 + $0x350] sm:$0xff]
  %v136 = vld [vmem:[%s1 + $0x358] sm:$0xff]
  %v137 = vld [vmem:[%s1 + $0x360] sm:$0xff]
  %v138 = vld [vmem:[%s1 + $0x368] sm:$0xff]
  %v139 = vld [vmem:[%s1 + $0x370] sm:$0xff]
  %v140 = vld [vmem:[%s1 + $0x378] sm:$0xff]
  %v141 = vld [vmem:[%s1 + $0x380] sm:$0xff]
  %v142 = vld [vmem:[%s1 + $0x388] sm:$0xff]
  %v143 = vld [vmem:[%s1 + $0x390] sm:$0xff]
  %v144 = vld [vmem:[%s1 + $0x398] sm:$0xff]
  %v145 = vld [vmem:[%s1 + $0x3a0] sm:$0xff]
  %v146 = vld [vmem:[%s1 + $0x3a8] sm:$0xff]
  %v147 = vld [vmem:[%s1 + $0x3b0] sm:$0xff]
  %v148 = vld [vmem:[%s1 + $0x3b8] sm:$0xff]
  %v149 = vld [vmem:[%s1 + $0x3c0] sm:$0xff]
  %v150 = vld [vmem:[%s1 + $0x3c8] sm:$0xff]
  %v151 = vld [vmem:[%s1 + $0x3d0] sm:$0xff]
  %v152 = vld [vmem:[%s1 + $0x3d8] sm:$0xff]
  %v153 = vld [vmem:[%s1 + $0x3e0] sm:$0xff]
  %v154 = vld [vmem:[%s1 + $0x3e8] sm:$0xff]
  %v155 = vld [vmem:[%s1 + $0x3f0] sm:$0xff]
  %v156 = vld [vmem:[%s1 + $0x3f8] sm:$0xff]
  %v157 = vld [vmem:[%s1 + $0x400] sm:$0xff]
  %v158 = vld [vmem:[%s1 + $0x408] sm:$0xff]
  %v159 = vld [vmem:[%s1 + $0x410] sm:$0xff]
  %v160 = vld [vmem:[%s1 + $0x418] sm:$0xff]
  %v161 = vld [vmem:[%s1 + $0x420] sm:$0xff]
  %v162 = vld [vmem:[%s1 + $0x428] sm:$0xff]
  %v163 = vld [vmem:[%s1 + $0x430] sm:$0xff]
  %v164 = vld [vmem:[%s1 + $0x438] sm:$0xff]
  %v165 = vld [vmem:[%s1 + $0x440] sm:$0xff]
  %v166 = vld [vmem:[%s1 + $0x448] sm:$0xff]
  %v167 = vld [vmem:[%s1 + $0x450] sm:$0xff]
  %v168 = vld [vmem:[%s1 + $0x458] sm:$0xff]
  %v169 = vld [vmem:[%s1 + $0x460] sm:$0xff]
  %v170 = vld [vmem:[%s1 + $0x468] sm:$0xff]
  %v171 = vld [vmem:[%s1 + $0x470] sm:$0xff]
  %v172 = vld [vmem:[%s1 + $0x478] sm:$0xff]
  %v173 = vld [vmem:[%s1 + $0x480] sm:$0xff]
  %v174 = vld [vmem:[%s1 + $0x488] sm:$0xff]
  %v175 = vld [vmem:[%s1 + $0x490] sm:$0xff]
  %v176 = vld [vmem:[%s1 + $0x498] sm:$0xff]
  %v177 = vld [vmem:[%s1 + $0x4a0] sm:$0xff]
  %v178 = vld [vmem:[%s1 + $0x4a8] sm:$0xff]
  %v179 = vld [vmem:[%s1 + $0x4b0] sm:$0xff]
  %v180 = vld [vmem:[%s1 + $0x4b8] sm:$0xff]
  %v181 = vld [vmem:[%s1 + $0x4c0] sm:$0xff]
  %v182 = vld [vmem:[%s1 + $0x4c8] sm:$0xff]
  %v183 = vld [vmem:[%s1 + $0x4d0] sm:$0xff]
  %v184 = vld [vmem:[%s1 + $0x4d8] sm:$0xff]
  %v185 = vld [vmem:[%s1 + $0x4e0] sm:$0xff]
  %v186 = vld [vmem:[%s1 + $0x4e8] sm:$0xff]
  %v187 = vld [vmem:[%s1 + $0x4f0] sm:$0xff]
  %v188 = vld [vmem:[%s1 + $0x4f8] sm:$0xff]
  %v189 = vld [vmem:[%s1 + $0x500] sm:$0xff]
  %v190 = vld [vmem:[%s1 + $0x508] sm:$0xff]
  %v191 = vld [vmem:[%s1 + $0x510] sm:$0xff]
  %v192 = vld [vmem:[%s1 + $0x518] sm:$0xff]
  %v193 = vld [vmem:[%s1 + $0x520] sm:$0xff]
  %v194 = vld [vmem:[%s1 + $0x528] sm:$0xff]
  %v195 = vld [vmem:[%s1 + $0x530] sm:$0xff]
  %v196 = vld [vmem:[%s1 + $0x538] sm:$0xff]
  %v197 = vld [vmem:[%s1 + $0x540] sm:$0xff]
  %v198 = vld [vmem:[%s1 + $0x548] sm:$0xff]
  %v199 = vld [vmem:[%s1 + $0x550] sm:$0xff]
  %v200 = vld [vmem:[%s1 + $0x558] sm:$0xff]
  %v201 = vld [vmem:[%s1 + $0x560] sm:$0xff]
  %v202 = vld [vmem:[%s1 + $0x568] sm:$0xff]
  %v203 = vld [vmem:[%s1 + $0x570] sm:$0xff]
  %v204 = vld [vmem:[%s1 + $0x578] sm:$0xff]
  %v205 = vld [vmem:[%s1 + $0x580] sm:$0xff]
  %v206 = vld [vmem:[%s1 + $0x588] sm:$0xff]
  %v207 = vld [vmem:[%s1 + $0x590] sm:$0xff]
  %v208 = vld [vmem:[%s1 + $0x598] sm:$0xff]
  %v209 = vld [vmem:[%s1 + $0x5a0] sm:$0xff]
  %v210 = vld [vmem:[%s1 + $0x5a8] sm:$0xff]
  %v211 = vld [vmem:[%s1 + $0x5b0] sm:$0xff]
  %v212 = vld [vmem:[%s1 + $0x5b8] sm:$0xff]
  %v213 = vld [vmem:[%s1 + $0x5c0] sm:$0xff]
  %v214 = vld [vmem:[%s1 + $0x5c8] sm:$0xff]
  %v215 = vld [vmem:[%s1 + $0x5d0] sm:$0xff]
  %v216 = vld [vmem:[%s1 + $0x5d8] sm:$0xff]
  %v217 = vld [vmem:[%s1 + $0x5e0] sm:$0xff]
  %v218 = vld [vmem:[%s1 + $0x5e8] sm:$0xff]
  %v219 = vld [vmem:[%s1 + $0x5f0] sm:$0xff]
  %v220 = vld [vmem:[%s1 + $0x5f8] sm:$0xff]
  %v221 = vld [vmem:[%s1 + $0x600] sm:$0xff]
  %v222 = vld [vmem:[%s1 + $0x608] sm:$0xff]
  %v223 = vld [vmem:[%s1 + $0x610] sm:$0xff]
  %v224 = vld [vmem:[%s1 + $0x618] sm:$0xff]
  %v225 = vld [vmem:[%s1 + $0x620] sm:$0xff]
  %v226 = vld [vmem:[%s1 + $0x628] sm:$0xff]
  %v227 = vld [vmem:[%s1 + $0x630] sm:$0xff]
  %v228 = vld [vmem:[%s1 + $0x638] sm:$0xff]
  %v229 = vld [vmem:[%s1 + $0x640] sm:$0xff]
  %v230 = vld [vmem:[%s1 + $0x648] sm:$0xff]
  %v231 = vld [vmem:[%s1 + $0x650] sm:$0xff]
  %v232 = vld [vmem:[%s1 + $0x658] sm:$0xff]
  %v233 = vld [vmem:[%s1 + $0x660] sm:$0xff]
  %v234 = vld [vmem:[%s1 + $0x668] sm:$0xff]
  %v235 = vld [vmem:[%s1 + $0x670] sm:$0xff]
  %v236 = vld [vmem:[%s1 + $0x678] sm:$0xff]
  %v237 = vld [vmem:[%s1 + $0x680] sm:$0xff]
  %v238 = vld [vmem:[%s1 + $0x688] sm:$0xff]
  %v239 = vld [vmem:[%s1 + $0x690] sm:$0xff]
  %v240 = vld [vmem:[%s1 + $0x698] sm:$0xff]
  %v241 = vld [vmem:[%s1 + $0x6a0] sm:$0xff]
  %v242 = vld [vmem:[%s1 + $0x6a8] sm:$0xff]
  %v243 = vld [vmem:[%s1 + $0x6b0] sm:$0xff]
  %v244 = vld [vmem:[%s1 + $0x6b8] sm:$0xff]
  %v245 = vld [vmem:[%s1 + $0x6c0] sm:$0xff]
  %v246 = vld [vmem:[%s1 + $0x6c8] sm:$0xff]
  %v247 = vld [vmem:[%s1 + $0x6d0] sm:$0xff]
  %v248 = vld [vmem:[%s1 + $0x6d8] sm:$0xff]
  %v249 = vld [vmem:[%s1 + $0x6e0] sm:$0xff]
  %v250 = vld [vmem:[%s1 + $0x6e8] sm:$0xff]
  %v251 = vld [vmem:[%s1 + $0x6f0] sm:$0xff]
  %v252 = vld [vmem:[%s1 + $0x6f8] sm:$0xff]
  %v253 = vld [vmem:[%s1 + $0x700] sm:$0xff]
  %v254 = vld [vmem:[%s1 + $0x708] sm:$0xff]
  %v255 = vld [vmem:[%s1 + $0x710] sm:$0xff]
  %v256 = vld [vmem:[%s1 + $0x718] sm:$0xff]
  %v257 = vld [vmem:[%s1 + $0x720] sm:$0xff]
  %v258 = vld [vmem:[%s1 + $0x728] sm:$0xff]
  %v259 = vld [vmem:[%s1 + $0x730] sm:$0xff]
  %v260 = vld [vmem:[%s1 + $0x738] sm:$0xff]
  %v261 = vld [vmem:[%s1 + $0x740] sm:$0xff]
  %v262 = vld [vmem:[%s1 + $0x748] sm:$0xff]
  %v263 = vld [vmem:[%s1 + $0x750] sm:$0xff]
  %v264 = vld [vmem:[%s1 + $0x758] sm:$0xff]
  %v265 = vld [vmem:[%s1 + $0x760] sm:$0xff]
  %v266 = vld [vmem:[%s1 + $0x768] sm:$0xff]
  %v267 = vld [vmem:[%s1 + $0x770] sm:$0xff]
  %v268 = vld [vmem:[%s1 + $0x778] sm:$0xff]
  %v269 = vld [vmem:[%s1 + $0x780] sm:$0xff]
  %v270 = vld [vmem:[%s1 + $0x788] sm:$0xff]
  %v271 = vld [vmem:[%s1 + $0x790] sm:$0xff]
  %v272 = vld [vmem:[%s1 + $0x798] sm:$0xff]
  %v273 = vld [vmem:[%s1 + $0x7a0] sm:$0xff]
  %v274 = vld [vmem:[%s1 + $0x7a8] sm:$0xff]
  %v275 = vld [vmem:[%s1 + $0x7b0] sm:$0xff]
  %v276 = vld [vmem:[%s1 + $0x7b8] sm:$0xff]
  %v277 = vld [vmem:[%s1 + $0x7c0] sm:$0xff]
  %v278 = vld [vmem:[%s1 + $0x7c8] sm:$0xff]
  %v279 = vld [vmem:[%s1 + $0x7d0] sm:$0xff]
  %v280 = vld [vmem:[%s1 + $0x7d8] sm:$0xff]
  %v281 = vld [vmem:[%s1 + $0x7e0] sm:$0xff]
  %v282 = vld [vmem:[%s1 + $0x7e8] sm:$0xff]
  %v283 = vld [vmem:[%s1 + $0x7f0] sm:$0xff]
  %v284 = vld [vmem:[%s1 + $0x7f8] sm:$0xff]
  %v285 = vld [vmem:[%s2] sm:$0xf]
  %v287 = vlaneseq
  %v288 = vshrl.u32 %v287, 7
  %v289 = vsub.s32 0, %v288
  %v290 = vrot.slane %v285, %v289
  %v291 = vlaneseq
  %v292 = vshrl.u32 %v291, 7
  %v293 = vsub.s32 1, %v292
  %v294 = vrot.slane %v285, %v293
  %v295 = vlaneseq
  %v296 = vshrl.u32 %v295, 7
  %v297 = vsub.s32 2, %v296
  %v298 = vrot.slane %v285, %v297
  %v299 = vlaneseq
  %v300 = vshrl.u32 %v299, 7
  %v301 = vsub.s32 3, %v300
  %v302 = vrot.slane %v285, %v301
  %v315 = vunpack.c.l.b16 %v21
  %v316 = vunpack.c.h.b16 %v21
  %v317 = vunpack.c.l.b16 %v22
  %v318 = vunpack.c.h.b16 %v22
  %v319 = vunpack.c.l.b16 %v23
  %v320 = vunpack.c.h.b16 %v23
  %v321 = vunpack.c.l.b16 %v24
  %v322 = vunpack.c.h.b16 %v24
  %v323 = vunpack.c.l.b16 %v25
  %v324 = vunpack.c.h.b16 %v25
  %v325 = vunpack.c.l.b16 %v26
  %v326 = vunpack.c.h.b16 %v26
  %v327 = vunpack.c.l.b16 %v27
  %v328 = vunpack.c.h.b16 %v27
  %v329 = vunpack.c.l.b16 %v28
  %v330 = vunpack.c.h.b16 %v28
  %v331 = vpack.c.b16 %v323, %v315
  %v332 = vpack.c.b16 %v324, %v316
  %v333 = vpack.c.b16 %v325, %v317
  %v334 = vpack.c.b16 %v326, %v318
  %v335 = vpack.c.b16 %v327, %v319
  %v336 = vpack.c.b16 %v328, %v320
  %v337 = vpack.c.b16 %v329, %v321
  %v338 = vpack.c.b16 %v330, %v322
  %v603 = vunpack.c.l.b16 %v29
  %v604 = vunpack.c.h.b16 %v29
  %v605 = vunpack.c.l.b16 %v30
  %v606 = vunpack.c.h.b16 %v30
  %v607 = vunpack.c.l.b16 %v31
  %v608 = vunpack.c.h.b16 %v31
  %v609 = vunpack.c.l.b16 %v32
  %v610 = vunpack.c.h.b16 %v32
  %v611 = vunpack.c.l.b16 %v33
  %v612 = vunpack.c.h.b16 %v33
  %v613 = vunpack.c.l.b16 %v34
  %v614 = vunpack.c.h.b16 %v34
  %v615 = vunpack.c.l.b16 %v35
  %v616 = vunpack.c.h.b16 %v35
  %v617 = vunpack.c.l.b16 %v36
  %v618 = vunpack.c.h.b16 %v36
  %v619 = vunpack.c.l.b16 %v37
  %v620 = vunpack.c.h.b16 %v37
  %v621 = vunpack.c.l.b16 %v38
  %v622 = vunpack.c.h.b16 %v38
  %v623 = vunpack.c.l.b16 %v39
  %v624 = vunpack.c.h.b16 %v39
  %v625 = vunpack.c.l.b16 %v40
  %v626 = vunpack.c.h.b16 %v40
  %v627 = vunpack.c.l.b16 %v41
  %v628 = vunpack.c.h.b16 %v41
  %v629 = vunpack.c.l.b16 %v42
  %v630 = vunpack.c.h.b16 %v42
  %v631 = vunpack.c.l.b16 %v43
  %v632 = vunpack.c.h.b16 %v43
  %v633 = vunpack.c.l.b16 %v44
  %v634 = vunpack.c.h.b16 %v44
  %v635 = vunpack.c.l.b16 %v45
  %v636 = vunpack.c.h.b16 %v45
  %v637 = vunpack.c.l.b16 %v46
  %v638 = vunpack.c.h.b16 %v46
  %v639 = vunpack.c.l.b16 %v47
  %v640 = vunpack.c.h.b16 %v47
  %v641 = vunpack.c.l.b16 %v48
  %v642 = vunpack.c.h.b16 %v48
  %v643 = vunpack.c.l.b16 %v49
  %v644 = vunpack.c.h.b16 %v49
  %v645 = vunpack.c.l.b16 %v50
  %v646 = vunpack.c.h.b16 %v50
  %v647 = vunpack.c.l.b16 %v51
  %v648 = vunpack.c.h.b16 %v51
  %v649 = vunpack.c.l.b16 %v52
  %v650 = vunpack.c.h.b16 %v52
  %v651 = vunpack.c.l.b16 %v53
  %v652 = vunpack.c.h.b16 %v53
  %v653 = vunpack.c.l.b16 %v54
  %v654 = vunpack.c.h.b16 %v54
  %v655 = vunpack.c.l.b16 %v55
  %v656 = vunpack.c.h.b16 %v55
  %v657 = vunpack.c.l.b16 %v56
  %v658 = vunpack.c.h.b16 %v56
  %v659 = vunpack.c.l.b16 %v57
  %v660 = vunpack.c.h.b16 %v57
  %v661 = vunpack.c.l.b16 %v58
  %v662 = vunpack.c.h.b16 %v58
  %v663 = vunpack.c.l.b16 %v59
  %v664 = vunpack.c.h.b16 %v59
  %v665 = vunpack.c.l.b16 %v60
  %v666 = vunpack.c.h.b16 %v60
  %v667 = vunpack.c.l.b16 %v61
  %v668 = vunpack.c.h.b16 %v61
  %v669 = vunpack.c.l.b16 %v62
  %v670 = vunpack.c.h.b16 %v62
  %v671 = vunpack.c.l.b16 %v63
  %v672 = vunpack.c.h.b16 %v63
  %v673 = vunpack.c.l.b16 %v64
  %v674 = vunpack.c.h.b16 %v64
  %v675 = vunpack.c.l.b16 %v65
  %v676 = vunpack.c.h.b16 %v65
  %v677 = vunpack.c.l.b16 %v66
  %v678 = vunpack.c.h.b16 %v66
  %v679 = vunpack.c.l.b16 %v67
  %v680 = vunpack.c.h.b16 %v67
  %v681 = vunpack.c.l.b16 %v68
  %v682 = vunpack.c.h.b16 %v68
  %v683 = vunpack.c.l.b16 %v69
  %v684 = vunpack.c.h.b16 %v69
  %v685 = vunpack.c.l.b16 %v70
  %v686 = vunpack.c.h.b16 %v70
  %v687 = vunpack.c.l.b16 %v71
  %v688 = vunpack.c.h.b16 %v71
  %v689 = vunpack.c.l.b16 %v72
  %v690 = vunpack.c.h.b16 %v72
  %v691 = vunpack.c.l.b16 %v73
  %v692 = vunpack.c.h.b16 %v73
  %v693 = vunpack.c.l.b16 %v74
  %v694 = vunpack.c.h.b16 %v74
  %v695 = vunpack.c.l.b16 %v75
  %v696 = vunpack.c.h.b16 %v75
  %v697 = vunpack.c.l.b16 %v76
  %v698 = vunpack.c.h.b16 %v76
  %v699 = vunpack.c.l.b16 %v77
  %v700 = vunpack.c.h.b16 %v77
  %v701 = vunpack.c.l.b16 %v78
  %v702 = vunpack.c.h.b16 %v78
  %v703 = vunpack.c.l.b16 %v79
  %v704 = vunpack.c.h.b16 %v79
  %v705 = vunpack.c.l.b16 %v80
  %v706 = vunpack.c.h.b16 %v80
  %v707 = vunpack.c.l.b16 %v81
  %v708 = vunpack.c.h.b16 %v81
  %v709 = vunpack.c.l.b16 %v82
  %v710 = vunpack.c.h.b16 %v82
  %v711 = vunpack.c.l.b16 %v83
  %v712 = vunpack.c.h.b16 %v83
  %v713 = vunpack.c.l.b16 %v84
  %v714 = vunpack.c.h.b16 %v84
  %v715 = vunpack.c.l.b16 %v85
  %v716 = vunpack.c.h.b16 %v85
  %v717 = vunpack.c.l.b16 %v86
  %v718 = vunpack.c.h.b16 %v86
  %v719 = vunpack.c.l.b16 %v87
  %v720 = vunpack.c.h.b16 %v87
  %v721 = vunpack.c.l.b16 %v88
  %v722 = vunpack.c.h.b16 %v88
  %v723 = vunpack.c.l.b16 %v89
  %v724 = vunpack.c.h.b16 %v89
  %v725 = vunpack.c.l.b16 %v90
  %v726 = vunpack.c.h.b16 %v90
  %v727 = vunpack.c.l.b16 %v91
  %v728 = vunpack.c.h.b16 %v91
  %v729 = vunpack.c.l.b16 %v92
  %v730 = vunpack.c.h.b16 %v92
  %v731 = vunpack.c.l.b16 %v93
  %v732 = vunpack.c.h.b16 %v93
  %v733 = vunpack.c.l.b16 %v94
  %v734 = vunpack.c.h.b16 %v94
  %v735 = vunpack.c.l.b16 %v95
  %v736 = vunpack.c.h.b16 %v95
  %v737 = vunpack.c.l.b16 %v96
  %v738 = vunpack.c.h.b16 %v96
  %v739 = vunpack.c.l.b16 %v97
  %v740 = vunpack.c.h.b16 %v97
  %v741 = vunpack.c.l.b16 %v98
  %v742 = vunpack.c.h.b16 %v98
  %v743 = vunpack.c.l.b16 %v99
  %v744 = vunpack.c.h.b16 %v99
  %v745 = vunpack.c.l.b16 %v100
  %v746 = vunpack.c.h.b16 %v100
  %v747 = vunpack.c.l.b16 %v101
  %v748 = vunpack.c.h.b16 %v101
  %v749 = vunpack.c.l.b16 %v102
  %v750 = vunpack.c.h.b16 %v102
  %v751 = vunpack.c.l.b16 %v103
  %v752 = vunpack.c.h.b16 %v103
  %v753 = vunpack.c.l.b16 %v104
  %v754 = vunpack.c.h.b16 %v104
  %v755 = vunpack.c.l.b16 %v105
  %v756 = vunpack.c.h.b16 %v105
  %v757 = vunpack.c.l.b16 %v106
  %v758 = vunpack.c.h.b16 %v106
  %v759 = vunpack.c.l.b16 %v107
  %v760 = vunpack.c.h.b16 %v107
  %v761 = vunpack.c.l.b16 %v108
  %v762 = vunpack.c.h.b16 %v108
  %v763 = vunpack.c.l.b16 %v109
  %v764 = vunpack.c.h.b16 %v109
  %v765 = vunpack.c.l.b16 %v110
  %v766 = vunpack.c.h.b16 %v110
  %v767 = vunpack.c.l.b16 %v111
  %v768 = vunpack.c.h.b16 %v111
  %v769 = vunpack.c.l.b16 %v112
  %v770 = vunpack.c.h.b16 %v112
  %v771 = vunpack.c.l.b16 %v113
  %v772 = vunpack.c.h.b16 %v113
  %v773 = vunpack.c.l.b16 %v114
  %v774 = vunpack.c.h.b16 %v114
  %v775 = vunpack.c.l.b16 %v115
  %v776 = vunpack.c.h.b16 %v115
  %v777 = vunpack.c.l.b16 %v116
  %v778 = vunpack.c.h.b16 %v116
  %v779 = vunpack.c.l.b16 %v117
  %v780 = vunpack.c.h.b16 %v117
  %v781 = vunpack.c.l.b16 %v118
  %v782 = vunpack.c.h.b16 %v118
  %v783 = vunpack.c.l.b16 %v119
  %v784 = vunpack.c.h.b16 %v119
  %v785 = vunpack.c.l.b16 %v120
  %v786 = vunpack.c.h.b16 %v120
  %v787 = vunpack.c.l.b16 %v121
  %v788 = vunpack.c.h.b16 %v121
  %v789 = vunpack.c.l.b16 %v122
  %v790 = vunpack.c.h.b16 %v122
  %v791 = vunpack.c.l.b16 %v123
  %v792 = vunpack.c.h.b16 %v123
  %v793 = vunpack.c.l.b16 %v124
  %v794 = vunpack.c.h.b16 %v124
  %v795 = vunpack.c.l.b16 %v125
  %v796 = vunpack.c.h.b16 %v125
  %v797 = vunpack.c.l.b16 %v126
  %v798 = vunpack.c.h.b16 %v126
  %v799 = vunpack.c.l.b16 %v127
  %v800 = vunpack.c.h.b16 %v127
  %v801 = vunpack.c.l.b16 %v128
  %v802 = vunpack.c.h.b16 %v128
  %v803 = vunpack.c.l.b16 %v129
  %v804 = vunpack.c.h.b16 %v129
  %v805 = vunpack.c.l.b16 %v130
  %v806 = vunpack.c.h.b16 %v130
  %v807 = vunpack.c.l.b16 %v131
  %v808 = vunpack.c.h.b16 %v131
  %v809 = vunpack.c.l.b16 %v132
  %v810 = vunpack.c.h.b16 %v132
  %v811 = vunpack.c.l.b16 %v133
  %v812 = vunpack.c.h.b16 %v133
  %v813 = vunpack.c.l.b16 %v134
  %v814 = vunpack.c.h.b16 %v134
  %v815 = vunpack.c.l.b16 %v135
  %v816 = vunpack.c.h.b16 %v135
  %v817 = vunpack.c.l.b16 %v136
  %v818 = vunpack.c.h.b16 %v136
  %v819 = vunpack.c.l.b16 %v137
  %v820 = vunpack.c.h.b16 %v137
  %v821 = vunpack.c.l.b16 %v138
  %v822 = vunpack.c.h.b16 %v138
  %v823 = vunpack.c.l.b16 %v139
  %v824 = vunpack.c.h.b16 %v139
  %v825 = vunpack.c.l.b16 %v140
  %v826 = vunpack.c.h.b16 %v140
  %v827 = vunpack.c.l.b16 %v141
  %v828 = vunpack.c.h.b16 %v141
  %v829 = vunpack.c.l.b16 %v142
  %v830 = vunpack.c.h.b16 %v142
  %v831 = vunpack.c.l.b16 %v143
  %v832 = vunpack.c.h.b16 %v143
  %v833 = vunpack.c.l.b16 %v144
  %v834 = vunpack.c.h.b16 %v144
  %v835 = vunpack.c.l.b16 %v145
  %v836 = vunpack.c.h.b16 %v145
  %v837 = vunpack.c.l.b16 %v146
  %v838 = vunpack.c.h.b16 %v146
  %v839 = vunpack.c.l.b16 %v147
  %v840 = vunpack.c.h.b16 %v147
  %v841 = vunpack.c.l.b16 %v148
  %v842 = vunpack.c.h.b16 %v148
  %v843 = vunpack.c.l.b16 %v149
  %v844 = vunpack.c.h.b16 %v149
  %v845 = vunpack.c.l.b16 %v150
  %v846 = vunpack.c.h.b16 %v150
  %v847 = vunpack.c.l.b16 %v151
  %v848 = vunpack.c.h.b16 %v151
  %v849 = vunpack.c.l.b16 %v152
  %v850 = vunpack.c.h.b16 %v152
  %v851 = vunpack.c.l.b16 %v153
  %v852 = vunpack.c.h.b16 %v153
  %v853 = vunpack.c.l.b16 %v154
  %v854 = vunpack.c.h.b16 %v154
  %v855 = vunpack.c.l.b16 %v155
  %v856 = vunpack.c.h.b16 %v155
  %v857 = vunpack.c.l.b16 %v156
  %v858 = vunpack.c.h.b16 %v156
  %v859 = vunpack.c.l.b16 %v157
  %v860 = vunpack.c.h.b16 %v157
  %v861 = vunpack.c.l.b16 %v158
  %v862 = vunpack.c.h.b16 %v158
  %v863 = vunpack.c.l.b16 %v159
  %v864 = vunpack.c.h.b16 %v159
  %v865 = vunpack.c.l.b16 %v160
  %v866 = vunpack.c.h.b16 %v160
  %v867 = vunpack.c.l.b16 %v161
  %v868 = vunpack.c.h.b16 %v161
  %v869 = vunpack.c.l.b16 %v162
  %v870 = vunpack.c.h.b16 %v162
  %v871 = vunpack.c.l.b16 %v163
  %v872 = vunpack.c.h.b16 %v163
  %v873 = vunpack.c.l.b16 %v164
  %v874 = vunpack.c.h.b16 %v164
  %v875 = vunpack.c.l.b16 %v165
  %v876 = vunpack.c.h.b16 %v165
  %v877 = vunpack.c.l.b16 %v166
  %v878 = vunpack.c.h.b16 %v166
  %v879 = vunpack.c.l.b16 %v167
  %v880 = vunpack.c.h.b16 %v167
  %v881 = vunpack.c.l.b16 %v168
  %v882 = vunpack.c.h.b16 %v168
  %v883 = vunpack.c.l.b16 %v169
  %v884 = vunpack.c.h.b16 %v169
  %v885 = vunpack.c.l.b16 %v170
  %v886 = vunpack.c.h.b16 %v170
  %v887 = vunpack.c.l.b16 %v171
  %v888 = vunpack.c.h.b16 %v171
  %v889 = vunpack.c.l.b16 %v172
  %v890 = vunpack.c.h.b16 %v172
  %v891 = vunpack.c.l.b16 %v173
  %v892 = vunpack.c.h.b16 %v173
  %v893 = vunpack.c.l.b16 %v174
  %v894 = vunpack.c.h.b16 %v174
  %v895 = vunpack.c.l.b16 %v175
  %v896 = vunpack.c.h.b16 %v175
  %v897 = vunpack.c.l.b16 %v176
  %v898 = vunpack.c.h.b16 %v176
  %v899 = vunpack.c.l.b16 %v177
  %v900 = vunpack.c.h.b16 %v177
  %v901 = vunpack.c.l.b16 %v178
  %v902 = vunpack.c.h.b16 %v178
  %v903 = vunpack.c.l.b16 %v179
  %v904 = vunpack.c.h.b16 %v179
  %v905 = vunpack.c.l.b16 %v180
  %v906 = vunpack.c.h.b16 %v180
  %v907 = vunpack.c.l.b16 %v181
  %v908 = vunpack.c.h.b16 %v181
  %v909 = vunpack.c.l.b16 %v182
  %v910 = vunpack.c.h.b16 %v182
  %v911 = vunpack.c.l.b16 %v183
  %v912 = vunpack.c.h.b16 %v183
  %v913 = vunpack.c.l.b16 %v184
  %v914 = vunpack.c.h.b16 %v184
  %v915 = vunpack.c.l.b16 %v185
  %v916 = vunpack.c.h.b16 %v185
  %v917 = vunpack.c.l.b16 %v186
  %v918 = vunpack.c.h.b16 %v186
  %v919 = vunpack.c.l.b16 %v187
  %v920 = vunpack.c.h.b16 %v187
  %v921 = vunpack.c.l.b16 %v188
  %v922 = vunpack.c.h.b16 %v188
  %v923 = vunpack.c.l.b16 %v189
  %v924 = vunpack.c.h.b16 %v189
  %v925 = vunpack.c.l.b16 %v190
  %v926 = vunpack.c.h.b16 %v190
  %v927 = vunpack.c.l.b16 %v191
  %v928 = vunpack.c.h.b16 %v191
  %v929 = vunpack.c.l.b16 %v192
  %v930 = vunpack.c.h.b16 %v192
  %v931 = vunpack.c.l.b16 %v193
  %v932 = vunpack.c.h.b16 %v193
  %v933 = vunpack.c.l.b16 %v194
  %v934 = vunpack.c.h.b16 %v194
  %v935 = vunpack.c.l.b16 %v195
  %v936 = vunpack.c.h.b16 %v195
  %v937 = vunpack.c.l.b16 %v196
  %v938 = vunpack.c.h.b16 %v196
  %v939 = vunpack.c.l.b16 %v197
  %v940 = vunpack.c.h.b16 %v197
  %v941 = vunpack.c.l.b16 %v198
  %v942 = vunpack.c.h.b16 %v198
  %v943 = vunpack.c.l.b16 %v199
  %v944 = vunpack.c.h.b16 %v199
  %v945 = vunpack.c.l.b16 %v200
  %v946 = vunpack.c.h.b16 %v200
  %v947 = vunpack.c.l.b16 %v201
  %v948 = vunpack.c.h.b16 %v201
  %v949 = vunpack.c.l.b16 %v202
  %v950 = vunpack.c.h.b16 %v202
  %v951 = vunpack.c.l.b16 %v203
  %v952 = vunpack.c.h.b16 %v203
  %v953 = vunpack.c.l.b16 %v204
  %v954 = vunpack.c.h.b16 %v204
  %v955 = vunpack.c.l.b16 %v205
  %v956 = vunpack.c.h.b16 %v205
  %v957 = vunpack.c.l.b16 %v206
  %v958 = vunpack.c.h.b16 %v206
  %v959 = vunpack.c.l.b16 %v207
  %v960 = vunpack.c.h.b16 %v207
  %v961 = vunpack.c.l.b16 %v208
  %v962 = vunpack.c.h.b16 %v208
  %v963 = vunpack.c.l.b16 %v209
  %v964 = vunpack.c.h.b16 %v209
  %v965 = vunpack.c.l.b16 %v210
  %v966 = vunpack.c.h.b16 %v210
  %v967 = vunpack.c.l.b16 %v211
  %v968 = vunpack.c.h.b16 %v211
  %v969 = vunpack.c.l.b16 %v212
  %v970 = vunpack.c.h.b16 %v212
  %v971 = vunpack.c.l.b16 %v213
  %v972 = vunpack.c.h.b16 %v213
  %v973 = vunpack.c.l.b16 %v214
  %v974 = vunpack.c.h.b16 %v214
  %v975 = vunpack.c.l.b16 %v215
  %v976 = vunpack.c.h.b16 %v215
  %v977 = vunpack.c.l.b16 %v216
  %v978 = vunpack.c.h.b16 %v216
  %v979 = vunpack.c.l.b16 %v217
  %v980 = vunpack.c.h.b16 %v217
  %v981 = vunpack.c.l.b16 %v218
  %v982 = vunpack.c.h.b16 %v218
  %v983 = vunpack.c.l.b16 %v219
  %v984 = vunpack.c.h.b16 %v219
  %v985 = vunpack.c.l.b16 %v220
  %v986 = vunpack.c.h.b16 %v220
  %v987 = vunpack.c.l.b16 %v221
  %v988 = vunpack.c.h.b16 %v221
  %v989 = vunpack.c.l.b16 %v222
  %v990 = vunpack.c.h.b16 %v222
  %v991 = vunpack.c.l.b16 %v223
  %v992 = vunpack.c.h.b16 %v223
  %v993 = vunpack.c.l.b16 %v224
  %v994 = vunpack.c.h.b16 %v224
  %v995 = vunpack.c.l.b16 %v225
  %v996 = vunpack.c.h.b16 %v225
  %v997 = vunpack.c.l.b16 %v226
  %v998 = vunpack.c.h.b16 %v226
  %v999 = vunpack.c.l.b16 %v227
  %v1000 = vunpack.c.h.b16 %v227
  %v1001 = vunpack.c.l.b16 %v228
  %v1002 = vunpack.c.h.b16 %v228
  %v1003 = vunpack.c.l.b16 %v229
  %v1004 = vunpack.c.h.b16 %v229
  %v1005 = vunpack.c.l.b16 %v230
  %v1006 = vunpack.c.h.b16 %v230
  %v1007 = vunpack.c.l.b16 %v231
  %v1008 = vunpack.c.h.b16 %v231
  %v1009 = vunpack.c.l.b16 %v232
  %v1010 = vunpack.c.h.b16 %v232
  %v1011 = vunpack.c.l.b16 %v233
  %v1012 = vunpack.c.h.b16 %v233
  %v1013 = vunpack.c.l.b16 %v234
  %v1014 = vunpack.c.h.b16 %v234
  %v1015 = vunpack.c.l.b16 %v235
  %v1016 = vunpack.c.h.b16 %v235
  %v1017 = vunpack.c.l.b16 %v236
  %v1018 = vunpack.c.h.b16 %v236
  %v1019 = vunpack.c.l.b16 %v237
  %v1020 = vunpack.c.h.b16 %v237
  %v1021 = vunpack.c.l.b16 %v238
  %v1022 = vunpack.c.h.b16 %v238
  %v1023 = vunpack.c.l.b16 %v239
  %v1024 = vunpack.c.h.b16 %v239
  %v1025 = vunpack.c.l.b16 %v240
  %v1026 = vunpack.c.h.b16 %v240
  %v1027 = vunpack.c.l.b16 %v241
  %v1028 = vunpack.c.h.b16 %v241
  %v1029 = vunpack.c.l.b16 %v242
  %v1030 = vunpack.c.h.b16 %v242
  %v1031 = vunpack.c.l.b16 %v243
  %v1032 = vunpack.c.h.b16 %v243
  %v1033 = vunpack.c.l.b16 %v244
  %v1034 = vunpack.c.h.b16 %v244
  %v1035 = vunpack.c.l.b16 %v245
  %v1036 = vunpack.c.h.b16 %v245
  %v1037 = vunpack.c.l.b16 %v246
  %v1038 = vunpack.c.h.b16 %v246
  %v1039 = vunpack.c.l.b16 %v247
  %v1040 = vunpack.c.h.b16 %v247
  %v1041 = vunpack.c.l.b16 %v248
  %v1042 = vunpack.c.h.b16 %v248
  %v1043 = vunpack.c.l.b16 %v249
  %v1044 = vunpack.c.h.b16 %v249
  %v1045 = vunpack.c.l.b16 %v250
  %v1046 = vunpack.c.h.b16 %v250
  %v1047 = vunpack.c.l.b16 %v251
  %v1048 = vunpack.c.h.b16 %v251
  %v1049 = vunpack.c.l.b16 %v252
  %v1050 = vunpack.c.h.b16 %v252
  %v1051 = vunpack.c.l.b16 %v253
  %v1052 = vunpack.c.h.b16 %v253
  %v1053 = vunpack.c.l.b16 %v254
  %v1054 = vunpack.c.h.b16 %v254
  %v1055 = vunpack.c.l.b16 %v255
  %v1056 = vunpack.c.h.b16 %v255
  %v1057 = vunpack.c.l.b16 %v256
  %v1058 = vunpack.c.h.b16 %v256
  %v1059 = vunpack.c.l.b16 %v257
  %v1060 = vunpack.c.h.b16 %v257
  %v1061 = vunpack.c.l.b16 %v258
  %v1062 = vunpack.c.h.b16 %v258
  %v1063 = vunpack.c.l.b16 %v259
  %v1064 = vunpack.c.h.b16 %v259
  %v1065 = vunpack.c.l.b16 %v260
  %v1066 = vunpack.c.h.b16 %v260
  %v1067 = vunpack.c.l.b16 %v261
  %v1068 = vunpack.c.h.b16 %v261
  %v1069 = vunpack.c.l.b16 %v262
  %v1070 = vunpack.c.h.b16 %v262
  %v1071 = vunpack.c.l.b16 %v263
  %v1072 = vunpack.c.h.b16 %v263
  %v1073 = vunpack.c.l.b16 %v264
  %v1074 = vunpack.c.h.b16 %v264
  %v1075 = vunpack.c.l.b16 %v265
  %v1076 = vunpack.c.h.b16 %v265
  %v1077 = vunpack.c.l.b16 %v266
  %v1078 = vunpack.c.h.b16 %v266
  %v1079 = vunpack.c.l.b16 %v267
  %v1080 = vunpack.c.h.b16 %v267
  %v1081 = vunpack.c.l.b16 %v268
  %v1082 = vunpack.c.h.b16 %v268
  %v1083 = vunpack.c.l.b16 %v269
  %v1084 = vunpack.c.h.b16 %v269
  %v1085 = vunpack.c.l.b16 %v270
  %v1086 = vunpack.c.h.b16 %v270
  %v1087 = vunpack.c.l.b16 %v271
  %v1088 = vunpack.c.h.b16 %v271
  %v1089 = vunpack.c.l.b16 %v272
  %v1090 = vunpack.c.h.b16 %v272
  %v1091 = vunpack.c.l.b16 %v273
  %v1092 = vunpack.c.h.b16 %v273
  %v1093 = vunpack.c.l.b16 %v274
  %v1094 = vunpack.c.h.b16 %v274
  %v1095 = vunpack.c.l.b16 %v275
  %v1096 = vunpack.c.h.b16 %v275
  %v1097 = vunpack.c.l.b16 %v276
  %v1098 = vunpack.c.h.b16 %v276
  %v1099 = vunpack.c.l.b16 %v277
  %v1100 = vunpack.c.h.b16 %v277
  %v1101 = vunpack.c.l.b16 %v278
  %v1102 = vunpack.c.h.b16 %v278
  %v1103 = vunpack.c.l.b16 %v279
  %v1104 = vunpack.c.h.b16 %v279
  %v1105 = vunpack.c.l.b16 %v280
  %v1106 = vunpack.c.h.b16 %v280
  %v1107 = vunpack.c.l.b16 %v281
  %v1108 = vunpack.c.h.b16 %v281
  %v1109 = vunpack.c.l.b16 %v282
  %v1110 = vunpack.c.h.b16 %v282
  %v1111 = vunpack.c.l.b16 %v283
  %v1112 = vunpack.c.h.b16 %v283
  %v1113 = vunpack.c.l.b16 %v284
  %v1114 = vunpack.c.h.b16 %v284
  %v1115 = vpack.c.b16 %v607, %v603
  %v1116 = vpack.c.b16 %v608, %v604
  %v1117 = vpack.c.b16 %v609, %v605
  %v1118 = vpack.c.b16 %v610, %v606
  %v1119 = vpack.c.b16 %v615, %v611
  %v1120 = vpack.c.b16 %v616, %v612
  %v1121 = vpack.c.b16 %v617, %v613
  %v1122 = vpack.c.b16 %v618, %v614
  %v1123 = vpack.c.b16 %v623, %v619
  %v1124 = vpack.c.b16 %v624, %v620
  %v1125 = vpack.c.b16 %v625, %v621
  %v1126 = vpack.c.b16 %v626, %v622
  %v1127 = vpack.c.b16 %v631, %v627
  %v1128 = vpack.c.b16 %v632, %v628
  %v1129 = vpack.c.b16 %v633, %v629
  %v1130 = vpack.c.b16 %v634, %v630
  %v1131 = vpack.c.b16 %v639, %v635
  %v1132 = vpack.c.b16 %v640, %v636
  %v1133 = vpack.c.b16 %v641, %v637
  %v1134 = vpack.c.b16 %v642, %v638
  %v1135 = vpack.c.b16 %v647, %v643
  %v1136 = vpack.c.b16 %v648, %v644
  %v1137 = vpack.c.b16 %v649, %v645
  %v1138 = vpack.c.b16 %v650, %v646
  %v1139 = vpack.c.b16 %v655, %v651
  %v1140 = vpack.c.b16 %v656, %v652
  %v1141 = vpack.c.b16 %v657, %v653
  %v1142 = vpack.c.b16 %v658, %v654
  %v1143 = vpack.c.b16 %v663, %v659
  %v1144 = vpack.c.b16 %v664, %v660
  %v1145 = vpack.c.b16 %v665, %v661
  %v1146 = vpack.c.b16 %v666, %v662
  %v1147 = vpack.c.b16 %v671, %v667
  %v1148 = vpack.c.b16 %v672, %v668
  %v1149 = vpack.c.b16 %v673, %v669
  %v1150 = vpack.c.b16 %v674, %v670
  %v1151 = vpack.c.b16 %v679, %v675
  %v1152 = vpack.c.b16 %v680, %v676
  %v1153 = vpack.c.b16 %v681, %v677
  %v1154 = vpack.c.b16 %v682, %v678
  %v1155 = vpack.c.b16 %v687, %v683
  %v1156 = vpack.c.b16 %v688, %v684
  %v1157 = vpack.c.b16 %v689, %v685
  %v1158 = vpack.c.b16 %v690, %v686
  %v1159 = vpack.c.b16 %v695, %v691
  %v1160 = vpack.c.b16 %v696, %v692
  %v1161 = vpack.c.b16 %v697, %v693
  %v1162 = vpack.c.b16 %v698, %v694
  %v1163 = vpack.c.b16 %v703, %v699
  %v1164 = vpack.c.b16 %v704, %v700
  %v1165 = vpack.c.b16 %v705, %v701
  %v1166 = vpack.c.b16 %v706, %v702
  %v1167 = vpack.c.b16 %v711, %v707
  %v1168 = vpack.c.b16 %v712, %v708
  %v1169 = vpack.c.b16 %v713, %v709
  %v1170 = vpack.c.b16 %v714, %v710
  %v1171 = vpack.c.b16 %v719, %v715
  %v1172 = vpack.c.b16 %v720, %v716
  %v1173 = vpack.c.b16 %v721, %v717
  %v1174 = vpack.c.b16 %v722, %v718
  %v1175 = vpack.c.b16 %v727, %v723
  %v1176 = vpack.c.b16 %v728, %v724
  %v1177 = vpack.c.b16 %v729, %v725
  %v1178 = vpack.c.b16 %v730, %v726
  %v1179 = vpack.c.b16 %v735, %v731
  %v1180 = vpack.c.b16 %v736, %v732
  %v1181 = vpack.c.b16 %v737, %v733
  %v1182 = vpack.c.b16 %v738, %v734
  %v1183 = vpack.c.b16 %v743, %v739
  %v1184 = vpack.c.b16 %v744, %v740
  %v1185 = vpack.c.b16 %v745, %v741
  %v1186 = vpack.c.b16 %v746, %v742
  %v1187 = vpack.c.b16 %v751, %v747
  %v1188 = vpack.c.b16 %v752, %v748
  %v1189 = vpack.c.b16 %v753, %v749
  %v1190 = vpack.c.b16 %v754, %v750
  %v1191 = vpack.c.b16 %v759, %v755
  %v1192 = vpack.c.b16 %v760, %v756
  %v1193 = vpack.c.b16 %v761, %v757
  %v1194 = vpack.c.b16 %v762, %v758
  %v1195 = vpack.c.b16 %v767, %v763
  %v1196 = vpack.c.b16 %v768, %v764
  %v1197 = vpack.c.b16 %v769, %v765
  %v1198 = vpack.c.b16 %v770, %v766
  %v1199 = vpack.c.b16 %v775, %v771
  %v1200 = vpack.c.b16 %v776, %v772
  %v1201 = vpack.c.b16 %v777, %v773
  %v1202 = vpack.c.b16 %v778, %v774
  %v1203 = vpack.c.b16 %v783, %v779
  %v1204 = vpack.c.b16 %v784, %v780
  %v1205 = vpack.c.b16 %v785, %v781
  %v1206 = vpack.c.b16 %v786, %v782
  %v1207 = vpack.c.b16 %v791, %v787
  %v1208 = vpack.c.b16 %v792, %v788
  %v1209 = vpack.c.b16 %v793, %v789
  %v1210 = vpack.c.b16 %v794, %v790
  %v1211 = vpack.c.b16 %v799, %v795
  %v1212 = vpack.c.b16 %v800, %v796
  %v1213 = vpack.c.b16 %v801, %v797
  %v1214 = vpack.c.b16 %v802, %v798
  %v1215 = vpack.c.b16 %v807, %v803
  %v1216 = vpack.c.b16 %v808, %v804
  %v1217 = vpack.c.b16 %v809, %v805
  %v1218 = vpack.c.b16 %v810, %v806
  %v1219 = vpack.c.b16 %v815, %v811
  %v1220 = vpack.c.b16 %v816, %v812
  %v1221 = vpack.c.b16 %v817, %v813
  %v1222 = vpack.c.b16 %v818, %v814
  %v1223 = vpack.c.b16 %v823, %v819
  %v1224 = vpack.c.b16 %v824, %v820
  %v1225 = vpack.c.b16 %v825, %v821
  %v1226 = vpack.c.b16 %v826, %v822
  %v1227 = vpack.c.b16 %v831, %v827
  %v1228 = vpack.c.b16 %v832, %v828
  %v1229 = vpack.c.b16 %v833, %v829
  %v1230 = vpack.c.b16 %v834, %v830
  %v1231 = vpack.c.b16 %v839, %v835
  %v1232 = vpack.c.b16 %v840, %v836
  %v1233 = vpack.c.b16 %v841, %v837
  %v1234 = vpack.c.b16 %v842, %v838
  %v1235 = vpack.c.b16 %v847, %v843
  %v1236 = vpack.c.b16 %v848, %v844
  %v1237 = vpack.c.b16 %v849, %v845
  %v1238 = vpack.c.b16 %v850, %v846
  %v1239 = vpack.c.b16 %v855, %v851
  %v1240 = vpack.c.b16 %v856, %v852
  %v1241 = vpack.c.b16 %v857, %v853
  %v1242 = vpack.c.b16 %v858, %v854
  %v1243 = vpack.c.b16 %v863, %v859
  %v1244 = vpack.c.b16 %v864, %v860
  %v1245 = vpack.c.b16 %v865, %v861
  %v1246 = vpack.c.b16 %v866, %v862
  %v1247 = vpack.c.b16 %v871, %v867
  %v1248 = vpack.c.b16 %v872, %v868
  %v1249 = vpack.c.b16 %v873, %v869
  %v1250 = vpack.c.b16 %v874, %v870
  %v1251 = vpack.c.b16 %v879, %v875
  %v1252 = vpack.c.b16 %v880, %v876
  %v1253 = vpack.c.b16 %v881, %v877
  %v1254 = vpack.c.b16 %v882, %v878
  %v1255 = vpack.c.b16 %v887, %v883
  %v1256 = vpack.c.b16 %v888, %v884
  %v1257 = vpack.c.b16 %v889, %v885
  %v1258 = vpack.c.b16 %v890, %v886
  %v1259 = vpack.c.b16 %v895, %v891
  %v1260 = vpack.c.b16 %v896, %v892
  %v1261 = vpack.c.b16 %v897, %v893
  %v1262 = vpack.c.b16 %v898, %v894
  %v1263 = vpack.c.b16 %v903, %v899
  %v1264 = vpack.c.b16 %v904, %v900
  %v1265 = vpack.c.b16 %v905, %v901
  %v1266 = vpack.c.b16 %v906, %v902
  %v1267 = vpack.c.b16 %v911, %v907
  %v1268 = vpack.c.b16 %v912, %v908
  %v1269 = vpack.c.b16 %v913, %v909
  %v1270 = vpack.c.b16 %v914, %v910
  %v1271 = vpack.c.b16 %v919, %v915
  %v1272 = vpack.c.b16 %v920, %v916
  %v1273 = vpack.c.b16 %v921, %v917
  %v1274 = vpack.c.b16 %v922, %v918
  %v1275 = vpack.c.b16 %v927, %v923
  %v1276 = vpack.c.b16 %v928, %v924
  %v1277 = vpack.c.b16 %v929, %v925
  %v1278 = vpack.c.b16 %v930, %v926
  %v1279 = vpack.c.b16 %v935, %v931
  %v1280 = vpack.c.b16 %v936, %v932
  %v1281 = vpack.c.b16 %v937, %v933
  %v1282 = vpack.c.b16 %v938, %v934
  %v1283 = vpack.c.b16 %v943, %v939
  %v1284 = vpack.c.b16 %v944, %v940
  %v1285 = vpack.c.b16 %v945, %v941
  %v1286 = vpack.c.b16 %v946, %v942
  %v1287 = vpack.c.b16 %v951, %v947
  %v1288 = vpack.c.b16 %v952, %v948
  %v1289 = vpack.c.b16 %v953, %v949
  %v1290 = vpack.c.b16 %v954, %v950
  %v1291 = vpack.c.b16 %v959, %v955
  %v1292 = vpack.c.b16 %v960, %v956
  %v1293 = vpack.c.b16 %v961, %v957
  %v1294 = vpack.c.b16 %v962, %v958
  %v1295 = vpack.c.b16 %v967, %v963
  %v1296 = vpack.c.b16 %v968, %v964
  %v1297 = vpack.c.b16 %v969, %v965
  %v1298 = vpack.c.b16 %v970, %v966
  %v1299 = vpack.c.b16 %v975, %v971
  %v1300 = vpack.c.b16 %v976, %v972
  %v1301 = vpack.c.b16 %v977, %v973
  %v1302 = vpack.c.b16 %v978, %v974
  %v1303 = vpack.c.b16 %v983, %v979
  %v1304 = vpack.c.b16 %v984, %v980
  %v1305 = vpack.c.b16 %v985, %v981
  %v1306 = vpack.c.b16 %v986, %v982
  %v1307 = vpack.c.b16 %v991, %v987
  %v1308 = vpack.c.b16 %v992, %v988
  %v1309 = vpack.c.b16 %v993, %v989
  %v1310 = vpack.c.b16 %v994, %v990
  %v1311 = vpack.c.b16 %v999, %v995
  %v1312 = vpack.c.b16 %v1000, %v996
  %v1313 = vpack.c.b16 %v1001, %v997
  %v1314 = vpack.c.b16 %v1002, %v998
  %v1315 = vpack.c.b16 %v1007, %v1003
  %v1316 = vpack.c.b16 %v1008, %v1004
  %v1317 = vpack.c.b16 %v1009, %v1005
  %v1318 = vpack.c.b16 %v1010, %v1006
  %v1319 = vpack.c.b16 %v1015, %v1011
  %v1320 = vpack.c.b16 %v1016, %v1012
  %v1321 = vpack.c.b16 %v1017, %v1013
  %v1322 = vpack.c.b16 %v1018, %v1014
  %v1323 = vpack.c.b16 %v1023, %v1019
  %v1324 = vpack.c.b16 %v1024, %v1020
  %v1325 = vpack.c.b16 %v1025, %v1021
  %v1326 = vpack.c.b16 %v1026, %v1022
  %v1327 = vpack.c.b16 %v1031, %v1027
  %v1328 = vpack.c.b16 %v1032, %v1028
  %v1329 = vpack.c.b16 %v1033, %v1029
  %v1330 = vpack.c.b16 %v1034, %v1030
  %v1331 = vpack.c.b16 %v1039, %v1035
  %v1332 = vpack.c.b16 %v1040, %v1036
  %v1333 = vpack.c.b16 %v1041, %v1037
  %v1334 = vpack.c.b16 %v1042, %v1038
  %v1335 = vpack.c.b16 %v1047, %v1043
  %v1336 = vpack.c.b16 %v1048, %v1044
  %v1337 = vpack.c.b16 %v1049, %v1045
  %v1338 = vpack.c.b16 %v1050, %v1046
  %v1339 = vpack.c.b16 %v1055, %v1051
  %v1340 = vpack.c.b16 %v1056, %v1052
  %v1341 = vpack.c.b16 %v1057, %v1053
  %v1342 = vpack.c.b16 %v1058, %v1054
  %v1343 = vpack.c.b16 %v1063, %v1059
  %v1344 = vpack.c.b16 %v1064, %v1060
  %v1345 = vpack.c.b16 %v1065, %v1061
  %v1346 = vpack.c.b16 %v1066, %v1062
  %v1347 = vpack.c.b16 %v1071, %v1067
  %v1348 = vpack.c.b16 %v1072, %v1068
  %v1349 = vpack.c.b16 %v1073, %v1069
  %v1350 = vpack.c.b16 %v1074, %v1070
  %v1351 = vpack.c.b16 %v1079, %v1075
  %v1352 = vpack.c.b16 %v1080, %v1076
  %v1353 = vpack.c.b16 %v1081, %v1077
  %v1354 = vpack.c.b16 %v1082, %v1078
  %v1355 = vpack.c.b16 %v1087, %v1083
  %v1356 = vpack.c.b16 %v1088, %v1084
  %v1357 = vpack.c.b16 %v1089, %v1085
  %v1358 = vpack.c.b16 %v1090, %v1086
  %v1359 = vpack.c.b16 %v1095, %v1091
  %v1360 = vpack.c.b16 %v1096, %v1092
  %v1361 = vpack.c.b16 %v1097, %v1093
  %v1362 = vpack.c.b16 %v1098, %v1094
  %v1363 = vpack.c.b16 %v1103, %v1099
  %v1364 = vpack.c.b16 %v1104, %v1100
  %v1365 = vpack.c.b16 %v1105, %v1101
  %v1366 = vpack.c.b16 %v1106, %v1102
  %v1367 = vpack.c.b16 %v1111, %v1107
  %v1368 = vpack.c.b16 %v1112, %v1108
  %v1369 = vpack.c.b16 %v1113, %v1109
  %v1370 = vpack.c.b16 %v1114, %v1110
  %1627 = vmatprep.subr.bf16.mxu0 %v1144
  %1628 = vmatpush1.bf16.msra.mxu0 %v1143
  %1629 = vmatprep.subr.bf16.mxu0 %v1140
  %1630 = vmatpush1.bf16.msra.mxu0 %v1139
  %1631 = vmatprep.subr.bf16.mxu0 %v1136
  %1632 = vmatpush1.bf16.msra.mxu0 %v1135
  %1633 = vmatprep.subr.bf16.mxu0 %v1132
  %1634 = vmatpush1.bf16.msra.mxu0 %v1131
  %1635 = vmatprep.subr.bf16.mxu0 %v1128
  %1636 = vmatpush1.bf16.msra.mxu0 %v1127
  %1637 = vmatprep.subr.bf16.mxu0 %v1124
  %1638 = vmatpush1.bf16.msra.mxu0 %v1123
  %1639 = vmatprep.subr.bf16.mxu0 %v1120
  %1640 = vmatpush1.bf16.msra.mxu0 %v1119
  %1641 = vmatprep.subr.bf16.mxu0 %v1116
  %1642 = vmatpush1.bf16.msra.mxu0 %v1115
  %1643 = vmatprep.subr.bf16.mxu0 %v1176
  %1644 = vmatpush2.bf16.msra.mxu0 %v1175
  %1645 = vmatprep.subr.bf16.mxu0 %v1172
  %1646 = vmatpush2.bf16.msra.mxu0 %v1171
  %1647 = vmatprep.subr.bf16.mxu0 %v1168
  %1648 = vmatpush2.bf16.msra.mxu0 %v1167
  %1649 = vmatprep.subr.bf16.mxu0 %v1164
  %1650 = vmatpush2.bf16.msra.mxu0 %v1163
  %1651 = vmatprep.subr.bf16.mxu0 %v1160
  %1652 = vmatpush2.bf16.msra.mxu0 %v1159
  %1653 = vmatprep.subr.bf16.mxu0 %v1156
  %1654 = vmatpush2.bf16.msra.mxu0 %v1155
  %1655 = vmatprep.subr.bf16.mxu0 %v1152
  %1656 = vmatpush2.bf16.msra.mxu0 %v1151
  %1657 = vmatprep.subr.bf16.mxu0 %v1148
  %1658 = vmatpush2.bf16.msra.mxu0 %v1147
  %1659 = vmatprep.mubr.bf16.mxu0 %v332
  %1660 = vmatmul.mubr.bf16.gmra.mxu0 %v331
  %v1661 = vpop.f32.mrf.mxu0
  %v1662 = vadd.f32 %v290, %v1661
  %v1663 = vpop.f32.mrf.mxu0
  %v1664 = vadd.f32 %v294, %v1663
  %v1665 = vpop.f32.mrf.mxu0
  %v1666 = vadd.f32 %v290, %v1665
  %v1667 = vpop.f32.mrf.mxu0
  %v1668 = vadd.f32 %v294, %v1667
  %1669 = vdwg.mxu0
  %1670 = vmatprep.subr.bf16.mxu0 %v1208
  %1671 = vmatpush1.bf16.msra.mxu0 %v1207
  %1672 = vmatprep.subr.bf16.mxu0 %v1204
  %1673 = vmatpush1.bf16.msra.mxu0 %v1203
  %1674 = vmatprep.subr.bf16.mxu0 %v1200
  %1675 = vmatpush1.bf16.msra.mxu0 %v1199
  %1676 = vmatprep.subr.bf16.mxu0 %v1196
  %1677 = vmatpush1.bf16.msra.mxu0 %v1195
  %1678 = vmatprep.subr.bf16.mxu0 %v1192
  %1679 = vmatpush1.bf16.msra.mxu0 %v1191
  %1680 = vmatprep.subr.bf16.mxu0 %v1188
  %1681 = vmatpush1.bf16.msra.mxu0 %v1187
  %1682 = vmatprep.subr.bf16.mxu0 %v1184
  %1683 = vmatpush1.bf16.msra.mxu0 %v1183
  %1684 = vmatprep.subr.bf16.mxu0 %v1180
  %1685 = vmatpush1.bf16.msra.mxu0 %v1179
  %1686 = vmatprep.subr.bf16.mxu0 %v1240
  %1687 = vmatpush2.bf16.msra.mxu0 %v1239
  %1688 = vmatprep.subr.bf16.mxu0 %v1236
  %1689 = vmatpush2.bf16.msra.mxu0 %v1235
  %1690 = vmatprep.subr.bf16.mxu0 %v1232
  %1691 = vmatpush2.bf16.msra.mxu0 %v1231
  %1692 = vmatprep.subr.bf16.mxu0 %v1228
  %1693 = vmatpush2.bf16.msra.mxu0 %v1227
  %1694 = vmatprep.subr.bf16.mxu0 %v1224
  %1695 = vmatpush2.bf16.msra.mxu0 %v1223
  %1696 = vmatprep.subr.bf16.mxu0 %v1220
  %1697 = vmatpush2.bf16.msra.mxu0 %v1219
  %1698 = vmatprep.subr.bf16.mxu0 %v1216
  %1699 = vmatpush2.bf16.msra.mxu0 %v1215
  %1700 = vmatprep.subr.bf16.mxu0 %v1212
  %1701 = vmatpush2.bf16.msra.mxu0 %v1211
  %1702 = vmatprep.mubr.bf16.mxu0 %v334
  %1703 = vmatmul.mubr.bf16.gmra.mxu0 %v333
  %v1704 = vpop.f32.mrf.mxu0
  %v1705 = vadd.f32 %v1662, %v1704
  %v1706 = vpop.f32.mrf.mxu0
  %v1707 = vadd.f32 %v1664, %v1706
  %v1708 = vpop.f32.mrf.mxu0
  %v1709 = vadd.f32 %v1666, %v1708
  %v1710 = vpop.f32.mrf.mxu0
  %v1711 = vadd.f32 %v1668, %v1710
  %1712 = vdwg.mxu0
  %1713 = vmatprep.subr.bf16.mxu0 %v1272
  %1714 = vmatpush1.bf16.msra.mxu0 %v1271
  %1715 = vmatprep.subr.bf16.mxu0 %v1268
  %1716 = vmatpush1.bf16.msra.mxu0 %v1267
  %1717 = vmatprep.subr.bf16.mxu0 %v1264
  %1718 = vmatpush1.bf16.msra.mxu0 %v1263
  %1719 = vmatprep.subr.bf16.mxu0 %v1260
  %1720 = vmatpush1.bf16.msra.mxu0 %v1259
  %1721 = vmatprep.subr.bf16.mxu0 %v1256
  %1722 = vmatpush1.bf16.msra.mxu0 %v1255
  %1723 = vmatprep.subr.bf16.mxu0 %v1252
  %1724 = vmatpush1.bf16.msra.mxu0 %v1251
  %1725 = vmatprep.subr.bf16.mxu0 %v1248
  %1726 = vmatpush1.bf16.msra.mxu0 %v1247
  %1727 = vmatprep.subr.bf16.mxu0 %v1244
  %1728 = vmatpush1.bf16.msra.mxu0 %v1243
  %1729 = vmatprep.subr.bf16.mxu0 %v1304
  %1730 = vmatpush2.bf16.msra.mxu0 %v1303
  %1731 = vmatprep.subr.bf16.mxu0 %v1300
  %1732 = vmatpush2.bf16.msra.mxu0 %v1299
  %1733 = vmatprep.subr.bf16.mxu0 %v1296
  %1734 = vmatpush2.bf16.msra.mxu0 %v1295
  %1735 = vmatprep.subr.bf16.mxu0 %v1292
  %1736 = vmatpush2.bf16.msra.mxu0 %v1291
  %1737 = vmatprep.subr.bf16.mxu0 %v1288
  %1738 = vmatpush2.bf16.msra.mxu0 %v1287
  %1739 = vmatprep.subr.bf16.mxu0 %v1284
  %1740 = vmatpush2.bf16.msra.mxu0 %v1283
  %1741 = vmatprep.subr.bf16.mxu0 %v1280
  %1742 = vmatpush2.bf16.msra.mxu0 %v1279
  %1743 = vmatprep.subr.bf16.mxu0 %v1276
  %1744 = vmatpush2.bf16.msra.mxu0 %v1275
  %1745 = vmatprep.mubr.bf16.mxu0 %v336
  %1746 = vmatmul.mubr.bf16.gmra.mxu0 %v335
  %v1747 = vpop.f32.mrf.mxu0
  %v1748 = vadd.f32 %v1705, %v1747
  %v1749 = vpop.f32.mrf.mxu0
  %v1750 = vadd.f32 %v1707, %v1749
  %v1751 = vpop.f32.mrf.mxu0
  %v1752 = vadd.f32 %v1709, %v1751
  %v1753 = vpop.f32.mrf.mxu0
  %v1754 = vadd.f32 %v1711, %v1753
  %1755 = vdwg.mxu0
  %1756 = vmatprep.subr.bf16.mxu0 %v1336
  %1757 = vmatpush1.bf16.msra.mxu0 %v1335
  %1758 = vmatprep.subr.bf16.mxu0 %v1332
  %1759 = vmatpush1.bf16.msra.mxu0 %v1331
  %1760 = vmatprep.subr.bf16.mxu0 %v1328
  %1761 = vmatpush1.bf16.msra.mxu0 %v1327
  %1762 = vmatprep.subr.bf16.mxu0 %v1324
  %1763 = vmatpush1.bf16.msra.mxu0 %v1323
  %1764 = vmatprep.subr.bf16.mxu0 %v1320
  %1765 = vmatpush1.bf16.msra.mxu0 %v1319
  %1766 = vmatprep.subr.bf16.mxu0 %v1316
  %1767 = vmatpush1.bf16.msra.mxu0 %v1315
  %1768 = vmatprep.subr.bf16.mxu0 %v1312
  %1769 = vmatpush1.bf16.msra.mxu0 %v1311
  %1770 = vmatprep.subr.bf16.mxu0 %v1308
  %1771 = vmatpush1.bf16.msra.mxu0 %v1307
  %1772 = vmatprep.subr.bf16.mxu0 %v1368
  %1773 = vmatpush2.bf16.msra.mxu0 %v1367
  %1774 = vmatprep.subr.bf16.mxu0 %v1364
  %1775 = vmatpush2.bf16.msra.mxu0 %v1363
  %1776 = vmatprep.subr.bf16.mxu0 %v1360
  %1777 = vmatpush2.bf16.msra.mxu0 %v1359
  %1778 = vmatprep.subr.bf16.mxu0 %v1356
  %1779 = vmatpush2.bf16.msra.mxu0 %v1355
  %1780 = vmatprep.subr.bf16.mxu0 %v1352
  %1781 = vmatpush2.bf16.msra.mxu0 %v1351
  %1782 = vmatprep.subr.bf16.mxu0 %v1348
  %1783 = vmatpush2.bf16.msra.mxu0 %v1347
  %1784 = vmatprep.subr.bf16.mxu0 %v1344
  %1785 = vmatpush2.bf16.msra.mxu0 %v1343
  %1786 = vmatprep.subr.bf16.mxu0 %v1340
  %1787 = vmatpush2.bf16.msra.mxu0 %v1339
  %1788 = vmatprep.mubr.bf16.mxu0 %v338
  %1789 = vmatmul.mubr.bf16.gmra.mxu0 %v337
  %v1790 = vpop.f32.mrf.mxu0
  %v1791 = vadd.f32 %v1748, %v1790
  %v1792 = vpop.f32.mrf.mxu0
  %v1793 = vadd.f32 %v1750, %v1792
  %v1794 = vpop.f32.mrf.mxu0
  %v1795 = vadd.f32 %v1752, %v1794
  %v1796 = vpop.f32.mrf.mxu0
  %v1797 = vadd.f32 %v1754, %v1796
  %1798 = vdwg.mxu0
  %1799 = vmatprep.subr.bf16.mxu0 %v1146
  %1800 = vmatpush1.bf16.msra.mxu0 %v1145
  %1801 = vmatprep.subr.bf16.mxu0 %v1142
  %1802 = vmatpush1.bf16.msra.mxu0 %v1141
  %1803 = vmatprep.subr.bf16.mxu0 %v1138
  %1804 = vmatpush1.bf16.msra.mxu0 %v1137
  %1805 = vmatprep.subr.bf16.mxu0 %v1134
  %1806 = vmatpush1.bf16.msra.mxu0 %v1133
  %1807 = vmatprep.subr.bf16.mxu0 %v1130
  %1808 = vmatpush1.bf16.msra.mxu0 %v1129
  %1809 = vmatprep.subr.bf16.mxu0 %v1126
  %1810 = vmatpush1.bf16.msra.mxu0 %v1125
  %1811 = vmatprep.subr.bf16.mxu0 %v1122
  %1812 = vmatpush1.bf16.msra.mxu0 %v1121
  %1813 = vmatprep.subr.bf16.mxu0 %v1118
  %1814 = vmatpush1.bf16.msra.mxu0 %v1117
  %1815 = vmatprep.subr.bf16.mxu0 %v1178
  %1816 = vmatpush2.bf16.msra.mxu0 %v1177
  %1817 = vmatprep.subr.bf16.mxu0 %v1174
  %1818 = vmatpush2.bf16.msra.mxu0 %v1173
  %1819 = vmatprep.subr.bf16.mxu0 %v1170
  %1820 = vmatpush2.bf16.msra.mxu0 %v1169
  %1821 = vmatprep.subr.bf16.mxu0 %v1166
  %1822 = vmatpush2.bf16.msra.mxu0 %v1165
  %1823 = vmatprep.subr.bf16.mxu0 %v1162
  %1824 = vmatpush2.bf16.msra.mxu0 %v1161
  %1825 = vmatprep.subr.bf16.mxu0 %v1158
  %1826 = vmatpush2.bf16.msra.mxu0 %v1157
  %1827 = vmatprep.subr.bf16.mxu0 %v1154
  %1828 = vmatpush2.bf16.msra.mxu0 %v1153
  %1829 = vmatprep.subr.bf16.mxu0 %v1150
  %1830 = vmatpush2.bf16.msra.mxu0 %v1149
  %1831 = vmatprep.mubr.bf16.mxu0 %v332
  %1832 = vmatmul.mubr.bf16.gmra.mxu0 %v331
  %v1833 = vpop.f32.mrf.mxu0
  %v1834 = vadd.f32 %v298, %v1833
  %v1835 = vpop.f32.mrf.mxu0
  %v1836 = vadd.f32 %v302, %v1835
  %v1837 = vpop.f32.mrf.mxu0
  %v1838 = vadd.f32 %v298, %v1837
  %v1839 = vpop.f32.mrf.mxu0
  %v1840 = vadd.f32 %v302, %v1839
  %1841 = vdwg.mxu0
  %1842 = vmatprep.subr.bf16.mxu0 %v1210
  %1843 = vmatpush1.bf16.msra.mxu0 %v1209
  %1844 = vmatprep.subr.bf16.mxu0 %v1206
  %1845 = vmatpush1.bf16.msra.mxu0 %v1205
  %1846 = vmatprep.subr.bf16.mxu0 %v1202
  %1847 = vmatpush1.bf16.msra.mxu0 %v1201
  %1848 = vmatprep.subr.bf16.mxu0 %v1198
  %1849 = vmatpush1.bf16.msra.mxu0 %v1197
  %1850 = vmatprep.subr.bf16.mxu0 %v1194
  %1851 = vmatpush1.bf16.msra.mxu0 %v1193
  %1852 = vmatprep.subr.bf16.mxu0 %v1190
  %1853 = vmatpush1.bf16.msra.mxu0 %v1189
  %1854 = vmatprep.subr.bf16.mxu0 %v1186
  %1855 = vmatpush1.bf16.msra.mxu0 %v1185
  %1856 = vmatprep.subr.bf16.mxu0 %v1182
  %1857 = vmatpush1.bf16.msra.mxu0 %v1181
  %1858 = vmatprep.subr.bf16.mxu0 %v1242
  %1859 = vmatpush2.bf16.msra.mxu0 %v1241
  %1860 = vmatprep.subr.bf16.mxu0 %v1238
  %1861 = vmatpush2.bf16.msra.mxu0 %v1237
  %1862 = vmatprep.subr.bf16.mxu0 %v1234
  %1863 = vmatpush2.bf16.msra.mxu0 %v1233
  %1864 = vmatprep.subr.bf16.mxu0 %v1230
  %1865 = vmatpush2.bf16.msra.mxu0 %v1229
  %1866 = vmatprep.subr.bf16.mxu0 %v1226
  %1867 = vmatpush2.bf16.msra.mxu0 %v1225
  %1868 = vmatprep.subr.bf16.mxu0 %v1222
  %1869 = vmatpush2.bf16.msra.mxu0 %v1221
  %1870 = vmatprep.subr.bf16.mxu0 %v1218
  %1871 = vmatpush2.bf16.msra.mxu0 %v1217
  %1872 = vmatprep.subr.bf16.mxu0 %v1214
  %1873 = vmatpush2.bf16.msra.mxu0 %v1213
  %1874 = vmatprep.mubr.bf16.mxu0 %v334
  %1875 = vmatmul.mubr.bf16.gmra.mxu0 %v333
  %v1876 = vpop.f32.mrf.mxu0
  %v1877 = vadd.f32 %v1834, %v1876
  %v1878 = vpop.f32.mrf.mxu0
  %v1879 = vadd.f32 %v1836, %v1878
  %v1880 = vpop.f32.mrf.mxu0
  %v1881 = vadd.f32 %v1838, %v1880
  %v1882 = vpop.f32.mrf.mxu0
  %v1883 = vadd.f32 %v1840, %v1882
  %1884 = vdwg.mxu0
  %1885 = vmatprep.subr.bf16.mxu0 %v1274
  %1886 = vmatpush1.bf16.msra.mxu0 %v1273
  %1887 = vmatprep.subr.bf16.mxu0 %v1270
  %1888 = vmatpush1.bf16.msra.mxu0 %v1269
  %1889 = vmatprep.subr.bf16.mxu0 %v1266
  %1890 = vmatpush1.bf16.msra.mxu0 %v1265
  %1891 = vmatprep.subr.bf16.mxu0 %v1262
  %1892 = vmatpush1.bf16.msra.mxu0 %v1261
  %1893 = vmatprep.subr.bf16.mxu0 %v1258
  %1894 = vmatpush1.bf16.msra.mxu0 %v1257
  %1895 = vmatprep.subr.bf16.mxu0 %v1254
  %1896 = vmatpush1.bf16.msra.mxu0 %v1253
  %1897 = vmatprep.subr.bf16.mxu0 %v1250
  %1898 = vmatpush1.bf16.msra.mxu0 %v1249
  %1899 = vmatprep.subr.bf16.mxu0 %v1246
  %1900 = vmatpush1.bf16.msra.mxu0 %v1245
  %1901 = vmatprep.subr.bf16.mxu0 %v1306
  %1902 = vmatpush2.bf16.msra.mxu0 %v1305
  %1903 = vmatprep.subr.bf16.mxu0 %v1302
  %1904 = vmatpush2.bf16.msra.mxu0 %v1301
  %1905 = vmatprep.subr.bf16.mxu0 %v1298
  %1906 = vmatpush2.bf16.msra.mxu0 %v1297
  %1907 = vmatprep.subr.bf16.mxu0 %v1294
  %1908 = vmatpush2.bf16.msra.mxu0 %v1293
  %1909 = vmatprep.subr.bf16.mxu0 %v1290
  %1910 = vmatpush2.bf16.msra.mxu0 %v1289
  %1911 = vmatprep.subr.bf16.mxu0 %v1286
  %1912 = vmatpush2.bf16.msra.mxu0 %v1285
  %1913 = vmatprep.subr.bf16.mxu0 %v1282
  %1914 = vmatpush2.bf16.msra.mxu0 %v1281
  %1915 = vmatprep.subr.bf16.mxu0 %v1278
  %1916 = vmatpush2.bf16.msra.mxu0 %v1277
  %1917 = vmatprep.mubr.bf16.mxu0 %v336
  %1918 = vmatmul.mubr.bf16.gmra.mxu0 %v335
  %v1919 = vpop.f32.mrf.mxu0
  %v1920 = vadd.f32 %v1877, %v1919
  %v1921 = vpop.f32.mrf.mxu0
  %v1922 = vadd.f32 %v1879, %v1921
  %v1923 = vpop.f32.mrf.mxu0
  %v1924 = vadd.f32 %v1881, %v1923
  %v1925 = vpop.f32.mrf.mxu0
  %v1926 = vadd.f32 %v1883, %v1925
  %1927 = vdwg.mxu0
  %1928 = vmatprep.subr.bf16.mxu0 %v1338
  %1929 = vmatpush1.bf16.msra.mxu0 %v1337
  %1930 = vmatprep.subr.bf16.mxu0 %v1334
  %1931 = vmatpush1.bf16.msra.mxu0 %v1333
  %1932 = vmatprep.subr.bf16.mxu0 %v1330
  %1933 = vmatpush1.bf16.msra.mxu0 %v1329
  %1934 = vmatprep.subr.bf16.mxu0 %v1326
  %1935 = vmatpush1.bf16.msra.mxu0 %v1325
  %1936 = vmatprep.subr.bf16.mxu0 %v1322
  %1937 = vmatpush1.bf16.msra.mxu0 %v1321
  %1938 = vmatprep.subr.bf16.mxu0 %v1318
  %1939 = vmatpush1.bf16.msra.mxu0 %v1317
  %1940 = vmatprep.subr.bf16.mxu0 %v1314
  %1941 = vmatpush1.bf16.msra.mxu0 %v1313
  %1942 = vmatprep.subr.bf16.mxu0 %v1310
  %1943 = vmatpush1.bf16.msra.mxu0 %v1309
  %1944 = vmatprep.subr.bf16.mxu0 %v1370
  %1945 = vmatpush2.bf16.msra.mxu0 %v1369
  %1946 = vmatprep.subr.bf16.mxu0 %v1366
  %1947 = vmatpush2.bf16.msra.mxu0 %v1365
  %1948 = vmatprep.subr.bf16.mxu0 %v1362
  %1949 = vmatpush2.bf16.msra.mxu0 %v1361
  %1950 = vmatprep.subr.bf16.mxu0 %v1358
  %1951 = vmatpush2.bf16.msra.mxu0 %v1357
  %1952 = vmatprep.subr.bf16.mxu0 %v1354
  %1953 = vmatpush2.bf16.msra.mxu0 %v1353
  %1954 = vmatprep.subr.bf16.mxu0 %v1350
  %1955 = vmatpush2.bf16.msra.mxu0 %v1349
  %1956 = vmatprep.subr.bf16.mxu0 %v1346
  %1957 = vmatpush2.bf16.msra.mxu0 %v1345
  %1958 = vmatprep.subr.bf16.mxu0 %v1342
  %1959 = vmatpush2.bf16.msra.mxu0 %v1341
  %1960 = vmatprep.mubr.bf16.mxu0 %v338
  %1961 = vmatmul.mubr.bf16.gmra.mxu0 %v337
  %v1962 = vpop.f32.mrf.mxu0
  %v1963 = vadd.f32 %v1920, %v1962
  %v1964 = vpop.f32.mrf.mxu0
  %v1965 = vadd.f32 %v1922, %v1964
  %v1966 = vpop.f32.mrf.mxu0
  %v1967 = vadd.f32 %v1924, %v1966
  %v1968 = vpop.f32.mrf.mxu0
  %v1969 = vadd.f32 %v1926, %v1968
  %1970 = vdwg.mxu0
  %v1971 = vmax.f32 %v1791, 0.0
  %v1972 = vmax.f32 %v1793, 0.0
  %v1973 = vmax.f32 %v1963, 0.0
  %v1974 = vmax.f32 %v1965, 0.0
  %v1975 = vmax.f32 %v1795, 0.0
  %v1976 = vmax.f32 %v1797, 0.0
  %v1977 = vmax.f32 %v1967, 0.0
  %v1978 = vmax.f32 %v1969, 0.0
  %v1979 = vpack.c.bf16 %v1975, %v1971
  %v1980 = vpack.c.bf16 %v1976, %v1972
  %v1981 = vpack.c.bf16 %v1977, %v1973
  %v1982 = vpack.c.bf16 %v1978, %v1974
  %v1983 = vld [vmem:[%s3] sm:$0xf]
  %v1984 = vld [vmem:[%s3 + $0x4] sm:$0xf]
  %v1985 = vld [vmem:[%s3 + $0x8] sm:$0xf]
  %v1986 = vld [vmem:[%s3 + $0xc] sm:$0xf]
  %v1987 = vld [vmem:[%s3 + $0x10] sm:$0xf]
  %v1988 = vld [vmem:[%s3 + $0x14] sm:$0xf]
  %v1989 = vld [vmem:[%s3 + $0x18] sm:$0xf]
  %v1990 = vld [vmem:[%s3 + $0x1c] sm:$0xf]
  %v1991 = vld [vmem:[%s3 + $0x20] sm:$0xf]
  %v1992 = vld [vmem:[%s3 + $0x24] sm:$0xf]
  %v1993 = vld [vmem:[%s3 + $0x28] sm:$0xf]
  %v1994 = vld [vmem:[%s3 + $0x2c] sm:$0xf]
  %v1995 = vld [vmem:[%s3 + $0x30] sm:$0xf]
  %v1996 = vld [vmem:[%s3 + $0x34] sm:$0xf]
  %v1997 = vld [vmem:[%s3 + $0x38] sm:$0xf]
  %v1998 = vld [vmem:[%s3 + $0x3c] sm:$0xf]
  %v1999 = vld [vmem:[%s3 + $0x40] sm:$0xf]
  %v2000 = vld [vmem:[%s3 + $0x44] sm:$0xf]
  %v2001 = vld [vmem:[%s3 + $0x48] sm:$0xf]
  %v2002 = vld [vmem:[%s3 + $0x4c] sm:$0xf]
  %v2003 = vld [vmem:[%s3 + $0x50] sm:$0xf]
  %v2004 = vld [vmem:[%s3 + $0x54] sm:$0xf]
  %v2005 = vld [vmem:[%s3 + $0x58] sm:$0xf]
  %v2006 = vld [vmem:[%s3 + $0x5c] sm:$0xf]
  %v2007 = vld [vmem:[%s3 + $0x60] sm:$0xf]
  %v2008 = vld [vmem:[%s3 + $0x64] sm:$0xf]
  %v2009 = vld [vmem:[%s3 + $0x68] sm:$0xf]
  %v2010 = vld [vmem:[%s3 + $0x6c] sm:$0xf]
  %v2011 = vld [vmem:[%s3 + $0x70] sm:$0xf]
  %v2012 = vld [vmem:[%s3 + $0x74] sm:$0xf]
  %v2013 = vld [vmem:[%s3 + $0x78] sm:$0xf]
  %v2014 = vld [vmem:[%s3 + $0x7c] sm:$0xf]
  %v2015 = vld [vmem:[%s3 + $0x80] sm:$0xf]
  %v2016 = vld [vmem:[%s3 + $0x84] sm:$0xf]
  %v2017 = vld [vmem:[%s3 + $0x88] sm:$0xf]
  %v2018 = vld [vmem:[%s3 + $0x8c] sm:$0xf]
  %v2019 = vld [vmem:[%s3 + $0x90] sm:$0xf]
  %v2020 = vld [vmem:[%s3 + $0x94] sm:$0xf]
  %v2021 = vld [vmem:[%s3 + $0x98] sm:$0xf]
  %v2022 = vld [vmem:[%s3 + $0x9c] sm:$0xf]
  %v2023 = vld [vmem:[%s3 + $0xa0] sm:$0xf]
  %v2024 = vld [vmem:[%s3 + $0xa4] sm:$0xf]
  %v2025 = vld [vmem:[%s3 + $0xa8] sm:$0xf]
  %v2026 = vld [vmem:[%s3 + $0xac] sm:$0xf]
  %v2027 = vld [vmem:[%s3 + $0xb0] sm:$0xf]
  %v2028 = vld [vmem:[%s3 + $0xb4] sm:$0xf]
  %v2029 = vld [vmem:[%s3 + $0xb8] sm:$0xf]
  %v2030 = vld [vmem:[%s3 + $0xbc] sm:$0xf]
  %v2031 = vld [vmem:[%s3 + $0xc0] sm:$0xf]
  %v2032 = vld [vmem:[%s3 + $0xc4] sm:$0xf]
  %v2033 = vld [vmem:[%s3 + $0xc8] sm:$0xf]
  %v2034 = vld [vmem:[%s3 + $0xcc] sm:$0xf]
  %v2035 = vld [vmem:[%s3 + $0xd0] sm:$0xf]
  %v2036 = vld [vmem:[%s3 + $0xd4] sm:$0xf]
  %v2037 = vld [vmem:[%s3 + $0xd8] sm:$0xf]
  %v2038 = vld [vmem:[%s3 + $0xdc] sm:$0xf]
  %v2039 = vld [vmem:[%s3 + $0xe0] sm:$0xf]
  %v2040 = vld [vmem:[%s3 + $0xe4] sm:$0xf]
  %v2041 = vld [vmem:[%s3 + $0xe8] sm:$0xf]
  %v2042 = vld [vmem:[%s3 + $0xec] sm:$0xf]
  %v2043 = vld [vmem:[%s3 + $0xf0] sm:$0xf]
  %v2044 = vld [vmem:[%s3 + $0xf4] sm:$0xf]
  %v2045 = vld [vmem:[%s3 + $0xf8] sm:$0xf]
  %v2046 = vld [vmem:[%s3 + $0xfc] sm:$0xf]
  %v2047 = vld [vmem:[%s4] sm:$0x1]
  %v2049 = vlaneseq
  %v2050 = vshrl.u32 %v2049, 7
  %v2051 = vsub.s32 0, %v2050
  %v2052 = vrot.slane %v2047, %v2051
  %v2118 = vunpack.c.l.b16 %v1983
  %v2119 = vunpack.c.l.b16 %v1984
  %v2120 = vunpack.c.l.b16 %v1985
  %v2121 = vunpack.c.l.b16 %v1986
  %v2122 = vunpack.c.l.b16 %v1987
  %v2123 = vunpack.c.l.b16 %v1988
  %v2124 = vunpack.c.l.b16 %v1989
  %v2125 = vunpack.c.l.b16 %v1990
  %v2126 = vunpack.c.l.b16 %v1991
  %v2127 = vunpack.c.l.b16 %v1992
  %v2128 = vunpack.c.l.b16 %v1993
  %v2129 = vunpack.c.l.b16 %v1994
  %v2130 = vunpack.c.l.b16 %v1995
  %v2131 = vunpack.c.l.b16 %v1996
  %v2132 = vunpack.c.l.b16 %v1997
  %v2133 = vunpack.c.l.b16 %v1998
  %v2134 = vunpack.c.l.b16 %v1999
  %v2135 = vunpack.c.l.b16 %v2000
  %v2136 = vunpack.c.l.b16 %v2001
  %v2137 = vunpack.c.l.b16 %v2002
  %v2138 = vunpack.c.l.b16 %v2003
  %v2139 = vunpack.c.l.b16 %v2004
  %v2140 = vunpack.c.l.b16 %v2005
  %v2141 = vunpack.c.l.b16 %v2006
  %v2142 = vunpack.c.l.b16 %v2007
  %v2143 = vunpack.c.l.b16 %v2008
  %v2144 = vunpack.c.l.b16 %v2009
  %v2145 = vunpack.c.l.b16 %v2010
  %v2146 = vunpack.c.l.b16 %v2011
  %v2147 = vunpack.c.l.b16 %v2012
  %v2148 = vunpack.c.l.b16 %v2013
  %v2149 = vunpack.c.l.b16 %v2014
  %v2150 = vunpack.c.l.b16 %v2015
  %v2151 = vunpack.c.l.b16 %v2016
  %v2152 = vunpack.c.l.b16 %v2017
  %v2153 = vunpack.c.l.b16 %v2018
  %v2154 = vunpack.c.l.b16 %v2019
  %v2155 = vunpack.c.l.b16 %v2020
  %v2156 = vunpack.c.l.b16 %v2021
  %v2157 = vunpack.c.l.b16 %v2022
  %v2158 = vunpack.c.l.b16 %v2023
  %v2159 = vunpack.c.l.b16 %v2024
  %v2160 = vunpack.c.l.b16 %v2025
  %v2161 = vunpack.c.l.b16 %v2026
  %v2162 = vunpack.c.l.b16 %v2027
  %v2163 = vunpack.c.l.b16 %v2028
  %v2164 = vunpack.c.l.b16 %v2029
  %v2165 = vunpack.c.l.b16 %v2030
  %v2166 = vunpack.c.l.b16 %v2031
  %v2167 = vunpack.c.l.b16 %v2032
  %v2168 = vunpack.c.l.b16 %v2033
  %v2169 = vunpack.c.l.b16 %v2034
  %v2170 = vunpack.c.l.b16 %v2035
  %v2171 = vunpack.c.l.b16 %v2036
  %v2172 = vunpack.c.l.b16 %v2037
  %v2173 = vunpack.c.l.b16 %v2038
  %v2174 = vunpack.c.l.b16 %v2039
  %v2175 = vunpack.c.l.b16 %v2040
  %v2176 = vunpack.c.l.b16 %v2041
  %v2177 = vunpack.c.l.b16 %v2042
  %v2178 = vunpack.c.l.b16 %v2043
  %v2179 = vunpack.c.l.b16 %v2044
  %v2180 = vunpack.c.l.b16 %v2045
  %v2181 = vunpack.c.l.b16 %v2046
  %v2182 = vpack.c.b16 %v2119, %v2118
  %v2183 = vpack.c.b16 %v2121, %v2120
  %v2184 = vpack.c.b16 %v2123, %v2122
  %v2185 = vpack.c.b16 %v2125, %v2124
  %v2186 = vpack.c.b16 %v2127, %v2126
  %v2187 = vpack.c.b16 %v2129, %v2128
  %v2188 = vpack.c.b16 %v2131, %v2130
  %v2189 = vpack.c.b16 %v2133, %v2132
  %v2190 = vpack.c.b16 %v2135, %v2134
  %v2191 = vpack.c.b16 %v2137, %v2136
  %v2192 = vpack.c.b16 %v2139, %v2138
  %v2193 = vpack.c.b16 %v2141, %v2140
  %v2194 = vpack.c.b16 %v2143, %v2142
  %v2195 = vpack.c.b16 %v2145, %v2144
  %v2196 = vpack.c.b16 %v2147, %v2146
  %v2197 = vpack.c.b16 %v2149, %v2148
  %v2198 = vpack.c.b16 %v2151, %v2150
  %v2199 = vpack.c.b16 %v2153, %v2152
  %v2200 = vpack.c.b16 %v2155, %v2154
  %v2201 = vpack.c.b16 %v2157, %v2156
  %v2202 = vpack.c.b16 %v2159, %v2158
  %v2203 = vpack.c.b16 %v2161, %v2160
  %v2204 = vpack.c.b16 %v2163, %v2162
  %v2205 = vpack.c.b16 %v2165, %v2164
  %v2206 = vpack.c.b16 %v2167, %v2166
  %v2207 = vpack.c.b16 %v2169, %v2168
  %v2208 = vpack.c.b16 %v2171, %v2170
  %v2209 = vpack.c.b16 %v2173, %v2172
  %v2210 = vpack.c.b16 %v2175, %v2174
  %v2211 = vpack.c.b16 %v2177, %v2176
  %v2212 = vpack.c.b16 %v2179, %v2178
  %v2213 = vpack.c.b16 %v2181, %v2180
  %2246 = vmatprep.subr.bf16.mxu0 0
  %2247 = vmatpush1.bf16.msra.mxu0 %v2189
  %2248 = vmatprep.subr.bf16.mxu0 0
  %2249 = vmatpush1.bf16.msra.mxu0 %v2188
  %2250 = vmatprep.subr.bf16.mxu0 0
  %2251 = vmatpush1.bf16.msra.mxu0 %v2187
  %2252 = vmatprep.subr.bf16.mxu0 0
  %2253 = vmatpush1.bf16.msra.mxu0 %v2186
  %2254 = vmatprep.subr.bf16.mxu0 0
  %2255 = vmatpush1.bf16.msra.mxu0 %v2185
  %2256 = vmatprep.subr.bf16.mxu0 0
  %2257 = vmatpush1.bf16.msra.mxu0 %v2184
  %2258 = vmatprep.subr.bf16.mxu0 0
  %2259 = vmatpush1.bf16.msra.mxu0 %v2183
  %2260 = vmatprep.subr.bf16.mxu0 0
  %2261 = vmatpush1.bf16.msra.mxu0 %v2182
  %2262 = vmatprep.subr.bf16.mxu0 0
  %2263 = vmatpush2.bf16.msra.mxu0 %v2197
  %2264 = vmatprep.subr.bf16.mxu0 0
  %2265 = vmatpush2.bf16.msra.mxu0 %v2196
  %2266 = vmatprep.subr.bf16.mxu0 0
  %2267 = vmatpush2.bf16.msra.mxu0 %v2195
  %2268 = vmatprep.subr.bf16.mxu0 0
  %2269 = vmatpush2.bf16.msra.mxu0 %v2194
  %2270 = vmatprep.subr.bf16.mxu0 0
  %2271 = vmatpush2.bf16.msra.mxu0 %v2193
  %2272 = vmatprep.subr.bf16.mxu0 0
  %2273 = vmatpush2.bf16.msra.mxu0 %v2192
  %2274 = vmatprep.subr.bf16.mxu0 0
  %2275 = vmatpush2.bf16.msra.mxu0 %v2191
  %2276 = vmatprep.subr.bf16.mxu0 0
  %2277 = vmatpush2.bf16.msra.mxu0 %v2190
  %2278 = vmatprep.mubr.bf16.mxu0 %v1980
  %2279 = vmatmul.mubr.bf16.gmra.mxu0 %v1979
  %v2280 = vpop.f32.mrf.mxu0
  %v2281 = vadd.f32 %v2052, %v2280
  %v2282 = vpop.f32.mrf.mxu0
  %v2283 = vpop.f32.mrf.mxu0
  %v2284 = vadd.f32 %v2052, %v2283
  %v2285 = vpop.f32.mrf.mxu0
  %2286 = vdwg.mxu0
  %2287 = vmatprep.subr.bf16.mxu0 0
  %2288 = vmatpush1.bf16.msra.mxu0 %v2205
  %2289 = vmatprep.subr.bf16.mxu0 0
  %2290 = vmatpush1.bf16.msra.mxu0 %v2204
  %2291 = vmatprep.subr.bf16.mxu0 0
  %2292 = vmatpush1.bf16.msra.mxu0 %v2203
  %2293 = vmatprep.subr.bf16.mxu0 0
  %2294 = vmatpush1.bf16.msra.mxu0 %v2202
  %2295 = vmatprep.subr.bf16.mxu0 0
  %2296 = vmatpush1.bf16.msra.mxu0 %v2201
  %2297 = vmatprep.subr.bf16.mxu0 0
  %2298 = vmatpush1.bf16.msra.mxu0 %v2200
  %2299 = vmatprep.subr.bf16.mxu0 0
  %2300 = vmatpush1.bf16.msra.mxu0 %v2199
  %2301 = vmatprep.subr.bf16.mxu0 0
  %2302 = vmatpush1.bf16.msra.mxu0 %v2198
  %2303 = vmatprep.subr.bf16.mxu0 0
  %2304 = vmatpush2.bf16.msra.mxu0 %v2213
  %2305 = vmatprep.subr.bf16.mxu0 0
  %2306 = vmatpush2.bf16.msra.mxu0 %v2212
  %2307 = vmatprep.subr.bf16.mxu0 0
  %2308 = vmatpush2.bf16.msra.mxu0 %v2211
  %2309 = vmatprep.subr.bf16.mxu0 0
  %2310 = vmatpush2.bf16.msra.mxu0 %v2210
  %2311 = vmatprep.subr.bf16.mxu0 0
  %2312 = vmatpush2.bf16.msra.mxu0 %v2209
  %2313 = vmatprep.subr.bf16.mxu0 0
  %2314 = vmatpush2.bf16.msra.mxu0 %v2208
  %2315 = vmatprep.subr.bf16.mxu0 0
  %2316 = vmatpush2.bf16.msra.mxu0 %v2207
  %2317 = vmatprep.subr.bf16.mxu0 0
  %2318 = vmatpush2.bf16.msra.mxu0 %v2206
  %2319 = vmatprep.mubr.bf16.mxu0 %v1982
  %2320 = vmatmul.mubr.bf16.gmra.mxu0 %v1981
  %v2321 = vpop.f32.mrf.mxu0
  %v2322 = vadd.f32 %v2281, %v2321
  %v2323 = vpop.f32.mrf.mxu0
  %v2324 = vpop.f32.mrf.mxu0
  %v2325 = vadd.f32 %v2284, %v2324
  %v2326 = vpop.f32.mrf.mxu0
  %2327 = vdwg.mxu0
  %v2328 = vlaneseq
  %v2329 = vand.u32 %v2328, 127
  %vm2330 = vcmp.lt.s32.totalorder %v2329, 10
  %v2331 = vsel %vm2330, %v2322, -1e+30
  %v2332 = vsel %vm2330, %v2325, -1e+30
  %2333 = vmax.xlane.f32.xlu0 %v2331
  %v2334 = vpop.xlane.xlu0 %2333
  %2335 = vmax.xlane.f32.xlu0 %v2332
  %v2336 = vpop.xlane.xlu0 %2335
  %v2337 = vsub.f32 %v2331, %v2334
  %v2338 = vsub.f32 %v2332, %v2336
  %v2339 = vmul.f32 %v2337, 1.442695
  %v2340 = vpow.pop %v2339
  %v2341 = vmul.f32 %v2338, 1.442695
  %v2342 = vpow.pop %v2341
  %2343 = vadd.xlane.f32.xlu0 %v2340
  %v2344 = vpop.xlane.xlu0 %2343
  %2345 = vadd.xlane.f32.xlu0 %v2342
  %v2346 = vpop.xlane.xlu0 %2345
  %v2347 = vlog2.pop %v2344
  %v2348 = vmul.f32 %v2347, 0.6931472
  %v2349 = vlog2.pop %v2346
  %v2350 = vmul.f32 %v2349, 0.6931472
  %v2351 = vadd.f32 %v2334, %v2348
  %v2352 = vadd.f32 %v2336, %v2350
  %v2353 = vsub.f32 %v2331, %v2351
  %v2354 = vsub.f32 %v2332, %v2352
  %2355 = vst [vmem:[%s5] sm:$0xff] %v2353
  %2356 = vst [vmem:[%s5 + $0x8] sm:$0xff] %v2354
  // Predicated region
  $region22: #{net_forward.5} parent=0 // pred_check
    _
  $region23: #{net_forward.5} parent=0 // pred_check_branch
    %2358 = sbr.rel (0) target = $region25
  $region24: #{net_forward.5} parent=0 // pred_region
    _
  $region25: #{net_forward.5} parent=0 // pred_fallthru
    _
  // Predicated region
  $region26: #{net_forward.5} parent=0 // pred_check
    _
  $region27: #{net_forward.5} parent=0 // pred_check_branch
    %2360 = sbr.rel (0) target = $region29
  $region28: #{net_forward.5} parent=0 // pred_region
    _
  $region29: #{net_forward.5} parent=0 // pred_fallthru
    _

// kernel: net_forward.4
$region0: #{net_forward.4}
  #allocation0 [shape = 'u32[]', space=smem, size = 0x4, offset = 0x4, fixed_abs, tag = 'smem constant byte address 0x4 - core index']
  #allocation1 [shape = 'u32[144,128]{1,0:T(1,128)}', space=vmem, size = 0x12000, scoped, tag = 'internal scratch']
  %s0 = inlined_call_operand.vmem [shape: bf16[16,1440], index: 0, kind: input, shape index: {}]
  %s1 = inlined_call_operand.hbm [shape: bf16[1440,1024], index: 1, kind: input, shape index: {}]
  %s2 = inlined_call_operand.hbm [shape: f32[1,256], index: 2, kind: input, shape index: {}]
  %s3 = inlined_call_operand.vmem [shape: bf16[16,256], index: 3, kind: output, shape index: {}]
  %s4 = sld [smem:[#allocation0]]
  $region30: #{net_forward.4} parent=0
    _
  %s6 = ssub.s32 1, %s4
  %s7 = scalar_select 0, %s6, %s4
  $region1: #{net_forward.4} parent=0
    #allocation2 [shape = 'u8[2949120]{0}', space=vmem, size = 0x2d0000, scoped, tag = 'input window, operand 1, single buffered']
    #allocation3 [shape = 's32[1]{0}', space=sflag, size = 0x4, scoped, tag = 'scoped memory for net_forward.4']
    #allocation4 [shape = 'u8[1024]{0}', space=vmem, size = 0x400, scoped, tag = 'input window, operand 2, single buffered']
    #allocation5 [shape = 's32[1]{0}', space=sflag, size = 0x4, scoped, tag = 'scoped memory for net_forward.4']
    %8 = vsyncpa [#allocation3], 0
    %9 = vsyncpa [#allocation5], 0
    // Predicated region
    $region2: #{net_forward.4} parent=1 // pred_check
      _
    $region3: #{net_forward.4} parent=1 // pred_check_branch
      %11 = sbr.rel (0) target = $region5
    $region4: #{net_forward.4} parent=1 // pred_region
      _
    $region5: #{net_forward.4} parent=1 // pred_fallthru
      _
    // Predicated region
    $region6: #{net_forward.4} parent=1 // pred_check
      _
    $region7: #{net_forward.4} parent=1 // pred_check_branch
      %13 = sbr.rel (0) target = $region9
    $region8: #{net_forward.4} parent=1 // pred_region
      %s15 = ssub.s32 92160, 92160
      %16 = vsyncadd [#allocation3], %s15
      %s17 = sshll.u32 [#allocation2], 4
      %s18 = int_to_ptr.vmem [resolvable:$true] %s17
      %23 = dma.hbm_to_vmem [thread:$0]  %s1, 92160, %s18, [#allocation3], 512, 512, 32
    $region9: #{net_forward.4} parent=1 // pred_fallthru
      _
    // Predicated region
    $region10: #{net_forward.4} parent=1 // pred_check
      _
    $region11: #{net_forward.4} parent=1 // pred_check_branch
      %25 = sbr.rel (0) target = $region13
    $region12: #{net_forward.4} parent=1 // pred_region
      %s27 = ssub.s32 32, 32
      %28 = vsyncadd [#allocation5], %s27
      %s30 = sshll.u32 [#allocation4], 4
      %s31 = int_to_ptr.vmem [resolvable:$true] %s30
      %33 = dma.hbm_to_vmem [thread:$0]  %s2, 32, %s31, [#allocation5]
    $region13: #{net_forward.4} parent=1 // pred_fallthru
      _
    // Predicated region
    $region14: #{net_forward.4} parent=1 // pred_check
      _
    $region15: #{net_forward.4} parent=1 // pred_check_branch
      %35 = sbr.rel (0) target = $region17
    $region16: #{net_forward.4} parent=1 // pred_region
      %36 = dma.done [#allocation3], 92160
    $region17: #{net_forward.4} parent=1 // pred_fallthru
      _
    // Predicated region
    $region18: #{net_forward.4} parent=1 // pred_check
      _
    $region19: #{net_forward.4} parent=1 // pred_check_branch
      %38 = sbr.rel (0) target = $region21
    $region20: #{net_forward.4} parent=1 // pred_region
      %39 = dma.done [#allocation5], 32
    $region21: #{net_forward.4} parent=1 // pred_fallthru
      _
    %v41 = vld [vmem:[%s0] sm:$0xff]
    %v42 = vld [vmem:[%s0 + $0x8] sm:$0xff]
    %v43 = vld [vmem:[%s0 + $0x10] sm:$0xff]
    %v44 = vld [vmem:[%s0 + $0x18] sm:$0xff]
    %v45 = vld [vmem:[%s0 + $0x20] sm:$0xff]
    %v46 = vld [vmem:[%s0 + $0x28] sm:$0xff]
    %v47 = vld [vmem:[%s0 + $0x30] sm:$0xff]
    %v48 = vld [vmem:[%s0 + $0x38] sm:$0xff]
    %v49 = vld [vmem:[%s0 + $0x40] sm:$0xff]
    %v50 = vld [vmem:[%s0 + $0x48] sm:$0xff]
    %v51 = vld [vmem:[%s0 + $0x50] sm:$0xff]
    %v52 = vld [vmem:[%s0 + $0x58] sm:$0xff]
    %v53 = vld [vmem:[#allocation2] sm:$0xff]
    %v54 = vld [vmem:[#allocation2 + $0x8] sm:$0xff]
    %v55 = vld [vmem:[#allocation2 + $0x10] sm:$0xff]
    %v56 = vld [vmem:[#allocation2 + $0x18] sm:$0xff]
    %v57 = vld [vmem:[#allocation2 + $0x20] sm:$0xff]
    %v58 = vld [vmem:[#allocation2 + $0x28] sm:$0xff]
    %v59 = vld [vmem:[#allocation2 + $0x30] sm:$0xff]
    %v60 = vld [vmem:[#allocation2 + $0x38] sm:$0xff]
    %v61 = vld [vmem:[#allocation2 + $0x40] sm:$0xff]
    %v62 = vld [vmem:[#allocation2 + $0x48] sm:$0xff]
    %v63 = vld [vmem:[#allocation2 + $0x50] sm:$0xff]
    %v64 = vld [vmem:[#allocation2 + $0x58] sm:$0xff]
    %v65 = vld [vmem:[#allocation2 + $0x60] sm:$0xff]
    %v66 = vld [vmem:[#allocation2 + $0x68] sm:$0xff]
    %v67 = vld [vmem:[#allocation2 + $0x70] sm:$0xff]
    %v68 = vld [vmem:[#allocation2 + $0x78] sm:$0xff]
    %v69 = vld [vmem:[#allocation2 + $0x80] sm:$0xff]
    %v70 = vld [vmem:[#allocation2 + $0x88] sm:$0xff]
    %v71 = vld [vmem:[#allocation2 + $0x90] sm:$0xff]
    %v72 = vld [vmem:[#allocation2 + $0x98] sm:$0xff]
    %v73 = vld [vmem:[#allocation2 + $0xa0] sm:$0xff]
    %v74 = vld [vmem:[#allocation2 + $0xa8] sm:$0xff]
    %v75 = vld [vmem:[#allocation2 + $0xb0] sm:$0xff]
    %v76 = vld [vmem:[#allocation2 + $0xb8] sm:$0xff]
    %v77 = vld [vmem:[#allocation2 + $0xc0] sm:$0xff]
    %v78 = vld [vmem:[#allocation2 + $0xc8] sm:$0xff]
    %v79 = vld [vmem:[#allocation2 + $0xd0] sm:$0xff]
    %v80 = vld [vmem:[#allocation2 + $0xd8] sm:$0xff]
    %v81 = vld [vmem:[#allocation2 + $0xe0] sm:$0xff]
    %v82 = vld [vmem:[#allocation2 + $0xe8] sm:$0xff]
    %v83 = vld [vmem:[#allocation2 + $0xf0] sm:$0xff]
    %v84 = vld [vmem:[#allocation2 + $0xf8] sm:$0xff]
    %v85 = vld [vmem:[#allocation2 + $0x100] sm:$0xff]
    %v86 = vld [vmem:[#allocation2 + $0x108] sm:$0xff]
    %v87 = vld [vmem:[#allocation2 + $0x110] sm:$0xff]
    %v88 = vld [vmem:[#allocation2 + $0x118] sm:$0xff]
    %v89 = vld [vmem:[#allocation2 + $0x120] sm:$0xff]
    %v90 = vld [vmem:[#allocation2 + $0x128] sm:$0xff]
    %v91 = vld [vmem:[#allocation2 + $0x130] sm:$0xff]
    %v92 = vld [vmem:[#allocation2 + $0x138] sm:$0xff]
    %v93 = vld [vmem:[#allocation2 + $0x140] sm:$0xff]
    %v94 = vld [vmem:[#allocation2 + $0x148] sm:$0xff]
    %v95 = vld [vmem:[#allocation2 + $0x150] sm:$0xff]
    %v96 = vld [vmem:[#allocation2 + $0x158] sm:$0xff]
    %v97 = vld [vmem:[#allocation2 + $0x160] sm:$0xff]
    %v98 = vld [vmem:[#allocation2 + $0x168] sm:$0xff]
    %v99 = vld [vmem:[#allocation2 + $0x170] sm:$0xff]
    %v100 = vld [vmem:[#allocation2 + $0x178] sm:$0xff]
    %v101 = vld [vmem:[#allocation2 + $0x180] sm:$0xff]
    %v102 = vld [vmem:[#allocation2 + $0x188] sm:$0xff]
    %v103 = vld [vmem:[#allocation2 + $0x190] sm:$0xff]
    %v104 = vld [vmem:[#allocation2 + $0x198] sm:$0xff]
    %v105 = vld [vmem:[#allocation2 + $0x1a0] sm:$0xff]
    %v106 = vld [vmem:[#allocation2 + $0x1a8] sm:$0xff]
    %v107 = vld [vmem:[#allocation2 + $0x1b0] sm:$0xff]
    %v108 = vld [vmem:[#allocation2 + $0x1b8] sm:$0xff]
    %v109 = vld [vmem:[#allocation2 + $0x1c0] sm:$0xff]
    %v110 = vld [vmem:[#allocation2 + $0x1c8] sm:$0xff]
    %v111 = vld [vmem:[#allocation2 + $0x1d0] sm:$0xff]
    %v112 = vld [vmem:[#allocation2 + $0x1d8] sm:$0xff]
    %v113 = vld [vmem:[#allocation2 + $0x1e0] sm:$0xff]
    %v114 = vld [vmem:[#allocation2 + $0x1e8] sm:$0xff]
    %v115 = vld [vmem:[#allocation2 + $0x1f0] sm:$0xff]
    %v116 = vld [vmem:[#allocation2 + $0x1f8] sm:$0xff]
    %v117 = vld [vmem:[#allocation2 + $0x200] sm:$0xff]
    %v118 = vld [vmem:[#allocation2 + $0x208] sm:$0xff]
    %v119 = vld [vmem:[#allocation2 + $0x210] sm:$0xff]
    %v120 = vld [vmem:[#allocation2 + $0x218] sm:$0xff]
    %v121 = vld [vmem:[#allocation2 + $0x220] sm:$0xff]
    %v122 = vld [vmem:[#allocation2 + $0x228] sm:$0xff]
    %v123 = vld [vmem:[#allocation2 + $0x230] sm:$0xff]
    %v124 = vld [vmem:[#allocation2 + $0x238] sm:$0xff]
    %v125 = vld [vmem:[#allocation2 + $0x240] sm:$0xff]
    %v126 = vld [vmem:[#allocation2 + $0x248] sm:$0xff]
    %v127 = vld [vmem:[#allocation2 + $0x250] sm:$0xff]
    %v128 = vld [vmem:[#allocation2 + $0x258] sm:$0xff]
    %v129 = vld [vmem:[#allocation2 + $0x260] sm:$0xff]
    %v130 = vld [vmem:[#allocation2 + $0x268] sm:$0xff]
    %v131 = vld [vmem:[#allocation2 + $0x270] sm:$0xff]
    %v132 = vld [vmem:[#allocation2 + $0x278] sm:$0xff]
    %v133 = vld [vmem:[#allocation2 + $0x280] sm:$0xff]
    %v134 = vld [vmem:[#allocation2 + $0x288] sm:$0xff]
    %v135 = vld [vmem:[#allocation2 + $0x290] sm:$0xff]
    %v136 = vld [vmem:[#allocation2 + $0x298] sm:$0xff]
    %v137 = vld [vmem:[#allocation2 + $0x2a0] sm:$0xff]
    %v138 = vld [vmem:[#allocation2 + $0x2a8] sm:$0xff]
    %v139 = vld [vmem:[#allocation2 + $0x2b0] sm:$0xff]
    %v140 = vld [vmem:[#allocation2 + $0x2b8] sm:$0xff]
    %v141 = vld [vmem:[#allocation2 + $0x2c0] sm:$0xff]
    %v142 = vld [vmem:[#allocation2 + $0x2c8] sm:$0xff]
    %v143 = vld [vmem:[#allocation2 + $0x2d0] sm:$0xff]
    %v144 = vld [vmem:[#allocation2 + $0x2d8] sm:$0xff]
    %v145 = vld [vmem:[#allocation2 + $0x2e0] sm:$0xff]
    %v146 = vld [vmem:[#allocation2 + $0x2e8] sm:$0xff]
    %v147 = vld [vmem:[#allocation2 + $0x2f0] sm:$0xff]
    %v148 = vld [vmem:[#allocation2 + $0x2f8] sm:$0xff]
    %v149 = vld [vmem:[#allocation2 + $0x300] sm:$0xff]
    %v150 = vld [vmem:[#allocation2 + $0x308] sm:$0xff]
    %v151 = vld [vmem:[#allocation2 + $0x310] sm:$0xff]
    %v152 = vld [vmem:[#allocation2 + $0x318] sm:$0xff]
    %v153 = vld [vmem:[#allocation2 + $0x320] sm:$0xff]
    %v154 = vld [vmem:[#allocation2 + $0x328] sm:$0xff]
    %v155 = vld [vmem:[#allocation2 + $0x330] sm:$0xff]
    %v156 = vld [vmem:[#allocation2 + $0x338] sm:$0xff]
    %v157 = vld [vmem:[#allocation2 + $0x340] sm:$0xff]
    %v158 = vld [vmem:[#allocation2 + $0x348] sm:$0xff]
    %v159 = vld [vmem:[#allocation2 + $0x350] sm:$0xff]
    %v160 = vld [vmem:[#allocation2 + $0x358] sm:$0xff]
    %v161 = vld [vmem:[#allocation2 + $0x360] sm:$0xff]
    %v162 = vld [vmem:[#allocation2 + $0x368] sm:$0xff]
    %v163 = vld [vmem:[#allocation2 + $0x370] sm:$0xff]
    %v164 = vld [vmem:[#allocation2 + $0x378] sm:$0xff]
    %v165 = vld [vmem:[#allocation2 + $0x380] sm:$0xff]
    %v166 = vld [vmem:[#allocation2 + $0x388] sm:$0xff]
    %v167 = vld [vmem:[#allocation2 + $0x390] sm:$0xff]
    %v168 = vld [vmem:[#allocation2 + $0x398] sm:$0xff]
    %v169 = vld [vmem:[#allocation2 + $0x3a0] sm:$0xff]
    %v170 = vld [vmem:[#allocation2 + $0x3a8] sm:$0xff]
    %v171 = vld [vmem:[#allocation2 + $0x3b0] sm:$0xff]
    %v172 = vld [vmem:[#allocation2 + $0x3b8] sm:$0xff]
    %v173 = vld [vmem:[#allocation2 + $0x3c0] sm:$0xff]
    %v174 = vld [vmem:[#allocation2 + $0x3c8] sm:$0xff]
    %v175 = vld [vmem:[#allocation2 + $0x3d0] sm:$0xff]
    %v176 = vld [vmem:[#allocation2 + $0x3d8] sm:$0xff]
    %v177 = vld [vmem:[#allocation2 + $0x3e0] sm:$0xff]
    %v178 = vld [vmem:[#allocation2 + $0x3e8] sm:$0xff]
    %v179 = vld [vmem:[#allocation2 + $0x3f0] sm:$0xff]
    %v180 = vld [vmem:[#allocation2 + $0x3f8] sm:$0xff]
    %v181 = vld [vmem:[#allocation2 + $0x400] sm:$0xff]
    %v182 = vld [vmem:[#allocation2 + $0x408] sm:$0xff]
    %v183 = vld [vmem:[#allocation2 + $0x410] sm:$0xff]
    %v184 = vld [vmem:[#allocation2 + $0x418] sm:$0xff]
    %v185 = vld [vmem:[#allocation2 + $0x420] sm:$0xff]
    %v186 = vld [vmem:[#allocation2 + $0x428] sm:$0xff]
    %v187 = vld [vmem:[#allocation2 + $0x430] sm:$0xff]
    %v188 = vld [vmem:[#allocation2 + $0x438] sm:$0xff]
    %v189 = vld [vmem:[#allocation2 + $0x440] sm:$0xff]
    %v190 = vld [vmem:[#allocation2 + $0x448] sm:$0xff]
    %v191 = vld [vmem:[#allocation2 + $0x450] sm:$0xff]
    %v192 = vld [vmem:[#allocation2 + $0x458] sm:$0xff]
    %v193 = vld [vmem:[#allocation2 + $0x460] sm:$0xff]
    %v194 = vld [vmem:[#allocation2 + $0x468] sm:$0xff]
    %v195 = vld [vmem:[#allocation2 + $0x470] sm:$0xff]
    %v196 = vld [vmem:[#allocation2 + $0x478] sm:$0xff]
    %v197 = vld [vmem:[#allocation2 + $0x480] sm:$0xff]
    %v198 = vld [vmem:[#allocation2 + $0x488] sm:$0xff]
    %v199 = vld [vmem:[#allocation2 + $0x490] sm:$0xff]
    %v200 = vld [vmem:[#allocation2 + $0x498] sm:$0xff]
    %v201 = vld [vmem:[#allocation2 + $0x4a0] sm:$0xff]
    %v202 = vld [vmem:[#allocation2 + $0x4a8] sm:$0xff]
    %v203 = vld [vmem:[#allocation2 + $0x4b0] sm:$0xff]
    %v204 = vld [vmem:[#allocation2 + $0x4b8] sm:$0xff]
    %v205 = vld [vmem:[#allocation2 + $0x4c0] sm:$0xff]
    %v206 = vld [vmem:[#allocation2 + $0x4c8] sm:$0xff]
    %v207 = vld [vmem:[#allocation2 + $0x4d0] sm:$0xff]
    %v208 = vld [vmem:[#allocation2 + $0x4d8] sm:$0xff]
    %v209 = vld [vmem:[#allocation2 + $0x4e0] sm:$0xff]
    %v210 = vld [vmem:[#allocation2 + $0x4e8] sm:$0xff]
    %v211 = vld [vmem:[#allocation2 + $0x4f0] sm:$0xff]
    %v212 = vld [vmem:[#allocation2 + $0x4f8] sm:$0xff]
    %v213 = vld [vmem:[#allocation2 + $0x500] sm:$0xff]
    %v214 = vld [vmem:[#allocation2 + $0x508] sm:$0xff]
    %v215 = vld [vmem:[#allocation2 + $0x510] sm:$0xff]
    %v216 = vld [vmem:[#allocation2 + $0x518] sm:$0xff]
    %v217 = vld [vmem:[#allocation2 + $0x520] sm:$0xff]
    %v218 = vld [vmem:[#allocation2 + $0x528] sm:$0xff]
    %v219 = vld [vmem:[#allocation2 + $0x530] sm:$0xff]
    %v220 = vld [vmem:[#allocation2 + $0x538] sm:$0xff]
    %v221 = vld [vmem:[#allocation2 + $0x540] sm:$0xff]
    %v222 = vld [vmem:[#allocation2 + $0x548] sm:$0xff]
    %v223 = vld [vmem:[#allocation2 + $0x550] sm:$0xff]
    %v224 = vld [vmem:[#allocation2 + $0x558] sm:$0xff]
    %v225 = vld [vmem:[#allocation2 + $0x560] sm:$0xff]
    %v226 = vld [vmem:[#allocation2 + $0x568] sm:$0xff]
    %v227 = vld [vmem:[#allocation2 + $0x570] sm:$0xff]
    %v228 = vld [vmem:[#allocation2 + $0x578] sm:$0xff]
    %v229 = vld [vmem:[#allocation2 + $0x580] sm:$0xff]
    %v230 = vld [vmem:[#allocation2 + $0x588] sm:$0xff]
    %v231 = vld [vmem:[#allocation2 + $0x590] sm:$0xff]
    %v232 = vld [vmem:[#allocation2 + $0x598] sm:$0xff]
    %v233 = vld [vmem:[#allocation2 + $0x5a0] sm:$0xff]
    %v234 = vld [vmem:[#allocation2 + $0x5a8] sm:$0xff]
    %v235 = vld [vmem:[#allocation2 + $0x5b0] sm:$0xff]
    %v236 = vld [vmem:[#allocation2 + $0x5b8] sm:$0xff]
    %v237 = vld [vmem:[#allocation2 + $0x5c0] sm:$0xff]
    %v238 = vld [vmem:[#allocation2 + $0x5c8] sm:$0xff]
    %v239 = vld [vmem:[#allocation2 + $0x5d0] sm:$0xff]
    %v240 = vld [vmem:[#allocation2 + $0x5d8] sm:$0xff]
    %v241 = vld [vmem:[#allocation2 + $0x5e0] sm:$0xff]
    %v242 = vld [vmem:[#allocation2 + $0x5e8] sm:$0xff]
    %v243 = vld [vmem:[#allocation2 + $0x5f0] sm:$0xff]
    %v244 = vld [vmem:[#allocation2 + $0x5f8] sm:$0xff]
    %v245 = vld [vmem:[#allocation2 + $0x600] sm:$0xff]
    %v246 = vld [vmem:[#allocation2 + $0x608] sm:$0xff]
    %v247 = vld [vmem:[#allocation2 + $0x610] sm:$0xff]
    %v248 = vld [vmem:[#allocation2 + $0x618] sm:$0xff]
    %v249 = vld [vmem:[#allocation2 + $0x620] sm:$0xff]
    %v250 = vld [vmem:[#allocation2 + $0x628] sm:$0xff]
    %v251 = vld [vmem:[#allocation2 + $0x630] sm:$0xff]
    %v252 = vld [vmem:[#allocation2 + $0x638] sm:$0xff]
    %v253 = vld [vmem:[#allocation2 + $0x640] sm:$0xff]
    %v254 = vld [vmem:[#allocation2 + $0x648] sm:$0xff]
    %v255 = vld [vmem:[#allocation2 + $0x650] sm:$0xff]
    %v256 = vld [vmem:[#allocation2 + $0x658] sm:$0xff]
    %v257 = vld [vmem:[#allocation2 + $0x660] sm:$0xff]
    %v258 = vld [vmem:[#allocation2 + $0x668] sm:$0xff]
    %v259 = vld [vmem:[#allocation2 + $0x670] sm:$0xff]
    %v260 = vld [vmem:[#allocation2 + $0x678] sm:$0xff]
    %v261 = vld [vmem:[#allocation2 + $0x680] sm:$0xff]
    %v262 = vld [vmem:[#allocation2 + $0x688] sm:$0xff]
    %v263 = vld [vmem:[#allocation2 + $0x690] sm:$0xff]
    %v264 = vld [vmem:[#allocation2 + $0x698] sm:$0xff]
    %v265 = vld [vmem:[#allocation2 + $0x6a0] sm:$0xff]
    %v266 = vld [vmem:[#allocation2 + $0x6a8] sm:$0xff]
    %v267 = vld [vmem:[#allocation2 + $0x6b0] sm:$0xff]
    %v268 = vld [vmem:[#allocation2 + $0x6b8] sm:$0xff]
    %v269 = vld [vmem:[#allocation2 + $0x6c0] sm:$0xff]
    %v270 = vld [vmem:[#allocation2 + $0x6c8] sm:$0xff]
    %v271 = vld [vmem:[#allocation2 + $0x6d0] sm:$0xff]
    %v272 = vld [vmem:[#allocation2 + $0x6d8] sm:$0xff]
    %v273 = vld [vmem:[#allocation2 + $0x6e0] sm:$0xff]
    %v274 = vld [vmem:[#allocation2 + $0x6e8] sm:$0xff]
    %v275 = vld [vmem:[#allocation2 + $0x6f0] sm:$0xff]
    %v276 = vld [vmem:[#allocation2 + $0x6f8] sm:$0xff]
    %v277 = vld [vmem:[#allocation2 + $0x700] sm:$0xff]
    %v278 = vld [vmem:[#allocation2 + $0x708] sm:$0xff]
    %v279 = vld [vmem:[#allocation2 + $0x710] sm:$0xff]
    %v280 = vld [vmem:[#allocation2 + $0x718] sm:$0xff]
    %v281 = vld [vmem:[#allocation2 + $0x720] sm:$0xff]
    %v282 = vld [vmem:[#allocation2 + $0x728] sm:$0xff]
    %v283 = vld [vmem:[#allocation2 + $0x730] sm:$0xff]
    %v284 = vld [vmem:[#allocation2 + $0x738] sm:$0xff]
    %v285 = vld [vmem:[#allocation2 + $0x740] sm:$0xff]
    %v286 = vld [vmem:[#allocation2 + $0x748] sm:$0xff]
    %v287 = vld [vmem:[#allocation2 + $0x750] sm:$0xff]
    %v288 = vld [vmem:[#allocation2 + $0x758] sm:$0xff]
    %v289 = vld [vmem:[#allocation2 + $0x760] sm:$0xff]
    %v290 = vld [vmem:[#allocation2 + $0x768] sm:$0xff]
    %v291 = vld [vmem:[#allocation2 + $0x770] sm:$0xff]
    %v292 = vld [vmem:[#allocation2 + $0x778] sm:$0xff]
    %v293 = vld [vmem:[#allocation2 + $0x780] sm:$0xff]
    %v294 = vld [vmem:[#allocation2 + $0x788] sm:$0xff]
    %v295 = vld [vmem:[#allocation2 + $0x790] sm:$0xff]
    %v296 = vld [vmem:[#allocation2 + $0x798] sm:$0xff]
    %v297 = vld [vmem:[#allocation2 + $0x7a0] sm:$0xff]
    %v298 = vld [vmem:[#allocation2 + $0x7a8] sm:$0xff]
    %v299 = vld [vmem:[#allocation2 + $0x7b0] sm:$0xff]
    %v300 = vld [vmem:[#allocation2 + $0x7b8] sm:$0xff]
    %v301 = vld [vmem:[#allocation2 + $0x7c0] sm:$0xff]
    %v302 = vld [vmem:[#allocation2 + $0x7c8] sm:$0xff]
    %v303 = vld [vmem:[#allocation2 + $0x7d0] sm:$0xff]
    %v304 = vld [vmem:[#allocation2 + $0x7d8] sm:$0xff]
    %v305 = vld [vmem:[#allocation2 + $0x7e0] sm:$0xff]
    %v306 = vld [vmem:[#allocation2 + $0x7e8] sm:$0xff]
    %v307 = vld [vmem:[#allocation2 + $0x7f0] sm:$0xff]
    %v308 = vld [vmem:[#allocation2 + $0x7f8] sm:$0xff]
    %v309 = vld [vmem:[#allocation2 + $0x800] sm:$0xff]
    %v310 = vld [vmem:[#allocation2 + $0x808] sm:$0xff]
    %v311 = vld [vmem:[#allocation2 + $0x810] sm:$0xff]
    %v312 = vld [vmem:[#allocation2 + $0x818] sm:$0xff]
    %v313 = vld [vmem:[#allocation2 + $0x820] sm:$0xff]
    %v314 = vld [vmem:[#allocation2 + $0x828] sm:$0xff]
    %v315 = vld [vmem:[#allocation2 + $0x830] sm:$0xff]
    %v316 = vld [vmem:[#allocation2 + $0x838] sm:$0xff]
    %v317 = vld [vmem:[#allocation2 + $0x840] sm:$0xff]
    %v318 = vld [vmem:[#allocation2 + $0x848] sm:$0xff]
    %v319 = vld [vmem:[#allocation2 + $0x850] sm:$0xff]
    %v320 = vld [vmem:[#allocation2 + $0x858] sm:$0xff]
    %v321 = vld [vmem:[#allocation2 + $0x860] sm:$0xff]
    %v322 = vld [vmem:[#allocation2 + $0x868] sm:$0xff]
    %v323 = vld [vmem:[#allocation2 + $0x870] sm:$0xff]
    %v324 = vld [vmem:[#allocation2 + $0x878] sm:$0xff]
    %v325 = vld [vmem:[#allocation2 + $0x880] sm:$0xff]
    %v326 = vld [vmem:[#allocation2 + $0x888] sm:$0xff]
    %v327 = vld [vmem:[#allocation2 + $0x890] sm:$0xff]
    %v328 = vld [vmem:[#allocation2 + $0x898] sm:$0xff]
    %v329 = vld [vmem:[#allocation2 + $0x8a0] sm:$0xff]
    %v330 = vld [vmem:[#allocation2 + $0x8a8] sm:$0xff]
    %v331 = vld [vmem:[#allocation2 + $0x8b0] sm:$0xff]
    %v332 = vld [vmem:[#allocation2 + $0x8b8] sm:$0xff]
    %v333 = vld [vmem:[#allocation2 + $0x8c0] sm:$0xff]
    %v334 = vld [vmem:[#allocation2 + $0x8c8] sm:$0xff]
    %v335 = vld [vmem:[#allocation2 + $0x8d0] sm:$0xff]
    %v336 = vld [vmem:[#allocation2 + $0x8d8] sm:$0xff]
    %v337 = vld [vmem:[#allocation2 + $0x8e0] sm:$0xff]
    %v338 = vld [vmem:[#allocation2 + $0x8e8] sm:$0xff]
    %v339 = vld [vmem:[#allocation2 + $0x8f0] sm:$0xff]
    %v340 = vld [vmem:[#allocation2 + $0x8f8] sm:$0xff]
    %v341 = vld [vmem:[#allocation2 + $0x900] sm:$0xff]
    %v342 = vld [vmem:[#allocation2 + $0x908] sm:$0xff]
    %v343 = vld [vmem:[#allocation2 + $0x910] sm:$0xff]
    %v344 = vld [vmem:[#allocation2 + $0x918] sm:$0xff]
    %v345 = vld [vmem:[#allocation2 + $0x920] sm:$0xff]
    %v346 = vld [vmem:[#allocation2 + $0x928] sm:$0xff]
    %v347 = vld [vmem:[#allocation2 + $0x930] sm:$0xff]
    %v348 = vld [vmem:[#allocation2 + $0x938] sm:$0xff]
    %v349 = vld [vmem:[#allocation2 + $0x940] sm:$0xff]
    %v350 = vld [vmem:[#allocation2 + $0x948] sm:$0xff]
    %v351 = vld [vmem:[#allocation2 + $0x950] sm:$0xff]
    %v352 = vld [vmem:[#allocation2 + $0x958] sm:$0xff]
    %v353 = vld [vmem:[#allocation2 + $0x960] sm:$0xff]
    %v354 = vld [vmem:[#allocation2 + $0x968] sm:$0xff]
    %v355 = vld [vmem:[#allocation2 + $0x970] sm:$0xff]
    %v356 = vld [vmem:[#allocation2 + $0x978] sm:$0xff]
    %v357 = vld [vmem:[#allocation2 + $0x980] sm:$0xff]
    %v358 = vld [vmem:[#allocation2 + $0x988] sm:$0xff]
    %v359 = vld [vmem:[#allocation2 + $0x990] sm:$0xff]
    %v360 = vld [vmem:[#allocation2 + $0x998] sm:$0xff]
    %v361 = vld [vmem:[#allocation2 + $0x9a0] sm:$0xff]
    %v362 = vld [vmem:[#allocation2 + $0x9a8] sm:$0xff]
    %v363 = vld [vmem:[#allocation2 + $0x9b0] sm:$0xff]
    %v364 = vld [vmem:[#allocation2 + $0x9b8] sm:$0xff]
    %v365 = vld [vmem:[#allocation2 + $0x9c0] sm:$0xff]
    %v366 = vld [vmem:[#allocation2 + $0x9c8] sm:$0xff]
    %v367 = vld [vmem:[#allocation2 + $0x9d0] sm:$0xff]
    %v368 = vld [vmem:[#allocation2 + $0x9d8] sm:$0xff]
    %v369 = vld [vmem:[#allocation2 + $0x9e0] sm:$0xff]
    %v370 = vld [vmem:[#allocation2 + $0x9e8] sm:$0xff]
    %v371 = vld [vmem:[#allocation2 + $0x9f0] sm:$0xff]
    %v372 = vld [vmem:[#allocation2 + $0x9f8] sm:$0xff]
    %v373 = vld [vmem:[#allocation2 + $0xa00] sm:$0xff]
    %v374 = vld [vmem:[#allocation2 + $0xa08] sm:$0xff]
    %v375 = vld [vmem:[#allocation2 + $0xa10] sm:$0xff]
    %v376 = vld [vmem:[#allocation2 + $0xa18] sm:$0xff]
    %v377 = vld [vmem:[#allocation2 + $0xa20] sm:$0xff]
    %v378 = vld [vmem:[#allocation2 + $0xa28] sm:$0xff]
    %v379 = vld [vmem:[#allocation2 + $0xa30] sm:$0xff]
    %v380 = vld [vmem:[#allocation2 + $0xa38] sm:$0xff]
    %v381 = vld [vmem:[#allocation2 + $0xa40] sm:$0xff]
    %v382 = vld [vmem:[#allocation2 + $0xa48] sm:$0xff]
    %v383 = vld [vmem:[#allocation2 + $0xa50] sm:$0xff]
    %v384 = vld [vmem:[#allocation2 + $0xa58] sm:$0xff]
    %v385 = vld [vmem:[#allocation2 + $0xa60] sm:$0xff]
    %v386 = vld [vmem:[#allocation2 + $0xa68] sm:$0xff]
    %v387 = vld [vmem:[#allocation2 + $0xa70] sm:$0xff]
    %v388 = vld [vmem:[#allocation2 + $0xa78] sm:$0xff]
    %v389 = vld [vmem:[#allocation2 + $0xa80] sm:$0xff]
    %v390 = vld [vmem:[#allocation2 + $0xa88] sm:$0xff]
    %v391 = vld [vmem:[#allocation2 + $0xa90] sm:$0xff]
    %v392 = vld [vmem:[#allocation2 + $0xa98] sm:$0xff]
    %v393 = vld [vmem:[#allocation2 + $0xaa0] sm:$0xff]
    %v394 = vld [vmem:[#allocation2 + $0xaa8] sm:$0xff]
    %v395 = vld [vmem:[#allocation2 + $0xab0] sm:$0xff]
    %v396 = vld [vmem:[#allocation2 + $0xab8] sm:$0xff]
    %v397 = vld [vmem:[#allocation2 + $0xac0] sm:$0xff]
    %v398 = vld [vmem:[#allocation2 + $0xac8] sm:$0xff]
    %v399 = vld [vmem:[#allocation2 + $0xad0] sm:$0xff]
    %v400 = vld [vmem:[#allocation2 + $0xad8] sm:$0xff]
    %v401 = vld [vmem:[#allocation2 + $0xae0] sm:$0xff]
    %v402 = vld [vmem:[#allocation2 + $0xae8] sm:$0xff]
    %v403 = vld [vmem:[#allocation2 + $0xaf0] sm:$0xff]
    %v404 = vld [vmem:[#allocation2 + $0xaf8] sm:$0xff]
    %v405 = vld [vmem:[#allocation2 + $0xb00] sm:$0xff]
    %v406 = vld [vmem:[#allocation2 + $0xb08] sm:$0xff]
    %v407 = vld [vmem:[#allocation2 + $0xb10] sm:$0xff]
    %v408 = vld [vmem:[#allocation2 + $0xb18] sm:$0xff]
    %v409 = vld [vmem:[#allocation2 + $0xb20] sm:$0xff]
    %v410 = vld [vmem:[#allocation2 + $0xb28] sm:$0xff]
    %v411 = vld [vmem:[#allocation2 + $0xb30] sm:$0xff]
    %v412 = vld [vmem:[#allocation2 + $0xb38] sm:$0xff]
    %v413 = vld [vmem:[#allocation2 + $0xb40] sm:$0xff]
    %v414 = vld [vmem:[#allocation2 + $0xb48] sm:$0xff]
    %v415 = vld [vmem:[#allocation2 + $0xb50] sm:$0xff]
    %v416 = vld [vmem:[#allocation2 + $0xb58] sm:$0xff]
    %v417 = vld [vmem:[#allocation2 + $0xb60] sm:$0xff]
    %v418 = vld [vmem:[#allocation2 + $0xb68] sm:$0xff]
    %v419 = vld [vmem:[#allocation2 + $0xb70] sm:$0xff]
    %v420 = vld [vmem:[#allocation2 + $0xb78] sm:$0xff]
    %v421 = vld [vmem:[#allocation2 + $0xb80] sm:$0xff]
    %v422 = vld [vmem:[#allocation2 + $0xb88] sm:$0xff]
    %v423 = vld [vmem:[#allocation2 + $0xb90] sm:$0xff]
    %v424 = vld [vmem:[#allocation2 + $0xb98] sm:$0xff]
    %v425 = vld [vmem:[#allocation2 + $0xba0] sm:$0xff]
    %v426 = vld [vmem:[#allocation2 + $0xba8] sm:$0xff]
    %v427 = vld [vmem:[#allocation2 + $0xbb0] sm:$0xff]
    %v428 = vld [vmem:[#allocation2 + $0xbb8] sm:$0xff]
    %v429 = vld [vmem:[#allocation2 + $0xbc0] sm:$0xff]
    %v430 = vld [vmem:[#allocation2 + $0xbc8] sm:$0xff]
    %v431 = vld [vmem:[#allocation2 + $0xbd0] sm:$0xff]
    %v432 = vld [vmem:[#allocation2 + $0xbd8] sm:$0xff]
    %v433 = vld [vmem:[#allocation2 + $0xbe0] sm:$0xff]
    %v434 = vld [vmem:[#allocation2 + $0xbe8] sm:$0xff]
    %v435 = vld [vmem:[#allocation2 + $0xbf0] sm:$0xff]
    %v436 = vld [vmem:[#allocation2 + $0xbf8] sm:$0xff]
    %v437 = vld [vmem:[#allocation2 + $0xc00] sm:$0xff]
    %v438 = vld [vmem:[#allocation2 + $0xc08] sm:$0xff]
    %v439 = vld [vmem:[#allocation2 + $0xc10] sm:$0xff]
    %v440 = vld [vmem:[#allocation2 + $0xc18] sm:$0xff]
    %v441 = vld [vmem:[#allocation2 + $0xc20] sm:$0xff]
    %v442 = vld [vmem:[#allocation2 + $0xc28] sm:$0xff]
    %v443 = vld [vmem:[#allocation2 + $0xc30] sm:$0xff]
    %v444 = vld [vmem:[#allocation2 + $0xc38] sm:$0xff]
    %v445 = vld [vmem:[#allocation2 + $0xc40] sm:$0xff]
    %v446 = vld [vmem:[#allocation2 + $0xc48] sm:$0xff]
    %v447 = vld [vmem:[#allocation2 + $0xc50] sm:$0xff]
    %v448 = vld [vmem:[#allocation2 + $0xc58] sm:$0xff]
    %v449 = vld [vmem:[#allocation2 + $0xc60] sm:$0xff]
    %v450 = vld [vmem:[#allocation2 + $0xc68] sm:$0xff]
    %v451 = vld [vmem:[#allocation2 + $0xc70] sm:$0xff]
    %v452 = vld [vmem:[#allocation2 + $0xc78] sm:$0xff]
    %v453 = vld [vmem:[#allocation2 + $0xc80] sm:$0xff]
    %v454 = vld [vmem:[#allocation2 + $0xc88] sm:$0xff]
    %v455 = vld [vmem:[#allocation2 + $0xc90] sm:$0xff]
    %v456 = vld [vmem:[#allocation2 + $0xc98] sm:$0xff]
    %v457 = vld [vmem:[#allocation2 + $0xca0] sm:$0xff]
    %v458 = vld [vmem:[#allocation2 + $0xca8] sm:$0xff]
    %v459 = vld [vmem:[#allocation2 + $0xcb0] sm:$0xff]
    %v460 = vld [vmem:[#allocation2 + $0xcb8] sm:$0xff]
    %v461 = vld [vmem:[#allocation2 + $0xcc0] sm:$0xff]
    %v462 = vld [vmem:[#allocation2 + $0xcc8] sm:$0xff]
    %v463 = vld [vmem:[#allocation2 + $0xcd0] sm:$0xff]
    %v464 = vld [vmem:[#allocation2 + $0xcd8] sm:$0xff]
    %v465 = vld [vmem:[#allocation2 + $0xce0] sm:$0xff]
    %v466 = vld [vmem:[#allocation2 + $0xce8] sm:$0xff]
    %v467 = vld [vmem:[#allocation2 + $0xcf0] sm:$0xff]
    %v468 = vld [vmem:[#allocation2 + $0xcf8] sm:$0xff]
    %v469 = vld [vmem:[#allocation2 + $0xd00] sm:$0xff]
    %v470 = vld [vmem:[#allocation2 + $0xd08] sm:$0xff]
    %v471 = vld [vmem:[#allocation2 + $0xd10] sm:$0xff]
    %v472 = vld [vmem:[#allocation2 + $0xd18] sm:$0xff]
    %v473 = vld [vmem:[#allocation2 + $0xd20] sm:$0xff]
    %v474 = vld [vmem:[#allocation2 + $0xd28] sm:$0xff]
    %v475 = vld [vmem:[#allocation2 + $0xd30] sm:$0xff]
    %v476 = vld [vmem:[#allocation2 + $0xd38] sm:$0xff]
    %v477 = vld [vmem:[#allocation2 + $0xd40] sm:$0xff]
    %v478 = vld [vmem:[#allocation2 + $0xd48] sm:$0xff]
    %v479 = vld [vmem:[#allocation2 + $0xd50] sm:$0xff]
    %v480 = vld [vmem:[#allocation2 + $0xd58] sm:$0xff]
    %v481 = vld [vmem:[#allocation2 + $0xd60] sm:$0xff]
    %v482 = vld [vmem:[#allocation2 + $0xd68] sm:$0xff]
    %v483 = vld [vmem:[#allocation2 + $0xd70] sm:$0xff]
    %v484 = vld [vmem:[#allocation2 + $0xd78] sm:$0xff]
    %v485 = vld [vmem:[#allocation2 + $0xd80] sm:$0xff]
    %v486 = vld [vmem:[#allocation2 + $0xd88] sm:$0xff]
    %v487 = vld [vmem:[#allocation2 + $0xd90] sm:$0xff]
    %v488 = vld [vmem:[#allocation2 + $0xd98] sm:$0xff]
    %v489 = vld [vmem:[#allocation2 + $0xda0] sm:$0xff]
    %v490 = vld [vmem:[#allocation2 + $0xda8] sm:$0xff]
    %v491 = vld [vmem:[#allocation2 + $0xdb0] sm:$0xff]
    %v492 = vld [vmem:[#allocation2 + $0xdb8] sm:$0xff]
    %v493 = vld [vmem:[#allocation2 + $0xdc0] sm:$0xff]
    %v494 = vld [vmem:[#allocation2 + $0xdc8] sm:$0xff]
    %v495 = vld [vmem:[#allocation2 + $0xdd0] sm:$0xff]
    %v496 = vld [vmem:[#allocation2 + $0xdd8] sm:$0xff]
    %v497 = vld [vmem:[#allocation2 + $0xde0] sm:$0xff]
    %v498 = vld [vmem:[#allocation2 + $0xde8] sm:$0xff]
    %v499 = vld [vmem:[#allocation2 + $0xdf0] sm:$0xff]
    %v500 = vld [vmem:[#allocation2 + $0xdf8] sm:$0xff]
    %v501 = vld [vmem:[#allocation2 + $0xe00] sm:$0xff]
    %v502 = vld [vmem:[#allocation2 + $0xe08] sm:$0xff]
    %v503 = vld [vmem:[#allocation2 + $0xe10] sm:$0xff]
    %v504 = vld [vmem:[#allocation2 + $0xe18] sm:$0xff]
    %v505 = vld [vmem:[#allocation2 + $0xe20] sm:$0xff]
    %v506 = vld [vmem:[#allocation2 + $0xe28] sm:$0xff]
    %v507 = vld [vmem:[#allocation2 + $0xe30] sm:$0xff]
    %v508 = vld [vmem:[#allocation2 + $0xe38] sm:$0xff]
    %v509 = vld [vmem:[#allocation2 + $0xe40] sm:$0xff]
    %v510 = vld [vmem:[#allocation2 + $0xe48] sm:$0xff]
    %v511 = vld [vmem:[#allocation2 + $0xe50] sm:$0xff]
    %v512 = vld [vmem:[#allocation2 + $0xe58] sm:$0xff]
    %v513 = vld [vmem:[#allocation2 + $0xe60] sm:$0xff]
    %v514 = vld [vmem:[#allocation2 + $0xe68] sm:$0xff]
    %v515 = vld [vmem:[#allocation2 + $0xe70] sm:$0xff]
    %v516 = vld [vmem:[#allocation2 + $0xe78] sm:$0xff]
    %v517 = vld [vmem:[#allocation2 + $0xe80] sm:$0xff]
    %v518 = vld [vmem:[#allocation2 + $0xe88] sm:$0xff]
    %v519 = vld [vmem:[#allocation2 + $0xe90] sm:$0xff]
    %v520 = vld [vmem:[#allocation2 + $0xe98] sm:$0xff]
    %v521 = vld [vmem:[#allocation2 + $0xea0] sm:$0xff]
    %v522 = vld [vmem:[#allocation2 + $0xea8] sm:$0xff]
    %v523 = vld [vmem:[#allocation2 + $0xeb0] sm:$0xff]
    %v524 = vld [vmem:[#allocation2 + $0xeb8] sm:$0xff]
    %v525 = vld [vmem:[#allocation2 + $0xec0] sm:$0xff]
    %v526 = vld [vmem:[#allocation2 + $0xec8] sm:$0xff]
    %v527 = vld [vmem:[#allocation2 + $0xed0] sm:$0xff]
    %v528 = vld [vmem:[#allocation2 + $0xed8] sm:$0xff]
    %v529 = vld [vmem:[#allocation2 + $0xee0] sm:$0xff]
    %v530 = vld [vmem:[#allocation2 + $0xee8] sm:$0xff]
    %v531 = vld [vmem:[#allocation2 + $0xef0] sm:$0xff]
    %v532 = vld [vmem:[#allocation2 + $0xef8] sm:$0xff]
    %v533 = vld [vmem:[#allocation2 + $0xf00] sm:$0xff]
    %v534 = vld [vmem:[#allocation2 + $0xf08] sm:$0xff]
    %v535 = vld [vmem:[#allocation2 + $0xf10] sm:$0xff]
    %v536 = vld [vmem:[#allocation2 + $0xf18] sm:$0xff]
    %v537 = vld [vmem:[#allocation2 + $0xf20] sm:$0xff]
    %v538 = vld [vmem:[#allocation2 + $0xf28] sm:$0xff]
    %v539 = vld [vmem:[#allocation2 + $0xf30] sm:$0xff]
    %v540 = vld [vmem:[#allocation2 + $0xf38] sm:$0xff]
    %v541 = vld [vmem:[#allocation2 + $0xf40] sm:$0xff]
    %v542 = vld [vmem:[#allocation2 + $0xf48] sm:$0xff]
    %v543 = vld [vmem:[#allocation2 + $0xf50] sm:$0xff]
    %v544 = vld [vmem:[#allocation2 + $0xf58] sm:$0xff]
    %v545 = vld [vmem:[#allocation2 + $0xf60] sm:$0xff]
    %v546 = vld [vmem:[#allocation2 + $0xf68] sm:$0xff]
    %v547 = vld [vmem:[#allocation2 + $0xf70] sm:$0xff]
    %v548 = vld [vmem:[#allocation2 + $0xf78] sm:$0xff]
    %v549 = vld [vmem:[#allocation2 + $0xf80] sm:$0xff]
    %v550 = vld [vmem:[#allocation2 + $0xf88] sm:$0xff]
    %v551 = vld [vmem:[#allocation2 + $0xf90] sm:$0xff]
    %v552 = vld [vmem:[#allocation2 + $0xf98] sm:$0xff]
    %v553 = vld [vmem:[#allocation2 + $0xfa0] sm:$0xff]
    %v554 = vld [vmem:[#allocation2 + $0xfa8] sm:$0xff]
    %v555 = vld [vmem:[#allocation2 + $0xfb0] sm:$0xff]
    %v556 = vld [vmem:[#allocation2 + $0xfb8] sm:$0xff]
    %v557 = vld [vmem:[#allocation2 + $0xfc0] sm:$0xff]
    %v558 = vld [vmem:[#allocation2 + $0xfc8] sm:$0xff]
    %v559 = vld [vmem:[#allocation2 + $0xfd0] sm:$0xff]
    %v560 = vld [vmem:[#allocation2 + $0xfd8] sm:$0xff]
    %v561 = vld [vmem:[#allocation2 + $0xfe0] sm:$0xff]
    %v562 = vld [vmem:[#allocation2 + $0xfe8] sm:$0xff]
    %v563 = vld [vmem:[#allocation2 + $0xff0] sm:$0xff]
    %v564 = vld [vmem:[#allocation2 + $0xff8] sm:$0xff]
    %v565 = vld [vmem:[#allocation2 + $0x1000] sm:$0xff]
    %v566 = vld [vmem:[#allocation2 + $0x1008] sm:$0xff]
    %v567 = vld [vmem:[#allocation2 + $0x1010] sm:$0xff]
    %v568 = vld [vmem:[#allocation2 + $0x1018] sm:$0xff]
    %v569 = vld [vmem:[#allocation2 + $0x1020] sm:$0xff]
    %v570 = vld [vmem:[#allocation2 + $0x1028] sm:$0xff]
    %v571 = vld [vmem:[#allocation2 + $0x1030] sm:$0xff]
    %v572 = vld [vmem:[#allocation2 + $0x1038] sm:$0xff]
    %v573 = vld [vmem:[#allocation2 + $0x1040] sm:$0xff]
    %v574 = vld [vmem:[#allocation2 + $0x1048] sm:$0xff]
    %v575 = vld [vmem:[#allocation2 + $0x1050] sm:$0xff]
    %v576 = vld [vmem:[#allocation2 + $0x1058] sm:$0xff]
    %v577 = vld [vmem:[#allocation2 + $0x1060] sm:$0xff]
    %v578 = vld [vmem:[#allocation2 + $0x1068] sm:$0xff]
    %v579 = vld [vmem:[#allocation2 + $0x1070] sm:$0xff]
    %v580 = vld [vmem:[#allocation2 + $0x1078] sm:$0xff]
    %v581 = vld [vmem:[#allocation2 + $0x1080] sm:$0xff]
    %v582 = vld [vmem:[#allocation2 + $0x1088] sm:$0xff]
    %v583 = vld [vmem:[#allocation2 + $0x1090] sm:$0xff]
    %v584 = vld [vmem:[#allocation2 + $0x1098] sm:$0xff]
    %v585 = vld [vmem:[#allocation2 + $0x10a0] sm:$0xff]
    %v586 = vld [vmem:[#allocation2 + $0x10a8] sm:$0xff]
    %v587 = vld [vmem:[#allocation2 + $0x10b0] sm:$0xff]
    %v588 = vld [vmem:[#allocation2 + $0x10b8] sm:$0xff]
    %v589 = vld [vmem:[#allocation2 + $0x10c0] sm:$0xff]
    %v590 = vld [vmem:[#allocation2 + $0x10c8] sm:$0xff]
    %v591 = vld [vmem:[#allocation2 + $0x10d0] sm:$0xff]
    %v592 = vld [vmem:[#allocation2 + $0x10d8] sm:$0xff]
    %v593 = vld [vmem:[#allocation2 + $0x10e0] sm:$0xff]
    %v594 = vld [vmem:[#allocation2 + $0x10e8] sm:$0xff]
    %v595 = vld [vmem:[#allocation2 + $0x10f0] sm:$0xff]
    %v596 = vld [vmem:[#allocation2 + $0x10f8] sm:$0xff]
    %v597 = vld [vmem:[#allocation2 + $0x1100] sm:$0xff]
    %v598 = vld [vmem:[#allocation2 + $0x1108] sm:$0xff]
    %v599 = vld [vmem:[#allocation2 + $0x1110] sm:$0xff]
    %v600 = vld [vmem:[#allocation2 + $0x1118] sm:$0xff]
    %v601 = vld [vmem:[#allocation2 + $0x1120] sm:$0xff]
    %v602 = vld [vmem:[#allocation2 + $0x1128] sm:$0xff]
    %v603 = vld [vmem:[#allocation2 + $0x1130] sm:$0xff]
    %v604 = vld [vmem:[#allocation2 + $0x1138] sm:$0xff]
    %v605 = vld [vmem:[#allocation2 + $0x1140] sm:$0xff]
    %v606 = vld [vmem:[#allocation2 + $0x1148] sm:$0xff]
    %v607 = vld [vmem:[#allocation2 + $0x1150] sm:$0xff]
    %v608 = vld [vmem:[#allocation2 + $0x1158] sm:$0xff]
    %v609 = vld [vmem:[#allocation2 + $0x1160] sm:$0xff]
    %v610 = vld [vmem:[#allocation2 + $0x1168] sm:$0xff]
    %v611 = vld [vmem:[#allocation2 + $0x1170] sm:$0xff]
    %v612 = vld [vmem:[#allocation2 + $0x1178] sm:$0xff]
    %v613 = vld [vmem:[#allocation2 + $0x1180] sm:$0xff]
    %v614 = vld [vmem:[#allocation2 + $0x1188] sm:$0xff]
    %v615 = vld [vmem:[#allocation2 + $0x1190] sm:$0xff]
    %v616 = vld [vmem:[#allocation2 + $0x1198] sm:$0xff]
    %v617 = vld [vmem:[#allocation2 + $0x11a0] sm:$0xff]
    %v618 = vld [vmem:[#allocation2 + $0x11a8] sm:$0xff]
    %v619 = vld [vmem:[#allocation2 + $0x11b0] sm:$0xff]
    %v620 = vld [vmem:[#allocation2 + $0x11b8] sm:$0xff]
    %v621 = vld [vmem:[#allocation2 + $0x11c0] sm:$0xff]
    %v622 = vld [vmem:[#allocation2 + $0x11c8] sm:$0xff]
    %v623 = vld [vmem:[#allocation2 + $0x11d0] sm:$0xff]
    %v624 = vld [vmem:[#allocation2 + $0x11d8] sm:$0xff]
    %v625 = vld [vmem:[#allocation2 + $0x11e0] sm:$0xff]
    %v626 = vld [vmem:[#allocation2 + $0x11e8] sm:$0xff]
    %v627 = vld [vmem:[#allocation2 + $0x11f0] sm:$0xff]
    %v628 = vld [vmem:[#allocation2 + $0x11f8] sm:$0xff]
    %v629 = vld [vmem:[#allocation2 + $0x1200] sm:$0xff]
    %v630 = vld [vmem:[#allocation2 + $0x1208] sm:$0xff]
    %v631 = vld [vmem:[#allocation2 + $0x1210] sm:$0xff]
    %v632 = vld [vmem:[#allocation2 + $0x1218] sm:$0xff]
    %v633 = vld [vmem:[#allocation2 + $0x1220] sm:$0xff]
    %v634 = vld [vmem:[#allocation2 + $0x1228] sm:$0xff]
    %v635 = vld [vmem:[#allocation2 + $0x1230] sm:$0xff]
    %v636 = vld [vmem:[#allocation2 + $0x1238] sm:$0xff]
    %v637 = vld [vmem:[#allocation2 + $0x1240] sm:$0xff]
    %v638 = vld [vmem:[#allocation2 + $0x1248] sm:$0xff]
    %v639 = vld [vmem:[#allocation2 + $0x1250] sm:$0xff]
    %v640 = vld [vmem:[#allocation2 + $0x1258] sm:$0xff]
    %v641 = vld [vmem:[#allocation2 + $0x1260] sm:$0xff]
    %v642 = vld [vmem:[#allocation2 + $0x1268] sm:$0xff]
    %v643 = vld [vmem:[#allocation2 + $0x1270] sm:$0xff]
    %v644 = vld [vmem:[#allocation2 + $0x1278] sm:$0xff]
    %v645 = vld [vmem:[#allocation2 + $0x1280] sm:$0xff]
    %v646 = vld [vmem:[#allocation2 + $0x1288] sm:$0xff]
    %v647 = vld [vmem:[#allocation2 + $0x1290] sm:$0xff]
    %v648 = vld [vmem:[#allocation2 + $0x1298] sm:$0xff]
    %v649 = vld [vmem:[#allocation2 + $0x12a0] sm:$0xff]
    %v650 = vld [vmem:[#allocation2 + $0x12a8] sm:$0xff]
    %v651 = vld [vmem:[#allocation2 + $0x12b0] sm:$0xff]
    %v652 = vld [vmem:[#allocation2 + $0x12b8] sm:$0xff]
    %v653 = vld [vmem:[#allocation2 + $0x12c0] sm:$0xff]
    %v654 = vld [vmem:[#allocation2 + $0x12c8] sm:$0xff]
    %v655 = vld [vmem:[#allocation2 + $0x12d0] sm:$0xff]
    %v656 = vld [vmem:[#allocation2 + $0x12d8] sm:$0xff]
    %v657 = vld [vmem:[#allocation2 + $0x12e0] sm:$0xff]
    %v658 = vld [vmem:[#allocation2 + $0x12e8] sm:$0xff]
    %v659 = vld [vmem:[#allocation2 + $0x12f0] sm:$0xff]
    %v660 = vld [vmem:[#allocation2 + $0x12f8] sm:$0xff]
    %v661 = vld [vmem:[#allocation2 + $0x1300] sm:$0xff]
    %v662 = vld [vmem:[#allocation2 + $0x1308] sm:$0xff]
    %v663 = vld [vmem:[#allocation2 + $0x1310] sm:$0xff]
    %v664 = vld [vmem:[#allocation2 + $0x1318] sm:$0xff]
    %v665 = vld [vmem:[#allocation2 + $0x1320] sm:$0xff]
    %v666 = vld [vmem:[#allocation2 + $0x1328] sm:$0xff]
    %v667 = vld [vmem:[#allocation2 + $0x1330] sm:$0xff]
    %v668 = vld [vmem:[#allocation2 + $0x1338] sm:$0xff]
    %v669 = vld [vmem:[#allocation2 + $0x1340] sm:$0xff]
    %v670 = vld [vmem:[#allocation2 + $0x1348] sm:$0xff]
    %v671 = vld [vmem:[#allocation2 + $0x1350] sm:$0xff]
    %v672 = vld [vmem:[#allocation2 + $0x1358] sm:$0xff]
    %v673 = vld [vmem:[#allocation2 + $0x1360] sm:$0xff]
    %v674 = vld [vmem:[#allocation2 + $0x1368] sm:$0xff]
    %v675 = vld [vmem:[#allocation2 + $0x1370] sm:$0xff]
    %v676 = vld [vmem:[#allocation2 + $0x1378] sm:$0xff]
    %v677 = vld [vmem:[#allocation2 + $0x1380] sm:$0xff]
    %v678 = vld [vmem:[#allocation2 + $0x1388] sm:$0xff]
    %v679 = vld [vmem:[#allocation2 + $0x1390] sm:$0xff]
    %v680 = vld [vmem:[#allocation2 + $0x1398] sm:$0xff]
    %v681 = vld [vmem:[#allocation2 + $0x13a0] sm:$0xff]
    %v682 = vld [vmem:[#allocation2 + $0x13a8] sm:$0xff]
    %v683 = vld [vmem:[#allocation2 + $0x13b0] sm:$0xff]
    %v684 = vld [vmem:[#allocation2 + $0x13b8] sm:$0xff]
    %v685 = vld [vmem:[#allocation2 + $0x13c0] sm:$0xff]
    %v686 = vld [vmem:[#allocation2 + $0x13c8] sm:$0xff]
    %v687 = vld [vmem:[#allocation2 + $0x13d0] sm:$0xff]
    %v688 = vld [vmem:[#allocation2 + $0x13d8] sm:$0xff]
    %v689 = vld [vmem:[#allocation2 + $0x13e0] sm:$0xff]
    %v690 = vld [vmem:[#allocation2 + $0x13e8] sm:$0xff]
    %v691 = vld [vmem:[#allocation2 + $0x13f0] sm:$0xff]
    %v692 = vld [vmem:[#allocation2 + $0x13f8] sm:$0xff]
    %v693 = vld [vmem:[#allocation2 + $0x1400] sm:$0xff]
    %v694 = vld [vmem:[#allocation2 + $0x1408] sm:$0xff]
    %v695 = vld [vmem:[#allocation2 + $0x1410] sm:$0xff]
    %v696 = vld [vmem:[#allocation2 + $0x1418] sm:$0xff]
    %v697 = vld [vmem:[#allocation2 + $0x1420] sm:$0xff]
    %v698 = vld [vmem:[#allocation2 + $0x1428] sm:$0xff]
    %v699 = vld [vmem:[#allocation2 + $0x1430] sm:$0xff]
    %v700 = vld [vmem:[#allocation2 + $0x1438] sm:$0xff]
    %v701 = vld [vmem:[#allocation2 + $0x1440] sm:$0xff]
    %v702 = vld [vmem:[#allocation2 + $0x1448] sm:$0xff]
    %v703 = vld [vmem:[#allocation2 + $0x1450] sm:$0xff]
    %v704 = vld [vmem:[#allocation2 + $0x1458] sm:$0xff]
    %v705 = vld [vmem:[#allocation2 + $0x1460] sm:$0xff]
    %v706 = vld [vmem:[#allocation2 + $0x1468] sm:$0xff]
    %v707 = vld [vmem:[#allocation2 + $0x1470] sm:$0xff]
    %v708 = vld [vmem:[#allocation2 + $0x1478] sm:$0xff]
    %v709 = vld [vmem:[#allocation2 + $0x1480] sm:$0xff]
    %v710 = vld [vmem:[#allocation2 + $0x1488] sm:$0xff]
    %v711 = vld [vmem:[#allocation2 + $0x1490] sm:$0xff]
    %v712 = vld [vmem:[#allocation2 + $0x1498] sm:$0xff]
    %v713 = vld [vmem:[#allocation2 + $0x14a0] sm:$0xff]
    %v714 = vld [vmem:[#allocation2 + $0x14a8] sm:$0xff]
    %v715 = vld [vmem:[#allocation2 + $0x14b0] sm:$0xff]
    %v716 = vld [vmem:[#allocation2 + $0x14b8] sm:$0xff]
    %v717 = vld [vmem:[#allocation2 + $0x14c0] sm:$0xff]
    %v718 = vld [vmem:[#allocation2 + $0x14c8] sm:$0xff]
    %v719 = vld [vmem:[#allocation2 + $0x14d0] sm:$0xff]
    %v720 = vld [vmem:[#allocation2 + $0x14d8] sm:$0xff]
    %v721 = vld [vmem:[#allocation2 + $0x14e0] sm:$0xff]
    %v722 = vld [vmem:[#allocation2 + $0x14e8] sm:$0xff]
    %v723 = vld [vmem:[#allocation2 + $0x14f0] sm:$0xff]
    %v724 = vld [vmem:[#allocation2 + $0x14f8] sm:$0xff]
    %v725 = vld [vmem:[#allocation2 + $0x1500] sm:$0xff]
    %v726 = vld [vmem:[#allocation2 + $0x1508] sm:$0xff]
    %v727 = vld [vmem:[#allocation2 + $0x1510] sm:$0xff]
    %v728 = vld [vmem:[#allocation2 + $0x1518] sm:$0xff]
    %v729 = vld [vmem:[#allocation2 + $0x1520] sm:$0xff]
    %v730 = vld [vmem:[#allocation2 + $0x1528] sm:$0xff]
    %v731 = vld [vmem:[#allocation2 + $0x1530] sm:$0xff]
    %v732 = vld [vmem:[#allocation2 + $0x1538] sm:$0xff]
    %v733 = vld [vmem:[#allocation2 + $0x1540] sm:$0xff]
    %v734 = vld [vmem:[#allocation2 + $0x1548] sm:$0xff]
    %v735 = vld [vmem:[#allocation2 + $0x1550] sm:$0xff]
    %v736 = vld [vmem:[#allocation2 + $0x1558] sm:$0xff]
    %v737 = vld [vmem:[#allocation2 + $0x1560] sm:$0xff]
    %v738 = vld [vmem:[#allocation2 + $0x1568] sm:$0xff]
    %v739 = vld [vmem:[#allocation2 + $0x1570] sm:$0xff]
    %v740 = vld [vmem:[#allocation2 + $0x1578] sm:$0xff]
    %v741 = vld [vmem:[#allocation2 + $0x1580] sm:$0xff]
    %v742 = vld [vmem:[#allocation2 + $0x1588] sm:$0xff]
    %v743 = vld [vmem:[#allocation2 + $0x1590] sm:$0xff]
    %v744 = vld [vmem:[#allocation2 + $0x1598] sm:$0xff]
    %v745 = vld [vmem:[#allocation2 + $0x15a0] sm:$0xff]
    %v746 = vld [vmem:[#allocation2 + $0x15a8] sm:$0xff]
    %v747 = vld [vmem:[#allocation2 + $0x15b0] sm:$0xff]
    %v748 = vld [vmem:[#allocation2 + $0x15b8] sm:$0xff]
    %v749 = vld [vmem:[#allocation2 + $0x15c0] sm:$0xff]
    %v750 = vld [vmem:[#allocation2 + $0x15c8] sm:$0xff]
    %v751 = vld [vmem:[#allocation2 + $0x15d0] sm:$0xff]
    %v752 = vld [vmem:[#allocation2 + $0x15d8] sm:$0xff]
    %v753 = vld [vmem:[#allocation2 + $0x15e0] sm:$0xff]
    %v754 = vld [vmem:[#allocation2 + $0x15e8] sm:$0xff]
    %v755 = vld [vmem:[#allocation2 + $0x15f0] sm:$0xff]
    %v756 = vld [vmem:[#allocation2 + $0x15f8] sm:$0xff]
    %v757 = vld [vmem:[#allocation2 + $0x1600] sm:$0xff]
    %v758 = vld [vmem:[#allocation2 + $0x1608] sm:$0xff]
    %v759 = vld [vmem:[#allocation2 + $0x1610] sm:$0xff]
    %v760 = vld [vmem:[#allocation2 + $0x1618] sm:$0xff]
    %v761 = vld [vmem:[#allocation2 + $0x1620] sm:$0xff]
    %v762 = vld [vmem:[#allocation2 + $0x1628] sm:$0xff]
    %v763 = vld [vmem:[#allocation2 + $0x1630] sm:$0xff]
    %v764 = vld [vmem:[#allocation2 + $0x1638] sm:$0xff]
    %v765 = vld [vmem:[#allocation2 + $0x1640] sm:$0xff]
    %v766 = vld [vmem:[#allocation2 + $0x1648] sm:$0xff]
    %v767 = vld [vmem:[#allocation2 + $0x1650] sm:$0xff]
    %v768 = vld [vmem:[#allocation2 + $0x1658] sm:$0xff]
    %v769 = vld [vmem:[#allocation2 + $0x1660] sm:$0xff]
    %v770 = vld [vmem:[#allocation2 + $0x1668] sm:$0xff]
    %v771 = vld [vmem:[#allocation2 + $0x1670] sm:$0xff]
    %v772 = vld [vmem:[#allocation2 + $0x1678] sm:$0xff]
    %v785 = vunpack.c.l.b16 %v41
    %v786 = vunpack.c.h.b16 %v41
    %v787 = vunpack.c.l.b16 %v42
    %v788 = vunpack.c.h.b16 %v42
    %v789 = vunpack.c.l.b16 %v43
    %v790 = vunpack.c.h.b16 %v43
    %v791 = vunpack.c.l.b16 %v44
    %v792 = vunpack.c.h.b16 %v44
    %v793 = vunpack.c.l.b16 %v45
    %v794 = vunpack.c.h.b16 %v45
    %v795 = vunpack.c.l.b16 %v46
    %v796 = vunpack.c.h.b16 %v46
    %v797 = vunpack.c.l.b16 %v47
    %v798 = vunpack.c.h.b16 %v47
    %v799 = vunpack.c.l.b16 %v48
    %v800 = vunpack.c.h.b16 %v48
    %v801 = vunpack.c.l.b16 %v49
    %v802 = vunpack.c.h.b16 %v49
    %v803 = vunpack.c.l.b16 %v50
    %v804 = vunpack.c.h.b16 %v50
    %v805 = vunpack.c.l.b16 %v51
    %v806 = vunpack.c.h.b16 %v51
    %v807 = vunpack.c.l.b16 %v52
    %v808 = vunpack.c.h.b16 %v52
    %v809 = vpack.c.b16 %v797, %v785
    %v810 = vpack.c.b16 %v798, %v786
    %v811 = vpack.c.b16 %v799, %v787
    %v812 = vpack.c.b16 %v800, %v788
    %v813 = vpack.c.b16 %v801, %v789
    %v814 = vpack.c.b16 %v802, %v790
    %v815 = vpack.c.b16 %v803, %v791
    %v816 = vpack.c.b16 %v804, %v792
    %v817 = vpack.c.b16 %v805, %v793
    %v818 = vpack.c.b16 %v806, %v794
    %v819 = vpack.c.b16 %v807, %v795
    %v820 = vpack.c.b16 %v808, %v796
    %v1552 = vunpack.c.l.b16 %v53
    %v1553 = vunpack.c.h.b16 %v53
    %v1554 = vunpack.c.l.b16 %v54
    %v1555 = vunpack.c.h.b16 %v54
    %v1556 = vunpack.c.l.b16 %v55
    %v1557 = vunpack.c.h.b16 %v55
    %v1558 = vunpack.c.l.b16 %v56
    %v1559 = vunpack.c.h.b16 %v56
    %v1560 = vunpack.c.l.b16 %v57
    %v1561 = vunpack.c.h.b16 %v57
    %v1562 = vunpack.c.l.b16 %v58
    %v1563 = vunpack.c.h.b16 %v58
    %v1564 = vunpack.c.l.b16 %v59
    %v1565 = vunpack.c.h.b16 %v59
    %v1566 = vunpack.c.l.b16 %v60
    %v1567 = vunpack.c.h.b16 %v60
    %v1568 = vunpack.c.l.b16 %v61
    %v1569 = vunpack.c.h.b16 %v61
    %v1570 = vunpack.c.l.b16 %v62
    %v1571 = vunpack.c.h.b16 %v62
    %v1572 = vunpack.c.l.b16 %v63
    %v1573 = vunpack.c.h.b16 %v63
    %v1574 = vunpack.c.l.b16 %v64
    %v1575 = vunpack.c.h.b16 %v64
    %v1576 = vunpack.c.l.b16 %v65
    %v1577 = vunpack.c.h.b16 %v65
    %v1578 = vunpack.c.l.b16 %v66
    %v1579 = vunpack.c.h.b16 %v66
    %v1580 = vunpack.c.l.b16 %v67
    %v1581 = vunpack.c.h.b16 %v67
    %v1582 = vunpack.c.l.b16 %v68
    %v1583 = vunpack.c.h.b16 %v68
    %v1584 = vunpack.c.l.b16 %v69
    %v1585 = vunpack.c.h.b16 %v69
    %v1586 = vunpack.c.l.b16 %v70
    %v1587 = vunpack.c.h.b16 %v70
    %v1588 = vunpack.c.l.b16 %v71
    %v1589 = vunpack.c.h.b16 %v71
    %v1590 = vunpack.c.l.b16 %v72
    %v1591 = vunpack.c.h.b16 %v72
    %v1592 = vunpack.c.l.b16 %v73
    %v1593 = vunpack.c.h.b16 %v73
    %v1594 = vunpack.c.l.b16 %v74
    %v1595 = vunpack.c.h.b16 %v74
    %v1596 = vunpack.c.l.b16 %v75
    %v1597 = vunpack.c.h.b16 %v75
    %v1598 = vunpack.c.l.b16 %v76
    %v1599 = vunpack.c.h.b16 %v76
    %v1600 = vunpack.c.l.b16 %v77
    %v1601 = vunpack.c.h.b16 %v77
    %v1602 = vunpack.c.l.b16 %v78
    %v1603 = vunpack.c.h.b16 %v78
    %v1604 = vunpack.c.l.b16 %v79
    %v1605 = vunpack.c.h.b16 %v79
    %v1606 = vunpack.c.l.b16 %v80
    %v1607 = vunpack.c.h.b16 %v80
    %v1608 = vunpack.c.l.b16 %v81
    %v1609 = vunpack.c.h.b16 %v81
    %v1610 = vunpack.c.l.b16 %v82
    %v1611 = vunpack.c.h.b16 %v82
    %v1612 = vunpack.c.l.b16 %v83
    %v1613 = vunpack.c.h.b16 %v83
    %v1614 = vunpack.c.l.b16 %v84
    %v1615 = vunpack.c.h.b16 %v84
    %v1616 = vunpack.c.l.b16 %v85
    %v1617 = vunpack.c.h.b16 %v85
    %v1618 = vunpack.c.l.b16 %v86
    %v1619 = vunpack.c.h.b16 %v86
    %v1620 = vunpack.c.l.b16 %v87
    %v1621 = vunpack.c.h.b16 %v87
    %v1622 = vunpack.c.l.b16 %v88
    %v1623 = vunpack.c.h.b16 %v88
    %v1624 = vunpack.c.l.b16 %v89
    %v1625 = vunpack.c.h.b16 %v89
    %v1626 = vunpack.c.l.b16 %v90
    %v1627 = vunpack.c.h.b16 %v90
    %v1628 = vunpack.c.l.b16 %v91
    %v1629 = vunpack.c.h.b16 %v91
    %v1630 = vunpack.c.l.b16 %v92
    %v1631 = vunpack.c.h.b16 %v92
    %v1632 = vunpack.c.l.b16 %v93
    %v1633 = vunpack.c.h.b16 %v93
    %v1634 = vunpack.c.l.b16 %v94
    %v1635 = vunpack.c.h.b16 %v94
    %v1636 = vunpack.c.l.b16 %v95
    %v1637 = vunpack.c.h.b16 %v95
    %v1638 = vunpack.c.l.b16 %v96
    %v1639 = vunpack.c.h.b16 %v96
    %v1640 = vunpack.c.l.b16 %v97
    %v1641 = vunpack.c.h.b16 %v97
    %v1642 = vunpack.c.l.b16 %v98
    %v1643 = vunpack.c.h.b16 %v98
    %v1644 = vunpack.c.l.b16 %v99
    %v1645 = vunpack.c.h.b16 %v99
    %v1646 = vunpack.c.l.b16 %v100
    %v1647 = vunpack.c.h.b16 %v100
    %v1648 = vunpack.c.l.b16 %v101
    %v1649 = vunpack.c.h.b16 %v101
    %v1650 = vunpack.c.l.b16 %v102
    %v1651 = vunpack.c.h.b16 %v102
    %v1652 = vunpack.c.l.b16 %v103
    %v1653 = vunpack.c.h.b16 %v103
    %v1654 = vunpack.c.l.b16 %v104
    %v1655 = vunpack.c.h.b16 %v104
    %v1656 = vunpack.c.l.b16 %v105
    %v1657 = vunpack.c.h.b16 %v105
    %v1658 = vunpack.c.l.b16 %v106
    %v1659 = vunpack.c.h.b16 %v106
    %v1660 = vunpack.c.l.b16 %v107
    %v1661 = vunpack.c.h.b16 %v107
    %v1662 = vunpack.c.l.b16 %v108
    %v1663 = vunpack.c.h.b16 %v108
    %v1664 = vunpack.c.l.b16 %v109
    %v1665 = vunpack.c.h.b16 %v109
    %v1666 = vunpack.c.l.b16 %v110
    %v1667 = vunpack.c.h.b16 %v110
    %v1668 = vunpack.c.l.b16 %v111
    %v1669 = vunpack.c.h.b16 %v111
    %v1670 = vunpack.c.l.b16 %v112
    %v1671 = vunpack.c.h.b16 %v112
    %v1672 = vunpack.c.l.b16 %v113
    %v1673 = vunpack.c.h.b16 %v113
    %v1674 = vunpack.c.l.b16 %v114
    %v1675 = vunpack.c.h.b16 %v114
    %v1676 = vunpack.c.l.b16 %v115
    %v1677 = vunpack.c.h.b16 %v115
    %v1678 = vunpack.c.l.b16 %v116
    %v1679 = vunpack.c.h.b16 %v116
    %v1680 = vunpack.c.l.b16 %v117
    %v1681 = vunpack.c.h.b16 %v117
    %v1682 = vunpack.c.l.b16 %v118
    %v1683 = vunpack.c.h.b16 %v118
    %v1684 = vunpack.c.l.b16 %v119
    %v1685 = vunpack.c.h.b16 %v119
    %v1686 = vunpack.c.l.b16 %v120
    %v1687 = vunpack.c.h.b16 %v120
    %v1688 = vunpack.c.l.b16 %v121
    %v1689 = vunpack.c.h.b16 %v121
    %v1690 = vunpack.c.l.b16 %v122
    %v1691 = vunpack.c.h.b16 %v122
    %v1692 = vunpack.c.l.b16 %v123
    %v1693 = vunpack.c.h.b16 %v123
    %v1694 = vunpack.c.l.b16 %v124
    %v1695 = vunpack.c.h.b16 %v124
    %v1696 = vunpack.c.l.b16 %v125
    %v1697 = vunpack.c.h.b16 %v125
    %v1698 = vunpack.c.l.b16 %v126
    %v1699 = vunpack.c.h.b16 %v126
    %v1700 = vunpack.c.l.b16 %v127
    %v1701 = vunpack.c.h.b16 %v127
    %v1702 = vunpack.c.l.b16 %v128
    %v1703 = vunpack.c.h.b16 %v128
    %v1704 = vunpack.c.l.b16 %v129
    %v1705 = vunpack.c.h.b16 %v129
    %v1706 = vunpack.c.l.b16 %v130
    %v1707 = vunpack.c.h.b16 %v130
    %v1708 = vunpack.c.l.b16 %v131
    %v1709 = vunpack.c.h.b16 %v131
    %v1710 = vunpack.c.l.b16 %v132
    %v1711 = vunpack.c.h.b16 %v132
    %v1712 = vunpack.c.l.b16 %v133
    %v1713 = vunpack.c.h.b16 %v133
    %v1714 = vunpack.c.l.b16 %v134
    %v1715 = vunpack.c.h.b16 %v134
    %v1716 = vunpack.c.l.b16 %v135
    %v1717 = vunpack.c.h.b16 %v135
    %v1718 = vunpack.c.l.b16 %v136
    %v1719 = vunpack.c.h.b16 %v136
    %v1720 = vunpack.c.l.b16 %v137
    %v1721 = vunpack.c.h.b16 %v137
    %v1722 = vunpack.c.l.b16 %v138
    %v1723 = vunpack.c.h.b16 %v138
    %v1724 = vunpack.c.l.b16 %v139
    %v1725 = vunpack.c.h.b16 %v139
    %v1726 = vunpack.c.l.b16 %v140
    %v1727 = vunpack.c.h.b16 %v140
    %v1728 = vunpack.c.l.b16 %v141
    %v1729 = vunpack.c.h.b16 %v141
    %v1730 = vunpack.c.l.b16 %v142
    %v1731 = vunpack.c.h.b16 %v142
    %v1732 = vunpack.c.l.b16 %v143
    %v1733 = vunpack.c.h.b16 %v143
    %v1734 = vunpack.c.l.b16 %v144
    %v1735 = vunpack.c.h.b16 %v144
    %v1736 = vunpack.c.l.b16 %v145
    %v1737 = vunpack.c.h.b16 %v145
    %v1738 = vunpack.c.l.b16 %v146
    %v1739 = vunpack.c.h.b16 %v146
    %v1740 = vunpack.c.l.b16 %v147
    %v1741 = vunpack.c.h.b16 %v147
    %v1742 = vunpack.c.l.b16 %v148
    %v1743 = vunpack.c.h.b16 %v148
    %v1744 = vunpack.c.l.b16 %v149
    %v1745 = vunpack.c.h.b16 %v149
    %v1746 = vunpack.c.l.b16 %v150
    %v1747 = vunpack.c.h.b16 %v150
    %v1748 = vunpack.c.l.b16 %v151
    %v1749 = vunpack.c.h.b16 %v151
    %v1750 = vunpack.c.l.b16 %v152
    %v1751 = vunpack.c.h.b16 %v152
    %v1752 = vunpack.c.l.b16 %v153
    %v1753 = vunpack.c.h.b16 %v153
    %v1754 = vunpack.c.l.b16 %v154
    %v1755 = vunpack.c.h.b16 %v154
    %v1756 = vunpack.c.l.b16 %v155
    %v1757 = vunpack.c.h.b16 %v155
    %v1758 = vunpack.c.l.b16 %v156
    %v1759 = vunpack.c.h.b16 %v156
    %v1760 = vunpack.c.l.b16 %v157
    %v1761 = vunpack.c.h.b16 %v157
    %v1762 = vunpack.c.l.b16 %v158
    %v1763 = vunpack.c.h.b16 %v158
    %v1764 = vunpack.c.l.b16 %v159
    %v1765 = vunpack.c.h.b16 %v159
    %v1766 = vunpack.c.l.b16 %v160
    %v1767 = vunpack.c.h.b16 %v160
    %v1768 = vunpack.c.l.b16 %v161
    %v1769 = vunpack.c.h.b16 %v161
    %v1770 = vunpack.c.l.b16 %v162
    %v1771 = vunpack.c.h.b16 %v162
    %v1772 = vunpack.c.l.b16 %v163
    %v1773 = vunpack.c.h.b16 %v163
    %v1774 = vunpack.c.l.b16 %v164
    %v1775 = vunpack.c.h.b16 %v164
    %v1776 = vunpack.c.l.b16 %v165
    %v1777 = vunpack.c.h.b16 %v165
    %v1778 = vunpack.c.l.b16 %v166
    %v1779 = vunpack.c.h.b16 %v166
    %v1780 = vunpack.c.l.b16 %v167
    %v1781 = vunpack.c.h.b16 %v167
    %v1782 = vunpack.c.l.b16 %v168
    %v1783 = vunpack.c.h.b16 %v168
    %v1784 = vunpack.c.l.b16 %v169
    %v1785 = vunpack.c.h.b16 %v169
    %v1786 = vunpack.c.l.b16 %v170
    %v1787 = vunpack.c.h.b16 %v170
    %v1788 = vunpack.c.l.b16 %v171
    %v1789 = vunpack.c.h.b16 %v171
    %v1790 = vunpack.c.l.b16 %v172
    %v1791 = vunpack.c.h.b16 %v172
    %v1792 = vunpack.c.l.b16 %v173
    %v1793 = vunpack.c.h.b16 %v173
    %v1794 = vunpack.c.l.b16 %v174
    %v1795 = vunpack.c.h.b16 %v174
    %v1796 = vunpack.c.l.b16 %v175
    %v1797 = vunpack.c.h.b16 %v175
    %v1798 = vunpack.c.l.b16 %v176
    %v1799 = vunpack.c.h.b16 %v176
    %v1800 = vunpack.c.l.b16 %v177
    %v1801 = vunpack.c.h.b16 %v177
    %v1802 = vunpack.c.l.b16 %v178
    %v1803 = vunpack.c.h.b16 %v178
    %v1804 = vunpack.c.l.b16 %v179
    %v1805 = vunpack.c.h.b16 %v179
    %v1806 = vunpack.c.l.b16 %v180
    %v1807 = vunpack.c.h.b16 %v180
    %v1808 = vunpack.c.l.b16 %v181
    %v1809 = vunpack.c.h.b16 %v181
    %v1810 = vunpack.c.l.b16 %v182
    %v1811 = vunpack.c.h.b16 %v182
    %v1812 = vunpack.c.l.b16 %v183
    %v1813 = vunpack.c.h.b16 %v183
    %v1814 = vunpack.c.l.b16 %v184
    %v1815 = vunpack.c.h.b16 %v184
    %v1816 = vunpack.c.l.b16 %v185
    %v1817 = vunpack.c.h.b16 %v185
    %v1818 = vunpack.c.l.b16 %v186
    %v1819 = vunpack.c.h.b16 %v186
    %v1820 = vunpack.c.l.b16 %v187
    %v1821 = vunpack.c.h.b16 %v187
    %v1822 = vunpack.c.l.b16 %v188
    %v1823 = vunpack.c.h.b16 %v188
    %v1824 = vunpack.c.l.b16 %v189
    %v1825 = vunpack.c.h.b16 %v189
    %v1826 = vunpack.c.l.b16 %v190
    %v1827 = vunpack.c.h.b16 %v190
    %v1828 = vunpack.c.l.b16 %v191
    %v1829 = vunpack.c.h.b16 %v191
    %v1830 = vunpack.c.l.b16 %v192
    %v1831 = vunpack.c.h.b16 %v192
    %v1832 = vunpack.c.l.b16 %v193
    %v1833 = vunpack.c.h.b16 %v193
    %v1834 = vunpack.c.l.b16 %v194
    %v1835 = vunpack.c.h.b16 %v194
    %v1836 = vunpack.c.l.b16 %v195
    %v1837 = vunpack.c.h.b16 %v195
    %v1838 = vunpack.c.l.b16 %v196
    %v1839 = vunpack.c.h.b16 %v196
    %v1840 = vunpack.c.l.b16 %v197
    %v1841 = vunpack.c.h.b16 %v197
    %v1842 = vunpack.c.l.b16 %v198
    %v1843 = vunpack.c.h.b16 %v198
    %v1844 = vunpack.c.l.b16 %v199
    %v1845 = vunpack.c.h.b16 %v199
    %v1846 = vunpack.c.l.b16 %v200
    %v1847 = vunpack.c.h.b16 %v200
    %v1848 = vunpack.c.l.b16 %v201
    %v1849 = vunpack.c.h.b16 %v201
    %v1850 = vunpack.c.l.b16 %v202
    %v1851 = vunpack.c.h.b16 %v202
    %v1852 = vunpack.c.l.b16 %v203
    %v1853 = vunpack.c.h.b16 %v203
    %v1854 = vunpack.c.l.b16 %v204
    %v1855 = vunpack.c.h.b16 %v204
    %v1856 = vunpack.c.l.b16 %v205
    %v1857 = vunpack.c.h.b16 %v205
    %v1858 = vunpack.c.l.b16 %v206
    %v1859 = vunpack.c.h.b16 %v206
    %v1860 = vunpack.c.l.b16 %v207
    %v1861 = vunpack.c.h.b16 %v207
    %v1862 = vunpack.c.l.b16 %v208
    %v1863 = vunpack.c.h.b16 %v208
    %v1864 = vunpack.c.l.b16 %v209
    %v1865 = vunpack.c.h.b16 %v209
    %v1866 = vunpack.c.l.b16 %v210
    %v1867 = vunpack.c.h.b16 %v210
    %v1868 = vunpack.c.l.b16 %v211
    %v1869 = vunpack.c.h.b16 %v211
    %v1870 = vunpack.c.l.b16 %v212
    %v1871 = vunpack.c.h.b16 %v212
    %v1872 = vunpack.c.l.b16 %v213
    %v1873 = vunpack.c.h.b16 %v213
    %v1874 = vunpack.c.l.b16 %v214
    %v1875 = vunpack.c.h.b16 %v214
    %v1876 = vunpack.c.l.b16 %v215
    %v1877 = vunpack.c.h.b16 %v215
    %v1878 = vunpack.c.l.b16 %v216
    %v1879 = vunpack.c.h.b16 %v216
    %v1880 = vunpack.c.l.b16 %v217
    %v1881 = vunpack.c.h.b16 %v217
    %v1882 = vunpack.c.l.b16 %v218
    %v1883 = vunpack.c.h.b16 %v218
    %v1884 = vunpack.c.l.b16 %v219
    %v1885 = vunpack.c.h.b16 %v219
    %v1886 = vunpack.c.l.b16 %v220
    %v1887 = vunpack.c.h.b16 %v220
    %v1888 = vunpack.c.l.b16 %v221
    %v1889 = vunpack.c.h.b16 %v221
    %v1890 = vunpack.c.l.b16 %v222
    %v1891 = vunpack.c.h.b16 %v222
    %v1892 = vunpack.c.l.b16 %v223
    %v1893 = vunpack.c.h.b16 %v223
    %v1894 = vunpack.c.l.b16 %v224
    %v1895 = vunpack.c.h.b16 %v224
    %v1896 = vunpack.c.l.b16 %v225
    %v1897 = vunpack.c.h.b16 %v225
    %v1898 = vunpack.c.l.b16 %v226
    %v1899 = vunpack.c.h.b16 %v226
    %v1900 = vunpack.c.l.b16 %v227
    %v1901 = vunpack.c.h.b16 %v227
    %v1902 = vunpack.c.l.b16 %v228
    %v1903 = vunpack.c.h.b16 %v228
    %v1904 = vunpack.c.l.b16 %v229
    %v1905 = vunpack.c.h.b16 %v229
    %v1906 = vunpack.c.l.b16 %v230
    %v1907 = vunpack.c.h.b16 %v230
    %v1908 = vunpack.c.l.b16 %v231
    %v1909 = vunpack.c.h.b16 %v231
    %v1910 = vunpack.c.l.b16 %v232
    %v1911 = vunpack.c.h.b16 %v232
    %v1912 = vunpack.c.l.b16 %v233
    %v1913 = vunpack.c.h.b16 %v233
    %v1914 = vunpack.c.l.b16 %v234
    %v1915 = vunpack.c.h.b16 %v234
    %v1916 = vunpack.c.l.b16 %v235
    %v1917 = vunpack.c.h.b16 %v235
    %v1918 = vunpack.c.l.b16 %v236
    %v1919 = vunpack.c.h.b16 %v236
    %v1920 = vunpack.c.l.b16 %v237
    %v1921 = vunpack.c.h.b16 %v237
    %v1922 = vunpack.c.l.b16 %v238
    %v1923 = vunpack.c.h.b16 %v238
    %v1924 = vunpack.c.l.b16 %v239
    %v1925 = vunpack.c.h.b16 %v239
    %v1926 = vunpack.c.l.b16 %v240
    %v1927 = vunpack.c.h.b16 %v240
    %v1928 = vunpack.c.l.b16 %v241
    %v1929 = vunpack.c.h.b16 %v241
    %v1930 = vunpack.c.l.b16 %v242
    %v1931 = vunpack.c.h.b16 %v242
    %v1932 = vunpack.c.l.b16 %v243
    %v1933 = vunpack.c.h.b16 %v243
    %v1934 = vunpack.c.l.b16 %v244
    %v1935 = vunpack.c.h.b16 %v244
    %v1936 = vunpack.c.l.b16 %v245
    %v1937 = vunpack.c.h.b16 %v245
    %v1938 = vunpack.c.l.b16 %v246
    %v1939 = vunpack.c.h.b16 %v246
    %v1940 = vunpack.c.l.b16 %v247
    %v1941 = vunpack.c.h.b16 %v247
    %v1942 = vunpack.c.l.b16 %v248
    %v1943 = vunpack.c.h.b16 %v248
    %v1944 = vunpack.c.l.b16 %v249
    %v1945 = vunpack.c.h.b16 %v249
    %v1946 = vunpack.c.l.b16 %v250
    %v1947 = vunpack.c.h.b16 %v250
    %v1948 = vunpack.c.l.b16 %v251
    %v1949 = vunpack.c.h.b16 %v251
    %v1950 = vunpack.c.l.b16 %v252
    %v1951 = vunpack.c.h.b16 %v252
    %v1952 = vunpack.c.l.b16 %v253
    %v1953 = vunpack.c.h.b16 %v253
    %v1954 = vunpack.c.l.b16 %v254
    %v1955 = vunpack.c.h.b16 %v254
    %v1956 = vunpack.c.l.b16 %v255
    %v1957 = vunpack.c.h.b16 %v255
    %v1958 = vunpack.c.l.b16 %v256
    %v1959 = vunpack.c.h.b16 %v256
    %v1960 = vunpack.c.l.b16 %v257
    %v1961 = vunpack.c.h.b16 %v257
    %v1962 = vunpack.c.l.b16 %v258
    %v1963 = vunpack.c.h.b16 %v258
    %v1964 = vunpack.c.l.b16 %v259
    %v1965 = vunpack.c.h.b16 %v259
    %v1966 = vunpack.c.l.b16 %v260
    %v1967 = vunpack.c.h.b16 %v260
    %v1968 = vunpack.c.l.b16 %v261
    %v1969 = vunpack.c.h.b16 %v261
    %v1970 = vunpack.c.l.b16 %v262
    %v1971 = vunpack.c.h.b16 %v262
    %v1972 = vunpack.c.l.b16 %v263
    %v1973 = vunpack.c.h.b16 %v263
    %v1974 = vunpack.c.l.b16 %v264
    %v1975 = vunpack.c.h.b16 %v264
    %v1976 = vunpack.c.l.b16 %v265
    %v1977 = vunpack.c.h.b16 %v265
    %v1978 = vunpack.c.l.b16 %v266
    %v1979 = vunpack.c.h.b16 %v266
    %v1980 = vunpack.c.l.b16 %v267
    %v1981 = vunpack.c.h.b16 %v267
    %v1982 = vunpack.c.l.b16 %v268
    %v1983 = vunpack.c.h.b16 %v268
    %v1984 = vunpack.c.l.b16 %v269
    %v1985 = vunpack.c.h.b16 %v269
    %v1986 = vunpack.c.l.b16 %v270
    %v1987 = vunpack.c.h.b16 %v270
    %v1988 = vunpack.c.l.b16 %v271
    %v1989 = vunpack.c.h.b16 %v271
    %v1990 = vunpack.c.l.b16 %v272
    %v1991 = vunpack.c.h.b16 %v272
    %v1992 = vunpack.c.l.b16 %v273
    %v1993 = vunpack.c.h.b16 %v273
    %v1994 = vunpack.c.l.b16 %v274
    %v1995 = vunpack.c.h.b16 %v274
    %v1996 = vunpack.c.l.b16 %v275
    %v1997 = vunpack.c.h.b16 %v275
    %v1998 = vunpack.c.l.b16 %v276
    %v1999 = vunpack.c.h.b16 %v276
    %v2000 = vunpack.c.l.b16 %v277
    %v2001 = vunpack.c.h.b16 %v277
    %v2002 = vunpack.c.l.b16 %v278
    %v2003 = vunpack.c.h.b16 %v278
    %v2004 = vunpack.c.l.b16 %v279
    %v2005 = vunpack.c.h.b16 %v279
    %v2006 = vunpack.c.l.b16 %v280
    %v2007 = vunpack.c.h.b16 %v280
    %v2008 = vunpack.c.l.b16 %v281
    %v2009 = vunpack.c.h.b16 %v281
    %v2010 = vunpack.c.l.b16 %v282
    %v2011 = vunpack.c.h.b16 %v282
    %v2012 = vunpack.c.l.b16 %v283
    %v2013 = vunpack.c.h.b16 %v283
    %v2014 = vunpack.c.l.b16 %v284
    %v2015 = vunpack.c.h.b16 %v284
    %v2016 = vunpack.c.l.b16 %v285
    %v2017 = vunpack.c.h.b16 %v285
    %v2018 = vunpack.c.l.b16 %v286
    %v2019 = vunpack.c.h.b16 %v286
    %v2020 = vunpack.c.l.b16 %v287
    %v2021 = vunpack.c.h.b16 %v287
    %v2022 = vunpack.c.l.b16 %v288
    %v2023 = vunpack.c.h.b16 %v288
    %v2024 = vunpack.c.l.b16 %v289
    %v2025 = vunpack.c.h.b16 %v289
    %v2026 = vunpack.c.l.b16 %v290
    %v2027 = vunpack.c.h.b16 %v290
    %v2028 = vunpack.c.l.b16 %v291
    %v2029 = vunpack.c.h.b16 %v291
    %v2030 = vunpack.c.l.b16 %v292
    %v2031 = vunpack.c.h.b16 %v292
    %v2032 = vunpack.c.l.b16 %v293
    %v2033 = vunpack.c.h.b16 %v293
    %v2034 = vunpack.c.l.b16 %v294
    %v2035 = vunpack.c.h.b16 %v294
    %v2036 = vunpack.c.l.b16 %v295
    %v2037 = vunpack.c.h.b16 %v295
    %v2038 = vunpack.c.l.b16 %v296
    %v2039 = vunpack.c.h.b16 %v296
    %v2040 = vunpack.c.l.b16 %v297
    %v2041 = vunpack.c.h.b16 %v297
    %v2042 = vunpack.c.l.b16 %v298
    %v2043 = vunpack.c.h.b16 %v298
    %v2044 = vunpack.c.l.b16 %v299
    %v2045 = vunpack.c.h.b16 %v299
    %v2046 = vunpack.c.l.b16 %v300
    %v2047 = vunpack.c.h.b16 %v300
    %v2048 = vunpack.c.l.b16 %v301
    %v2049 = vunpack.c.h.b16 %v301
    %v2050 = vunpack.c.l.b16 %v302
    %v2051 = vunpack.c.h.b16 %v302
    %v2052 = vunpack.c.l.b16 %v303
    %v2053 = vunpack.c.h.b16 %v303
    %v2054 = vunpack.c.l.b16 %v304
    %v2055 = vunpack.c.h.b16 %v304
    %v2056 = vunpack.c.l.b16 %v305
    %v2057 = vunpack.c.h.b16 %v305
    %v2058 = vunpack.c.l.b16 %v306
    %v2059 = vunpack.c.h.b16 %v306
    %v2060 = vunpack.c.l.b16 %v307
    %v2061 = vunpack.c.h.b16 %v307
    %v2062 = vunpack.c.l.b16 %v308
    %v2063 = vunpack.c.h.b16 %v308
    %v2064 = vunpack.c.l.b16 %v309
    %v2065 = vunpack.c.h.b16 %v309
    %v2066 = vunpack.c.l.b16 %v310
    %v2067 = vunpack.c.h.b16 %v310
    %v2068 = vunpack.c.l.b16 %v311
    %v2069 = vunpack.c.h.b16 %v311
    %v2070 = vunpack.c.l.b16 %v312
    %v2071 = vunpack.c.h.b16 %v312
    %v2072 = vunpack.c.l.b16 %v313
    %v2073 = vunpack.c.h.b16 %v313
    %v2074 = vunpack.c.l.b16 %v314
    %v2075 = vunpack.c.h.b16 %v314
    %v2076 = vunpack.c.l.b16 %v315
    %v2077 = vunpack.c.h.b16 %v315
    %v2078 = vunpack.c.l.b16 %v316
    %v2079 = vunpack.c.h.b16 %v316
    %v2080 = vunpack.c.l.b16 %v317
    %v2081 = vunpack.c.h.b16 %v317
    %v2082 = vunpack.c.l.b16 %v318
    %v2083 = vunpack.c.h.b16 %v318
    %v2084 = vunpack.c.l.b16 %v319
    %v2085 = vunpack.c.h.b16 %v319
    %v2086 = vunpack.c.l.b16 %v320
    %v2087 = vunpack.c.h.b16 %v320
    %v2088 = vunpack.c.l.b16 %v321
    %v2089 = vunpack.c.h.b16 %v321
    %v2090 = vunpack.c.l.b16 %v322
    %v2091 = vunpack.c.h.b16 %v322
    %v2092 = vunpack.c.l.b16 %v323
    %v2093 = vunpack.c.h.b16 %v323
    %v2094 = vunpack.c.l.b16 %v324
    %v2095 = vunpack.c.h.b16 %v324
    %v2096 = vunpack.c.l.b16 %v325
    %v2097 = vunpack.c.h.b16 %v325
    %v2098 = vunpack.c.l.b16 %v326
    %v2099 = vunpack.c.h.b16 %v326
    %v2100 = vunpack.c.l.b16 %v327
    %v2101 = vunpack.c.h.b16 %v327
    %v2102 = vunpack.c.l.b16 %v328
    %v2103 = vunpack.c.h.b16 %v328
    %v2104 = vunpack.c.l.b16 %v329
    %v2105 = vunpack.c.h.b16 %v329
    %v2106 = vunpack.c.l.b16 %v330
    %v2107 = vunpack.c.h.b16 %v330
    %v2108 = vunpack.c.l.b16 %v331
    %v2109 = vunpack.c.h.b16 %v331
    %v2110 = vunpack.c.l.b16 %v332
    %v2111 = vunpack.c.h.b16 %v332
    %v2112 = vunpack.c.l.b16 %v333
    %v2113 = vunpack.c.h.b16 %v333
    %v2114 = vunpack.c.l.b16 %v334
    %v2115 = vunpack.c.h.b16 %v334
    %v2116 = vunpack.c.l.b16 %v335
    %v2117 = vunpack.c.h.b16 %v335
    %v2118 = vunpack.c.l.b16 %v336
    %v2119 = vunpack.c.h.b16 %v336
    %v2120 = vunpack.c.l.b16 %v337
    %v2121 = vunpack.c.h.b16 %v337
    %v2122 = vunpack.c.l.b16 %v338
    %v2123 = vunpack.c.h.b16 %v338
    %v2124 = vunpack.c.l.b16 %v339
    %v2125 = vunpack.c.h.b16 %v339
    %v2126 = vunpack.c.l.b16 %v340
    %v2127 = vunpack.c.h.b16 %v340
    %v2128 = vunpack.c.l.b16 %v341
    %v2129 = vunpack.c.h.b16 %v341
    %v2130 = vunpack.c.l.b16 %v342
    %v2131 = vunpack.c.h.b16 %v342
    %v2132 = vunpack.c.l.b16 %v343
    %v2133 = vunpack.c.h.b16 %v343
    %v2134 = vunpack.c.l.b16 %v344
    %v2135 = vunpack.c.h.b16 %v344
    %v2136 = vunpack.c.l.b16 %v345
    %v2137 = vunpack.c.h.b16 %v345
    %v2138 = vunpack.c.l.b16 %v346
    %v2139 = vunpack.c.h.b16 %v346
    %v2140 = vunpack.c.l.b16 %v347
    %v2141 = vunpack.c.h.b16 %v347
    %v2142 = vunpack.c.l.b16 %v348
    %v2143 = vunpack.c.h.b16 %v348
    %v2144 = vunpack.c.l.b16 %v349
    %v2145 = vunpack.c.h.b16 %v349
    %v2146 = vunpack.c.l.b16 %v350
    %v2147 = vunpack.c.h.b16 %v350
    %v2148 = vunpack.c.l.b16 %v351
    %v2149 = vunpack.c.h.b16 %v351
    %v2150 = vunpack.c.l.b16 %v352
    %v2151 = vunpack.c.h.b16 %v352
    %v2152 = vunpack.c.l.b16 %v353
    %v2153 = vunpack.c.h.b16 %v353
    %v2154 = vunpack.c.l.b16 %v354
    %v2155 = vunpack.c.h.b16 %v354
    %v2156 = vunpack.c.l.b16 %v355
    %v2157 = vunpack.c.h.b16 %v355
    %v2158 = vunpack.c.l.b16 %v356
    %v2159 = vunpack.c.h.b16 %v356
    %v2160 = vunpack.c.l.b16 %v357
    %v2161 = vunpack.c.h.b16 %v357
    %v2162 = vunpack.c.l.b16 %v358
    %v2163 = vunpack.c.h.b16 %v358
    %v2164 = vunpack.c.l.b16 %v359
    %v2165 = vunpack.c.h.b16 %v359
    %v2166 = vunpack.c.l.b16 %v360
    %v2167 = vunpack.c.h.b16 %v360
    %v2168 = vunpack.c.l.b16 %v361
    %v2169 = vunpack.c.h.b16 %v361
    %v2170 = vunpack.c.l.b16 %v362
    %v2171 = vunpack.c.h.b16 %v362
    %v2172 = vunpack.c.l.b16 %v363
    %v2173 = vunpack.c.h.b16 %v363
    %v2174 = vunpack.c.l.b16 %v364
    %v2175 = vunpack.c.h.b16 %v364
    %v2176 = vunpack.c.l.b16 %v365
    %v2177 = vunpack.c.h.b16 %v365
    %v2178 = vunpack.c.l.b16 %v366
    %v2179 = vunpack.c.h.b16 %v366
    %v2180 = vunpack.c.l.b16 %v367
    %v2181 = vunpack.c.h.b16 %v367
    %v2182 = vunpack.c.l.b16 %v368
    %v2183 = vunpack.c.h.b16 %v368
    %v2184 = vunpack.c.l.b16 %v369
    %v2185 = vunpack.c.h.b16 %v369
    %v2186 = vunpack.c.l.b16 %v370
    %v2187 = vunpack.c.h.b16 %v370
    %v2188 = vunpack.c.l.b16 %v371
    %v2189 = vunpack.c.h.b16 %v371
    %v2190 = vunpack.c.l.b16 %v372
    %v2191 = vunpack.c.h.b16 %v372
    %v2192 = vunpack.c.l.b16 %v373
    %v2193 = vunpack.c.h.b16 %v373
    %v2194 = vunpack.c.l.b16 %v374
    %v2195 = vunpack.c.h.b16 %v374
    %v2196 = vunpack.c.l.b16 %v375
    %v2197 = vunpack.c.h.b16 %v375
    %v2198 = vunpack.c.l.b16 %v376
    %v2199 = vunpack.c.h.b16 %v376
    %v2200 = vunpack.c.l.b16 %v377
    %v2201 = vunpack.c.h.b16 %v377
    %v2202 = vunpack.c.l.b16 %v378
    %v2203 = vunpack.c.h.b16 %v378
    %v2204 = vunpack.c.l.b16 %v379
    %v2205 = vunpack.c.h.b16 %v379
    %v2206 = vunpack.c.l.b16 %v380
    %v2207 = vunpack.c.h.b16 %v380
    %v2208 = vunpack.c.l.b16 %v381
    %v2209 = vunpack.c.h.b16 %v381
    %v2210 = vunpack.c.l.b16 %v382
    %v2211 = vunpack.c.h.b16 %v382
    %v2212 = vunpack.c.l.b16 %v383
    %v2213 = vunpack.c.h.b16 %v383
    %v2214 = vunpack.c.l.b16 %v384
    %v2215 = vunpack.c.h.b16 %v384
    %v2216 = vunpack.c.l.b16 %v385
    %v2217 = vunpack.c.h.b16 %v385
    %v2218 = vunpack.c.l.b16 %v386
    %v2219 = vunpack.c.h.b16 %v386
    %v2220 = vunpack.c.l.b16 %v387
    %v2221 = vunpack.c.h.b16 %v387
    %v2222 = vunpack.c.l.b16 %v388
    %v2223 = vunpack.c.h.b16 %v388
    %v2224 = vunpack.c.l.b16 %v389
    %v2225 = vunpack.c.h.b16 %v389
    %v2226 = vunpack.c.l.b16 %v390
    %v2227 = vunpack.c.h.b16 %v390
    %v2228 = vunpack.c.l.b16 %v391
    %v2229 = vunpack.c.h.b16 %v391
    %v2230 = vunpack.c.l.b16 %v392
    %v2231 = vunpack.c.h.b16 %v392
    %v2232 = vunpack.c.l.b16 %v393
    %v2233 = vunpack.c.h.b16 %v393
    %v2234 = vunpack.c.l.b16 %v394
    %v2235 = vunpack.c.h.b16 %v394
    %v2236 = vunpack.c.l.b16 %v395
    %v2237 = vunpack.c.h.b16 %v395
    %v2238 = vunpack.c.l.b16 %v396
    %v2239 = vunpack.c.h.b16 %v396
    %v2240 = vunpack.c.l.b16 %v397
    %v2241 = vunpack.c.h.b16 %v397
    %v2242 = vunpack.c.l.b16 %v398
    %v2243 = vunpack.c.h.b16 %v398
    %v2244 = vunpack.c.l.b16 %v399
    %v2245 = vunpack.c.h.b16 %v399
    %v2246 = vunpack.c.l.b16 %v400
    %v2247 = vunpack.c.h.b16 %v400
    %v2248 = vunpack.c.l.b16 %v401
    %v2249 = vunpack.c.h.b16 %v401
    %v2250 = vunpack.c.l.b16 %v402
    %v2251 = vunpack.c.h.b16 %v402
    %v2252 = vunpack.c.l.b16 %v403
    %v2253 = vunpack.c.h.b16 %v403
    %v2254 = vunpack.c.l.b16 %v404
    %v2255 = vunpack.c.h.b16 %v404
    %v2256 = vunpack.c.l.b16 %v405
    %v2257 = vunpack.c.h.b16 %v405
    %v2258 = vunpack.c.l.b16 %v406
    %v2259 = vunpack.c.h.b16 %v406
    %v2260 = vunpack.c.l.b16 %v407
    %v2261 = vunpack.c.h.b16 %v407
    %v2262 = vunpack.c.l.b16 %v408
    %v2263 = vunpack.c.h.b16 %v408
    %v2264 = vunpack.c.l.b16 %v409
    %v2265 = vunpack.c.h.b16 %v409
    %v2266 = vunpack.c.l.b16 %v410
    %v2267 = vunpack.c.h.b16 %v410
    %v2268 = vunpack.c.l.b16 %v411
    %v2269 = vunpack.c.h.b16 %v411
    %v2270 = vunpack.c.l.b16 %v412
    %v2271 = vunpack.c.h.b16 %v412
    %v2272 = vunpack.c.l.b16 %v413
    %v2273 = vunpack.c.h.b16 %v413
    %v2274 = vunpack.c.l.b16 %v414
    %v2275 = vunpack.c.h.b16 %v414
    %v2276 = vunpack.c.l.b16 %v415
    %v2277 = vunpack.c.h.b16 %v415
    %v2278 = vunpack.c.l.b16 %v416
    %v2279 = vunpack.c.h.b16 %v416
    %v2280 = vunpack.c.l.b16 %v417
    %v2281 = vunpack.c.h.b16 %v417
    %v2282 = vunpack.c.l.b16 %v418
    %v2283 = vunpack.c.h.b16 %v418
    %v2284 = vunpack.c.l.b16 %v419
    %v2285 = vunpack.c.h.b16 %v419
    %v2286 = vunpack.c.l.b16 %v420
    %v2287 = vunpack.c.h.b16 %v420
    %v2288 = vunpack.c.l.b16 %v421
    %v2289 = vunpack.c.h.b16 %v421
    %v2290 = vunpack.c.l.b16 %v422
    %v2291 = vunpack.c.h.b16 %v422
    %v2292 = vunpack.c.l.b16 %v423
    %v2293 = vunpack.c.h.b16 %v423
    %v2294 = vunpack.c.l.b16 %v424
    %v2295 = vunpack.c.h.b16 %v424
    %v2296 = vunpack.c.l.b16 %v425
    %v2297 = vunpack.c.h.b16 %v425
    %v2298 = vunpack.c.l.b16 %v426
    %v2299 = vunpack.c.h.b16 %v426
    %v2300 = vunpack.c.l.b16 %v427
    %v2301 = vunpack.c.h.b16 %v427
    %v2302 = vunpack.c.l.b16 %v428
    %v2303 = vunpack.c.h.b16 %v428
    %v2304 = vunpack.c.l.b16 %v429
    %v2305 = vunpack.c.h.b16 %v429
    %v2306 = vunpack.c.l.b16 %v430
    %v2307 = vunpack.c.h.b16 %v430
    %v2308 = vunpack.c.l.b16 %v431
    %v2309 = vunpack.c.h.b16 %v431
    %v2310 = vunpack.c.l.b16 %v432
    %v2311 = vunpack.c.h.b16 %v432
    %v2312 = vunpack.c.l.b16 %v433
    %v2313 = vunpack.c.h.b16 %v433
    %v2314 = vunpack.c.l.b16 %v434
    %v2315 = vunpack.c.h.b16 %v434
    %v2316 = vunpack.c.l.b16 %v435
    %v2317 = vunpack.c.h.b16 %v435
    %v2318 = vunpack.c.l.b16 %v436
    %v2319 = vunpack.c.h.b16 %v436
    %v2320 = vunpack.c.l.b16 %v437
    %v2321 = vunpack.c.h.b16 %v437
    %v2322 = vunpack.c.l.b16 %v438
    %v2323 = vunpack.c.h.b16 %v438
    %v2324 = vunpack.c.l.b16 %v439
    %v2325 = vunpack.c.h.b16 %v439
    %v2326 = vunpack.c.l.b16 %v440
    %v2327 = vunpack.c.h.b16 %v440
    %v2328 = vunpack.c.l.b16 %v441
    %v2329 = vunpack.c.h.b16 %v441
    %v2330 = vunpack.c.l.b16 %v442
    %v2331 = vunpack.c.h.b16 %v442
    %v2332 = vunpack.c.l.b16 %v443
    %v2333 = vunpack.c.h.b16 %v443
    %v2334 = vunpack.c.l.b16 %v444
    %v2335 = vunpack.c.h.b16 %v444
    %v2336 = vunpack.c.l.b16 %v445
    %v2337 = vunpack.c.h.b16 %v445
    %v2338 = vunpack.c.l.b16 %v446
    %v2339 = vunpack.c.h.b16 %v446
    %v2340 = vunpack.c.l.b16 %v447
    %v2341 = vunpack.c.h.b16 %v447
    %v2342 = vunpack.c.l.b16 %v448
    %v2343 = vunpack.c.h.b16 %v448
    %v2344 = vunpack.c.l.b16 %v449
    %v2345 = vunpack.c.h.b16 %v449
    %v2346 = vunpack.c.l.b16 %v450
    %v2347 = vunpack.c.h.b16 %v450
    %v2348 = vunpack.c.l.b16 %v451
    %v2349 = vunpack.c.h.b16 %v451
    %v2350 = vunpack.c.l.b16 %v452
    %v2351 = vunpack.c.h.b16 %v452
    %v2352 = vunpack.c.l.b16 %v453
    %v2353 = vunpack.c.h.b16 %v453
    %v2354 = vunpack.c.l.b16 %v454
    %v2355 = vunpack.c.h.b16 %v454
    %v2356 = vunpack.c.l.b16 %v455
    %v2357 = vunpack.c.h.b16 %v455
    %v2358 = vunpack.c.l.b16 %v456
    %v2359 = vunpack.c.h.b16 %v456
    %v2360 = vunpack.c.l.b16 %v457
    %v2361 = vunpack.c.h.b16 %v457
    %v2362 = vunpack.c.l.b16 %v458
    %v2363 = vunpack.c.h.b16 %v458
    %v2364 = vunpack.c.l.b16 %v459
    %v2365 = vunpack.c.h.b16 %v459
    %v2366 = vunpack.c.l.b16 %v460
    %v2367 = vunpack.c.h.b16 %v460
    %v2368 = vunpack.c.l.b16 %v461
    %v2369 = vunpack.c.h.b16 %v461
    %v2370 = vunpack.c.l.b16 %v462
    %v2371 = vunpack.c.h.b16 %v462
    %v2372 = vunpack.c.l.b16 %v463
    %v2373 = vunpack.c.h.b16 %v463
    %v2374 = vunpack.c.l.b16 %v464
    %v2375 = vunpack.c.h.b16 %v464
    %v2376 = vunpack.c.l.b16 %v465
    %v2377 = vunpack.c.h.b16 %v465
    %v2378 = vunpack.c.l.b16 %v466
    %v2379 = vunpack.c.h.b16 %v466
    %v2380 = vunpack.c.l.b16 %v467
    %v2381 = vunpack.c.h.b16 %v467
    %v2382 = vunpack.c.l.b16 %v468
    %v2383 = vunpack.c.h.b16 %v468
    %v2384 = vunpack.c.l.b16 %v469
    %v2385 = vunpack.c.h.b16 %v469
    %v2386 = vunpack.c.l.b16 %v470
    %v2387 = vunpack.c.h.b16 %v470
    %v2388 = vunpack.c.l.b16 %v471
    %v2389 = vunpack.c.h.b16 %v471
    %v2390 = vunpack.c.l.b16 %v472
    %v2391 = vunpack.c.h.b16 %v472
    %v2392 = vunpack.c.l.b16 %v473
    %v2393 = vunpack.c.h.b16 %v473
    %v2394 = vunpack.c.l.b16 %v474
    %v2395 = vunpack.c.h.b16 %v474
    %v2396 = vunpack.c.l.b16 %v475
    %v2397 = vunpack.c.h.b16 %v475
    %v2398 = vunpack.c.l.b16 %v476
    %v2399 = vunpack.c.h.b16 %v476
    %v2400 = vunpack.c.l.b16 %v477
    %v2401 = vunpack.c.h.b16 %v477
    %v2402 = vunpack.c.l.b16 %v478
    %v2403 = vunpack.c.h.b16 %v478
    %v2404 = vunpack.c.l.b16 %v479
    %v2405 = vunpack.c.h.b16 %v479
    %v2406 = vunpack.c.l.b16 %v480
    %v2407 = vunpack.c.h.b16 %v480
    %v2408 = vunpack.c.l.b16 %v481
    %v2409 = vunpack.c.h.b16 %v481
    %v2410 = vunpack.c.l.b16 %v482
    %v2411 = vunpack.c.h.b16 %v482
    %v2412 = vunpack.c.l.b16 %v483
    %v2413 = vunpack.c.h.b16 %v483
    %v2414 = vunpack.c.l.b16 %v484
    %v2415 = vunpack.c.h.b16 %v484
    %v2416 = vunpack.c.l.b16 %v485
    %v2417 = vunpack.c.h.b16 %v485
    %v2418 = vunpack.c.l.b16 %v486
    %v2419 = vunpack.c.h.b16 %v486
    %v2420 = vunpack.c.l.b16 %v487
    %v2421 = vunpack.c.h.b16 %v487
    %v2422 = vunpack.c.l.b16 %v488
    %v2423 = vunpack.c.h.b16 %v488
    %v2424 = vunpack.c.l.b16 %v489
    %v2425 = vunpack.c.h.b16 %v489
    %v2426 = vunpack.c.l.b16 %v490
    %v2427 = vunpack.c.h.b16 %v490
    %v2428 = vunpack.c.l.b16 %v491
    %v2429 = vunpack.c.h.b16 %v491
    %v2430 = vunpack.c.l.b16 %v492
    %v2431 = vunpack.c.h.b16 %v492
    %v2432 = vunpack.c.l.b16 %v493
    %v2433 = vunpack.c.h.b16 %v493
    %v2434 = vunpack.c.l.b16 %v494
    %v2435 = vunpack.c.h.b16 %v494
    %v2436 = vunpack.c.l.b16 %v495
    %v2437 = vunpack.c.h.b16 %v495
    %v2438 = vunpack.c.l.b16 %v496
    %v2439 = vunpack.c.h.b16 %v496
    %v2440 = vunpack.c.l.b16 %v497
    %v2441 = vunpack.c.h.b16 %v497
    %v2442 = vunpack.c.l.b16 %v498
    %v2443 = vunpack.c.h.b16 %v498
    %v2444 = vunpack.c.l.b16 %v499
    %v2445 = vunpack.c.h.b16 %v499
    %v2446 = vunpack.c.l.b16 %v500
    %v2447 = vunpack.c.h.b16 %v500
    %v2448 = vunpack.c.l.b16 %v501
    %v2449 = vunpack.c.h.b16 %v501
    %v2450 = vunpack.c.l.b16 %v502
    %v2451 = vunpack.c.h.b16 %v502
    %v2452 = vunpack.c.l.b16 %v503
    %v2453 = vunpack.c.h.b16 %v503
    %v2454 = vunpack.c.l.b16 %v504
    %v2455 = vunpack.c.h.b16 %v504
    %v2456 = vunpack.c.l.b16 %v505
    %v2457 = vunpack.c.h.b16 %v505
    %v2458 = vunpack.c.l.b16 %v506
    %v2459 = vunpack.c.h.b16 %v506
    %v2460 = vunpack.c.l.b16 %v507
    %v2461 = vunpack.c.h.b16 %v507
    %v2462 = vunpack.c.l.b16 %v508
    %v2463 = vunpack.c.h.b16 %v508
    %v2464 = vunpack.c.l.b16 %v509
    %v2465 = vunpack.c.h.b16 %v509
    %v2466 = vunpack.c.l.b16 %v510
    %v2467 = vunpack.c.h.b16 %v510
    %v2468 = vunpack.c.l.b16 %v511
    %v2469 = vunpack.c.h.b16 %v511
    %v2470 = vunpack.c.l.b16 %v512
    %v2471 = vunpack.c.h.b16 %v512
    %v2472 = vunpack.c.l.b16 %v513
    %v2473 = vunpack.c.h.b16 %v513
    %v2474 = vunpack.c.l.b16 %v514
    %v2475 = vunpack.c.h.b16 %v514
    %v2476 = vunpack.c.l.b16 %v515
    %v2477 = vunpack.c.h.b16 %v515
    %v2478 = vunpack.c.l.b16 %v516
    %v2479 = vunpack.c.h.b16 %v516
    %v2480 = vunpack.c.l.b16 %v517
    %v2481 = vunpack.c.h.b16 %v517
    %v2482 = vunpack.c.l.b16 %v518
    %v2483 = vunpack.c.h.b16 %v518
    %v2484 = vunpack.c.l.b16 %v519
    %v2485 = vunpack.c.h.b16 %v519
    %v2486 = vunpack.c.l.b16 %v520
    %v2487 = vunpack.c.h.b16 %v520
    %v2488 = vunpack.c.l.b16 %v521
    %v2489 = vunpack.c.h.b16 %v521
    %v2490 = vunpack.c.l.b16 %v522
    %v2491 = vunpack.c.h.b16 %v522
    %v2492 = vunpack.c.l.b16 %v523
    %v2493 = vunpack.c.h.b16 %v523
    %v2494 = vunpack.c.l.b16 %v524
    %v2495 = vunpack.c.h.b16 %v524
    %v2496 = vunpack.c.l.b16 %v525
    %v2497 = vunpack.c.h.b16 %v525
    %v2498 = vunpack.c.l.b16 %v526
    %v2499 = vunpack.c.h.b16 %v526
    %v2500 = vunpack.c.l.b16 %v527
    %v2501 = vunpack.c.h.b16 %v527
    %v2502 = vunpack.c.l.b16 %v528
    %v2503 = vunpack.c.h.b16 %v528
    %v2504 = vunpack.c.l.b16 %v529
    %v2505 = vunpack.c.h.b16 %v529
    %v2506 = vunpack.c.l.b16 %v530
    %v2507 = vunpack.c.h.b16 %v530
    %v2508 = vunpack.c.l.b16 %v531
    %v2509 = vunpack.c.h.b16 %v531
    %v2510 = vunpack.c.l.b16 %v532
    %v2511 = vunpack.c.h.b16 %v532
    %v2512 = vunpack.c.l.b16 %v533
    %v2513 = vunpack.c.h.b16 %v533
    %v2514 = vunpack.c.l.b16 %v534
    %v2515 = vunpack.c.h.b16 %v534
    %v2516 = vunpack.c.l.b16 %v535
    %v2517 = vunpack.c.h.b16 %v535
    %v2518 = vunpack.c.l.b16 %v536
    %v2519 = vunpack.c.h.b16 %v536
    %v2520 = vunpack.c.l.b16 %v537
    %v2521 = vunpack.c.h.b16 %v537
    %v2522 = vunpack.c.l.b16 %v538
    %v2523 = vunpack.c.h.b16 %v538
    %v2524 = vunpack.c.l.b16 %v539
    %v2525 = vunpack.c.h.b16 %v539
    %v2526 = vunpack.c.l.b16 %v540
    %v2527 = vunpack.c.h.b16 %v540
    %v2528 = vunpack.c.l.b16 %v541
    %v2529 = vunpack.c.h.b16 %v541
    %v2530 = vunpack.c.l.b16 %v542
    %v2531 = vunpack.c.h.b16 %v542
    %v2532 = vunpack.c.l.b16 %v543
    %v2533 = vunpack.c.h.b16 %v543
    %v2534 = vunpack.c.l.b16 %v544
    %v2535 = vunpack.c.h.b16 %v544
    %v2536 = vunpack.c.l.b16 %v545
    %v2537 = vunpack.c.h.b16 %v545
    %v2538 = vunpack.c.l.b16 %v546
    %v2539 = vunpack.c.h.b16 %v546
    %v2540 = vunpack.c.l.b16 %v547
    %v2541 = vunpack.c.h.b16 %v547
    %v2542 = vunpack.c.l.b16 %v548
    %v2543 = vunpack.c.h.b16 %v548
    %v2544 = vunpack.c.l.b16 %v549
    %v2545 = vunpack.c.h.b16 %v549
    %v2546 = vunpack.c.l.b16 %v550
    %v2547 = vunpack.c.h.b16 %v550
    %v2548 = vunpack.c.l.b16 %v551
    %v2549 = vunpack.c.h.b16 %v551
    %v2550 = vunpack.c.l.b16 %v552
    %v2551 = vunpack.c.h.b16 %v552
    %v2552 = vunpack.c.l.b16 %v553
    %v2553 = vunpack.c.h.b16 %v553
    %v2554 = vunpack.c.l.b16 %v554
    %v2555 = vunpack.c.h.b16 %v554
    %v2556 = vunpack.c.l.b16 %v555
    %v2557 = vunpack.c.h.b16 %v555
    %v2558 = vunpack.c.l.b16 %v556
    %v2559 = vunpack.c.h.b16 %v556
    %v2560 = vunpack.c.l.b16 %v557
    %v2561 = vunpack.c.h.b16 %v557
    %v2562 = vunpack.c.l.b16 %v558
    %v2563 = vunpack.c.h.b16 %v558
    %v2564 = vunpack.c.l.b16 %v559
    %v2565 = vunpack.c.h.b16 %v559
    %v2566 = vunpack.c.l.b16 %v560
    %v2567 = vunpack.c.h.b16 %v560
    %v2568 = vunpack.c.l.b16 %v561
    %v2569 = vunpack.c.h.b16 %v561
    %v2570 = vunpack.c.l.b16 %v562
    %v2571 = vunpack.c.h.b16 %v562
    %v2572 = vunpack.c.l.b16 %v563
    %v2573 = vunpack.c.h.b16 %v563
    %v2574 = vunpack.c.l.b16 %v564
    %v2575 = vunpack.c.h.b16 %v564
    %v2576 = vunpack.c.l.b16 %v565
    %v2577 = vunpack.c.h.b16 %v565
    %v2578 = vunpack.c.l.b16 %v566
    %v2579 = vunpack.c.h.b16 %v566
    %v2580 = vunpack.c.l.b16 %v567
    %v2581 = vunpack.c.h.b16 %v567
    %v2582 = vunpack.c.l.b16 %v568
    %v2583 = vunpack.c.h.b16 %v568
    %v2584 = vunpack.c.l.b16 %v569
    %v2585 = vunpack.c.h.b16 %v569
    %v2586 = vunpack.c.l.b16 %v570
    %v2587 = vunpack.c.h.b16 %v570
    %v2588 = vunpack.c.l.b16 %v571
    %v2589 = vunpack.c.h.b16 %v571
    %v2590 = vunpack.c.l.b16 %v572
    %v2591 = vunpack.c.h.b16 %v572
    %v2592 = vunpack.c.l.b16 %v573
    %v2593 = vunpack.c.h.b16 %v573
    %v2594 = vunpack.c.l.b16 %v574
    %v2595 = vunpack.c.h.b16 %v574
    %v2596 = vunpack.c.l.b16 %v575
    %v2597 = vunpack.c.h.b16 %v575
    %v2598 = vunpack.c.l.b16 %v576
    %v2599 = vunpack.c.h.b16 %v576
    %v2600 = vunpack.c.l.b16 %v577
    %v2601 = vunpack.c.h.b16 %v577
    %v2602 = vunpack.c.l.b16 %v578
    %v2603 = vunpack.c.h.b16 %v578
    %v2604 = vunpack.c.l.b16 %v579
    %v2605 = vunpack.c.h.b16 %v579
    %v2606 = vunpack.c.l.b16 %v580
    %v2607 = vunpack.c.h.b16 %v580
    %v2608 = vunpack.c.l.b16 %v581
    %v2609 = vunpack.c.h.b16 %v581
    %v2610 = vunpack.c.l.b16 %v582
    %v2611 = vunpack.c.h.b16 %v582
    %v2612 = vunpack.c.l.b16 %v583
    %v2613 = vunpack.c.h.b16 %v583
    %v2614 = vunpack.c.l.b16 %v584
    %v2615 = vunpack.c.h.b16 %v584
    %v2616 = vunpack.c.l.b16 %v585
    %v2617 = vunpack.c.h.b16 %v585
    %v2618 = vunpack.c.l.b16 %v586
    %v2619 = vunpack.c.h.b16 %v586
    %v2620 = vunpack.c.l.b16 %v587
    %v2621 = vunpack.c.h.b16 %v587
    %v2622 = vunpack.c.l.b16 %v588
    %v2623 = vunpack.c.h.b16 %v588
    %v2624 = vunpack.c.l.b16 %v589
    %v2625 = vunpack.c.h.b16 %v589
    %v2626 = vunpack.c.l.b16 %v590
    %v2627 = vunpack.c.h.b16 %v590
    %v2628 = vunpack.c.l.b16 %v591
    %v2629 = vunpack.c.h.b16 %v591
    %v2630 = vunpack.c.l.b16 %v592
    %v2631 = vunpack.c.h.b16 %v592
    %v2632 = vunpack.c.l.b16 %v593
    %v2633 = vunpack.c.h.b16 %v593
    %v2634 = vunpack.c.l.b16 %v594
    %v2635 = vunpack.c.h.b16 %v594
    %v2636 = vunpack.c.l.b16 %v595
    %v2637 = vunpack.c.h.b16 %v595
    %v2638 = vunpack.c.l.b16 %v596
    %v2639 = vunpack.c.h.b16 %v596
    %v2640 = vunpack.c.l.b16 %v597
    %v2641 = vunpack.c.h.b16 %v597
    %v2642 = vunpack.c.l.b16 %v598
    %v2643 = vunpack.c.h.b16 %v598
    %v2644 = vunpack.c.l.b16 %v599
    %v2645 = vunpack.c.h.b16 %v599
    %v2646 = vunpack.c.l.b16 %v600
    %v2647 = vunpack.c.h.b16 %v600
    %v2648 = vunpack.c.l.b16 %v601
    %v2649 = vunpack.c.h.b16 %v601
    %v2650 = vunpack.c.l.b16 %v602
    %v2651 = vunpack.c.h.b16 %v602
    %v2652 = vunpack.c.l.b16 %v603
    %v2653 = vunpack.c.h.b16 %v603
    %v2654 = vunpack.c.l.b16 %v604
    %v2655 = vunpack.c.h.b16 %v604
    %v2656 = vunpack.c.l.b16 %v605
    %v2657 = vunpack.c.h.b16 %v605
    %v2658 = vunpack.c.l.b16 %v606
    %v2659 = vunpack.c.h.b16 %v606
    %v2660 = vunpack.c.l.b16 %v607
    %v2661 = vunpack.c.h.b16 %v607
    %v2662 = vunpack.c.l.b16 %v608
    %v2663 = vunpack.c.h.b16 %v608
    %v2664 = vunpack.c.l.b16 %v609
    %v2665 = vunpack.c.h.b16 %v609
    %v2666 = vunpack.c.l.b16 %v610
    %v2667 = vunpack.c.h.b16 %v610
    %v2668 = vunpack.c.l.b16 %v611
    %v2669 = vunpack.c.h.b16 %v611
    %v2670 = vunpack.c.l.b16 %v612
    %v2671 = vunpack.c.h.b16 %v612
    %v2672 = vunpack.c.l.b16 %v613
    %v2673 = vunpack.c.h.b16 %v613
    %v2674 = vunpack.c.l.b16 %v614
    %v2675 = vunpack.c.h.b16 %v614
    %v2676 = vunpack.c.l.b16 %v615
    %v2677 = vunpack.c.h.b16 %v615
    %v2678 = vunpack.c.l.b16 %v616
    %v2679 = vunpack.c.h.b16 %v616
    %v2680 = vunpack.c.l.b16 %v617
    %v2681 = vunpack.c.h.b16 %v617
    %v2682 = vunpack.c.l.b16 %v618
    %v2683 = vunpack.c.h.b16 %v618
    %v2684 = vunpack.c.l.b16 %v619
    %v2685 = vunpack.c.h.b16 %v619
    %v2686 = vunpack.c.l.b16 %v620
    %v2687 = vunpack.c.h.b16 %v620
    %v2688 = vunpack.c.l.b16 %v621
    %v2689 = vunpack.c.h.b16 %v621
    %v2690 = vunpack.c.l.b16 %v622
    %v2691 = vunpack.c.h.b16 %v622
    %v2692 = vunpack.c.l.b16 %v623
    %v2693 = vunpack.c.h.b16 %v623
    %v2694 = vunpack.c.l.b16 %v624
    %v2695 = vunpack.c.h.b16 %v624
    %v2696 = vunpack.c.l.b16 %v625
    %v2697 = vunpack.c.h.b16 %v625
    %v2698 = vunpack.c.l.b16 %v626
    %v2699 = vunpack.c.h.b16 %v626
    %v2700 = vunpack.c.l.b16 %v627
    %v2701 = vunpack.c.h.b16 %v627
    %v2702 = vunpack.c.l.b16 %v628
    %v2703 = vunpack.c.h.b16 %v628
    %v2704 = vunpack.c.l.b16 %v629
    %v2705 = vunpack.c.h.b16 %v629
    %v2706 = vunpack.c.l.b16 %v630
    %v2707 = vunpack.c.h.b16 %v630
    %v2708 = vunpack.c.l.b16 %v631
    %v2709 = vunpack.c.h.b16 %v631
    %v2710 = vunpack.c.l.b16 %v632
    %v2711 = vunpack.c.h.b16 %v632
    %v2712 = vunpack.c.l.b16 %v633
    %v2713 = vunpack.c.h.b16 %v633
    %v2714 = vunpack.c.l.b16 %v634
    %v2715 = vunpack.c.h.b16 %v634
    %v2716 = vunpack.c.l.b16 %v635
    %v2717 = vunpack.c.h.b16 %v635
    %v2718 = vunpack.c.l.b16 %v636
    %v2719 = vunpack.c.h.b16 %v636
    %v2720 = vunpack.c.l.b16 %v637
    %v2721 = vunpack.c.h.b16 %v637
    %v2722 = vunpack.c.l.b16 %v638
    %v2723 = vunpack.c.h.b16 %v638
    %v2724 = vunpack.c.l.b16 %v639
    %v2725 = vunpack.c.h.b16 %v639
    %v2726 = vunpack.c.l.b16 %v640
    %v2727 = vunpack.c.h.b16 %v640
    %v2728 = vunpack.c.l.b16 %v641
    %v2729 = vunpack.c.h.b16 %v641
    %v2730 = vunpack.c.l.b16 %v642
    %v2731 = vunpack.c.h.b16 %v642
    %v2732 = vunpack.c.l.b16 %v643
    %v2733 = vunpack.c.h.b16 %v643
    %v2734 = vunpack.c.l.b16 %v644
    %v2735 = vunpack.c.h.b16 %v644
    %v2736 = vunpack.c.l.b16 %v645
    %v2737 = vunpack.c.h.b16 %v645
    %v2738 = vunpack.c.l.b16 %v646
    %v2739 = vunpack.c.h.b16 %v646
    %v2740 = vunpack.c.l.b16 %v647
    %v2741 = vunpack.c.h.b16 %v647
    %v2742 = vunpack.c.l.b16 %v648
    %v2743 = vunpack.c.h.b16 %v648
    %v2744 = vunpack.c.l.b16 %v649
    %v2745 = vunpack.c.h.b16 %v649
    %v2746 = vunpack.c.l.b16 %v650
    %v2747 = vunpack.c.h.b16 %v650
    %v2748 = vunpack.c.l.b16 %v651
    %v2749 = vunpack.c.h.b16 %v651
    %v2750 = vunpack.c.l.b16 %v652
    %v2751 = vunpack.c.h.b16 %v652
    %v2752 = vunpack.c.l.b16 %v653
    %v2753 = vunpack.c.h.b16 %v653
    %v2754 = vunpack.c.l.b16 %v654
    %v2755 = vunpack.c.h.b16 %v654
    %v2756 = vunpack.c.l.b16 %v655
    %v2757 = vunpack.c.h.b16 %v655
    %v2758 = vunpack.c.l.b16 %v656
    %v2759 = vunpack.c.h.b16 %v656
    %v2760 = vunpack.c.l.b16 %v657
    %v2761 = vunpack.c.h.b16 %v657
    %v2762 = vunpack.c.l.b16 %v658
    %v2763 = vunpack.c.h.b16 %v658
    %v2764 = vunpack.c.l.b16 %v659
    %v2765 = vunpack.c.h.b16 %v659
    %v2766 = vunpack.c.l.b16 %v660
    %v2767 = vunpack.c.h.b16 %v660
    %v2768 = vunpack.c.l.b16 %v661
    %v2769 = vunpack.c.h.b16 %v661
    %v2770 = vunpack.c.l.b16 %v662
    %v2771 = vunpack.c.h.b16 %v662
    %v2772 = vunpack.c.l.b16 %v663
    %v2773 = vunpack.c.h.b16 %v663
    %v2774 = vunpack.c.l.b16 %v664
    %v2775 = vunpack.c.h.b16 %v664
    %v2776 = vunpack.c.l.b16 %v665
    %v2777 = vunpack.c.h.b16 %v665
    %v2778 = vunpack.c.l.b16 %v666
    %v2779 = vunpack.c.h.b16 %v666
    %v2780 = vunpack.c.l.b16 %v667
    %v2781 = vunpack.c.h.b16 %v667
    %v2782 = vunpack.c.l.b16 %v668
    %v2783 = vunpack.c.h.b16 %v668
    %v2784 = vunpack.c.l.b16 %v669
    %v2785 = vunpack.c.h.b16 %v669
    %v2786 = vunpack.c.l.b16 %v670
    %v2787 = vunpack.c.h.b16 %v670
    %v2788 = vunpack.c.l.b16 %v671
    %v2789 = vunpack.c.h.b16 %v671
    %v2790 = vunpack.c.l.b16 %v672
    %v2791 = vunpack.c.h.b16 %v672
    %v2792 = vunpack.c.l.b16 %v673
    %v2793 = vunpack.c.h.b16 %v673
    %v2794 = vunpack.c.l.b16 %v674
    %v2795 = vunpack.c.h.b16 %v674
    %v2796 = vunpack.c.l.b16 %v675
    %v2797 = vunpack.c.h.b16 %v675
    %v2798 = vunpack.c.l.b16 %v676
    %v2799 = vunpack.c.h.b16 %v676
    %v2800 = vunpack.c.l.b16 %v677
    %v2801 = vunpack.c.h.b16 %v677
    %v2802 = vunpack.c.l.b16 %v678
    %v2803 = vunpack.c.h.b16 %v678
    %v2804 = vunpack.c.l.b16 %v679
    %v2805 = vunpack.c.h.b16 %v679
    %v2806 = vunpack.c.l.b16 %v680
    %v2807 = vunpack.c.h.b16 %v680
    %v2808 = vunpack.c.l.b16 %v681
    %v2809 = vunpack.c.h.b16 %v681
    %v2810 = vunpack.c.l.b16 %v682
    %v2811 = vunpack.c.h.b16 %v682
    %v2812 = vunpack.c.l.b16 %v683
    %v2813 = vunpack.c.h.b16 %v683
    %v2814 = vunpack.c.l.b16 %v684
    %v2815 = vunpack.c.h.b16 %v684
    %v2816 = vunpack.c.l.b16 %v685
    %v2817 = vunpack.c.h.b16 %v685
    %v2818 = vunpack.c.l.b16 %v686
    %v2819 = vunpack.c.h.b16 %v686
    %v2820 = vunpack.c.l.b16 %v687
    %v2821 = vunpack.c.h.b16 %v687
    %v2822 = vunpack.c.l.b16 %v688
    %v2823 = vunpack.c.h.b16 %v688
    %v2824 = vunpack.c.l.b16 %v689
    %v2825 = vunpack.c.h.b16 %v689
    %v2826 = vunpack.c.l.b16 %v690
    %v2827 = vunpack.c.h.b16 %v690
    %v2828 = vunpack.c.l.b16 %v691
    %v2829 = vunpack.c.h.b16 %v691
    %v2830 = vunpack.c.l.b16 %v692
    %v2831 = vunpack.c.h.b16 %v692
    %v2832 = vunpack.c.l.b16 %v693
    %v2833 = vunpack.c.h.b16 %v693
    %v2834 = vunpack.c.l.b16 %v694
    %v2835 = vunpack.c.h.b16 %v694
    %v2836 = vunpack.c.l.b16 %v695
    %v2837 = vunpack.c.h.b16 %v695
    %v2838 = vunpack.c.l.b16 %v696
    %v2839 = vunpack.c.h.b16 %v696
    %v2840 = vunpack.c.l.b16 %v697
    %v2841 = vunpack.c.h.b16 %v697
    %v2842 = vunpack.c.l.b16 %v698
    %v2843 = vunpack.c.h.b16 %v698
    %v2844 = vunpack.c.l.b16 %v699
    %v2845 = vunpack.c.h.b16 %v699
    %v2846 = vunpack.c.l.b16 %v700
    %v2847 = vunpack.c.h.b16 %v700
    %v2848 = vunpack.c.l.b16 %v701
    %v2849 = vunpack.c.h.b16 %v701
    %v2850 = vunpack.c.l.b16 %v702
    %v2851 = vunpack.c.h.b16 %v702
    %v2852 = vunpack.c.l.b16 %v703
    %v2853 = vunpack.c.h.b16 %v703
    %v2854 = vunpack.c.l.b16 %v704
    %v2855 = vunpack.c.h.b16 %v704
    %v2856 = vunpack.c.l.b16 %v705
    %v2857 = vunpack.c.h.b16 %v705
    %v2858 = vunpack.c.l.b16 %v706
    %v2859 = vunpack.c.h.b16 %v706
    %v2860 = vunpack.c.l.b16 %v707
    %v2861 = vunpack.c.h.b16 %v707
    %v2862 = vunpack.c.l.b16 %v708
    %v2863 = vunpack.c.h.b16 %v708
    %v2864 = vunpack.c.l.b16 %v709
    %v2865 = vunpack.c.h.b16 %v709
    %v2866 = vunpack.c.l.b16 %v710
    %v2867 = vunpack.c.h.b16 %v710
    %v2868 = vunpack.c.l.b16 %v711
    %v2869 = vunpack.c.h.b16 %v711
    %v2870 = vunpack.c.l.b16 %v712
    %v2871 = vunpack.c.h.b16 %v712
    %v2872 = vunpack.c.l.b16 %v713
    %v2873 = vunpack.c.h.b16 %v713
    %v2874 = vunpack.c.l.b16 %v714
    %v2875 = vunpack.c.h.b16 %v714
    %v2876 = vunpack.c.l.b16 %v715
    %v2877 = vunpack.c.h.b16 %v715
    %v2878 = vunpack.c.l.b16 %v716
    %v2879 = vunpack.c.h.b16 %v716
    %v2880 = vunpack.c.l.b16 %v717
    %v2881 = vunpack.c.h.b16 %v717
    %v2882 = vunpack.c.l.b16 %v718
    %v2883 = vunpack.c.h.b16 %v718
    %v2884 = vunpack.c.l.b16 %v719
    %v2885 = vunpack.c.h.b16 %v719
    %v2886 = vunpack.c.l.b16 %v720
    %v2887 = vunpack.c.h.b16 %v720
    %v2888 = vunpack.c.l.b16 %v721
    %v2889 = vunpack.c.h.b16 %v721
    %v2890 = vunpack.c.l.b16 %v722
    %v2891 = vunpack.c.h.b16 %v722
    %v2892 = vunpack.c.l.b16 %v723
    %v2893 = vunpack.c.h.b16 %v723
    %v2894 = vunpack.c.l.b16 %v724
    %v2895 = vunpack.c.h.b16 %v724
    %v2896 = vunpack.c.l.b16 %v725
    %v2897 = vunpack.c.h.b16 %v725
    %v2898 = vunpack.c.l.b16 %v726
    %v2899 = vunpack.c.h.b16 %v726
    %v2900 = vunpack.c.l.b16 %v727
    %v2901 = vunpack.c.h.b16 %v727
    %v2902 = vunpack.c.l.b16 %v728
    %v2903 = vunpack.c.h.b16 %v728
    %v2904 = vunpack.c.l.b16 %v729
    %v2905 = vunpack.c.h.b16 %v729
    %v2906 = vunpack.c.l.b16 %v730
    %v2907 = vunpack.c.h.b16 %v730
    %v2908 = vunpack.c.l.b16 %v731
    %v2909 = vunpack.c.h.b16 %v731
    %v2910 = vunpack.c.l.b16 %v732
    %v2911 = vunpack.c.h.b16 %v732
    %v2912 = vunpack.c.l.b16 %v733
    %v2913 = vunpack.c.h.b16 %v733
    %v2914 = vunpack.c.l.b16 %v734
    %v2915 = vunpack.c.h.b16 %v734
    %v2916 = vunpack.c.l.b16 %v735
    %v2917 = vunpack.c.h.b16 %v735
    %v2918 = vunpack.c.l.b16 %v736
    %v2919 = vunpack.c.h.b16 %v736
    %v2920 = vunpack.c.l.b16 %v737
    %v2921 = vunpack.c.h.b16 %v737
    %v2922 = vunpack.c.l.b16 %v738
    %v2923 = vunpack.c.h.b16 %v738
    %v2924 = vunpack.c.l.b16 %v739
    %v2925 = vunpack.c.h.b16 %v739
    %v2926 = vunpack.c.l.b16 %v740
    %v2927 = vunpack.c.h.b16 %v740
    %v2928 = vunpack.c.l.b16 %v741
    %v2929 = vunpack.c.h.b16 %v741
    %v2930 = vunpack.c.l.b16 %v742
    %v2931 = vunpack.c.h.b16 %v742
    %v2932 = vunpack.c.l.b16 %v743
    %v2933 = vunpack.c.h.b16 %v743
    %v2934 = vunpack.c.l.b16 %v744
    %v2935 = vunpack.c.h.b16 %v744
    %v2936 = vunpack.c.l.b16 %v745
    %v2937 = vunpack.c.h.b16 %v745
    %v2938 = vunpack.c.l.b16 %v746
    %v2939 = vunpack.c.h.b16 %v746
    %v2940 = vunpack.c.l.b16 %v747
    %v2941 = vunpack.c.h.b16 %v747
    %v2942 = vunpack.c.l.b16 %v748
    %v2943 = vunpack.c.h.b16 %v748
    %v2944 = vunpack.c.l.b16 %v749
    %v2945 = vunpack.c.h.b16 %v749
    %v2946 = vunpack.c.l.b16 %v750
    %v2947 = vunpack.c.h.b16 %v750
    %v2948 = vunpack.c.l.b16 %v751
    %v2949 = vunpack.c.h.b16 %v751
    %v2950 = vunpack.c.l.b16 %v752
    %v2951 = vunpack.c.h.b16 %v752
    %v2952 = vunpack.c.l.b16 %v753
    %v2953 = vunpack.c.h.b16 %v753
    %v2954 = vunpack.c.l.b16 %v754
    %v2955 = vunpack.c.h.b16 %v754
    %v2956 = vunpack.c.l.b16 %v755
    %v2957 = vunpack.c.h.b16 %v755
    %v2958 = vunpack.c.l.b16 %v756
    %v2959 = vunpack.c.h.b16 %v756
    %v2960 = vunpack.c.l.b16 %v757
    %v2961 = vunpack.c.h.b16 %v757
    %v2962 = vunpack.c.l.b16 %v758
    %v2963 = vunpack.c.h.b16 %v758
    %v2964 = vunpack.c.l.b16 %v759
    %v2965 = vunpack.c.h.b16 %v759
    %v2966 = vunpack.c.l.b16 %v760
    %v2967 = vunpack.c.h.b16 %v760
    %v2968 = vunpack.c.l.b16 %v761
    %v2969 = vunpack.c.h.b16 %v761
    %v2970 = vunpack.c.l.b16 %v762
    %v2971 = vunpack.c.h.b16 %v762
    %v2972 = vunpack.c.l.b16 %v763
    %v2973 = vunpack.c.h.b16 %v763
    %v2974 = vunpack.c.l.b16 %v764
    %v2975 = vunpack.c.h.b16 %v764
    %v2976 = vunpack.c.l.b16 %v765
    %v2977 = vunpack.c.h.b16 %v765
    %v2978 = vunpack.c.l.b16 %v766
    %v2979 = vunpack.c.h.b16 %v766
    %v2980 = vunpack.c.l.b16 %v767
    %v2981 = vunpack.c.h.b16 %v767
    %v2982 = vunpack.c.l.b16 %v768
    %v2983 = vunpack.c.h.b16 %v768
    %v2984 = vunpack.c.l.b16 %v769
    %v2985 = vunpack.c.h.b16 %v769
    %v2986 = vunpack.c.l.b16 %v770
    %v2987 = vunpack.c.h.b16 %v770
    %v2988 = vunpack.c.l.b16 %v771
    %v2989 = vunpack.c.h.b16 %v771
    %v2990 = vunpack.c.l.b16 %v772
    %v2991 = vunpack.c.h.b16 %v772
    %v2992 = vpack.c.b16 %v1560, %v1552
    %v2993 = vpack.c.b16 %v1561, %v1553
    %v2994 = vpack.c.b16 %v1562, %v1554
    %v2995 = vpack.c.b16 %v1563, %v1555
    %v2996 = vpack.c.b16 %v1564, %v1556
    %v2997 = vpack.c.b16 %v1565, %v1557
    %v2998 = vpack.c.b16 %v1566, %v1558
    %v2999 = vpack.c.b16 %v1567, %v1559
    %v3000 = vpack.c.b16 %v1576, %v1568
    %v3001 = vpack.c.b16 %v1577, %v1569
    %v3002 = vpack.c.b16 %v1578, %v1570
    %v3003 = vpack.c.b16 %v1579, %v1571
    %v3004 = vpack.c.b16 %v1580, %v1572
    %v3005 = vpack.c.b16 %v1581, %v1573
    %v3006 = vpack.c.b16 %v1582, %v1574
    %v3007 = vpack.c.b16 %v1583, %v1575
    %v3008 = vpack.c.b16 %v1592, %v1584
    %v3009 = vpack.c.b16 %v1593, %v1585
    %v3010 = vpack.c.b16 %v1594, %v1586
    %v3011 = vpack.c.b16 %v1595, %v1587
    %v3012 = vpack.c.b16 %v1596, %v1588
    %v3013 = vpack.c.b16 %v1597, %v1589
    %v3014 = vpack.c.b16 %v1598, %v1590
    %v3015 = vpack.c.b16 %v1599, %v1591
    %v3016 = vpack.c.b16 %v1608, %v1600
    %v3017 = vpack.c.b16 %v1609, %v1601
    %v3018 = vpack.c.b16 %v1610, %v1602
    %v3019 = vpack.c.b16 %v1611, %v1603
    %v3020 = vpack.c.b16 %v1612, %v1604
    %v3021 = vpack.c.b16 %v1613, %v1605
    %v3022 = vpack.c.b16 %v1614, %v1606
    %v3023 = vpack.c.b16 %v1615, %v1607
    %v3024 = vpack.c.b16 %v1624, %v1616
    %v3025 = vpack.c.b16 %v1625, %v1617
    %v3026 = vpack.c.b16 %v1626, %v1618
    %v3027 = vpack.c.b16 %v1627, %v1619
    %v3028 = vpack.c.b16 %v1628, %v1620
    %v3029 = vpack.c.b16 %v1629, %v1621
    %v3030 = vpack.c.b16 %v1630, %v1622
    %v3031 = vpack.c.b16 %v1631, %v1623
    %v3032 = vpack.c.b16 %v1640, %v1632
    %v3033 = vpack.c.b16 %v1641, %v1633
    %v3034 = vpack.c.b16 %v1642, %v1634
    %v3035 = vpack.c.b16 %v1643, %v1635
    %v3036 = vpack.c.b16 %v1644, %v1636
    %v3037 = vpack.c.b16 %v1645, %v1637
    %v3038 = vpack.c.b16 %v1646, %v1638
    %v3039 = vpack.c.b16 %v1647, %v1639
    %v3040 = vpack.c.b16 %v1656, %v1648
    %v3041 = vpack.c.b16 %v1657, %v1649
    %v3042 = vpack.c.b16 %v1658, %v1650
    %v3043 = vpack.c.b16 %v1659, %v1651
    %v3044 = vpack.c.b16 %v1660, %v1652
    %v3045 = vpack.c.b16 %v1661, %v1653
    %v3046 = vpack.c.b16 %v1662, %v1654
    %v3047 = vpack.c.b16 %v1663, %v1655
    %v3048 = vpack.c.b16 %v1672, %v1664
    %v3049 = vpack.c.b16 %v1673, %v1665
    %v3050 = vpack.c.b16 %v1674, %v1666
    %v3051 = vpack.c.b16 %v1675, %v1667
    %v3052 = vpack.c.b16 %v1676, %v1668
    %v3053 = vpack.c.b16 %v1677, %v1669
    %v3054 = vpack.c.b16 %v1678, %v1670
    %v3055 = vpack.c.b16 %v1679, %v1671
    %v3056 = vpack.c.b16 %v1688, %v1680
    %v3057 = vpack.c.b16 %v1689, %v1681
    %v3058 = vpack.c.b16 %v1690, %v1682
    %v3059 = vpack.c.b16 %v1691, %v1683
    %v3060 = vpack.c.b16 %v1692, %v1684
    %v3061 = vpack.c.b16 %v1693, %v1685
    %v3062 = vpack.c.b16 %v1694, %v1686
    %v3063 = vpack.c.b16 %v1695, %v1687
    %v3064 = vpack.c.b16 %v1704, %v1696
    %v3065 = vpack.c.b16 %v1705, %v1697
    %v3066 = vpack.c.b16 %v1706, %v1698
    %v3067 = vpack.c.b16 %v1707, %v1699
    %v3068 = vpack.c.b16 %v1708, %v1700
    %v3069 = vpack.c.b16 %v1709, %v1701
    %v3070 = vpack.c.b16 %v1710, %v1702
    %v3071 = vpack.c.b16 %v1711, %v1703
    %v3072 = vpack.c.b16 %v1720, %v1712
    %v3073 = vpack.c.b16 %v1721, %v1713
    %v3074 = vpack.c.b16 %v1722, %v1714
    %v3075 = vpack.c.b16 %v1723, %v1715
    %v3076 = vpack.c.b16 %v1724, %v1716
    %v3077 = vpack.c.b16 %v1725, %v1717
    %v3078 = vpack.c.b16 %v1726, %v1718
    %v3079 = vpack.c.b16 %v1727, %v1719
    %v3080 = vpack.c.b16 %v1736, %v1728
    %v3081 = vpack.c.b16 %v1737, %v1729
    %v3082 = vpack.c.b16 %v1738, %v1730
    %v3083 = vpack.c.b16 %v1739, %v1731
    %v3084 = vpack.c.b16 %v1740, %v1732
    %v3085 = vpack.c.b16 %v1741, %v1733
    %v3086 = vpack.c.b16 %v1742, %v1734
    %v3087 = vpack.c.b16 %v1743, %v1735
    %v3088 = vpack.c.b16 %v1752, %v1744
    %v3089 = vpack.c.b16 %v1753, %v1745
    %v3090 = vpack.c.b16 %v1754, %v1746
    %v3091 = vpack.c.b16 %v1755, %v1747
    %v3092 = vpack.c.b16 %v1756, %v1748
    %v3093 = vpack.c.b16 %v1757, %v1749
    %v3094 = vpack.c.b16 %v1758, %v1750
    %v3095 = vpack.c.b16 %v1759, %v1751
    %v3096 = vpack.c.b16 %v1768, %v1760
    %v3097 = vpack.c.b16 %v1769, %v1761
    %v3098 = vpack.c.b16 %v1770, %v1762
    %v3099 = vpack.c.b16 %v1771, %v1763
    %v3100 = vpack.c.b16 %v1772, %v1764
    %v3101 = vpack.c.b16 %v1773, %v1765
    %v3102 = vpack.c.b16 %v1774, %v1766
    %v3103 = vpack.c.b16 %v1775, %v1767
    %v3104 = vpack.c.b16 %v1784, %v1776
    %v3105 = vpack.c.b16 %v1785, %v1777
    %v3106 = vpack.c.b16 %v1786, %v1778
    %v3107 = vpack.c.b16 %v1787, %v1779
    %v3108 = vpack.c.b16 %v1788, %v1780
    %v3109 = vpack.c.b16 %v1789, %v1781
    %v3110 = vpack.c.b16 %v1790, %v1782
    %v3111 = vpack.c.b16 %v1791, %v1783
    %v3112 = vpack.c.b16 %v1800, %v1792
    %v3113 = vpack.c.b16 %v1801, %v1793
    %v3114 = vpack.c.b16 %v1802, %v1794
    %v3115 = vpack.c.b16 %v1803, %v1795
    %v3116 = vpack.c.b16 %v1804, %v1796
    %v3117 = vpack.c.b16 %v1805, %v1797
    %v3118 = vpack.c.b16 %v1806, %v1798
    %v3119 = vpack.c.b16 %v1807, %v1799
    %v3120 = vpack.c.b16 %v1816, %v1808
    %v3121 = vpack.c.b16 %v1817, %v1809
    %v3122 = vpack.c.b16 %v1818, %v1810
    %v3123 = vpack.c.b16 %v1819, %v1811
    %v3124 = vpack.c.b16 %v1820, %v1812
    %v3125 = vpack.c.b16 %v1821, %v1813
    %v3126 = vpack.c.b16 %v1822, %v1814
    %v3127 = vpack.c.b16 %v1823, %v1815
    %v3128 = vpack.c.b16 %v1832, %v1824
    %v3129 = vpack.c.b16 %v1833, %v1825
    %v3130 = vpack.c.b16 %v1834, %v1826
    %v3131 = vpack.c.b16 %v1835, %v1827
    %v3132 = vpack.c.b16 %v1836, %v1828
    %v3133 = vpack.c.b16 %v1837, %v1829
    %v3134 = vpack.c.b16 %v1838, %v1830
    %v3135 = vpack.c.b16 %v1839, %v1831
    %v3136 = vpack.c.b16 %v1848, %v1840
    %v3137 = vpack.c.b16 %v1849, %v1841
    %v3138 = vpack.c.b16 %v1850, %v1842
    %v3139 = vpack.c.b16 %v1851, %v1843
    %v3140 = vpack.c.b16 %v1852, %v1844
    %v3141 = vpack.c.b16 %v1853, %v1845
    %v3142 = vpack.c.b16 %v1854, %v1846
    %v3143 = vpack.c.b16 %v1855, %v1847
    %v3144 = vpack.c.b16 %v1864, %v1856
    %v3145 = vpack.c.b16 %v1865, %v1857
    %v3146 = vpack.c.b16 %v1866, %v1858
    %v3147 = vpack.c.b16 %v1867, %v1859
    %v3148 = vpack.c.b16 %v1868, %v1860
    %v3149 = vpack.c.b16 %v1869, %v1861
    %v3150 = vpack.c.b16 %v1870, %v1862
    %v3151 = vpack.c.b16 %v1871, %v1863
    %v3152 = vpack.c.b16 %v1880, %v1872
    %v3153 = vpack.c.b16 %v1881, %v1873
    %v3154 = vpack.c.b16 %v1882, %v1874
    %v3155 = vpack.c.b16 %v1883, %v1875
    %v3156 = vpack.c.b16 %v1884, %v1876
    %v3157 = vpack.c.b16 %v1885, %v1877
    %v3158 = vpack.c.b16 %v1886, %v1878
    %v3159 = vpack.c.b16 %v1887, %v1879
    %v3160 = vpack.c.b16 %v1896, %v1888
    %v3161 = vpack.c.b16 %v1897, %v1889
    %v3162 = vpack.c.b16 %v1898, %v1890
    %v3163 = vpack.c.b16 %v1899, %v1891
    %v3164 = vpack.c.b16 %v1900, %v1892
    %v3165 = vpack.c.b16 %v1901, %v1893
    %v3166 = vpack.c.b16 %v1902, %v1894
    %v3167 = vpack.c.b16 %v1903, %v1895
    %v3168 = vpack.c.b16 %v1912, %v1904
    %v3169 = vpack.c.b16 %v1913, %v1905
    %v3170 = vpack.c.b16 %v1914, %v1906
    %v3171 = vpack.c.b16 %v1915, %v1907
    %v3172 = vpack.c.b16 %v1916, %v1908
    %v3173 = vpack.c.b16 %v1917, %v1909
    %v3174 = vpack.c.b16 %v1918, %v1910
    %v3175 = vpack.c.b16 %v1919, %v1911
    %v3176 = vpack.c.b16 %v1928, %v1920
    %v3177 = vpack.c.b16 %v1929, %v1921
    %v3178 = vpack.c.b16 %v1930, %v1922
    %v3179 = vpack.c.b16 %v1931, %v1923
    %v3180 = vpack.c.b16 %v1932, %v1924
    %v3181 = vpack.c.b16 %v1933, %v1925
    %v3182 = vpack.c.b16 %v1934, %v1926
    %v3183 = vpack.c.b16 %v1935, %v1927
    %v3184 = vpack.c.b16 %v1944, %v1936
    %v3185 = vpack.c.b16 %v1945, %v1937
    %v3186 = vpack.c.b16 %v1946, %v1938
    %v3187 = vpack.c.b16 %v1947, %v1939
    %v3188 = vpack.c.b16 %v1948, %v1940
    %v3189 = vpack.c.b16 %v1949, %v1941
    %v3190 = vpack.c.b16 %v1950, %v1942
    %v3191 = vpack.c.b16 %v1951, %v1943
    %v3192 = vpack.c.b16 %v1960, %v1952
    %v3193 = vpack.c.b16 %v1961, %v1953
    %v3194 = vpack.c.b16 %v1962, %v1954
    %v3195 = vpack.c.b16 %v1963, %v1955
    %v3196 = vpack.c.b16 %v1964, %v1956
    %v3197 = vpack.c.b16 %v1965, %v1957
    %v3198 = vpack.c.b16 %v1966, %v1958
    %v3199 = vpack.c.b16 %v1967, %v1959
    %v3200 = vpack.c.b16 %v1976, %v1968
    %v3201 = vpack.c.b16 %v1977, %v1969
    %v3202 = vpack.c.b16 %v1978, %v1970
    %v3203 = vpack.c.b16 %v1979, %v1971
    %v3204 = vpack.c.b16 %v1980, %v1972
    %v3205 = vpack.c.b16 %v1981, %v1973
    %v3206 = vpack.c.b16 %v1982, %v1974
    %v3207 = vpack.c.b16 %v1983, %v1975
    %v3208 = vpack.c.b16 %v1992, %v1984
    %v3209 = vpack.c.b16 %v1993, %v1985
    %v3210 = vpack.c.b16 %v1994, %v1986
    %v3211 = vpack.c.b16 %v1995, %v1987
    %v3212 = vpack.c.b16 %v1996, %v1988
    %v3213 = vpack.c.b16 %v1997, %v1989
    %v3214 = vpack.c.b16 %v1998, %v1990
    %v3215 = vpack.c.b16 %v1999, %v1991
    %v3216 = vpack.c.b16 %v2008, %v2000
    %v3217 = vpack.c.b16 %v2009, %v2001
    %v3218 = vpack.c.b16 %v2010, %v2002
    %v3219 = vpack.c.b16 %v2011, %v2003
    %v3220 = vpack.c.b16 %v2012, %v2004
    %v3221 = vpack.c.b16 %v2013, %v2005
    %v3222 = vpack.c.b16 %v2014, %v2006
    %v3223 = vpack.c.b16 %v2015, %v2007
    %v3224 = vpack.c.b16 %v2024, %v2016
    %v3225 = vpack.c.b16 %v2025, %v2017
    %v3226 = vpack.c.b16 %v2026, %v2018
    %v3227 = vpack.c.b16 %v2027, %v2019
    %v3228 = vpack.c.b16 %v2028, %v2020
    %v3229 = vpack.c.b16 %v2029, %v2021
    %v3230 = vpack.c.b16 %v2030, %v2022
    %v3231 = vpack.c.b16 %v2031, %v2023
    %v3232 = vpack.c.b16 %v2040, %v2032
    %v3233 = vpack.c.b16 %v2041, %v2033
    %v3234 = vpack.c.b16 %v2042, %v2034
    %v3235 = vpack.c.b16 %v2043, %v2035
    %v3236 = vpack.c.b16 %v2044, %v2036
    %v3237 = vpack.c.b16 %v2045, %v2037
    %v3238 = vpack.c.b16 %v2046, %v2038
    %v3239 = vpack.c.b16 %v2047, %v2039
    %v3240 = vpack.c.b16 %v2056, %v2048
    %v3241 = vpack.c.b16 %v2057, %v2049
    %v3242 = vpack.c.b16 %v2058, %v2050
    %v3243 = vpack.c.b16 %v2059, %v2051
    %v3244 = vpack.c.b16 %v2060, %v2052
    %v3245 = vpack.c.b16 %v2061, %v2053
    %v3246 = vpack.c.b16 %v2062, %v2054
    %v3247 = vpack.c.b16 %v2063, %v2055
    %v3248 = vpack.c.b16 %v2072, %v2064
    %v3249 = vpack.c.b16 %v2073, %v2065
    %v3250 = vpack.c.b16 %v2074, %v2066
    %v3251 = vpack.c.b16 %v2075, %v2067
    %v3252 = vpack.c.b16 %v2076, %v2068
    %v3253 = vpack.c.b16 %v2077, %v2069
    %v3254 = vpack.c.b16 %v2078, %v2070
    %v3255 = vpack.c.b16 %v2079, %v2071
    %v3256 = vpack.c.b16 %v2088, %v2080
    %v3257 = vpack.c.b16 %v2089, %v2081
    %v3258 = vpack.c.b16 %v2090, %v2082
    %v3259 = vpack.c.b16 %v2091, %v2083
    %v3260 = vpack.c.b16 %v2092, %v2084
    %v3261 = vpack.c.b16 %v2093, %v2085
    %v3262 = vpack.c.b16 %v2094, %v2086
    %v3263 = vpack.c.b16 %v2095, %v2087
    %v3264 = vpack.c.b16 %v2104, %v2096
    %v3265 = vpack.c.b16 %v2105, %v2097
    %v3266 = vpack.c.b16 %v2106, %v2098
    %v3267 = vpack.c.b16 %v2107, %v2099
    %v3268 = vpack.c.b16 %v2108, %v2100
    %v3269 = vpack.c.b16 %v2109, %v2101
    %v3270 = vpack.c.b16 %v2110, %v2102
    %v3271 = vpack.c.b16 %v2111, %v2103
    %v3272 = vpack.c.b16 %v2120, %v2112
    %v3273 = vpack.c.b16 %v2121, %v2113
    %v3274 = vpack.c.b16 %v2122, %v2114
    %v3275 = vpack.c.b16 %v2123, %v2115
    %v3276 = vpack.c.b16 %v2124, %v2116
    %v3277 = vpack.c.b16 %v2125, %v2117
    %v3278 = vpack.c.b16 %v2126, %v2118
    %v3279 = vpack.c.b16 %v2127, %v2119
    %v3280 = vpack.c.b16 %v2136, %v2128
    %v3281 = vpack.c.b16 %v2137, %v2129
    %v3282 = vpack.c.b16 %v2138, %v2130
    %v3283 = vpack.c.b16 %v2139, %v2131
    %v3284 = vpack.c.b16 %v2140, %v2132
    %v3285 = vpack.c.b16 %v2141, %v2133
    %v3286 = vpack.c.b16 %v2142, %v2134
    %v3287 = vpack.c.b16 %v2143, %v2135
    %v3288 = vpack.c.b16 %v2152, %v2144
    %v3289 = vpack.c.b16 %v2153, %v2145
    %v3290 = vpack.c.b16 %v2154, %v2146
    %v3291 = vpack.c.b16 %v2155, %v2147
    %v3292 = vpack.c.b16 %v2156, %v2148
    %v3293 = vpack.c.b16 %v2157, %v2149
    %v3294 = vpack.c.b16 %v2158, %v2150
    %v3295 = vpack.c.b16 %v2159, %v2151
    %v3296 = vpack.c.b16 %v2168, %v2160
    %v3297 = vpack.c.b16 %v2169, %v2161
    %v3298 = vpack.c.b16 %v2170, %v2162
    %v3299 = vpack.c.b16 %v2171, %v2163
    %v3300 = vpack.c.b16 %v2172, %v2164
    %v3301 = vpack.c.b16 %v2173, %v2165
    %v3302 = vpack.c.b16 %v2174, %v2166
    %v3303 = vpack.c.b16 %v2175, %v2167
    %v3304 = vpack.c.b16 %v2184, %v2176
    %v3305 = vpack.c.b16 %v2185, %v2177
    %v3306 = vpack.c.b16 %v2186, %v2178
    %v3307 = vpack.c.b16 %v2187, %v2179
    %v3308 = vpack.c.b16 %v2188, %v2180
    %v3309 = vpack.c.b16 %v2189, %v2181
    %v3310 = vpack.c.b16 %v2190, %v2182
    %v3311 = vpack.c.b16 %v2191, %v2183
    %v3312 = vpack.c.b16 %v2200, %v2192
    %v3313 = vpack.c.b16 %v2201, %v2193
    %v3314 = vpack.c.b16 %v2202, %v2194
    %v3315 = vpack.c.b16 %v2203, %v2195
    %v3316 = vpack.c.b16 %v2204, %v2196
    %v3317 = vpack.c.b16 %v2205, %v2197
    %v3318 = vpack.c.b16 %v2206, %v2198
    %v3319 = vpack.c.b16 %v2207, %v2199
    %v3320 = vpack.c.b16 %v2216, %v2208
    %v3321 = vpack.c.b16 %v2217, %v2209
    %v3322 = vpack.c.b16 %v2218, %v2210
    %v3323 = vpack.c.b16 %v2219, %v2211
    %v3324 = vpack.c.b16 %v2220, %v2212
    %v3325 = vpack.c.b16 %v2221, %v2213
    %v3326 = vpack.c.b16 %v2222, %v2214
    %v3327 = vpack.c.b16 %v2223, %v2215
    %v3328 = vpack.c.b16 %v2232, %v2224
    %v3329 = vpack.c.b16 %v2233, %v2225
    %v3330 = vpack.c.b16 %v2234, %v2226
    %v3331 = vpack.c.b16 %v2235, %v2227
    %v3332 = vpack.c.b16 %v2236, %v2228
    %v3333 = vpack.c.b16 %v2237, %v2229
    %v3334 = vpack.c.b16 %v2238, %v2230
    %v3335 = vpack.c.b16 %v2239, %v2231
    %v3336 = vpack.c.b16 %v2248, %v2240
    %v3337 = vpack.c.b16 %v2249, %v2241
    %v3338 = vpack.c.b16 %v2250, %v2242
    %v3339 = vpack.c.b16 %v2251, %v2243
    %v3340 = vpack.c.b16 %v2252, %v2244
    %v3341 = vpack.c.b16 %v2253, %v2245
    %v3342 = vpack.c.b16 %v2254, %v2246
    %v3343 = vpack.c.b16 %v2255, %v2247
    %v3344 = vpack.c.b16 %v2264, %v2256
    %v3345 = vpack.c.b16 %v2265, %v2257
    %v3346 = vpack.c.b16 %v2266, %v2258
    %v3347 = vpack.c.b16 %v2267, %v2259
    %v3348 = vpack.c.b16 %v2268, %v2260
    %v3349 = vpack.c.b16 %v2269, %v2261
    %v3350 = vpack.c.b16 %v2270, %v2262
    %v3351 = vpack.c.b16 %v2271, %v2263
    %v3352 = vpack.c.b16 %v2280, %v2272
    %v3353 = vpack.c.b16 %v2281, %v2273
    %v3354 = vpack.c.b16 %v2282, %v2274
    %v3355 = vpack.c.b16 %v2283, %v2275
    %v3356 = vpack.c.b16 %v2284, %v2276
    %v3357 = vpack.c.b16 %v2285, %v2277
    %v3358 = vpack.c.b16 %v2286, %v2278
    %v3359 = vpack.c.b16 %v2287, %v2279
    %v3360 = vpack.c.b16 %v2296, %v2288
    %v3361 = vpack.c.b16 %v2297, %v2289
    %v3362 = vpack.c.b16 %v2298, %v2290
    %v3363 = vpack.c.b16 %v2299, %v2291
    %v3364 = vpack.c.b16 %v2300, %v2292
    %v3365 = vpack.c.b16 %v2301, %v2293
    %v3366 = vpack.c.b16 %v2302, %v2294
    %v3367 = vpack.c.b16 %v2303, %v2295
    %v3368 = vpack.c.b16 %v2312, %v2304
    %v3369 = vpack.c.b16 %v2313, %v2305
    %v3370 = vpack.c.b16 %v2314, %v2306
    %v3371 = vpack.c.b16 %v2315, %v2307
    %v3372 = vpack.c.b16 %v2316, %v2308
    %v3373 = vpack.c.b16 %v2317, %v2309
    %v3374 = vpack.c.b16 %v2318, %v2310
    %v3375 = vpack.c.b16 %v2319, %v2311
    %v3376 = vpack.c.b16 %v2328, %v2320
    %v3377 = vpack.c.b16 %v2329, %v2321
    %v3378 = vpack.c.b16 %v2330, %v2322
    %v3379 = vpack.c.b16 %v2331, %v2323
    %v3380 = vpack.c.b16 %v2332, %v2324
    %v3381 = vpack.c.b16 %v2333, %v2325
    %v3382 = vpack.c.b16 %v2334, %v2326
    %v3383 = vpack.c.b16 %v2335, %v2327
    %v3384 = vpack.c.b16 %v2344, %v2336
    %v3385 = vpack.c.b16 %v2345, %v2337
    %v3386 = vpack.c.b16 %v2346, %v2338
    %v3387 = vpack.c.b16 %v2347, %v2339
    %v3388 = vpack.c.b16 %v2348, %v2340
    %v3389 = vpack.c.b16 %v2349, %v2341
    %v3390 = vpack.c.b16 %v2350, %v2342
    %v3391 = vpack.c.b16 %v2351, %v2343
    %v3392 = vpack.c.b16 %v2360, %v2352
    %v3393 = vpack.c.b16 %v2361, %v2353
    %v3394 = vpack.c.b16 %v2362, %v2354
    %v3395 = vpack.c.b16 %v2363, %v2355
    %v3396 = vpack.c.b16 %v2364, %v2356
    %v3397 = vpack.c.b16 %v2365, %v2357
    %v3398 = vpack.c.b16 %v2366, %v2358
    %v3399 = vpack.c.b16 %v2367, %v2359
    %v3400 = vpack.c.b16 %v2376, %v2368
    %v3401 = vpack.c.b16 %v2377, %v2369
    %v3402 = vpack.c.b16 %v2378, %v2370
    %v3403 = vpack.c.b16 %v2379, %v2371
    %v3404 = vpack.c.b16 %v2380, %v2372
    %v3405 = vpack.c.b16 %v2381, %v2373
    %v3406 = vpack.c.b16 %v2382, %v2374
    %v3407 = vpack.c.b16 %v2383, %v2375
    %v3408 = vpack.c.b16 %v2392, %v2384
    %v3409 = vpack.c.b16 %v2393, %v2385
    %v3410 = vpack.c.b16 %v2394, %v2386
    %v3411 = vpack.c.b16 %v2395, %v2387
    %v3412 = vpack.c.b16 %v2396, %v2388
    %v3413 = vpack.c.b16 %v2397, %v2389
    %v3414 = vpack.c.b16 %v2398, %v2390
    %v3415 = vpack.c.b16 %v2399, %v2391
    %v3416 = vpack.c.b16 %v2408, %v2400
    %v3417 = vpack.c.b16 %v2409, %v2401
    %v3418 = vpack.c.b16 %v2410, %v2402
    %v3419 = vpack.c.b16 %v2411, %v2403
    %v3420 = vpack.c.b16 %v2412, %v2404
    %v3421 = vpack.c.b16 %v2413, %v2405
    %v3422 = vpack.c.b16 %v2414, %v2406
    %v3423 = vpack.c.b16 %v2415, %v2407
    %v3424 = vpack.c.b16 %v2424, %v2416
    %v3425 = vpack.c.b16 %v2425, %v2417
    %v3426 = vpack.c.b16 %v2426, %v2418
    %v3427 = vpack.c.b16 %v2427, %v2419
    %v3428 = vpack.c.b16 %v2428, %v2420
    %v3429 = vpack.c.b16 %v2429, %v2421
    %v3430 = vpack.c.b16 %v2430, %v2422
    %v3431 = vpack.c.b16 %v2431, %v2423
    %v3432 = vpack.c.b16 %v2440, %v2432
    %v3433 = vpack.c.b16 %v2441, %v2433
    %v3434 = vpack.c.b16 %v2442, %v2434
    %v3435 = vpack.c.b16 %v2443, %v2435
    %v3436 = vpack.c.b16 %v2444, %v2436
    %v3437 = vpack.c.b16 %v2445, %v2437
    %v3438 = vpack.c.b16 %v2446, %v2438
    %v3439 = vpack.c.b16 %v2447, %v2439
    %v3440 = vpack.c.b16 %v2456, %v2448
    %v3441 = vpack.c.b16 %v2457, %v2449
    %v3442 = vpack.c.b16 %v2458, %v2450
    %v3443 = vpack.c.b16 %v2459, %v2451
    %v3444 = vpack.c.b16 %v2460, %v2452
    %v3445 = vpack.c.b16 %v2461, %v2453
    %v3446 = vpack.c.b16 %v2462, %v2454
    %v3447 = vpack.c.b16 %v2463, %v2455
    %v3448 = vpack.c.b16 %v2472, %v2464
    %v3449 = vpack.c.b16 %v2473, %v2465
    %v3450 = vpack.c.b16 %v2474, %v2466
    %v3451 = vpack.c.b16 %v2475, %v2467
    %v3452 = vpack.c.b16 %v2476, %v2468
    %v3453 = vpack.c.b16 %v2477, %v2469
    %v3454 = vpack.c.b16 %v2478, %v2470
    %v3455 = vpack.c.b16 %v2479, %v2471
    %v3456 = vpack.c.b16 %v2488, %v2480
    %v3457 = vpack.c.b16 %v2489, %v2481
    %v3458 = vpack.c.b16 %v2490, %v2482
    %v3459 = vpack.c.b16 %v2491, %v2483
    %v3460 = vpack.c.b16 %v2492, %v2484
    %v3461 = vpack.c.b16 %v2493, %v2485
    %v3462 = vpack.c.b16 %v2494, %v2486
    %v3463 = vpack.c.b16 %v2495, %v2487
    %v3464 = vpack.c.b16 %v2504, %v2496
    %v3465 = vpack.c.b16 %v2505, %v2497
    %v3466 = vpack.c.b16 %v2506, %v2498
    %v3467 = vpack.c.b16 %v2507, %v2499
    %v3468 = vpack.c.b16 %v2508, %v2500
    %v3469 = vpack.c.b16 %v2509, %v2501
    %v3470 = vpack.c.b16 %v2510, %v2502
    %v3471 = vpack.c.b16 %v2511, %v2503
    %v3472 = vpack.c.b16 %v2520, %v2512
    %v3473 = vpack.c.b16 %v2521, %v2513
    %v3474 = vpack.c.b16 %v2522, %v2514
    %v3475 = vpack.c.b16 %v2523, %v2515
    %v3476 = vpack.c.b16 %v2524, %v2516
    %v3477 = vpack.c.b16 %v2525, %v2517
    %v3478 = vpack.c.b16 %v2526, %v2518
    %v3479 = vpack.c.b16 %v2527, %v2519
    %v3480 = vpack.c.b16 %v2536, %v2528
    %v3481 = vpack.c.b16 %v2537, %v2529
    %v3482 = vpack.c.b16 %v2538, %v2530
    %v3483 = vpack.c.b16 %v2539, %v2531
    %v3484 = vpack.c.b16 %v2540, %v2532
    %v3485 = vpack.c.b16 %v2541, %v2533
    %v3486 = vpack.c.b16 %v2542, %v2534
    %v3487 = vpack.c.b16 %v2543, %v2535
    %v3488 = vpack.c.b16 %v2552, %v2544
    %v3489 = vpack.c.b16 %v2553, %v2545
    %v3490 = vpack.c.b16 %v2554, %v2546
    %v3491 = vpack.c.b16 %v2555, %v2547
    %v3492 = vpack.c.b16 %v2556, %v2548
    %v3493 = vpack.c.b16 %v2557, %v2549
    %v3494 = vpack.c.b16 %v2558, %v2550
    %v3495 = vpack.c.b16 %v2559, %v2551
    %v3496 = vpack.c.b16 %v2568, %v2560
    %v3497 = vpack.c.b16 %v2569, %v2561
    %v3498 = vpack.c.b16 %v2570, %v2562
    %v3499 = vpack.c.b16 %v2571, %v2563
    %v3500 = vpack.c.b16 %v2572, %v2564
    %v3501 = vpack.c.b16 %v2573, %v2565
    %v3502 = vpack.c.b16 %v2574, %v2566
    %v3503 = vpack.c.b16 %v2575, %v2567
    %v3504 = vpack.c.b16 %v2584, %v2576
    %v3505 = vpack.c.b16 %v2585, %v2577
    %v3506 = vpack.c.b16 %v2586, %v2578
    %v3507 = vpack.c.b16 %v2587, %v2579
    %v3508 = vpack.c.b16 %v2588, %v2580
    %v3509 = vpack.c.b16 %v2589, %v2581
    %v3510 = vpack.c.b16 %v2590, %v2582
    %v3511 = vpack.c.b16 %v2591, %v2583
    %v3512 = vpack.c.b16 %v2600, %v2592
    %v3513 = vpack.c.b16 %v2601, %v2593
    %v3514 = vpack.c.b16 %v2602, %v2594
    %v3515 = vpack.c.b16 %v2603, %v2595
    %v3516 = vpack.c.b16 %v2604, %v2596
    %v3517 = vpack.c.b16 %v2605, %v2597
    %v3518 = vpack.c.b16 %v2606, %v2598
    %v3519 = vpack.c.b16 %v2607, %v2599
    %v3520 = vpack.c.b16 %v2616, %v2608
    %v3521 = vpack.c.b16 %v2617, %v2609
    %v3522 = vpack.c.b16 %v2618, %v2610
    %v3523 = vpack.c.b16 %v2619, %v2611
    %v3524 = vpack.c.b16 %v2620, %v2612
    %v3525 = vpack.c.b16 %v2621, %v2613
    %v3526 = vpack.c.b16 %v2622, %v2614
    %v3527 = vpack.c.b16 %v2623, %v2615
    %v3528 = vpack.c.b16 %v2632, %v2624
    %v3529 = vpack.c.b16 %v2633, %v2625
    %v3530 = vpack.c.b16 %v2634, %v2626
    %v3531 = vpack.c.b16 %v2635, %v2627
    %v3532 = vpack.c.b16 %v2636, %v2628
    %v3533 = vpack.c.b16 %v2637, %v2629
    %v3534 = vpack.c.b16 %v2638, %v2630
    %v3535 = vpack.c.b16 %v2639, %v2631
    %v3536 = vpack.c.b16 %v2648, %v2640
    %v3537 = vpack.c.b16 %v2649, %v2641
    %v3538 = vpack.c.b16 %v2650, %v2642
    %v3539 = vpack.c.b16 %v2651, %v2643
    %v3540 = vpack.c.b16 %v2652, %v2644
    %v3541 = vpack.c.b16 %v2653, %v2645
    %v3542 = vpack.c.b16 %v2654, %v2646
    %v3543 = vpack.c.b16 %v2655, %v2647
    %v3544 = vpack.c.b16 %v2664, %v2656
    %v3545 = vpack.c.b16 %v2665, %v2657
    %v3546 = vpack.c.b16 %v2666, %v2658
    %v3547 = vpack.c.b16 %v2667, %v2659
    %v3548 = vpack.c.b16 %v2668, %v2660
    %v3549 = vpack.c.b16 %v2669, %v2661
    %v3550 = vpack.c.b16 %v2670, %v2662
    %v3551 = vpack.c.b16 %v2671, %v2663
    %v3552 = vpack.c.b16 %v2680, %v2672
    %v3553 = vpack.c.b16 %v2681, %v2673
    %v3554 = vpack.c.b16 %v2682, %v2674
    %v3555 = vpack.c.b16 %v2683, %v2675
    %v3556 = vpack.c.b16 %v2684, %v2676
    %v3557 = vpack.c.b16 %v2685, %v2677
    %v3558 = vpack.c.b16 %v2686, %v2678
    %v3559 = vpack.c.b16 %v2687, %v2679
    %v3560 = vpack.c.b16 %v2696, %v2688
    %v3561 = vpack.c.b16 %v2697, %v2689
    %v3562 = vpack.c.b16 %v2698, %v2690
    %v3563 = vpack.c.b16 %v2699, %v2691
    %v3564 = vpack.c.b16 %v2700, %v2692
    %v3565 = vpack.c.b16 %v2701, %v2693
    %v3566 = vpack.c.b16 %v2702, %v2694
    %v3567 = vpack.c.b16 %v2703, %v2695
    %v3568 = vpack.c.b16 %v2712, %v2704
    %v3569 = vpack.c.b16 %v2713, %v2705
    %v3570 = vpack.c.b16 %v2714, %v2706
    %v3571 = vpack.c.b16 %v2715, %v2707
    %v3572 = vpack.c.b16 %v2716, %v2708
    %v3573 = vpack.c.b16 %v2717, %v2709
    %v3574 = vpack.c.b16 %v2718, %v2710
    %v3575 = vpack.c.b16 %v2719, %v2711
    %v3576 = vpack.c.b16 %v2728, %v2720
    %v3577 = vpack.c.b16 %v2729, %v2721
    %v3578 = vpack.c.b16 %v2730, %v2722
    %v3579 = vpack.c.b16 %v2731, %v2723
    %v3580 = vpack.c.b16 %v2732, %v2724
    %v3581 = vpack.c.b16 %v2733, %v2725
    %v3582 = vpack.c.b16 %v2734, %v2726
    %v3583 = vpack.c.b16 %v2735, %v2727
    %v3584 = vpack.c.b16 %v2744, %v2736
    %v3585 = vpack.c.b16 %v2745, %v2737
    %v3586 = vpack.c.b16 %v2746, %v2738
    %v3587 = vpack.c.b16 %v2747, %v2739
    %v3588 = vpack.c.b16 %v2748, %v2740
    %v3589 = vpack.c.b16 %v2749, %v2741
    %v3590 = vpack.c.b16 %v2750, %v2742
    %v3591 = vpack.c.b16 %v2751, %v2743
    %v3592 = vpack.c.b16 %v2760, %v2752
    %v3593 = vpack.c.b16 %v2761, %v2753
    %v3594 = vpack.c.b16 %v2762, %v2754
    %v3595 = vpack.c.b16 %v2763, %v2755
    %v3596 = vpack.c.b16 %v2764, %v2756
    %v3597 = vpack.c.b16 %v2765, %v2757
    %v3598 = vpack.c.b16 %v2766, %v2758
    %v3599 = vpack.c.b16 %v2767, %v2759
    %v3600 = vpack.c.b16 %v2776, %v2768
    %v3601 = vpack.c.b16 %v2777, %v2769
    %v3602 = vpack.c.b16 %v2778, %v2770
    %v3603 = vpack.c.b16 %v2779, %v2771
    %v3604 = vpack.c.b16 %v2780, %v2772
    %v3605 = vpack.c.b16 %v2781, %v2773
    %v3606 = vpack.c.b16 %v2782, %v2774
    %v3607 = vpack.c.b16 %v2783, %v2775
    %v3608 = vpack.c.b16 %v2792, %v2784
    %v3609 = vpack.c.b16 %v2793, %v2785
    %v3610 = vpack.c.b16 %v2794, %v2786
    %v3611 = vpack.c.b16 %v2795, %v2787
    %v3612 = vpack.c.b16 %v2796, %v2788
    %v3613 = vpack.c.b16 %v2797, %v2789
    %v3614 = vpack.c.b16 %v2798, %v2790
    %v3615 = vpack.c.b16 %v2799, %v2791
    %v3616 = vpack.c.b16 %v2808, %v2800
    %v3617 = vpack.c.b16 %v2809, %v2801
    %v3618 = vpack.c.b16 %v2810, %v2802
    %v3619 = vpack.c.b16 %v2811, %v2803
    %v3620 = vpack.c.b16 %v2812, %v2804
    %v3621 = vpack.c.b16 %v2813, %v2805
    %v3622 = vpack.c.b16 %v2814, %v2806
    %v3623 = vpack.c.b16 %v2815, %v2807
    %v3624 = vpack.c.b16 %v2824, %v2816
    %v3625 = vpack.c.b16 %v2825, %v2817
    %v3626 = vpack.c.b16 %v2826, %v2818
    %v3627 = vpack.c.b16 %v2827, %v2819
    %v3628 = vpack.c.b16 %v2828, %v2820
    %v3629 = vpack.c.b16 %v2829, %v2821
    %v3630 = vpack.c.b16 %v2830, %v2822
    %v3631 = vpack.c.b16 %v2831, %v2823
    %v3632 = vpack.c.b16 %v2840, %v2832
    %v3633 = vpack.c.b16 %v2841, %v2833
    %v3634 = vpack.c.b16 %v2842, %v2834
    %v3635 = vpack.c.b16 %v2843, %v2835
    %v3636 = vpack.c.b16 %v2844, %v2836
    %v3637 = vpack.c.b16 %v2845, %v2837
    %v3638 = vpack.c.b16 %v2846, %v2838
    %v3639 = vpack.c.b16 %v2847, %v2839
    %v3640 = vpack.c.b16 %v2856, %v2848
    %v3641 = vpack.c.b16 %v2857, %v2849
    %v3642 = vpack.c.b16 %v2858, %v2850
    %v3643 = vpack.c.b16 %v2859, %v2851
    %v3644 = vpack.c.b16 %v2860, %v2852
    %v3645 = vpack.c.b16 %v2861, %v2853
    %v3646 = vpack.c.b16 %v2862, %v2854
    %v3647 = vpack.c.b16 %v2863, %v2855
    %v3648 = vpack.c.b16 %v2872, %v2864
    %v3649 = vpack.c.b16 %v2873, %v2865
    %v3650 = vpack.c.b16 %v2874, %v2866
    %v3651 = vpack.c.b16 %v2875, %v2867
    %v3652 = vpack.c.b16 %v2876, %v2868
    %v3653 = vpack.c.b16 %v2877, %v2869
    %v3654 = vpack.c.b16 %v2878, %v2870
    %v3655 = vpack.c.b16 %v2879, %v2871
    %v3656 = vpack.c.b16 %v2888, %v2880
    %v3657 = vpack.c.b16 %v2889, %v2881
    %v3658 = vpack.c.b16 %v2890, %v2882
    %v3659 = vpack.c.b16 %v2891, %v2883
    %v3660 = vpack.c.b16 %v2892, %v2884
    %v3661 = vpack.c.b16 %v2893, %v2885
    %v3662 = vpack.c.b16 %v2894, %v2886
    %v3663 = vpack.c.b16 %v2895, %v2887
    %v3664 = vpack.c.b16 %v2904, %v2896
    %v3665 = vpack.c.b16 %v2905, %v2897
    %v3666 = vpack.c.b16 %v2906, %v2898
    %v3667 = vpack.c.b16 %v2907, %v2899
    %v3668 = vpack.c.b16 %v2908, %v2900
    %v3669 = vpack.c.b16 %v2909, %v2901
    %v3670 = vpack.c.b16 %v2910, %v2902
    %v3671 = vpack.c.b16 %v2911, %v2903
    %v3672 = vpack.c.b16 %v2920, %v2912
    %v3673 = vpack.c.b16 %v2921, %v2913
    %v3674 = vpack.c.b16 %v2922, %v2914
    %v3675 = vpack.c.b16 %v2923, %v2915
    %v3676 = vpack.c.b16 %v2924, %v2916
    %v3677 = vpack.c.b16 %v2925, %v2917
    %v3678 = vpack.c.b16 %v2926, %v2918
    %v3679 = vpack.c.b16 %v2927, %v2919
    %v3680 = vpack.c.b16 %v2936, %v2928
    %v3681 = vpack.c.b16 %v2937, %v2929
    %v3682 = vpack.c.b16 %v2938, %v2930
    %v3683 = vpack.c.b16 %v2939, %v2931
    %v3684 = vpack.c.b16 %v2940, %v2932
    %v3685 = vpack.c.b16 %v2941, %v2933
    %v3686 = vpack.c.b16 %v2942, %v2934
    %v3687 = vpack.c.b16 %v2943, %v2935
    %v3688 = vpack.c.b16 %v2952, %v2944
    %v3689 = vpack.c.b16 %v2953, %v2945
    %v3690 = vpack.c.b16 %v2954, %v2946
    %v3691 = vpack.c.b16 %v2955, %v2947
    %v3692 = vpack.c.b16 %v2956, %v2948
    %v3693 = vpack.c.b16 %v2957, %v2949
    %v3694 = vpack.c.b16 %v2958, %v2950
    %v3695 = vpack.c.b16 %v2959, %v2951
    %v3696 = vpack.c.b16 %v2968, %v2960
    %v3697 = vpack.c.b16 %v2969, %v2961
    %v3698 = vpack.c.b16 %v2970, %v2962
    %v3699 = vpack.c.b16 %v2971, %v2963
    %v3700 = vpack.c.b16 %v2972, %v2964
    %v3701 = vpack.c.b16 %v2973, %v2965
    %v3702 = vpack.c.b16 %v2974, %v2966
    %v3703 = vpack.c.b16 %v2975, %v2967
    %v3704 = vpack.c.b16 %v2984, %v2976
    %v3705 = vpack.c.b16 %v2985, %v2977
    %v3706 = vpack.c.b16 %v2986, %v2978
    %v3707 = vpack.c.b16 %v2987, %v2979
    %v3708 = vpack.c.b16 %v2988, %v2980
    %v3709 = vpack.c.b16 %v2989, %v2981
    %v3710 = vpack.c.b16 %v2990, %v2982
    %v3711 = vpack.c.b16 %v2991, %v2983
    %vm4432 = vcmask 261120
    %v4434 = vsel %vm4432, %v820, 0
    %4436 = vmatprep.subr.bf16.mxu0 %v3049
    %4437 = vmatpush1.bf16.msra.mxu0 %v3048
    %4438 = vmatprep.subr.bf16.mxu0 %v3041
    %4439 = vmatpush1.bf16.msra.mxu0 %v3040
    %4440 = vmatprep.subr.bf16.mxu0 %v3033
    %4441 = vmatpush1.bf16.msra.mxu0 %v3032
    %4442 = vmatprep.subr.bf16.mxu0 %v3025
    %4443 = vmatpush1.bf16.msra.mxu0 %v3024
    %4444 = vmatprep.subr.bf16.mxu0 %v3017
    %4445 = vmatpush1.bf16.msra.mxu0 %v3016
    %4446 = vmatprep.subr.bf16.mxu0 %v3009
    %4447 = vmatpush1.bf16.msra.mxu0 %v3008
    %4448 = vmatprep.subr.bf16.mxu0 %v3001
    %4449 = vmatpush1.bf16.msra.mxu0 %v3000
    %4450 = vmatprep.subr.bf16.mxu0 %v2993
    %4451 = vmatpush1.bf16.msra.mxu0 %v2992
    %4452 = vmatprep.subr.bf16.mxu0 %v3113
    %4453 = vmatpush2.bf16.msra.mxu0 %v3112
    %4454 = vmatprep.subr.bf16.mxu0 %v3105
    %4455 = vmatpush2.bf16.msra.mxu0 %v3104
    %4456 = vmatprep.subr.bf16.mxu0 %v3097
    %4457 = vmatpush2.bf16.msra.mxu0 %v3096
    %4458 = vmatprep.subr.bf16.mxu0 %v3089
    %4459 = vmatpush2.bf16.msra.mxu0 %v3088
    %4460 = vmatprep.subr.bf16.mxu0 %v3081
    %4461 = vmatpush2.bf16.msra.mxu0 %v3080
    %4462 = vmatprep.subr.bf16.mxu0 %v3073
    %4463 = vmatpush2.bf16.msra.mxu0 %v3072
    %4464 = vmatprep.subr.bf16.mxu0 %v3065
    %4465 = vmatpush2.bf16.msra.mxu0 %v3064
    %4466 = vmatprep.subr.bf16.mxu0 %v3057
    %4467 = vmatpush2.bf16.msra.mxu0 %v3056
    %4468 = vmatprep.mubr.bf16.mxu0 %v810
    %4469 = vmatmul.mubr.bf16.gmra.mxu0 %v809
    %v4470 = vpop.f32.mrf.mxu0
    %v4471 = vadd.f32 0.0, %v4470
    %v4472 = vpop.f32.mrf.mxu0
    %v4473 = vadd.f32 0.0, %v4472
    %v4474 = vpop.f32.mrf.mxu0
    %v4475 = vadd.f32 0.0, %v4474
    %v4476 = vpop.f32.mrf.mxu0
    %v4477 = vadd.f32 0.0, %v4476
    %4478 = vdwg.mxu0
    %4479 = vmatprep.subr.bf16.mxu0 %v3177
    %4480 = vmatpush1.bf16.msra.mxu0 %v3176
    %4481 = vmatprep.subr.bf16.mxu0 %v3169
    %4482 = vmatpush1.bf16.msra.mxu0 %v3168
    %4483 = vmatprep.subr.bf16.mxu0 %v3161
    %4484 = vmatpush1.bf16.msra.mxu0 %v3160
    %4485 = vmatprep.subr.bf16.mxu0 %v3153
    %4486 = vmatpush1.bf16.msra.mxu0 %v3152
    %4487 = vmatprep.subr.bf16.mxu0 %v3145
    %4488 = vmatpush1.bf16.msra.mxu0 %v3144
    %4489 = vmatprep.subr.bf16.mxu0 %v3137
    %4490 = vmatpush1.bf16.msra.mxu0 %v3136
    %4491 = vmatprep.subr.bf16.mxu0 %v3129
    %4492 = vmatpush1.bf16.msra.mxu0 %v3128
    %4493 = vmatprep.subr.bf16.mxu0 %v3121
    %4494 = vmatpush1.bf16.msra.mxu0 %v3120
    %4495 = vmatprep.subr.bf16.mxu0 %v3241
    %4496 = vmatpush2.bf16.msra.mxu0 %v3240
    %4497 = vmatprep.subr.bf16.mxu0 %v3233
    %4498 = vmatpush2.bf16.msra.mxu0 %v3232
    %4499 = vmatprep.subr.bf16.mxu0 %v3225
    %4500 = vmatpush2.bf16.msra.mxu0 %v3224
    %4501 = vmatprep.subr.bf16.mxu0 %v3217
    %4502 = vmatpush2.bf16.msra.mxu0 %v3216
    %4503 = vmatprep.subr.bf16.mxu0 %v3209
    %4504 = vmatpush2.bf16.msra.mxu0 %v3208
    %4505 = vmatprep.subr.bf16.mxu0 %v3201
    %4506 = vmatpush2.bf16.msra.mxu0 %v3200
    %4507 = vmatprep.subr.bf16.mxu0 %v3193
    %4508 = vmatpush2.bf16.msra.mxu0 %v3192
    %4509 = vmatprep.subr.bf16.mxu0 %v3185
    %4510 = vmatpush2.bf16.msra.mxu0 %v3184
    %4511 = vmatprep.mubr.bf16.mxu0 %v812
    %4512 = vmatmul.mubr.bf16.gmra.mxu0 %v811
    %v4513 = vpop.f32.mrf.mxu0
    %v4514 = vadd.f32 %v4471, %v4513
    %v4515 = vpop.f32.mrf.mxu0
    %v4516 = vadd.f32 %v4473, %v4515
    %v4517 = vpop.f32.mrf.mxu0
    %v4518 = vadd.f32 %v4475, %v4517
    %v4519 = vpop.f32.mrf.mxu0
    %v4520 = vadd.f32 %v4477, %v4519
    %4521 = vdwg.mxu0
    %4522 = vmatprep.subr.bf16.mxu0 %v3305
    %4523 = vmatpush1.bf16.msra.mxu0 %v3304
    %4524 = vmatprep.subr.bf16.mxu0 %v3297
    %4525 = vmatpush1.bf16.msra.mxu0 %v3296
    %4526 = vmatprep.subr.bf16.mxu0 %v3289
    %4527 = vmatpush1.bf16.msra.mxu0 %v3288
    %4528 = vmatprep.subr.bf16.mxu0 %v3281
    %4529 = vmatpush1.bf16.msra.mxu0 %v3280
    %4530 = vmatprep.subr.bf16.mxu0 %v3273
    %4531 = vmatpush1.bf16.msra.mxu0 %v3272
    %4532 = vmatprep.subr.bf16.mxu0 %v3265
    %4533 = vmatpush1.bf16.msra.mxu0 %v3264
    %4534 = vmatprep.subr.bf16.mxu0 %v3257
    %4535 = vmatpush1.bf16.msra.mxu0 %v3256
    %4536 = vmatprep.subr.bf16.mxu0 %v3249
    %4537 = vmatpush1.bf16.msra.mxu0 %v3248
    %4538 = vmatprep.subr.bf16.mxu0 %v3369
    %4539 = vmatpush2.bf16.msra.mxu0 %v3368
    %4540 = vmatprep.subr.bf16.mxu0 %v3361
    %4541 = vmatpush2.bf16.msra.mxu0 %v3360
    %4542 = vmatprep.subr.bf16.mxu0 %v3353
    %4543 = vmatpush2.bf16.msra.mxu0 %v3352
    %4544 = vmatprep.subr.bf16.mxu0 %v3345
    %4545 = vmatpush2.bf16.msra.mxu0 %v3344
    %4546 = vmatprep.subr.bf16.mxu0 %v3337
    %4547 = vmatpush2.bf16.msra.mxu0 %v3336
    %4548 = vmatprep.subr.bf16.mxu0 %v3329
    %4549 = vmatpush2.bf16.msra.mxu0 %v3328
    %4550 = vmatprep.subr.bf16.mxu0 %v3321
    %4551 = vmatpush2.bf16.msra.mxu0 %v3320
    %4552 = vmatprep.subr.bf16.mxu0 %v3313
    %4553 = vmatpush2.bf16.msra.mxu0 %v3312
    %4554 = vmatprep.mubr.bf16.mxu0 %v814
    %4555 = vmatmul.mubr.bf16.gmra.mxu0 %v813
    %v4556 = vpop.f32.mrf.mxu0
    %v4557 = vadd.f32 %v4514, %v4556
    %v4558 = vpop.f32.mrf.mxu0
    %v4559 = vadd.f32 %v4516, %v4558
    %v4560 = vpop.f32.mrf.mxu0
    %v4561 = vadd.f32 %v4518, %v4560
    %v4562 = vpop.f32.mrf.mxu0
    %v4563 = vadd.f32 %v4520, %v4562
    %4564 = vdwg.mxu0
    %4565 = vmatprep.subr.bf16.mxu0 %v3433
    %4566 = vmatpush1.bf16.msra.mxu0 %v3432
    %4567 = vmatprep.subr.bf16.mxu0 %v3425
    %4568 = vmatpush1.bf16.msra.mxu0 %v3424
    %4569 = vmatprep.subr.bf16.mxu0 %v3417
    %4570 = vmatpush1.bf16.msra.mxu0 %v3416
    %4571 = vmatprep.subr.bf16.mxu0 %v3409
    %4572 = vmatpush1.bf16.msra.mxu0 %v3408
    %4573 = vmatprep.subr.bf16.mxu0 %v3401
    %4574 = vmatpush1.bf16.msra.mxu0 %v3400
    %4575 = vmatprep.subr.bf16.mxu0 %v3393
    %4576 = vmatpush1.bf16.msra.mxu0 %v3392
    %4577 = vmatprep.subr.bf16.mxu0 %v3385
    %4578 = vmatpush1.bf16.msra.mxu0 %v3384
    %4579 = vmatprep.subr.bf16.mxu0 %v3377
    %4580 = vmatpush1.bf16.msra.mxu0 %v3376
    %4581 = vmatprep.subr.bf16.mxu0 %v3497
    %4582 = vmatpush2.bf16.msra.mxu0 %v3496
    %4583 = vmatprep.subr.bf16.mxu0 %v3489
    %4584 = vmatpush2.bf16.msra.mxu0 %v3488
    %4585 = vmatprep.subr.bf16.mxu0 %v3481
    %4586 = vmatpush2.bf16.msra.mxu0 %v3480
    %4587 = vmatprep.subr.bf16.mxu0 %v3473
    %4588 = vmatpush2.bf16.msra.mxu0 %v3472
    %4589 = vmatprep.subr.bf16.mxu0 %v3465
    %4590 = vmatpush2.bf16.msra.mxu0 %v3464
    %4591 = vmatprep.subr.bf16.mxu0 %v3457
    %4592 = vmatpush2.bf16.msra.mxu0 %v3456
    %4593 = vmatprep.subr.bf16.mxu0 %v3449
    %4594 = vmatpush2.bf16.msra.mxu0 %v3448
    %4595 = vmatprep.subr.bf16.mxu0 %v3441
    %4596 = vmatpush2.bf16.msra.mxu0 %v3440
    %4597 = vmatprep.mubr.bf16.mxu0 %v816
    %4598 = vmatmul.mubr.bf16.gmra.mxu0 %v815
    %v4599 = vpop.f32.mrf.mxu0
    %v4600 = vadd.f32 %v4557, %v4599
    %v4601 = vpop.f32.mrf.mxu0
    %v4602 = vadd.f32 %v4559, %v4601
    %v4603 = vpop.f32.mrf.mxu0
    %v4604 = vadd.f32 %v4561, %v4603
    %v4605 = vpop.f32.mrf.mxu0
    %v4606 = vadd.f32 %v4563, %v4605
    %4607 = vdwg.mxu0
    %4608 = vmatprep.subr.bf16.mxu0 %v3561
    %4609 = vmatpush1.bf16.msra.mxu0 %v3560
    %4610 = vmatprep.subr.bf16.mxu0 %v3553
    %4611 = vmatpush1.bf16.msra.mxu0 %v3552
    %4612 = vmatprep.subr.bf16.mxu0 %v3545
    %4613 = vmatpush1.bf16.msra.mxu0 %v3544
    %4614 = vmatprep.subr.bf16.mxu0 %v3537
    %4615 = vmatpush1.bf16.msra.mxu0 %v3536
    %4616 = vmatprep.subr.bf16.mxu0 %v3529
    %4617 = vmatpush1.bf16.msra.mxu0 %v3528
    %4618 = vmatprep.subr.bf16.mxu0 %v3521
    %4619 = vmatpush1.bf16.msra.mxu0 %v3520
    %4620 = vmatprep.subr.bf16.mxu0 %v3513
    %4621 = vmatpush1.bf16.msra.mxu0 %v3512
    %4622 = vmatprep.subr.bf16.mxu0 %v3505
    %4623 = vmatpush1.bf16.msra.mxu0 %v3504
    %4624 = vmatprep.subr.bf16.mxu0 %v3625
    %4625 = vmatpush2.bf16.msra.mxu0 %v3624
    %4626 = vmatprep.subr.bf16.mxu0 %v3617
    %4627 = vmatpush2.bf16.msra.mxu0 %v3616
    %4628 = vmatprep.subr.bf16.mxu0 %v3609
    %4629 = vmatpush2.bf16.msra.mxu0 %v3608
    %4630 = vmatprep.subr.bf16.mxu0 %v3601
    %4631 = vmatpush2.bf16.msra.mxu0 %v3600
    %4632 = vmatprep.subr.bf16.mxu0 %v3593
    %4633 = vmatpush2.bf16.msra.mxu0 %v3592
    %4634 = vmatprep.subr.bf16.mxu0 %v3585
    %4635 = vmatpush2.bf16.msra.mxu0 %v3584
    %4636 = vmatprep.subr.bf16.mxu0 %v3577
    %4637 = vmatpush2.bf16.msra.mxu0 %v3576
    %4638 = vmatprep.subr.bf16.mxu0 %v3569
    %4639 = vmatpush2.bf16.msra.mxu0 %v3568
    %4640 = vmatprep.mubr.bf16.mxu0 %v818
    %4641 = vmatmul.mubr.bf16.gmra.mxu0 %v817
    %v4642 = vpop.f32.mrf.mxu0
    %v4643 = vadd.f32 %v4600, %v4642
    %v4644 = vpop.f32.mrf.mxu0
    %v4645 = vadd.f32 %v4602, %v4644
    %v4646 = vpop.f32.mrf.mxu0
    %v4647 = vadd.f32 %v4604, %v4646
    %v4648 = vpop.f32.mrf.mxu0
    %v4649 = vadd.f32 %v4606, %v4648
    %4650 = vdwg.mxu0
    %4651 = vmatprep.subr.bf16.mxu0 %v3689
    %4652 = vmatpush1.bf16.msra.mxu0 %v3688
    %4653 = vmatprep.subr.bf16.mxu0 %v3681
    %4654 = vmatpush1.bf16.msra.mxu0 %v3680
    %4655 = vmatprep.subr.bf16.mxu0 %v3673
    %4656 = vmatpush1.bf16.msra.mxu0 %v3672
    %4657 = vmatprep.subr.bf16.mxu0 %v3665
    %4658 = vmatpush1.bf16.msra.mxu0 %v3664
    %4659 = vmatprep.subr.bf16.mxu0 %v3657
    %4660 = vmatpush1.bf16.msra.mxu0 %v3656
    %4661 = vmatprep.subr.bf16.mxu0 %v3649
    %4662 = vmatpush1.bf16.msra.mxu0 %v3648
    %4663 = vmatprep.subr.bf16.mxu0 %v3641
    %4664 = vmatpush1.bf16.msra.mxu0 %v3640
    %4665 = vmatprep.subr.bf16.mxu0 %v3633
    %4666 = vmatpush1.bf16.msra.mxu0 %v3632
    %4667 = vmatprep.subr.bf16.mxu0 0
    %4668 = vmatpush2.bf16.msra.mxu0 0
    %4669 = vmatprep.subr.bf16.mxu0 0
    %4670 = vmatpush2.bf16.msra.mxu0 0
    %4671 = vmatprep.subr.bf16.mxu0 0
    %4672 = vmatpush2.bf16.msra.mxu0 0
    %4673 = vmatprep.subr.bf16.mxu0 0
    %4674 = vmatpush2.bf16.msra.mxu0 0
    %4675 = vmatprep.subr.bf16.mxu0 0
    %4676 = vmatpush2.bf16.msra.mxu0 0
    %4677 = vmatprep.subr.bf16.mxu0 0
    %4678 = vmatpush2.bf16.msra.mxu0 0
    %4679 = vmatprep.subr.bf16.mxu0 %v3705
    %4680 = vmatpush2.bf16.msra.mxu0 %v3704
    %4681 = vmatprep.subr.bf16.mxu0 %v3697
    %4682 = vmatpush2.bf16.msra.mxu0 %v3696
    %4683 = vmatprep.mubr.bf16.mxu0 %v4434
    %4684 = vmatmul.mubr.bf16.gmra.mxu0 %v819
    %v4685 = vpop.f32.mrf.mxu0
    %v4686 = vadd.f32 %v4643, %v4685
    %v4687 = vpop.f32.mrf.mxu0
    %v4688 = vadd.f32 %v4645, %v4687
    %v4689 = vpop.f32.mrf.mxu0
    %v4690 = vadd.f32 %v4647, %v4689
    %v4691 = vpop.f32.mrf.mxu0
    %v4692 = vadd.f32 %v4649, %v4691
    %4693 = vdwg.mxu0
    %4694 = vmatprep.subr.bf16.mxu0 %v3051
    %4695 = vmatpush1.bf16.msra.mxu0 %v3050
    %4696 = vmatprep.subr.bf16.mxu0 %v3043
    %4697 = vmatpush1.bf16.msra.mxu0 %v3042
    %4698 = vmatprep.subr.bf16.mxu0 %v3035
    %4699 = vmatpush1.bf16.msra.mxu0 %v3034
    %4700 = vmatprep.subr.bf16.mxu0 %v3027
    %4701 = vmatpush1.bf16.msra.mxu0 %v3026
    %4702 = vmatprep.subr.bf16.mxu0 %v3019
    %4703 = vmatpush1.bf16.msra.mxu0 %v3018
    %4704 = vmatprep.subr.bf16.mxu0 %v3011
    %4705 = vmatpush1.bf16.msra.mxu0 %v3010
    %4706 = vmatprep.subr.bf16.mxu0 %v3003
    %4707 = vmatpush1.bf16.msra.mxu0 %v3002
    %4708 = vmatprep.subr.bf16.mxu0 %v2995
    %4709 = vmatpush1.bf16.msra.mxu0 %v2994
    %4710 = vmatprep.subr.bf16.mxu0 %v3115
    %4711 = vmatpush2.bf16.msra.mxu0 %v3114
    %4712 = vmatprep.subr.bf16.mxu0 %v3107
    %4713 = vmatpush2.bf16.msra.mxu0 %v3106
    %4714 = vmatprep.subr.bf16.mxu0 %v3099
    %4715 = vmatpush2.bf16.msra.mxu0 %v3098
    %4716 = vmatprep.subr.bf16.mxu0 %v3091
    %4717 = vmatpush2.bf16.msra.mxu0 %v3090
    %4718 = vmatprep.subr.bf16.mxu0 %v3083
    %4719 = vmatpush2.bf16.msra.mxu0 %v3082
    %4720 = vmatprep.subr.bf16.mxu0 %v3075
    %4721 = vmatpush2.bf16.msra.mxu0 %v3074
    %4722 = vmatprep.subr.bf16.mxu0 %v3067
    %4723 = vmatpush2.bf16.msra.mxu0 %v3066
    %4724 = vmatprep.subr.bf16.mxu0 %v3059
    %4725 = vmatpush2.bf16.msra.mxu0 %v3058
    %4726 = vmatprep.mubr.bf16.mxu0 %v810
    %4727 = vmatmul.mubr.bf16.gmra.mxu0 %v809
    %v4728 = vpop.f32.mrf.mxu0
    %v4729 = vadd.f32 0.0, %v4728
    %v4730 = vpop.f32.mrf.mxu0
    %v4731 = vadd.f32 0.0, %v4730
    %v4732 = vpop.f32.mrf.mxu0
    %v4733 = vadd.f32 0.0, %v4732
    %v4734 = vpop.f32.mrf.mxu0
    %v4735 = vadd.f32 0.0, %v4734
    %4736 = vdwg.mxu0
    %4737 = vmatprep.subr.bf16.mxu0 %v3179
    %4738 = vmatpush1.bf16.msra.mxu0 %v3178
    %4739 = vmatprep.subr.bf16.mxu0 %v3171
    %4740 = vmatpush1.bf16.msra.mxu0 %v3170
    %4741 = vmatprep.subr.bf16.mxu0 %v3163
    %4742 = vmatpush1.bf16.msra.mxu0 %v3162
    %4743 = vmatprep.subr.bf16.mxu0 %v3155
    %4744 = vmatpush1.bf16.msra.mxu0 %v3154
    %4745 = vmatprep.subr.bf16.mxu0 %v3147
    %4746 = vmatpush1.bf16.msra.mxu0 %v3146
    %4747 = vmatprep.subr.bf16.mxu0 %v3139
    %4748 = vmatpush1.bf16.msra.mxu0 %v3138
    %4749 = vmatprep.subr.bf16.mxu0 %v3131
    %4750 = vmatpush1.bf16.msra.mxu0 %v3130
    %4751 = vmatprep.subr.bf16.mxu0 %v3123
    %4752 = vmatpush1.bf16.msra.mxu0 %v3122
    %4753 = vmatprep.subr.bf16.mxu0 %v3243
    %4754 = vmatpush2.bf16.msra.mxu0 %v3242
    %4755 = vmatprep.subr.bf16.mxu0 %v3235
    %4756 = vmatpush2.bf16.msra.mxu0 %v3234
    %4757 = vmatprep.subr.bf16.mxu0 %v3227
    %4758 = vmatpush2.bf16.msra.mxu0 %v3226
    %4759 = vmatprep.subr.bf16.mxu0 %v3219
    %4760 = vmatpush2.bf16.msra.mxu0 %v3218
    %4761 = vmatprep.subr.bf16.mxu0 %v3211
    %4762 = vmatpush2.bf16.msra.mxu0 %v3210
    %4763 = vmatprep.subr.bf16.mxu0 %v3203
    %4764 = vmatpush2.bf16.msra.mxu0 %v3202
    %4765 = vmatprep.subr.bf16.mxu0 %v3195
    %4766 = vmatpush2.bf16.msra.mxu0 %v3194
    %4767 = vmatprep.subr.bf16.mxu0 %v3187
    %4768 = vmatpush2.bf16.msra.mxu0 %v3186
    %4769 = vmatprep.mubr.bf16.mxu0 %v812
    %4770 = vmatmul.mubr.bf16.gmra.mxu0 %v811
    %v4771 = vpop.f32.mrf.mxu0
    %v4772 = vadd.f32 %v4729, %v4771
    %v4773 = vpop.f32.mrf.mxu0
    %v4774 = vadd.f32 %v4731, %v4773
    %v4775 = vpop.f32.mrf.mxu0
    %v4776 = vadd.f32 %v4733, %v4775
    %v4777 = vpop.f32.mrf.mxu0
    %v4778 = vadd.f32 %v4735, %v4777
    %4779 = vdwg.mxu0
    %4780 = vmatprep.subr.bf16.mxu0 %v3307
    %4781 = vmatpush1.bf16.msra.mxu0 %v3306
    %4782 = vmatprep.subr.bf16.mxu0 %v3299
    %4783 = vmatpush1.bf16.msra.mxu0 %v3298
    %4784 = vmatprep.subr.bf16.mxu0 %v3291
    %4785 = vmatpush1.bf16.msra.mxu0 %v3290
    %4786 = vmatprep.subr.bf16.mxu0 %v3283
    %4787 = vmatpush1.bf16.msra.mxu0 %v3282
    %4788 = vmatprep.subr.bf16.mxu0 %v3275
    %4789 = vmatpush1.bf16.msra.mxu0 %v3274
    %4790 = vmatprep.subr.bf16.mxu0 %v3267
    %4791 = vmatpush1.bf16.msra.mxu0 %v3266
    %4792 = vmatprep.subr.bf16.mxu0 %v3259
    %4793 = vmatpush1.bf16.msra.mxu0 %v3258
    %4794 = vmatprep.subr.bf16.mxu0 %v3251
    %4795 = vmatpush1.bf16.msra.mxu0 %v3250
    %4796 = vmatprep.subr.bf16.mxu0 %v3371
    %4797 = vmatpush2.bf16.msra.mxu0 %v3370
    %4798 = vmatprep.subr.bf16.mxu0 %v3363
    %4799 = vmatpush2.bf16.msra.mxu0 %v3362
    %4800 = vmatprep.subr.bf16.mxu0 %v3355
    %4801 = vmatpush2.bf16.msra.mxu0 %v3354
    %4802 = vmatprep.subr.bf16.mxu0 %v3347
    %4803 = vmatpush2.bf16.msra.mxu0 %v3346
    %4804 = vmatprep.subr.bf16.mxu0 %v3339
    %4805 = vmatpush2.bf16.msra.mxu0 %v3338
    %4806 = vmatprep.subr.bf16.mxu0 %v3331
    %4807 = vmatpush2.bf16.msra.mxu0 %v3330
    %4808 = vmatprep.subr.bf16.mxu0 %v3323
    %4809 = vmatpush2.bf16.msra.mxu0 %v3322
    %4810 = vmatprep.subr.bf16.mxu0 %v3315
    %4811 = vmatpush2.bf16.msra.mxu0 %v3314
    %4812 = vmatprep.mubr.bf16.mxu0 %v814
    %4813 = vmatmul.mubr.bf16.gmra.mxu0 %v813
    %v4814 = vpop.f32.mrf.mxu0
    %v4815 = vadd.f32 %v4772, %v4814
    %v4816 = vpop.f32.mrf.mxu0
    %v4817 = vadd.f32 %v4774, %v4816
    %v4818 = vpop.f32.mrf.mxu0
    %v4819 = vadd.f32 %v4776, %v4818
    %v4820 = vpop.f32.mrf.mxu0
    %v4821 = vadd.f32 %v4778, %v4820
    %4822 = vdwg.mxu0
    %4823 = vmatprep.subr.bf16.mxu0 %v3435
    %4824 = vmatpush1.bf16.msra.mxu0 %v3434
    %4825 = vmatprep.subr.bf16.mxu0 %v3427
    %4826 = vmatpush1.bf16.msra.mxu0 %v3426
    %4827 = vmatprep.subr.bf16.mxu0 %v3419
    %4828 = vmatpush1.bf16.msra.mxu0 %v3418
    %4829 = vmatprep.subr.bf16.mxu0 %v3411
    %4830 = vmatpush1.bf16.msra.mxu0 %v3410
    %4831 = vmatprep.subr.bf16.mxu0 %v3403
    %4832 = vmatpush1.bf16.msra.mxu0 %v3402
    %4833 = vmatprep.subr.bf16.mxu0 %v3395
    %4834 = vmatpush1.bf16.msra.mxu0 %v3394
    %4835 = vmatprep.subr.bf16.mxu0 %v3387
    %4836 = vmatpush1.bf16.msra.mxu0 %v3386
    %4837 = vmatprep.subr.bf16.mxu0 %v3379
    %4838 = vmatpush1.bf16.msra.mxu0 %v3378
    %4839 = vmatprep.subr.bf16.mxu0 %v3499
    %4840 = vmatpush2.bf16.msra.mxu0 %v3498
    %4841 = vmatprep.subr.bf16.mxu0 %v3491
    %4842 = vmatpush2.bf16.msra.mxu0 %v3490
    %4843 = vmatprep.subr.bf16.mxu0 %v3483
    %4844 = vmatpush2.bf16.msra.mxu0 %v3482
    %4845 = vmatprep.subr.bf16.mxu0 %v3475
    %4846 = vmatpush2.bf16.msra.mxu0 %v3474
    %4847 = vmatprep.subr.bf16.mxu0 %v3467
    %4848 = vmatpush2.bf16.msra.mxu0 %v3466
    %4849 = vmatprep.subr.bf16.mxu0 %v3459
    %4850 = vmatpush2.bf16.msra.mxu0 %v3458
    %4851 = vmatprep.subr.bf16.mxu0 %v3451
    %4852 = vmatpush2.bf16.msra.mxu0 %v3450
    %4853 = vmatprep.subr.bf16.mxu0 %v3443
    %4854 = vmatpush2.bf16.msra.mxu0 %v3442
    %4855 = vmatprep.mubr.bf16.mxu0 %v816
    %4856 = vmatmul.mubr.bf16.gmra.mxu0 %v815
    %v4857 = vpop.f32.mrf.mxu0
    %v4858 = vadd.f32 %v4815, %v4857
    %v4859 = vpop.f32.mrf.mxu0
    %v4860 = vadd.f32 %v4817, %v4859
    %v4861 = vpop.f32.mrf.mxu0
    %v4862 = vadd.f32 %v4819, %v4861
    %v4863 = vpop.f32.mrf.mxu0
    %v4864 = vadd.f32 %v4821, %v4863
    %4865 = vdwg.mxu0
    %4866 = vmatprep.subr.bf16.mxu0 %v3563
    %4867 = vmatpush1.bf16.msra.mxu0 %v3562
    %4868 = vmatprep.subr.bf16.mxu0 %v3555
    %4869 = vmatpush1.bf16.msra.mxu0 %v3554
    %4870 = vmatprep.subr.bf16.mxu0 %v3547
    %4871 = vmatpush1.bf16.msra.mxu0 %v3546
    %4872 = vmatprep.subr.bf16.mxu0 %v3539
    %4873 = vmatpush1.bf16.msra.mxu0 %v3538
    %4874 = vmatprep.subr.bf16.mxu0 %v3531
    %4875 = vmatpush1.bf16.msra.mxu0 %v3530
    %4876 = vmatprep.subr.bf16.mxu0 %v3523
    %4877 = vmatpush1.bf16.msra.mxu0 %v3522
    %4878 = vmatprep.subr.bf16.mxu0 %v3515
    %4879 = vmatpush1.bf16.msra.mxu0 %v3514
    %4880 = vmatprep.subr.bf16.mxu0 %v3507
    %4881 = vmatpush1.bf16.msra.mxu0 %v3506
    %4882 = vmatprep.subr.bf16.mxu0 %v3627
    %4883 = vmatpush2.bf16.msra.mxu0 %v3626
    %4884 = vmatprep.subr.bf16.mxu0 %v3619
    %4885 = vmatpush2.bf16.msra.mxu0 %v3618
    %4886 = vmatprep.subr.bf16.mxu0 %v3611
    %4887 = vmatpush2.bf16.msra.mxu0 %v3610
    %4888 = vmatprep.subr.bf16.mxu0 %v3603
    %4889 = vmatpush2.bf16.msra.mxu0 %v3602
    %4890 = vmatprep.subr.bf16.mxu0 %v3595
    %4891 = vmatpush2.bf16.msra.mxu0 %v3594
    %4892 = vmatprep.subr.bf16.mxu0 %v3587
    %4893 = vmatpush2.bf16.msra.mxu0 %v3586
    %4894 = vmatprep.subr.bf16.mxu0 %v3579
    %4895 = vmatpush2.bf16.msra.mxu0 %v3578
    %4896 = vmatprep.subr.bf16.mxu0 %v3571
    %4897 = vmatpush2.bf16.msra.mxu0 %v3570
    %4898 = vmatprep.mubr.bf16.mxu0 %v818
    %4899 = vmatmul.mubr.bf16.gmra.mxu0 %v817
    %v4900 = vpop.f32.mrf.mxu0
    %v4901 = vadd.f32 %v4858, %v4900
    %v4902 = vpop.f32.mrf.mxu0
    %v4903 = vadd.f32 %v4860, %v4902
    %v4904 = vpop.f32.mrf.mxu0
    %v4905 = vadd.f32 %v4862, %v4904
    %v4906 = vpop.f32.mrf.mxu0
    %v4907 = vadd.f32 %v4864, %v4906
    %4908 = vdwg.mxu0
    %4909 = vmatprep.subr.bf16.mxu0 %v3691
    %4910 = vmatpush1.bf16.msra.mxu0 %v3690
    %4911 = vmatprep.subr.bf16.mxu0 %v3683
    %4912 = vmatpush1.bf16.msra.mxu0 %v3682
    %4913 = vmatprep.subr.bf16.mxu0 %v3675
    %4914 = vmatpush1.bf16.msra.mxu0 %v3674
    %4915 = vmatprep.subr.bf16.mxu0 %v3667
    %4916 = vmatpush1.bf16.msra.mxu0 %v3666
    %4917 = vmatprep.subr.bf16.mxu0 %v3659
    %4918 = vmatpush1.bf16.msra.mxu0 %v3658
    %4919 = vmatprep.subr.bf16.mxu0 %v3651
    %4920 = vmatpush1.bf16.msra.mxu0 %v3650
    %4921 = vmatprep.subr.bf16.mxu0 %v3643
    %4922 = vmatpush1.bf16.msra.mxu0 %v3642
    %4923 = vmatprep.subr.bf16.mxu0 %v3635
    %4924 = vmatpush1.bf16.msra.mxu0 %v3634
    %4925 = vmatprep.subr.bf16.mxu0 0
    %4926 = vmatpush2.bf16.msra.mxu0 0
    %4927 = vmatprep.subr.bf16.mxu0 0
    %4928 = vmatpush2.bf16.msra.mxu0 0
    %4929 = vmatprep.subr.bf16.mxu0 0
    %4930 = vmatpush2.bf16.msra.mxu0 0
    %4931 = vmatprep.subr.bf16.mxu0 0
    %4932 = vmatpush2.bf16.msra.mxu0 0
    %4933 = vmatprep.subr.bf16.mxu0 0
    %4934 = vmatpush2.bf16.msra.mxu0 0
    %4935 = vmatprep.subr.bf16.mxu0 0
    %4936 = vmatpush2.bf16.msra.mxu0 0
    %4937 = vmatprep.subr.bf16.mxu0 %v3707
    %4938 = vmatpush2.bf16.msra.mxu0 %v3706
    %4939 = vmatprep.subr.bf16.mxu0 %v3699
    %4940 = vmatpush2.bf16.msra.mxu0 %v3698
    %4941 = vmatprep.mubr.bf16.mxu0 %v4434
    %4942 = vmatmul.mubr.bf16.gmra.mxu0 %v819
    %v4943 = vpop.f32.mrf.mxu0
    %v4944 = vadd.f32 %v4901, %v4943
    %v4945 = vpop.f32.mrf.mxu0
    %v4946 = vadd.f32 %v4903, %v4945
    %v4947 = vpop.f32.mrf.mxu0
    %v4948 = vadd.f32 %v4905, %v4947
    %v4949 = vpop.f32.mrf.mxu0
    %v4950 = vadd.f32 %v4907, %v4949
    %4951 = vdwg.mxu0
    %4952 = vmatprep.subr.bf16.mxu0 %v3053
    %4953 = vmatpush1.bf16.msra.mxu0 %v3052
    %4954 = vmatprep.subr.bf16.mxu0 %v3045
    %4955 = vmatpush1.bf16.msra.mxu0 %v3044
    %4956 = vmatprep.subr.bf16.mxu0 %v3037
    %4957 = vmatpush1.bf16.msra.mxu0 %v3036
    %4958 = vmatprep.subr.bf16.mxu0 %v3029
    %4959 = vmatpush1.bf16.msra.mxu0 %v3028
    %4960 = vmatprep.subr.bf16.mxu0 %v3021
    %4961 = vmatpush1.bf16.msra.mxu0 %v3020
    %4962 = vmatprep.subr.bf16.mxu0 %v3013
    %4963 = vmatpush1.bf16.msra.mxu0 %v3012
    %4964 = vmatprep.subr.bf16.mxu0 %v3005
    %4965 = vmatpush1.bf16.msra.mxu0 %v3004
    %4966 = vmatprep.subr.bf16.mxu0 %v2997
    %4967 = vmatpush1.bf16.msra.mxu0 %v2996
    %4968 = vmatprep.subr.bf16.mxu0 %v3117
    %4969 = vmatpush2.bf16.msra.mxu0 %v3116
    %4970 = vmatprep.subr.bf16.mxu0 %v3109
    %4971 = vmatpush2.bf16.msra.mxu0 %v3108
    %4972 = vmatprep.subr.bf16.mxu0 %v3101
    %4973 = vmatpush2.bf16.msra.mxu0 %v3100
    %4974 = vmatprep.subr.bf16.mxu0 %v3093
    %4975 = vmatpush2.bf16.msra.mxu0 %v3092
    %4976 = vmatprep.subr.bf16.mxu0 %v3085
    %4977 = vmatpush2.bf16.msra.mxu0 %v3084
    %4978 = vmatprep.subr.bf16.mxu0 %v3077
    %4979 = vmatpush2.bf16.msra.mxu0 %v3076
    %4980 = vmatprep.subr.bf16.mxu0 %v3069
    %4981 = vmatpush2.bf16.msra.mxu0 %v3068
    %4982 = vmatprep.subr.bf16.mxu0 %v3061
    %4983 = vmatpush2.bf16.msra.mxu0 %v3060
    %4984 = vmatprep.mubr.bf16.mxu0 %v810
    %4985 = vmatmul.mubr.bf16.gmra.mxu0 %v809
    %v4986 = vpop.f32.mrf.mxu0
    %v4987 = vadd.f32 0.0, %v4986
    %v4988 = vpop.f32.mrf.mxu0
    %v4989 = vadd.f32 0.0, %v4988
    %v4990 = vpop.f32.mrf.mxu0
    %v4991 = vadd.f32 0.0, %v4990
    %v4992 = vpop.f32.mrf.mxu0
    %v4993 = vadd.f32 0.0, %v4992
    %4994 = vdwg.mxu0
    %4995 = vmatprep.subr.bf16.mxu0 %v3181
    %4996 = vmatpush1.bf16.msra.mxu0 %v3180
    %4997 = vmatprep.subr.bf16.mxu0 %v3173
    %4998 = vmatpush1.bf16.msra.mxu0 %v3172
    %4999 = vmatprep.subr.bf16.mxu0 %v3165
    %5000 = vmatpush1.bf16.msra.mxu0 %v3164
    %5001 = vmatprep.subr.bf16.mxu0 %v3157
    %5002 = vmatpush1.bf16.msra.mxu0 %v3156
    %5003 = vmatprep.subr.bf16.mxu0 %v3149
    %5004 = vmatpush1.bf16.msra.mxu0 %v3148
    %5005 = vmatprep.subr.bf16.mxu0 %v3141
    %5006 = vmatpush1.bf16.msra.mxu0 %v3140
    %5007 = vmatprep.subr.bf16.mxu0 %v3133
    %5008 = vmatpush1.bf16.msra.mxu0 %v3132
    %5009 = vmatprep.subr.bf16.mxu0 %v3125
    %5010 = vmatpush1.bf16.msra.mxu0 %v3124
    %5011 = vmatprep.subr.bf16.mxu0 %v3245
    %5012 = vmatpush2.bf16.msra.mxu0 %v3244
    %5013 = vmatprep.subr.bf16.mxu0 %v3237
    %5014 = vmatpush2.bf16.msra.mxu0 %v3236
    %5015 = vmatprep.subr.bf16.mxu0 %v3229
    %5016 = vmatpush2.bf16.msra.mxu0 %v3228
    %5017 = vmatprep.subr.bf16.mxu0 %v3221
    %5018 = vmatpush2.bf16.msra.mxu0 %v3220
    %5019 = vmatprep.subr.bf16.mxu0 %v3213
    %5020 = vmatpush2.bf16.msra.mxu0 %v3212
    %5021 = vmatprep.subr.bf16.mxu0 %v3205
    %5022 = vmatpush2.bf16.msra.mxu0 %v3204
    %5023 = vmatprep.subr.bf16.mxu0 %v3197
    %5024 = vmatpush2.bf16.msra.mxu0 %v3196
    %5025 = vmatprep.subr.bf16.mxu0 %v3189
    %5026 = vmatpush2.bf16.msra.mxu0 %v3188
    %5027 = vmatprep.mubr.bf16.mxu0 %v812
    %5028 = vmatmul.mubr.bf16.gmra.mxu0 %v811
    %v5029 = vpop.f32.mrf.mxu0
    %v5030 = vadd.f32 %v4987, %v5029
    %v5031 = vpop.f32.mrf.mxu0
    %v5032 = vadd.f32 %v4989, %v5031
    %v5033 = vpop.f32.mrf.mxu0
    %v5034 = vadd.f32 %v4991, %v5033
    %v5035 = vpop.f32.mrf.mxu0
    %v5036 = vadd.f32 %v4993, %v5035
    %5037 = vdwg.mxu0
    %5038 = vmatprep.subr.bf16.mxu0 %v3309
    %5039 = vmatpush1.bf16.msra.mxu0 %v3308
    %5040 = vmatprep.subr.bf16.mxu0 %v3301
    %5041 = vmatpush1.bf16.msra.mxu0 %v3300
    %5042 = vmatprep.subr.bf16.mxu0 %v3293
    %5043 = vmatpush1.bf16.msra.mxu0 %v3292
    %5044 = vmatprep.subr.bf16.mxu0 %v3285
    %5045 = vmatpush1.bf16.msra.mxu0 %v3284
    %5046 = vmatprep.subr.bf16.mxu0 %v3277
    %5047 = vmatpush1.bf16.msra.mxu0 %v3276
    %5048 = vmatprep.subr.bf16.mxu0 %v3269
    %5049 = vmatpush1.bf16.msra.mxu0 %v3268
    %5050 = vmatprep.subr.bf16.mxu0 %v3261
    %5051 = vmatpush1.bf16.msra.mxu0 %v3260
    %5052 = vmatprep.subr.bf16.mxu0 %v3253
    %5053 = vmatpush1.bf16.msra.mxu0 %v3252
    %5054 = vmatprep.subr.bf16.mxu0 %v3373
    %5055 = vmatpush2.bf16.msra.mxu0 %v3372
    %5056 = vmatprep.subr.bf16.mxu0 %v3365
    %5057 = vmatpush2.bf16.msra.mxu0 %v3364
    %5058 = vmatprep.subr.bf16.mxu0 %v3357
    %5059 = vmatpush2.bf16.msra.mxu0 %v3356
    %5060 = vmatprep.subr.bf16.mxu0 %v3349
    %5061 = vmatpush2.bf16.msra.mxu0 %v3348
    %5062 = vmatprep.subr.bf16.mxu0 %v3341
    %5063 = vmatpush2.bf16.msra.mxu0 %v3340
    %5064 = vmatprep.subr.bf16.mxu0 %v3333
    %5065 = vmatpush2.bf16.msra.mxu0 %v3332
    %5066 = vmatprep.subr.bf16.mxu0 %v3325
    %5067 = vmatpush2.bf16.msra.mxu0 %v3324
    %5068 = vmatprep.subr.bf16.mxu0 %v3317
    %5069 = vmatpush2.bf16.msra.mxu0 %v3316
    %5070 = vmatprep.mubr.bf16.mxu0 %v814
    %5071 = vmatmul.mubr.bf16.gmra.mxu0 %v813
    %v5072 = vpop.f32.mrf.mxu0
    %v5073 = vadd.f32 %v5030, %v5072
    %v5074 = vpop.f32.mrf.mxu0
    %v5075 = vadd.f32 %v5032, %v5074
    %v5076 = vpop.f32.mrf.mxu0
    %v5077 = vadd.f32 %v5034, %v5076
    %v5078 = vpop.f32.mrf.mxu0
    %v5079 = vadd.f32 %v5036, %v5078
    %5080 = vdwg.mxu0
    %5081 = vmatprep.subr.bf16.mxu0 %v3437
    %5082 = vmatpush1.bf16.msra.mxu0 %v3436
    %5083 = vmatprep.subr.bf16.mxu0 %v3429
    %5084 = vmatpush1.bf16.msra.mxu0 %v3428
    %5085 = vmatprep.subr.bf16.mxu0 %v3421
    %5086 = vmatpush1.bf16.msra.mxu0 %v3420
    %5087 = vmatprep.subr.bf16.mxu0 %v3413
    %5088 = vmatpush1.bf16.msra.mxu0 %v3412
    %5089 = vmatprep.subr.bf16.mxu0 %v3405
    %5090 = vmatpush1.bf16.msra.mxu0 %v3404
    %5091 = vmatprep.subr.bf16.mxu0 %v3397
    %5092 = vmatpush1.bf16.msra.mxu0 %v3396
    %5093 = vmatprep.subr.bf16.mxu0 %v3389
    %5094 = vmatpush1.bf16.msra.mxu0 %v3388
    %5095 = vmatprep.subr.bf16.mxu0 %v3381
    %5096 = vmatpush1.bf16.msra.mxu0 %v3380
    %5097 = vmatprep.subr.bf16.mxu0 %v3501
    %5098 = vmatpush2.bf16.msra.mxu0 %v3500
    %5099 = vmatprep.subr.bf16.mxu0 %v3493
    %5100 = vmatpush2.bf16.msra.mxu0 %v3492
    %5101 = vmatprep.subr.bf16.mxu0 %v3485
    %5102 = vmatpush2.bf16.msra.mxu0 %v3484
    %5103 = vmatprep.subr.bf16.mxu0 %v3477
    %5104 = vmatpush2.bf16.msra.mxu0 %v3476
    %5105 = vmatprep.subr.bf16.mxu0 %v3469
    %5106 = vmatpush2.bf16.msra.mxu0 %v3468
    %5107 = vmatprep.subr.bf16.mxu0 %v3461
    %5108 = vmatpush2.bf16.msra.mxu0 %v3460
    %5109 = vmatprep.subr.bf16.mxu0 %v3453
    %5110 = vmatpush2.bf16.msra.mxu0 %v3452
    %5111 = vmatprep.subr.bf16.mxu0 %v3445
    %5112 = vmatpush2.bf16.msra.mxu0 %v3444
    %5113 = vmatprep.mubr.bf16.mxu0 %v816
    %5114 = vmatmul.mubr.bf16.gmra.mxu0 %v815
    %v5115 = vpop.f32.mrf.mxu0
    %v5116 = vadd.f32 %v5073, %v5115
    %v5117 = vpop.f32.mrf.mxu0
    %v5118 = vadd.f32 %v5075, %v5117
    %v5119 = vpop.f32.mrf.mxu0
    %v5120 = vadd.f32 %v5077, %v5119
    %v5121 = vpop.f32.mrf.mxu0
    %v5122 = vadd.f32 %v5079, %v5121
    %5123 = vdwg.mxu0
    %5124 = vmatprep.subr.bf16.mxu0 %v3565
    %5125 = vmatpush1.bf16.msra.mxu0 %v3564
    %5126 = vmatprep.subr.bf16.mxu0 %v3557
    %5127 = vmatpush1.bf16.msra.mxu0 %v3556
    %5128 = vmatprep.subr.bf16.mxu0 %v3549
    %5129 = vmatpush1.bf16.msra.mxu0 %v3548
    %5130 = vmatprep.subr.bf16.mxu0 %v3541
    %5131 = vmatpush1.bf16.msra.mxu0 %v3540
    %5132 = vmatprep.subr.bf16.mxu0 %v3533
    %5133 = vmatpush1.bf16.msra.mxu0 %v3532
    %5134 = vmatprep.subr.bf16.mxu0 %v3525
    %5135 = vmatpush1.bf16.msra.mxu0 %v3524
    %5136 = vmatprep.subr.bf16.mxu0 %v3517
    %5137 = vmatpush1.bf16.msra.mxu0 %v3516
    %5138 = vmatprep.subr.bf16.mxu0 %v3509
    %5139 = vmatpush1.bf16.msra.mxu0 %v3508
    %5140 = vmatprep.subr.bf16.mxu0 %v3629
    %5141 = vmatpush2.bf16.msra.mxu0 %v3628
    %5142 = vmatprep.subr.bf16.mxu0 %v3621
    %5143 = vmatpush2.bf16.msra.mxu0 %v3620
    %5144 = vmatprep.subr.bf16.mxu0 %v3613
    %5145 = vmatpush2.bf16.msra.mxu0 %v3612
    %5146 = vmatprep.subr.bf16.mxu0 %v3605
    %5147 = vmatpush2.bf16.msra.mxu0 %v3604
    %5148 = vmatprep.subr.bf16.mxu0 %v3597
    %5149 = vmatpush2.bf16.msra.mxu0 %v3596
    %5150 = vmatprep.subr.bf16.mxu0 %v3589
    %5151 = vmatpush2.bf16.msra.mxu0 %v3588
    %5152 = vmatprep.subr.bf16.mxu0 %v3581
    %5153 = vmatpush2.bf16.msra.mxu0 %v3580
    %5154 = vmatprep.subr.bf16.mxu0 %v3573
    %5155 = vmatpush2.bf16.msra.mxu0 %v3572
    %5156 = vmatprep.mubr.bf16.mxu0 %v818
    %5157 = vmatmul.mubr.bf16.gmra.mxu0 %v817
    %v5158 = vpop.f32.mrf.mxu0
    %v5159 = vadd.f32 %v5116, %v5158
    %v5160 = vpop.f32.mrf.mxu0
    %v5161 = vadd.f32 %v5118, %v5160
    %v5162 = vpop.f32.mrf.mxu0
    %v5163 = vadd.f32 %v5120, %v5162
    %v5164 = vpop.f32.mrf.mxu0
    %v5165 = vadd.f32 %v5122, %v5164
    %5166 = vdwg.mxu0
    %5167 = vmatprep.subr.bf16.mxu0 %v3693
    %5168 = vmatpush1.bf16.msra.mxu0 %v3692
    %5169 = vmatprep.subr.bf16.mxu0 %v3685
    %5170 = vmatpush1.bf16.msra.mxu0 %v3684
    %5171 = vmatprep.subr.bf16.mxu0 %v3677
    %5172 = vmatpush1.bf16.msra.mxu0 %v3676
    %5173 = vmatprep.subr.bf16.mxu0 %v3669
    %5174 = vmatpush1.bf16.msra.mxu0 %v3668
    %5175 = vmatprep.subr.bf16.mxu0 %v3661
    %5176 = vmatpush1.bf16.msra.mxu0 %v3660
    %5177 = vmatprep.subr.bf16.mxu0 %v3653
    %5178 = vmatpush1.bf16.msra.mxu0 %v3652
    %5179 = vmatprep.subr.bf16.mxu0 %v3645
    %5180 = vmatpush1.bf16.msra.mxu0 %v3644
    %5181 = vmatprep.subr.bf16.mxu0 %v3637
    %5182 = vmatpush1.bf16.msra.mxu0 %v3636
    %5183 = vmatprep.subr.bf16.mxu0 0
    %5184 = vmatpush2.bf16.msra.mxu0 0
    %5185 = vmatprep.subr.bf16.mxu0 0
    %5186 = vmatpush2.bf16.msra.mxu0 0
    %5187 = vmatprep.subr.bf16.mxu0 0
    %5188 = vmatpush2.bf16.msra.mxu0 0
    %5189 = vmatprep.subr.bf16.mxu0 0
    %5190 = vmatpush2.bf16.msra.mxu0 0
    %5191 = vmatprep.subr.bf16.mxu0 0
    %5192 = vmatpush2.bf16.msra.mxu0 0
    %5193 = vmatprep.subr.bf16.mxu0 0
    %5194 = vmatpush2.bf16.msra.mxu0 0
    %5195 = vmatprep.subr.bf16.mxu0 %v3709
    %5196 = vmatpush2.bf16.msra.mxu0 %v3708
    %5197 = vmatprep.subr.bf16.mxu0 %v3701
    %5198 = vmatpush2.bf16.msra.mxu0 %v3700
    %5199 = vmatprep.mubr.bf16.mxu0 %v4434
    %5200 = vmatmul.mubr.bf16.gmra.mxu0 %v819
    %v5201 = vpop.f32.mrf.mxu0
    %v5202 = vadd.f32 %v5159, %v5201
    %v5203 = vpop.f32.mrf.mxu0
    %v5204 = vadd.f32 %v5161, %v5203
    %v5205 = vpop.f32.mrf.mxu0
    %v5206 = vadd.f32 %v5163, %v5205
    %v5207 = vpop.f32.mrf.mxu0
    %v5208 = vadd.f32 %v5165, %v5207
    %5209 = vdwg.mxu0
    %5210 = vmatprep.subr.bf16.mxu0 %v3055
    %5211 = vmatpush1.bf16.msra.mxu0 %v3054
    %5212 = vmatprep.subr.bf16.mxu0 %v3047
    %5213 = vmatpush1.bf16.msra.mxu0 %v3046
    %5214 = vmatprep.subr.bf16.mxu0 %v3039
    %5215 = vmatpush1.bf16.msra.mxu0 %v3038
    %5216 = vmatprep.subr.bf16.mxu0 %v3031
    %5217 = vmatpush1.bf16.msra.mxu0 %v3030
    %5218 = vmatprep.subr.bf16.mxu0 %v3023
    %5219 = vmatpush1.bf16.msra.mxu0 %v3022
    %5220 = vmatprep.subr.bf16.mxu0 %v3015
    %5221 = vmatpush1.bf16.msra.mxu0 %v3014
    %5222 = vmatprep.subr.bf16.mxu0 %v3007
    %5223 = vmatpush1.bf16.msra.mxu0 %v3006
    %5224 = vmatprep.subr.bf16.mxu0 %v2999
    %5225 = vmatpush1.bf16.msra.mxu0 %v2998
    %5226 = vmatprep.subr.bf16.mxu0 %v3119
    %5227 = vmatpush2.bf16.msra.mxu0 %v3118
    %5228 = vmatprep.subr.bf16.mxu0 %v3111
    %5229 = vmatpush2.bf16.msra.mxu0 %v3110
    %5230 = vmatprep.subr.bf16.mxu0 %v3103
    %5231 = vmatpush2.bf16.msra.mxu0 %v3102
    %5232 = vmatprep.subr.bf16.mxu0 %v3095
    %5233 = vmatpush2.bf16.msra.mxu0 %v3094
    %5234 = vmatprep.subr.bf16.mxu0 %v3087
    %5235 = vmatpush2.bf16.msra.mxu0 %v3086
    %5236 = vmatprep.subr.bf16.mxu0 %v3079
    %5237 = vmatpush2.bf16.msra.mxu0 %v3078
    %5238 = vmatprep.subr.bf16.mxu0 %v3071
    %5239 = vmatpush2.bf16.msra.mxu0 %v3070
    %5240 = vmatprep.subr.bf16.mxu0 %v3063
    %5241 = vmatpush2.bf16.msra.mxu0 %v3062
    %5242 = vmatprep.mubr.bf16.mxu0 %v810
    %5243 = vmatmul.mubr.bf16.gmra.mxu0 %v809
    %v5244 = vpop.f32.mrf.mxu0
    %v5245 = vadd.f32 0.0, %v5244
    %v5246 = vpop.f32.mrf.mxu0
    %v5247 = vadd.f32 0.0, %v5246
    %v5248 = vpop.f32.mrf.mxu0
    %v5249 = vadd.f32 0.0, %v5248
    %v5250 = vpop.f32.mrf.mxu0
    %v5251 = vadd.f32 0.0, %v5250
    %5252 = vdwg.mxu0
    %5253 = vmatprep.subr.bf16.mxu0 %v3183
    %5254 = vmatpush1.bf16.msra.mxu0 %v3182
    %5255 = vmatprep.subr.bf16.mxu0 %v3175
    %5256 = vmatpush1.bf16.msra.mxu0 %v3174
    %5257 = vmatprep.subr.bf16.mxu0 %v3167
    %5258 = vmatpush1.bf16.msra.mxu0 %v3166
    %5259 = vmatprep.subr.bf16.mxu0 %v3159
    %5260 = vmatpush1.bf16.msra.mxu0 %v3158
    %5261 = vmatprep.subr.bf16.mxu0 %v3151
    %5262 = vmatpush1.bf16.msra.mxu0 %v3150
    %5263 = vmatprep.subr.bf16.mxu0 %v3143
    %5264 = vmatpush1.bf16.msra.mxu0 %v3142
    %5265 = vmatprep.subr.bf16.mxu0 %v3135
    %5266 = vmatpush1.bf16.msra.mxu0 %v3134
    %5267 = vmatprep.subr.bf16.mxu0 %v3127
    %5268 = vmatpush1.bf16.msra.mxu0 %v3126
    %5269 = vmatprep.subr.bf16.mxu0 %v3247
    %5270 = vmatpush2.bf16.msra.mxu0 %v3246
    %5271 = vmatprep.subr.bf16.mxu0 %v3239
    %5272 = vmatpush2.bf16.msra.mxu0 %v3238
    %5273 = vmatprep.subr.bf16.mxu0 %v3231
    %5274 = vmatpush2.bf16.msra.mxu0 %v3230
    %5275 = vmatprep.subr.bf16.mxu0 %v3223
    %5276 = vmatpush2.bf16.msra.mxu0 %v3222
    %5277 = vmatprep.subr.bf16.mxu0 %v3215
    %5278 = vmatpush2.bf16.msra.mxu0 %v3214
    %5279 = vmatprep.subr.bf16.mxu0 %v3207
    %5280 = vmatpush2.bf16.msra.mxu0 %v3206
    %5281 = vmatprep.subr.bf16.mxu0 %v3199
    %5282 = vmatpush2.bf16.msra.mxu0 %v3198
    %5283 = vmatprep.subr.bf16.mxu0 %v3191
    %5284 = vmatpush2.bf16.msra.mxu0 %v3190
    %5285 = vmatprep.mubr.bf16.mxu0 %v812
    %5286 = vmatmul.mubr.bf16.gmra.mxu0 %v811
    %v5287 = vpop.f32.mrf.mxu0
    %v5288 = vadd.f32 %v5245, %v5287
    %v5289 = vpop.f32.mrf.mxu0
    %v5290 = vadd.f32 %v5247, %v5289
    %v5291 = vpop.f32.mrf.mxu0
    %v5292 = vadd.f32 %v5249, %v5291
    %v5293 = vpop.f32.mrf.mxu0
    %v5294 = vadd.f32 %v5251, %v5293
    %5295 = vdwg.mxu0
    %5296 = vmatprep.subr.bf16.mxu0 %v3311
    %5297 = vmatpush1.bf16.msra.mxu0 %v3310
    %5298 = vmatprep.subr.bf16.mxu0 %v3303
    %5299 = vmatpush1.bf16.msra.mxu0 %v3302
    %5300 = vmatprep.subr.bf16.mxu0 %v3295
    %5301 = vmatpush1.bf16.msra.mxu0 %v3294
    %5302 = vmatprep.subr.bf16.mxu0 %v3287
    %5303 = vmatpush1.bf16.msra.mxu0 %v3286
    %5304 = vmatprep.subr.bf16.mxu0 %v3279
    %5305 = vmatpush1.bf16.msra.mxu0 %v3278
    %5306 = vmatprep.subr.bf16.mxu0 %v3271
    %5307 = vmatpush1.bf16.msra.mxu0 %v3270
    %5308 = vmatprep.subr.bf16.mxu0 %v3263
    %5309 = vmatpush1.bf16.msra.mxu0 %v3262
    %5310 = vmatprep.subr.bf16.mxu0 %v3255
    %5311 = vmatpush1.bf16.msra.mxu0 %v3254
    %5312 = vmatprep.subr.bf16.mxu0 %v3375
    %5313 = vmatpush2.bf16.msra.mxu0 %v3374
    %5314 = vmatprep.subr.bf16.mxu0 %v3367
    %5315 = vmatpush2.bf16.msra.mxu0 %v3366
    %5316 = vmatprep.subr.bf16.mxu0 %v3359
    %5317 = vmatpush2.bf16.msra.mxu0 %v3358
    %5318 = vmatprep.subr.bf16.mxu0 %v3351
    %5319 = vmatpush2.bf16.msra.mxu0 %v3350
    %5320 = vmatprep.subr.bf16.mxu0 %v3343
    %5321 = vmatpush2.bf16.msra.mxu0 %v3342
    %5322 = vmatprep.subr.bf16.mxu0 %v3335
    %5323 = vmatpush2.bf16.msra.mxu0 %v3334
    %5324 = vmatprep.subr.bf16.mxu0 %v3327
    %5325 = vmatpush2.bf16.msra.mxu0 %v3326
    %5326 = vmatprep.subr.bf16.mxu0 %v3319
    %5327 = vmatpush2.bf16.msra.mxu0 %v3318
    %5328 = vmatprep.mubr.bf16.mxu0 %v814
    %5329 = vmatmul.mubr.bf16.gmra.mxu0 %v813
    %v5330 = vpop.f32.mrf.mxu0
    %v5331 = vadd.f32 %v5288, %v5330
    %v5332 = vpop.f32.mrf.mxu0
    %v5333 = vadd.f32 %v5290, %v5332
    %v5334 = vpop.f32.mrf.mxu0
    %v5335 = vadd.f32 %v5292, %v5334
    %v5336 = vpop.f32.mrf.mxu0
    %v5337 = vadd.f32 %v5294, %v5336
    %5338 = vdwg.mxu0
    %5339 = vmatprep.subr.bf16.mxu0 %v3439
    %5340 = vmatpush1.bf16.msra.mxu0 %v3438
    %5341 = vmatprep.subr.bf16.mxu0 %v3431
    %5342 = vmatpush1.bf16.msra.mxu0 %v3430
    %5343 = vmatprep.subr.bf16.mxu0 %v3423
    %5344 = vmatpush1.bf16.msra.mxu0 %v3422
    %5345 = vmatprep.subr.bf16.mxu0 %v3415
    %5346 = vmatpush1.bf16.msra.mxu0 %v3414
    %5347 = vmatprep.subr.bf16.mxu0 %v3407
    %5348 = vmatpush1.bf16.msra.mxu0 %v3406
    %5349 = vmatprep.subr.bf16.mxu0 %v3399
    %5350 = vmatpush1.bf16.msra.mxu0 %v3398
    %5351 = vmatprep.subr.bf16.mxu0 %v3391
    %5352 = vmatpush1.bf16.msra.mxu0 %v3390
    %5353 = vmatprep.subr.bf16.mxu0 %v3383
    %5354 = vmatpush1.bf16.msra.mxu0 %v3382
    %5355 = vmatprep.subr.bf16.mxu0 %v3503
    %5356 = vmatpush2.bf16.msra.mxu0 %v3502
    %5357 = vmatprep.subr.bf16.mxu0 %v3495
    %5358 = vmatpush2.bf16.msra.mxu0 %v3494
    %5359 = vmatprep.subr.bf16.mxu0 %v3487
    %5360 = vmatpush2.bf16.msra.mxu0 %v3486
    %5361 = vmatprep.subr.bf16.mxu0 %v3479
    %5362 = vmatpush2.bf16.msra.mxu0 %v3478
    %5363 = vmatprep.subr.bf16.mxu0 %v3471
    %5364 = vmatpush2.bf16.msra.mxu0 %v3470
    %5365 = vmatprep.subr.bf16.mxu0 %v3463
    %5366 = vmatpush2.bf16.msra.mxu0 %v3462
    %5367 = vmatprep.subr.bf16.mxu0 %v3455
    %5368 = vmatpush2.bf16.msra.mxu0 %v3454
    %5369 = vmatprep.subr.bf16.mxu0 %v3447
    %5370 = vmatpush2.bf16.msra.mxu0 %v3446
    %5371 = vmatprep.mubr.bf16.mxu0 %v816
    %5372 = vmatmul.mubr.bf16.gmra.mxu0 %v815
    %v5373 = vpop.f32.mrf.mxu0
    %v5374 = vadd.f32 %v5331, %v5373
    %v5375 = vpop.f32.mrf.mxu0
    %v5376 = vadd.f32 %v5333, %v5375
    %v5377 = vpop.f32.mrf.mxu0
    %v5378 = vadd.f32 %v5335, %v5377
    %v5379 = vpop.f32.mrf.mxu0
    %v5380 = vadd.f32 %v5337, %v5379
    %5381 = vdwg.mxu0
    %5382 = vmatprep.subr.bf16.mxu0 %v3567
    %5383 = vmatpush1.bf16.msra.mxu0 %v3566
    %5384 = vmatprep.subr.bf16.mxu0 %v3559
    %5385 = vmatpush1.bf16.msra.mxu0 %v3558
    %5386 = vmatprep.subr.bf16.mxu0 %v3551
    %5387 = vmatpush1.bf16.msra.mxu0 %v3550
    %5388 = vmatprep.subr.bf16.mxu0 %v3543
    %5389 = vmatpush1.bf16.msra.mxu0 %v3542
    %5390 = vmatprep.subr.bf16.mxu0 %v3535
    %5391 = vmatpush1.bf16.msra.mxu0 %v3534
    %5392 = vmatprep.subr.bf16.mxu0 %v3527
    %5393 = vmatpush1.bf16.msra.mxu0 %v3526
    %5394 = vmatprep.subr.bf16.mxu0 %v3519
    %5395 = vmatpush1.bf16.msra.mxu0 %v3518
    %5396 = vmatprep.subr.bf16.mxu0 %v3511
    %5397 = vmatpush1.bf16.msra.mxu0 %v3510
    %5398 = vmatprep.subr.bf16.mxu0 %v3631
    %5399 = vmatpush2.bf16.msra.mxu0 %v3630
    %5400 = vmatprep.subr.bf16.mxu0 %v3623
    %5401 = vmatpush2.bf16.msra.mxu0 %v3622
    %5402 = vmatprep.subr.bf16.mxu0 %v3615
    %5403 = vmatpush2.bf16.msra.mxu0 %v3614
    %5404 = vmatprep.subr.bf16.mxu0 %v3607
    %5405 = vmatpush2.bf16.msra.mxu0 %v3606
    %5406 = vmatprep.subr.bf16.mxu0 %v3599
    %5407 = vmatpush2.bf16.msra.mxu0 %v3598
    %5408 = vmatprep.subr.bf16.mxu0 %v3591
    %5409 = vmatpush2.bf16.msra.mxu0 %v3590
    %5410 = vmatprep.subr.bf16.mxu0 %v3583
    %5411 = vmatpush2.bf16.msra.mxu0 %v3582
    %5412 = vmatprep.subr.bf16.mxu0 %v3575
    %5413 = vmatpush2.bf16.msra.mxu0 %v3574
    %5414 = vmatprep.mubr.bf16.mxu0 %v818
    %5415 = vmatmul.mubr.bf16.gmra.mxu0 %v817
    %v5416 = vpop.f32.mrf.mxu0
    %v5417 = vadd.f32 %v5374, %v5416
    %v5418 = vpop.f32.mrf.mxu0
    %v5419 = vadd.f32 %v5376, %v5418
    %v5420 = vpop.f32.mrf.mxu0
    %v5421 = vadd.f32 %v5378, %v5420
    %v5422 = vpop.f32.mrf.mxu0
    %v5423 = vadd.f32 %v5380, %v5422
    %5424 = vdwg.mxu0
    %5425 = vmatprep.subr.bf16.mxu0 %v3695
    %5426 = vmatpush1.bf16.msra.mxu0 %v3694
    %5427 = vmatprep.subr.bf16.mxu0 %v3687
    %5428 = vmatpush1.bf16.msra.mxu0 %v3686
    %5429 = vmatprep.subr.bf16.mxu0 %v3679
    %5430 = vmatpush1.bf16.msra.mxu0 %v3678
    %5431 = vmatprep.subr.bf16.mxu0 %v3671
    %5432 = vmatpush1.bf16.msra.mxu0 %v3670
    %5433 = vmatprep.subr.bf16.mxu0 %v3663
    %5434 = vmatpush1.bf16.msra.mxu0 %v3662
    %5435 = vmatprep.subr.bf16.mxu0 %v3655
    %5436 = vmatpush1.bf16.msra.mxu0 %v3654
    %5437 = vmatprep.subr.bf16.mxu0 %v3647
    %5438 = vmatpush1.bf16.msra.mxu0 %v3646
    %5439 = vmatprep.subr.bf16.mxu0 %v3639
    %5440 = vmatpush1.bf16.msra.mxu0 %v3638
    %5441 = vmatprep.subr.bf16.mxu0 0
    %5442 = vmatpush2.bf16.msra.mxu0 0
    %5443 = vmatprep.subr.bf16.mxu0 0
    %5444 = vmatpush2.bf16.msra.mxu0 0
    %5445 = vmatprep.subr.bf16.mxu0 0
    %5446 = vmatpush2.bf16.msra.mxu0 0
    %5447 = vmatprep.subr.bf16.mxu0 0
    %5448 = vmatpush2.bf16.msra.mxu0 0
    %5449 = vmatprep.subr.bf16.mxu0 0
    %5450 = vmatpush2.bf16.msra.mxu0 0
    %5451 = vmatprep.subr.bf16.mxu0 0
    %5452 = vmatpush2.bf16.msra.mxu0 0
    %5453 = vmatprep.subr.bf16.mxu0 %v3711
    %5454 = vmatpush2.bf16.msra.mxu0 %v3710
    %5455 = vmatprep.subr.bf16.mxu0 %v3703
    %5456 = vmatpush2.bf16.msra.mxu0 %v3702
    %5457 = vmatprep.mubr.bf16.mxu0 %v4434
    %5458 = vmatmul.mubr.bf16.gmra.mxu0 %v819
    %v5459 = vpop.f32.mrf.mxu0
    %v5460 = vadd.f32 %v5417, %v5459
    %v5461 = vpop.f32.mrf.mxu0
    %v5462 = vadd.f32 %v5419, %v5461
    %v5463 = vpop.f32.mrf.mxu0
    %v5464 = vadd.f32 %v5421, %v5463
    %v5465 = vpop.f32.mrf.mxu0
    %v5466 = vadd.f32 %v5423, %v5465
    %5467 = vdwg.mxu0
    %v5468 = vmax.f32 %v4686, %v4944
    %v5469 = vmax.f32 %v4688, %v4946
    %v5470 = vmax.f32 %v4690, %v4948
    %v5471 = vmax.f32 %v4692, %v4950
    %v5472 = vmax.f32 %v5202, %v5460
    %v5473 = vmax.f32 %v5204, %v5462
    %v5474 = vmax.f32 %v5206, %v5464
    %v5475 = vmax.f32 %v5208, %v5466
    %v5476 = vmax.f32 %v5468, %v5472
    %v5477 = vmax.f32 %v5469, %v5473
    %v5478 = vmax.f32 %v5470, %v5474
    %v5479 = vmax.f32 %v5471, %v5475
    %v5480 = vld [vmem:[#allocation4] sm:$0x3]
    %v5482 = vlaneseq
    %v5483 = vshrl.u32 %v5482, 7
    %v5484 = vsub.s32 0, %v5483
    %v5485 = vrot.slane %v5480, %v5484
    %v5486 = vlaneseq
    %v5487 = vshrl.u32 %v5486, 7
    %v5488 = vsub.s32 1, %v5487
    %v5489 = vrot.slane %v5480, %v5488
    %v5492 = vadd.f32 %v5476, %v5485
    %v5493 = vadd.f32 %v5477, %v5489
    %v5494 = vadd.f32 %v5478, %v5485
    %v5495 = vadd.f32 %v5479, %v5489
    %v5496 = vmax.f32 %v5492, 0.0
    %v5497 = vmax.f32 %v5493, 0.0
    %v5498 = vmax.f32 %v5494, 0.0
    %v5499 = vmax.f32 %v5495, 0.0
    %v5500 = vpack.c.bf16 %v5498, %v5496
    %v5501 = vpack.c.bf16 %v5499, %v5497
    %v5504 = vunpack.c.l.b16 %v5500
    %v5505 = vunpack.c.l.b16 %v5501
    %v5506 = vunpack.c.h.b16 %v5500
    %v5507 = vunpack.c.h.b16 %v5501
    %v5508 = vpack.c.b16 %v5505, %v5504
    %v5509 = vpack.c.b16 %v5507, %v5506
    %5512 = vst [vmem:[%s3] sm:$0xff] %v5508
    %5513 = vst [vmem:[%s3 + $0x8] sm:$0xff] %v5509
    // Predicated region
    $region22: #{net_forward.4} parent=1 // pred_check
      _
    $region23: #{net_forward.4} parent=1 // pred_check_branch
      %5515 = sbr.rel (0) target = $region25
    $region24: #{net_forward.4} parent=1 // pred_region
      _
    $region25: #{net_forward.4} parent=1 // pred_fallthru
      _
    // Predicated region
    $region26: #{net_forward.4} parent=1 // pred_check
      _
    $region27: #{net_forward.4} parent=1 // pred_check_branch
      %5517 = sbr.rel (0) target = $region29
    $region28: #{net_forward.4} parent=1 // pred_region
      _
    $region29: #{net_forward.4} parent=1 // pred_fallthru
      _
    %5518 = vsyncpa [#allocation3], 1
    %5519 = vsyncpa [#allocation5], 1

</llo_original>
